<compile_context>
chip_gen: v6e
topology: v6e:2x2x1
jax: 0.10.0
libtpu: 0.0.40
codegen_flags: <defaults>
</compile_context>

<pallas_src>
import functools
import math

import numpy as np
import jax
import jax.numpy as jnp
from jax.experimental import pallas as pl
from jax.experimental.pallas import tpu as pltpu

EPS = 1e-5          # torch.nn.LayerNorm default
PAD_LANES = 128     # lane-dense padding for the two head outputs


# ---------------------------- in-kernel building blocks ----------------------------

def _ln(x, g, b, eps):
    mu = jnp.mean(x, axis=-1, keepdims=True)
    var = jnp.mean(jnp.square(x - mu), axis=-1, keepdims=True)
    return (x - mu) * jax.lax.rsqrt(var + eps) * g + b


def _mha_ln(x, kv, p, bias, *, H, dk, dv, eps):
    """LayerNorm(MultiHeadAttention(x, kv, kv) + x) over all B*L rows at once.

    x: (B*Lq, D), kv: (B*Lk, D).  `bias` is a precomputed (B*Lq, B*Lk) additive mask
    that is -1e9 across batches (block-diagonal) and above the diagonal for causal
    self-attention (mask_subsequent).  Note: -1e9, not -inf — rows are never fully
    masked here (the diagonal is always allowed).  1/sqrt(dk) is folded into wq/bq.
    """
    # Fat projections for all rows at once (hoisted out of any batch loop).
    q = jnp.dot(x, p["wq"], preferred_element_type=jnp.float32) + p["bq"]        # (M, H*dk)
    kvp = jnp.dot(kv, p["wkv"], preferred_element_type=jnp.float32) + p["bkv"]   # (N, H*(dk+dv))

    out = p["bo"] + x  # residual + output bias; per-head output projections accumulate in
    for h in range(H):
        qh = q[:, h * dk:(h + 1) * dk]
        kh = kvp[:, h * dk:(h + 1) * dk]
        vh = kvp[:, H * dk + h * dv: H * dk + (h + 1) * dv]
        # q @ k^T without an explicit transpose: contract the last dims of both.
        s = jax.lax.dot_general(qh, kh, (((1,), (1,)), ((), ())),
                                preferred_element_type=jnp.float32) + bias       # (M, N)
        s = s - jnp.max(s, axis=-1, keepdims=True)
        e = jnp.exp(s)
        # approx reciprocal runs on the EUP slot; swap to exact division if bit-level
        # parity with a PyTorch reference is ever required.
        pr = e * pl.reciprocal(jnp.sum(e, axis=-1, keepdims=True), approx=True)
        ctx = jnp.dot(pr, vh, preferred_element_type=jnp.float32)                # (M, dv)
        out = out + jnp.dot(ctx, p["wo"][h * dv:(h + 1) * dv, :],
                            preferred_element_type=jnp.float32)                  # (M, D)
    return _ln(out, p["ln_g"], p["ln_b"], eps)


def _ffn_ln(x, p, eps):
    h = jnp.maximum(jnp.dot(x, p["w1"], preferred_element_type=jnp.float32) + p["b1"], 0.0)
    y = jnp.dot(h, p["w2"], preferred_element_type=jnp.float32) + p["b2"]
    return _ln(y + x, p["ln_g"], p["ln_b"], eps)


# ---------------------------- the single fused kernel ----------------------------

def _ctransformer_kernel(*refs, B, Li, Lo, D, H, dk, dv, n_layers, eps):
    it = iter(refs)
    v = lambda: next(it)[...]

    # --- unpack inputs (order must match _flatten_inputs) ---
    x_in, y_in = v(), v()
    pe_enc, pe_dec = v(), v()
    bias_enc, bias_dec_self, bias_dec_enc = v(), v(), v()
    src_w, src_b, tgt_w, tgt_b = v(), v(), v(), v()

    def take_attn():
        return {"wq": v(), "bq": v(), "wkv": v(), "bkv": v(),
                "wo": v(), "bo": v(), "ln_g": v(), "ln_b": v()}

    def take_ffn():
        return {"w1": v(), "b1": v(), "w2": v(), "b2": v(), "ln_g": v(), "ln_b": v()}

    enc_layers = [(take_attn(), take_ffn()) for _ in range(n_layers)]
    dec_layers = [(take_attn(), take_attn(), take_ffn()) for _ in range(n_layers)]
    wfc, bfc, wp, bp = v(), v(), v(), v()
    dec_ref, long_ref, enc_ref = next(it), next(it), next(it)

    # --- encoder: input projection + sinusoidal PE, then n_layers x (MHA+LN, FFN+LN) ---
    x = jnp.dot(x_in, src_w, preferred_element_type=jnp.float32) + src_b + pe_enc
    for ap, fp in enc_layers:
        x = _mha_ln(x, x, ap, bias_enc, H=H, dk=dk, dv=dv, eps=eps)
        x = _ffn_ln(x, fp, eps)
    enc_ref[...] = x                                                   # (B*Li, D) latent

    # --- decoder: output projection + PE, then n_layers x (causal self-attn, enc-attn, FFN) ---
    y = jnp.dot(y_in, tgt_w, preferred_element_type=jnp.float32) + tgt_b + pe_dec
    for sp, ep, fp in dec_layers:
        y = _mha_ln(y, y, sp, bias_dec_self, H=H, dk=dk, dv=dv, eps=eps)   # mask_subsequent
        y = _mha_ln(y, x, ep, bias_dec_enc, H=H, dk=dk, dv=dv, eps=eps)
        y = _ffn_ln(y, fp, eps)

    # --- heads (lane-dense 128-wide outputs; wrapper slices real columns) ---
    dec_ref[...] = jnp.dot(y, wfc, preferred_element_type=jnp.float32) + bfc    # (B*Lo, 128)

    # predictor on flatten(enc_out): long[b] = sum_i enc_out[b*Li+i, :] @ wp[i*D:(i+1)*D, :]
    # (decomposed to avoid an in-kernel (B*Li, D) -> (B, Li*D) relayout; trivial FLOPs here)
    for b in range(B):
        acc = bp                                                                 # (1, 128)
        for i in range(Li):
            row = x[b * Li + i: b * Li + i + 1, :]                               # (1, D)
            acc = acc + jnp.dot(row, wp[i * D:(i + 1) * D, :],
                                preferred_element_type=jnp.float32)
        long_ref[b:b + 1, :] = acc


# ---------------------------- wrapper (one pallas_call per forward) ----------------------------

def _flatten_inputs(params, x2d, y2d, pe_enc, pe_dec, bias_enc, bias_dec_self, bias_dec_enc):
    flat = [x2d, y2d, pe_enc, pe_dec, bias_enc, bias_dec_self, bias_dec_enc,
            params["src_proj"]["w"], params["src_proj"]["b"],
            params["tgt_proj"]["w"], params["tgt_proj"]["b"]]

    def add_attn(p):
        flat.extend([p["wq"], p["bq"], p["wkv"], p["bkv"],
                     p["wo"], p["bo"], p["ln_g"], p["ln_b"]])

    def add_ffn(p):
        flat.extend([p["w1"], p["b1"], p["w2"], p["b2"], p["ln_g"], p["ln_b"]])

    for lp in params["enc_layers"]:
        add_attn(lp["attn"]); add_ffn(lp["ffn"])
    for lp in params["dec_layers"]:
        add_attn(lp["self_attn"]); add_attn(lp["enc_attn"]); add_ffn(lp["ffn"])
    flat.extend([params["fc"]["w"], params["fc"]["b"],
                 params["predictor"]["w"], params["predictor"]["b"]])
    return flat


def _block_bias(B, Lq, Lk, causal):
    """Additive (B*Lq, B*Lk) bias: 0 where attention allowed, -1e9 otherwise.
    Block-diagonal over batches; optionally causal within a batch (mask_subsequent)."""
    r = np.arange(B * Lq)[:, None]
    c = np.arange(B * Lk)[None, :]
    allowed = (r // Lq) == (c // Lk)
    if causal:
        allowed = allowed & ((r % Lq) >= (c % Lk))
    return np.where(allowed, 0.0, -1e9).astype(np.float32)


def sinusoid_pe(L, D):
    pos = np.arange(L)[:, None].astype(np.float64)
    i = np.arange(D)[None, :]
    angle = pos / np.power(10000.0, (2 * (i // 2)) / D)
    pe = np.zeros((L, D))
    pe[:, 0::2] = np.sin(angle[:, 0::2])
    pe[:, 1::2] = np.cos(angle[:, 1::2])
    return pe.astype(np.float32)


def ctransformer_forward(params, input_seq, output_seq, cfg, return_latent=False):
    B, Li, din = input_seq.shape
    _, Lo, dout = output_seq.shape
    D, H, dk, dv = cfg["D"], cfg["H"], cfg["dk"], cfg["dv"]
    n_layers = cfg["n_layers"]
    dim_output, dim_class = cfg["dim_output"], cfg["dim_class"]

    # trace-time constants (numpy): positional encodings tiled over batch, attention biases
    pe_enc = jnp.asarray(np.tile(sinusoid_pe(Li, D), (B, 1)))
    pe_dec = jnp.asarray(np.tile(sinusoid_pe(Lo, D), (B, 1)))
    bias_enc = jnp.asarray(_block_bias(B, Li, Li, causal=False))
    bias_dec_self = jnp.asarray(_block_bias(B, Lo, Lo, causal=True))
    bias_dec_enc = jnp.asarray(_block_bias(B, Lo, Li, causal=False))

    flat = _flatten_inputs(params,
                           input_seq.reshape(B * Li, din),
                           output_seq.reshape(B * Lo, dout),
                           pe_enc, pe_dec, bias_enc, bias_dec_self, bias_dec_enc)

    kern = functools.partial(_ctransformer_kernel, B=B, Li=Li, Lo=Lo, D=D,
                             H=H, dk=dk, dv=dv, n_layers=n_layers, eps=EPS)
    vmem = pl.BlockSpec(memory_space=pltpu.MemorySpace.VMEM)

    dec_pad, long_pad, enc_out = pl.pallas_call(
        kern,
        out_shape=(jax.ShapeDtypeStruct((B * Lo, PAD_LANES), jnp.float32),
                   jax.ShapeDtypeStruct((B, PAD_LANES), jnp.float32),
                   jax.ShapeDtypeStruct((B * Li, D), jnp.float32)),
        in_specs=[vmem] * len(flat),
        out_specs=(vmem, vmem, vmem),
    )(*flat)

    dec_out = dec_pad[:, :dim_output].reshape(B, Lo, dim_output)
    long_out = long_pad[:, :dim_class]
    if return_latent:
        return dec_out, long_out, enc_out.reshape(B, Li, D)
    return dec_out, long_out


# ---------------------------- parameter init (plain JAX) ----------------------------

def _dense(key, din, dout, scale=0.02):
    return {"w": scale * jax.random.normal(key, (din, dout), jnp.float32),
            "b": jnp.zeros((1, dout), jnp.float32)}


def _dense_padded(key, din, dout, scale=0.02):
    # lane-densified head: real weights occupy the first `dout` of 128 output lanes,
    # the rest are zero and sliced off in the wrapper (full (8,128) stores in-kernel).
    w = jnp.zeros((din, PAD_LANES), jnp.float32)
    w = w.at[:, :dout].set(scale * jax.random.normal(key, (din, dout), jnp.float32))
    return {"w": w, "b": jnp.zeros((1, PAD_LANES), jnp.float32)}


def init_mha(key, D, H, dk, dv, scale=0.02):
    ks = jax.random.split(key, 3)
    inv = 1.0 / math.sqrt(dk)  # 1/sqrt(dk) folded into Q projection ONCE at init
    return {"wq": (scale * inv) * jax.random.normal(ks[0], (D, H * dk), jnp.float32),
            "bq": jnp.zeros((1, H * dk), jnp.float32),
            "wkv": scale * jax.random.normal(ks[1], (D, H * (dk + dv)), jnp.float32),
            "bkv": jnp.zeros((1, H * (dk + dv)), jnp.float32),
            "wo": scale * jax.random.normal(ks[2], (H * dv, D), jnp.float32),
            "bo": jnp.zeros((1, D), jnp.float32),
            "ln_g": jnp.ones((1, D), jnp.float32),
            "ln_b": jnp.zeros((1, D), jnp.float32)}


def init_ffn(key, D, Dh, scale=0.02):
    k1, k2 = jax.random.split(key)
    return {"w1": scale * jax.random.normal(k1, (D, Dh), jnp.float32),
            "b1": jnp.zeros((1, Dh), jnp.float32),
            "w2": scale * jax.random.normal(k2, (Dh, D), jnp.float32),
            "b2": jnp.zeros((1, D), jnp.float32),
            "ln_g": jnp.ones((1, D), jnp.float32),
            "ln_b": jnp.zeros((1, D), jnp.float32)}


def init_model(key, dim_input, dim_output, D, n_layers, H, dk, dv, Dh, dim_class, t0):
    kit = iter(jax.random.split(key, 64))
    return {
        "src_proj": _dense(next(kit), dim_input, D),
        "tgt_proj": _dense(next(kit), dim_output, D),
        "enc_layers": [{"attn": init_mha(next(kit), D, H, dk, dv),
                        "ffn": init_ffn(next(kit), D, Dh)} for _ in range(n_layers)],
        "dec_layers": [{"self_attn": init_mha(next(kit), D, H, dk, dv),
                        "enc_attn": init_mha(next(kit), D, H, dk, dv),
                        "ffn": init_ffn(next(kit), D, Dh)} for _ in range(n_layers)],
        "fc": _dense_padded(next(kit), D, dim_output),
        "predictor": _dense_padded(next(kit), D * t0, dim_class),
    }


# ---------------------------- main ----------------------------

if __name__ == "__main__":
    # small config consistent with the module's constructor
    dim_input, dim_output, dim_class = 4, 3, 3
    D, n_layers, H, dk, dv, Dh, t0 = 32, 2, 2, 8, 8, 64, 8
    Lo, B = 8, 2

    key = jax.random.PRNGKey(0)
    kp, ki, ko = jax.random.split(key, 3)
    params = init_model(kp, dim_input, dim_output, D, n_layers, H, dk, dv, Dh, dim_class, t0)

    input_seq = jax.random.normal(ki, (B, t0, dim_input), jnp.float32)    # encoder input, len = t0
    output_seq = jax.random.normal(ko, (B, Lo, dim_output), jnp.float32)  # decoder input

    cfg = {"D": D, "H": H, "dk": dk, "dv": dv, "n_layers": n_layers,
           "dim_output": dim_output, "dim_class": dim_class}
    fwd = jax.jit(lambda p, a, b: ctransformer_forward(p, a, b, cfg))

    dec_out, long_out = fwd(params, input_seq, output_seq)
    jax.block_until_ready((dec_out, long_out))

    assert dec_out.shape == (B, Lo, dim_output)
    assert long_out.shape == (B, dim_class)
    assert bool(jnp.all(jnp.isfinite(dec_out))) and bool(jnp.all(jnp.isfinite(long_out)))
    print("KERNEL_OK")
</pallas_src>

<mosaic_0001>
module attributes {stable_mosaic.version = 11 : i64} {
  func.func @_ctransformer_kernel(%arg0: memref<16x4xf32, #tpu.memory_space<vmem>>, %arg1: memref<16x3xf32, #tpu.memory_space<vmem>>, %arg2: memref<16x32xf32, #tpu.memory_space<vmem>>, %arg3: memref<16x32xf32, #tpu.memory_space<vmem>>, %arg4: memref<16x16xf32, #tpu.memory_space<vmem>>, %arg5: memref<16x16xf32, #tpu.memory_space<vmem>>, %arg6: memref<16x16xf32, #tpu.memory_space<vmem>>, %arg7: memref<4x32xf32, #tpu.memory_space<vmem>>, %arg8: memref<1x32xf32, #tpu.memory_space<vmem>>, %arg9: memref<3x32xf32, #tpu.memory_space<vmem>>, %arg10: memref<1x32xf32, #tpu.memory_space<vmem>>, %arg11: memref<32x16xf32, #tpu.memory_space<vmem>>, %arg12: memref<1x16xf32, #tpu.memory_space<vmem>>, %arg13: memref<32x32xf32, #tpu.memory_space<vmem>>, %arg14: memref<1x32xf32, #tpu.memory_space<vmem>>, %arg15: memref<16x32xf32, #tpu.memory_space<vmem>>, %arg16: memref<1x32xf32, #tpu.memory_space<vmem>>, %arg17: memref<1x32xf32, #tpu.memory_space<vmem>>, %arg18: memref<1x32xf32, #tpu.memory_space<vmem>>, %arg19: memref<32x64xf32, #tpu.memory_space<vmem>>, %arg20: memref<1x64xf32, #tpu.memory_space<vmem>>, %arg21: memref<64x32xf32, #tpu.memory_space<vmem>>, %arg22: memref<1x32xf32, #tpu.memory_space<vmem>>, %arg23: memref<1x32xf32, #tpu.memory_space<vmem>>, %arg24: memref<1x32xf32, #tpu.memory_space<vmem>>, %arg25: memref<32x16xf32, #tpu.memory_space<vmem>>, %arg26: memref<1x16xf32, #tpu.memory_space<vmem>>, %arg27: memref<32x32xf32, #tpu.memory_space<vmem>>, %arg28: memref<1x32xf32, #tpu.memory_space<vmem>>, %arg29: memref<16x32xf32, #tpu.memory_space<vmem>>, %arg30: memref<1x32xf32, #tpu.memory_space<vmem>>, %arg31: memref<1x32xf32, #tpu.memory_space<vmem>>, %arg32: memref<1x32xf32, #tpu.memory_space<vmem>>, %arg33: memref<32x64xf32, #tpu.memory_space<vmem>>, %arg34: memref<1x64xf32, #tpu.memory_space<vmem>>, %arg35: memref<64x32xf32, #tpu.memory_space<vmem>>, %arg36: memref<1x32xf32, #tpu.memory_space<vmem>>, %arg37: memref<1x32xf32, #tpu.memory_space<vmem>>, %arg38: memref<1x32xf32, #tpu.memory_space<vmem>>, %arg39: memref<32x16xf32, #tpu.memory_space<vmem>>, %arg40: memref<1x16xf32, #tpu.memory_space<vmem>>, %arg41: memref<32x32xf32, #tpu.memory_space<vmem>>, %arg42: memref<1x32xf32, #tpu.memory_space<vmem>>, %arg43: memref<16x32xf32, #tpu.memory_space<vmem>>, %arg44: memref<1x32xf32, #tpu.memory_space<vmem>>, %arg45: memref<1x32xf32, #tpu.memory_space<vmem>>, %arg46: memref<1x32xf32, #tpu.memory_space<vmem>>, %arg47: memref<32x16xf32, #tpu.memory_space<vmem>>, %arg48: memref<1x16xf32, #tpu.memory_space<vmem>>, %arg49: memref<32x32xf32, #tpu.memory_space<vmem>>, %arg50: memref<1x32xf32, #tpu.memory_space<vmem>>, %arg51: memref<16x32xf32, #tpu.memory_space<vmem>>, %arg52: memref<1x32xf32, #tpu.memory_space<vmem>>, %arg53: memref<1x32xf32, #tpu.memory_space<vmem>>, %arg54: memref<1x32xf32, #tpu.memory_space<vmem>>, %arg55: memref<32x64xf32, #tpu.memory_space<vmem>>, %arg56: memref<1x64xf32, #tpu.memory_space<vmem>>, %arg57: memref<64x32xf32, #tpu.memory_space<vmem>>, %arg58: memref<1x32xf32, #tpu.memory_space<vmem>>, %arg59: memref<1x32xf32, #tpu.memory_space<vmem>>, %arg60: memref<1x32xf32, #tpu.memory_space<vmem>>, %arg61: memref<32x16xf32, #tpu.memory_space<vmem>>, %arg62: memref<1x16xf32, #tpu.memory_space<vmem>>, %arg63: memref<32x32xf32, #tpu.memory_space<vmem>>, %arg64: memref<1x32xf32, #tpu.memory_space<vmem>>, %arg65: memref<16x32xf32, #tpu.memory_space<vmem>>, %arg66: memref<1x32xf32, #tpu.memory_space<vmem>>, %arg67: memref<1x32xf32, #tpu.memory_space<vmem>>, %arg68: memref<1x32xf32, #tpu.memory_space<vmem>>, %arg69: memref<32x16xf32, #tpu.memory_space<vmem>>, %arg70: memref<1x16xf32, #tpu.memory_space<vmem>>, %arg71: memref<32x32xf32, #tpu.memory_space<vmem>>, %arg72: memref<1x32xf32, #tpu.memory_space<vmem>>, %arg73: memref<16x32xf32, #tpu.memory_space<vmem>>, %arg74: memref<1x32xf32, #tpu.memory_space<vmem>>, %arg75: memref<1x32xf32, #tpu.memory_space<vmem>>, %arg76: memref<1x32xf32, #tpu.memory_space<vmem>>, %arg77: memref<32x64xf32, #tpu.memory_space<vmem>>, %arg78: memref<1x64xf32, #tpu.memory_space<vmem>>, %arg79: memref<64x32xf32, #tpu.memory_space<vmem>>, %arg80: memref<1x32xf32, #tpu.memory_space<vmem>>, %arg81: memref<1x32xf32, #tpu.memory_space<vmem>>, %arg82: memref<1x32xf32, #tpu.memory_space<vmem>>, %arg83: memref<32x128xf32, #tpu.memory_space<vmem>>, %arg84: memref<1x128xf32, #tpu.memory_space<vmem>>, %arg85: memref<256x128xf32, #tpu.memory_space<vmem>>, %arg86: memref<1x128xf32, #tpu.memory_space<vmem>>, %arg87: memref<16x128xf32, #tpu.memory_space<vmem>>, %arg88: memref<2x128xf32, #tpu.memory_space<vmem>>, %arg89: memref<16x32xf32, #tpu.memory_space<vmem>>) attributes {dimension_semantics = [], scalar_prefetch = 0 : i64, scratch_operands = 0 : i64, tpu.core_type = #tpu.core_type<tc>} {
    %c0 = arith.constant 0 : index
    %c0_0 = arith.constant 0 : index
    %0 = vector.load %arg0[%c0, %c0_0] : memref<16x4xf32, #tpu.memory_space<vmem>>, vector<16x4xf32>
    %c0_1 = arith.constant 0 : index
    %c0_2 = arith.constant 0 : index
    %1 = vector.load %arg1[%c0_1, %c0_2] : memref<16x3xf32, #tpu.memory_space<vmem>>, vector<16x3xf32>
    %c0_3 = arith.constant 0 : index
    %c0_4 = arith.constant 0 : index
    %2 = vector.load %arg2[%c0_3, %c0_4] : memref<16x32xf32, #tpu.memory_space<vmem>>, vector<16x32xf32>
    %c0_5 = arith.constant 0 : index
    %c0_6 = arith.constant 0 : index
    %3 = vector.load %arg3[%c0_5, %c0_6] : memref<16x32xf32, #tpu.memory_space<vmem>>, vector<16x32xf32>
    %c0_7 = arith.constant 0 : index
    %c0_8 = arith.constant 0 : index
    %4 = vector.load %arg4[%c0_7, %c0_8] : memref<16x16xf32, #tpu.memory_space<vmem>>, vector<16x16xf32>
    %c0_9 = arith.constant 0 : index
    %c0_10 = arith.constant 0 : index
    %5 = vector.load %arg5[%c0_9, %c0_10] : memref<16x16xf32, #tpu.memory_space<vmem>>, vector<16x16xf32>
    %c0_11 = arith.constant 0 : index
    %c0_12 = arith.constant 0 : index
    %6 = vector.load %arg6[%c0_11, %c0_12] : memref<16x16xf32, #tpu.memory_space<vmem>>, vector<16x16xf32>
    %c0_13 = arith.constant 0 : index
    %c0_14 = arith.constant 0 : index
    %7 = vector.load %arg7[%c0_13, %c0_14] : memref<4x32xf32, #tpu.memory_space<vmem>>, vector<4x32xf32>
    %c0_15 = arith.constant 0 : index
    %c0_16 = arith.constant 0 : index
    %8 = vector.load %arg8[%c0_15, %c0_16] : memref<1x32xf32, #tpu.memory_space<vmem>>, vector<1x32xf32>
    %c0_17 = arith.constant 0 : index
    %c0_18 = arith.constant 0 : index
    %9 = vector.load %arg9[%c0_17, %c0_18] : memref<3x32xf32, #tpu.memory_space<vmem>>, vector<3x32xf32>
    %c0_19 = arith.constant 0 : index
    %c0_20 = arith.constant 0 : index
    %10 = vector.load %arg10[%c0_19, %c0_20] : memref<1x32xf32, #tpu.memory_space<vmem>>, vector<1x32xf32>
    %c0_21 = arith.constant 0 : index
    %c0_22 = arith.constant 0 : index
    %11 = vector.load %arg11[%c0_21, %c0_22] : memref<32x16xf32, #tpu.memory_space<vmem>>, vector<32x16xf32>
    %c0_23 = arith.constant 0 : index
    %c0_24 = arith.constant 0 : index
    %12 = vector.load %arg12[%c0_23, %c0_24] : memref<1x16xf32, #tpu.memory_space<vmem>>, vector<1x16xf32>
    %c0_25 = arith.constant 0 : index
    %c0_26 = arith.constant 0 : index
    %13 = vector.load %arg13[%c0_25, %c0_26] : memref<32x32xf32, #tpu.memory_space<vmem>>, vector<32x32xf32>
    %c0_27 = arith.constant 0 : index
    %c0_28 = arith.constant 0 : index
    %14 = vector.load %arg14[%c0_27, %c0_28] : memref<1x32xf32, #tpu.memory_space<vmem>>, vector<1x32xf32>
    %c0_29 = arith.constant 0 : index
    %c0_30 = arith.constant 0 : index
    %15 = vector.load %arg15[%c0_29, %c0_30] : memref<16x32xf32, #tpu.memory_space<vmem>>, vector<16x32xf32>
    %c0_31 = arith.constant 0 : index
    %c0_32 = arith.constant 0 : index
    %16 = vector.load %arg16[%c0_31, %c0_32] : memref<1x32xf32, #tpu.memory_space<vmem>>, vector<1x32xf32>
    %c0_33 = arith.constant 0 : index
    %c0_34 = arith.constant 0 : index
    %17 = vector.load %arg17[%c0_33, %c0_34] : memref<1x32xf32, #tpu.memory_space<vmem>>, vector<1x32xf32>
    %c0_35 = arith.constant 0 : index
    %c0_36 = arith.constant 0 : index
    %18 = vector.load %arg18[%c0_35, %c0_36] : memref<1x32xf32, #tpu.memory_space<vmem>>, vector<1x32xf32>
    %c0_37 = arith.constant 0 : index
    %c0_38 = arith.constant 0 : index
    %19 = vector.load %arg19[%c0_37, %c0_38] : memref<32x64xf32, #tpu.memory_space<vmem>>, vector<32x64xf32>
    %c0_39 = arith.constant 0 : index
    %c0_40 = arith.constant 0 : index
    %20 = vector.load %arg20[%c0_39, %c0_40] : memref<1x64xf32, #tpu.memory_space<vmem>>, vector<1x64xf32>
    %c0_41 = arith.constant 0 : index
    %c0_42 = arith.constant 0 : index
    %21 = vector.load %arg21[%c0_41, %c0_42] : memref<64x32xf32, #tpu.memory_space<vmem>>, vector<64x32xf32>
    %c0_43 = arith.constant 0 : index
    %c0_44 = arith.constant 0 : index
    %22 = vector.load %arg22[%c0_43, %c0_44] : memref<1x32xf32, #tpu.memory_space<vmem>>, vector<1x32xf32>
    %c0_45 = arith.constant 0 : index
    %c0_46 = arith.constant 0 : index
    %23 = vector.load %arg23[%c0_45, %c0_46] : memref<1x32xf32, #tpu.memory_space<vmem>>, vector<1x32xf32>
    %c0_47 = arith.constant 0 : index
    %c0_48 = arith.constant 0 : index
    %24 = vector.load %arg24[%c0_47, %c0_48] : memref<1x32xf32, #tpu.memory_space<vmem>>, vector<1x32xf32>
    %c0_49 = arith.constant 0 : index
    %c0_50 = arith.constant 0 : index
    %25 = vector.load %arg25[%c0_49, %c0_50] : memref<32x16xf32, #tpu.memory_space<vmem>>, vector<32x16xf32>
    %c0_51 = arith.constant 0 : index
    %c0_52 = arith.constant 0 : index
    %26 = vector.load %arg26[%c0_51, %c0_52] : memref<1x16xf32, #tpu.memory_space<vmem>>, vector<1x16xf32>
    %c0_53 = arith.constant 0 : index
    %c0_54 = arith.constant 0 : index
    %27 = vector.load %arg27[%c0_53, %c0_54] : memref<32x32xf32, #tpu.memory_space<vmem>>, vector<32x32xf32>
    %c0_55 = arith.constant 0 : index
    %c0_56 = arith.constant 0 : index
    %28 = vector.load %arg28[%c0_55, %c0_56] : memref<1x32xf32, #tpu.memory_space<vmem>>, vector<1x32xf32>
    %c0_57 = arith.constant 0 : index
    %c0_58 = arith.constant 0 : index
    %29 = vector.load %arg29[%c0_57, %c0_58] : memref<16x32xf32, #tpu.memory_space<vmem>>, vector<16x32xf32>
    %c0_59 = arith.constant 0 : index
    %c0_60 = arith.constant 0 : index
    %30 = vector.load %arg30[%c0_59, %c0_60] : memref<1x32xf32, #tpu.memory_space<vmem>>, vector<1x32xf32>
    %c0_61 = arith.constant 0 : index
    %c0_62 = arith.constant 0 : index
    %31 = vector.load %arg31[%c0_61, %c0_62] : memref<1x32xf32, #tpu.memory_space<vmem>>, vector<1x32xf32>
    %c0_63 = arith.constant 0 : index
    %c0_64 = arith.constant 0 : index
    %32 = vector.load %arg32[%c0_63, %c0_64] : memref<1x32xf32, #tpu.memory_space<vmem>>, vector<1x32xf32>
    %c0_65 = arith.constant 0 : index
    %c0_66 = arith.constant 0 : index
    %33 = vector.load %arg33[%c0_65, %c0_66] : memref<32x64xf32, #tpu.memory_space<vmem>>, vector<32x64xf32>
    %c0_67 = arith.constant 0 : index
    %c0_68 = arith.constant 0 : index
    %34 = vector.load %arg34[%c0_67, %c0_68] : memref<1x64xf32, #tpu.memory_space<vmem>>, vector<1x64xf32>
    %c0_69 = arith.constant 0 : index
    %c0_70 = arith.constant 0 : index
    %35 = vector.load %arg35[%c0_69, %c0_70] : memref<64x32xf32, #tpu.memory_space<vmem>>, vector<64x32xf32>
    %c0_71 = arith.constant 0 : index
    %c0_72 = arith.constant 0 : index
    %36 = vector.load %arg36[%c0_71, %c0_72] : memref<1x32xf32, #tpu.memory_space<vmem>>, vector<1x32xf32>
    %c0_73 = arith.constant 0 : index
    %c0_74 = arith.constant 0 : index
    %37 = vector.load %arg37[%c0_73, %c0_74] : memref<1x32xf32, #tpu.memory_space<vmem>>, vector<1x32xf32>
    %c0_75 = arith.constant 0 : index
    %c0_76 = arith.constant 0 : index
    %38 = vector.load %arg38[%c0_75, %c0_76] : memref<1x32xf32, #tpu.memory_space<vmem>>, vector<1x32xf32>
    %c0_77 = arith.constant 0 : index
    %c0_78 = arith.constant 0 : index
    %39 = vector.load %arg39[%c0_77, %c0_78] : memref<32x16xf32, #tpu.memory_space<vmem>>, vector<32x16xf32>
    %c0_79 = arith.constant 0 : index
    %c0_80 = arith.constant 0 : index
    %40 = vector.load %arg40[%c0_79, %c0_80] : memref<1x16xf32, #tpu.memory_space<vmem>>, vector<1x16xf32>
    %c0_81 = arith.constant 0 : index
    %c0_82 = arith.constant 0 : index
    %41 = vector.load %arg41[%c0_81, %c0_82] : memref<32x32xf32, #tpu.memory_space<vmem>>, vector<32x32xf32>
    %c0_83 = arith.constant 0 : index
    %c0_84 = arith.constant 0 : index
    %42 = vector.load %arg42[%c0_83, %c0_84] : memref<1x32xf32, #tpu.memory_space<vmem>>, vector<1x32xf32>
    %c0_85 = arith.constant 0 : index
    %c0_86 = arith.constant 0 : index
    %43 = vector.load %arg43[%c0_85, %c0_86] : memref<16x32xf32, #tpu.memory_space<vmem>>, vector<16x32xf32>
    %c0_87 = arith.constant 0 : index
    %c0_88 = arith.constant 0 : index
    %44 = vector.load %arg44[%c0_87, %c0_88] : memref<1x32xf32, #tpu.memory_space<vmem>>, vector<1x32xf32>
    %c0_89 = arith.constant 0 : index
    %c0_90 = arith.constant 0 : index
    %45 = vector.load %arg45[%c0_89, %c0_90] : memref<1x32xf32, #tpu.memory_space<vmem>>, vector<1x32xf32>
    %c0_91 = arith.constant 0 : index
    %c0_92 = arith.constant 0 : index
    %46 = vector.load %arg46[%c0_91, %c0_92] : memref<1x32xf32, #tpu.memory_space<vmem>>, vector<1x32xf32>
    %c0_93 = arith.constant 0 : index
    %c0_94 = arith.constant 0 : index
    %47 = vector.load %arg47[%c0_93, %c0_94] : memref<32x16xf32, #tpu.memory_space<vmem>>, vector<32x16xf32>
    %c0_95 = arith.constant 0 : index
    %c0_96 = arith.constant 0 : index
    %48 = vector.load %arg48[%c0_95, %c0_96] : memref<1x16xf32, #tpu.memory_space<vmem>>, vector<1x16xf32>
    %c0_97 = arith.constant 0 : index
    %c0_98 = arith.constant 0 : index
    %49 = vector.load %arg49[%c0_97, %c0_98] : memref<32x32xf32, #tpu.memory_space<vmem>>, vector<32x32xf32>
    %c0_99 = arith.constant 0 : index
    %c0_100 = arith.constant 0 : index
    %50 = vector.load %arg50[%c0_99, %c0_100] : memref<1x32xf32, #tpu.memory_space<vmem>>, vector<1x32xf32>
    %c0_101 = arith.constant 0 : index
    %c0_102 = arith.constant 0 : index
    %51 = vector.load %arg51[%c0_101, %c0_102] : memref<16x32xf32, #tpu.memory_space<vmem>>, vector<16x32xf32>
    %c0_103 = arith.constant 0 : index
    %c0_104 = arith.constant 0 : index
    %52 = vector.load %arg52[%c0_103, %c0_104] : memref<1x32xf32, #tpu.memory_space<vmem>>, vector<1x32xf32>
    %c0_105 = arith.constant 0 : index
    %c0_106 = arith.constant 0 : index
    %53 = vector.load %arg53[%c0_105, %c0_106] : memref<1x32xf32, #tpu.memory_space<vmem>>, vector<1x32xf32>
    %c0_107 = arith.constant 0 : index
    %c0_108 = arith.constant 0 : index
    %54 = vector.load %arg54[%c0_107, %c0_108] : memref<1x32xf32, #tpu.memory_space<vmem>>, vector<1x32xf32>
    %c0_109 = arith.constant 0 : index
    %c0_110 = arith.constant 0 : index
    %55 = vector.load %arg55[%c0_109, %c0_110] : memref<32x64xf32, #tpu.memory_space<vmem>>, vector<32x64xf32>
    %c0_111 = arith.constant 0 : index
    %c0_112 = arith.constant 0 : index
    %56 = vector.load %arg56[%c0_111, %c0_112] : memref<1x64xf32, #tpu.memory_space<vmem>>, vector<1x64xf32>
    %c0_113 = arith.constant 0 : index
    %c0_114 = arith.constant 0 : index
    %57 = vector.load %arg57[%c0_113, %c0_114] : memref<64x32xf32, #tpu.memory_space<vmem>>, vector<64x32xf32>
    %c0_115 = arith.constant 0 : index
    %c0_116 = arith.constant 0 : index
    %58 = vector.load %arg58[%c0_115, %c0_116] : memref<1x32xf32, #tpu.memory_space<vmem>>, vector<1x32xf32>
    %c0_117 = arith.constant 0 : index
    %c0_118 = arith.constant 0 : index
    %59 = vector.load %arg59[%c0_117, %c0_118] : memref<1x32xf32, #tpu.memory_space<vmem>>, vector<1x32xf32>
    %c0_119 = arith.constant 0 : index
    %c0_120 = arith.constant 0 : index
    %60 = vector.load %arg60[%c0_119, %c0_120] : memref<1x32xf32, #tpu.memory_space<vmem>>, vector<1x32xf32>
    %c0_121 = arith.constant 0 : index
    %c0_122 = arith.constant 0 : index
    %61 = vector.load %arg61[%c0_121, %c0_122] : memref<32x16xf32, #tpu.memory_space<vmem>>, vector<32x16xf32>
    %c0_123 = arith.constant 0 : index
    %c0_124 = arith.constant 0 : index
    %62 = vector.load %arg62[%c0_123, %c0_124] : memref<1x16xf32, #tpu.memory_space<vmem>>, vector<1x16xf32>
    %c0_125 = arith.constant 0 : index
    %c0_126 = arith.constant 0 : index
    %63 = vector.load %arg63[%c0_125, %c0_126] : memref<32x32xf32, #tpu.memory_space<vmem>>, vector<32x32xf32>
    %c0_127 = arith.constant 0 : index
    %c0_128 = arith.constant 0 : index
    %64 = vector.load %arg64[%c0_127, %c0_128] : memref<1x32xf32, #tpu.memory_space<vmem>>, vector<1x32xf32>
    %c0_129 = arith.constant 0 : index
    %c0_130 = arith.constant 0 : index
    %65 = vector.load %arg65[%c0_129, %c0_130] : memref<16x32xf32, #tpu.memory_space<vmem>>, vector<16x32xf32>
    %c0_131 = arith.constant 0 : index
    %c0_132 = arith.constant 0 : index
    %66 = vector.load %arg66[%c0_131, %c0_132] : memref<1x32xf32, #tpu.memory_space<vmem>>, vector<1x32xf32>
    %c0_133 = arith.constant 0 : index
    %c0_134 = arith.constant 0 : index
    %67 = vector.load %arg67[%c0_133, %c0_134] : memref<1x32xf32, #tpu.memory_space<vmem>>, vector<1x32xf32>
    %c0_135 = arith.constant 0 : index
    %c0_136 = arith.constant 0 : index
    %68 = vector.load %arg68[%c0_135, %c0_136] : memref<1x32xf32, #tpu.memory_space<vmem>>, vector<1x32xf32>
    %c0_137 = arith.constant 0 : index
    %c0_138 = arith.constant 0 : index
    %69 = vector.load %arg69[%c0_137, %c0_138] : memref<32x16xf32, #tpu.memory_space<vmem>>, vector<32x16xf32>
    %c0_139 = arith.constant 0 : index
    %c0_140 = arith.constant 0 : index
    %70 = vector.load %arg70[%c0_139, %c0_140] : memref<1x16xf32, #tpu.memory_space<vmem>>, vector<1x16xf32>
    %c0_141 = arith.constant 0 : index
    %c0_142 = arith.constant 0 : index
    %71 = vector.load %arg71[%c0_141, %c0_142] : memref<32x32xf32, #tpu.memory_space<vmem>>, vector<32x32xf32>
    %c0_143 = arith.constant 0 : index
    %c0_144 = arith.constant 0 : index
    %72 = vector.load %arg72[%c0_143, %c0_144] : memref<1x32xf32, #tpu.memory_space<vmem>>, vector<1x32xf32>
    %c0_145 = arith.constant 0 : index
    %c0_146 = arith.constant 0 : index
    %73 = vector.load %arg73[%c0_145, %c0_146] : memref<16x32xf32, #tpu.memory_space<vmem>>, vector<16x32xf32>
    %c0_147 = arith.constant 0 : index
    %c0_148 = arith.constant 0 : index
    %74 = vector.load %arg74[%c0_147, %c0_148] : memref<1x32xf32, #tpu.memory_space<vmem>>, vector<1x32xf32>
    %c0_149 = arith.constant 0 : index
    %c0_150 = arith.constant 0 : index
    %75 = vector.load %arg75[%c0_149, %c0_150] : memref<1x32xf32, #tpu.memory_space<vmem>>, vector<1x32xf32>
    %c0_151 = arith.constant 0 : index
    %c0_152 = arith.constant 0 : index
    %76 = vector.load %arg76[%c0_151, %c0_152] : memref<1x32xf32, #tpu.memory_space<vmem>>, vector<1x32xf32>
    %c0_153 = arith.constant 0 : index
    %c0_154 = arith.constant 0 : index
    %77 = vector.load %arg77[%c0_153, %c0_154] : memref<32x64xf32, #tpu.memory_space<vmem>>, vector<32x64xf32>
    %c0_155 = arith.constant 0 : index
    %c0_156 = arith.constant 0 : index
    %78 = vector.load %arg78[%c0_155, %c0_156] : memref<1x64xf32, #tpu.memory_space<vmem>>, vector<1x64xf32>
    %c0_157 = arith.constant 0 : index
    %c0_158 = arith.constant 0 : index
    %79 = vector.load %arg79[%c0_157, %c0_158] : memref<64x32xf32, #tpu.memory_space<vmem>>, vector<64x32xf32>
    %c0_159 = arith.constant 0 : index
    %c0_160 = arith.constant 0 : index
    %80 = vector.load %arg80[%c0_159, %c0_160] : memref<1x32xf32, #tpu.memory_space<vmem>>, vector<1x32xf32>
    %c0_161 = arith.constant 0 : index
    %c0_162 = arith.constant 0 : index
    %81 = vector.load %arg81[%c0_161, %c0_162] : memref<1x32xf32, #tpu.memory_space<vmem>>, vector<1x32xf32>
    %c0_163 = arith.constant 0 : index
    %c0_164 = arith.constant 0 : index
    %82 = vector.load %arg82[%c0_163, %c0_164] : memref<1x32xf32, #tpu.memory_space<vmem>>, vector<1x32xf32>
    %c0_165 = arith.constant 0 : index
    %c0_166 = arith.constant 0 : index
    %83 = vector.load %arg83[%c0_165, %c0_166] : memref<32x128xf32, #tpu.memory_space<vmem>>, vector<32x128xf32>
    %c0_167 = arith.constant 0 : index
    %c0_168 = arith.constant 0 : index
    %84 = vector.load %arg84[%c0_167, %c0_168] : memref<1x128xf32, #tpu.memory_space<vmem>>, vector<1x128xf32>
    %c0_169 = arith.constant 0 : index
    %c0_170 = arith.constant 0 : index
    %85 = vector.load %arg85[%c0_169, %c0_170] : memref<256x128xf32, #tpu.memory_space<vmem>>, vector<256x128xf32>
    %c0_171 = arith.constant 0 : index
    %c0_172 = arith.constant 0 : index
    %86 = vector.load %arg86[%c0_171, %c0_172] : memref<1x128xf32, #tpu.memory_space<vmem>>, vector<1x128xf32>
    %cst = arith.constant dense<0.000000e+00> : vector<16x32xf32>
    %87 = tpu.matmul %0, %7, %cst {dimension_numbers = #tpu.dot_dimension_numbers<[1], [0], [0], [1], [0, 0, 1, 1], [], []>} : vector<16x4xf32>, vector<4x32xf32>, vector<16x32xf32> -> vector<16x32xf32>
    %88 = vector.broadcast %8 : vector<1x32xf32> to vector<16x32xf32>
    %89 = arith.addf %87, %88 : vector<16x32xf32>
    %90 = arith.addf %89, %2 : vector<16x32xf32>
    %cst_173 = arith.constant dense<0.000000e+00> : vector<16x16xf32>
    %91 = tpu.matmul %90, %11, %cst_173 {dimension_numbers = #tpu.dot_dimension_numbers<[1], [0], [0], [1], [0, 0, 1, 1], [], []>} : vector<16x32xf32>, vector<32x16xf32>, vector<16x16xf32> -> vector<16x16xf32>
    %92 = vector.broadcast %12 : vector<1x16xf32> to vector<16x16xf32>
    %93 = arith.addf %91, %92 : vector<16x16xf32>
    %cst_174 = arith.constant dense<0.000000e+00> : vector<16x32xf32>
    %94 = tpu.matmul %90, %13, %cst_174 {dimension_numbers = #tpu.dot_dimension_numbers<[1], [0], [0], [1], [0, 0, 1, 1], [], []>} : vector<16x32xf32>, vector<32x32xf32>, vector<16x32xf32> -> vector<16x32xf32>
    %95 = vector.broadcast %14 : vector<1x32xf32> to vector<16x32xf32>
    %96 = arith.addf %94, %95 : vector<16x32xf32>
    %97 = vector.broadcast %16 : vector<1x32xf32> to vector<16x32xf32>
    %98 = arith.addf %97, %90 : vector<16x32xf32>
    %99 = vector.extract_strided_slice %93 {offsets = [0, 0], sizes = [16, 8], strides = [1, 1]} : vector<16x16xf32> to vector<16x8xf32>
    %100 = vector.extract_strided_slice %96 {offsets = [0, 0], sizes = [16, 8], strides = [1, 1]} : vector<16x32xf32> to vector<16x8xf32>
    %101 = vector.extract_strided_slice %96 {offsets = [0, 16], sizes = [16, 8], strides = [1, 1]} : vector<16x32xf32> to vector<16x8xf32>
    %cst_175 = arith.constant dense<0.000000e+00> : vector<16x16xf32>
    %102 = tpu.matmul %99, %100, %cst_175 {dimension_numbers = #tpu.dot_dimension_numbers<[1], [1], [0], [0], [0, 0, 1, 0], [], []>} : vector<16x8xf32>, vector<16x8xf32>, vector<16x16xf32> -> vector<16x16xf32>
    %103 = arith.addf %102, %4 : vector<16x16xf32>
    %cst_176 = arith.constant dense<0xFF800000> : vector<16xf32>
    %104 = vector.multi_reduction <maximumf>, %103, %cst_176 [1] : vector<16x16xf32> to vector<16xf32>
    %105 = vector.shape_cast %104 : vector<16xf32> to vector<16x1xf32>
    %106 = vector.broadcast %105 : vector<16x1xf32> to vector<16x16xf32>
    %107 = arith.subf %103, %106 : vector<16x16xf32>
    %108 = math.exp %107 : vector<16x16xf32>
    %cst_177 = arith.constant dense<0.000000e+00> : vector<16xf32>
    %109 = vector.multi_reduction <add>, %108, %cst_177 [1] : vector<16x16xf32> to vector<16xf32>
    %110 = vector.shape_cast %109 : vector<16xf32> to vector<16x1xf32>
    %111 = tpu.reciprocal %110 {approx = true} : vector<16x1xf32> -> vector<16x1xf32>
    %112 = vector.broadcast %111 : vector<16x1xf32> to vector<16x16xf32>
    %113 = arith.mulf %108, %112 : vector<16x16xf32>
    %cst_178 = arith.constant dense<0.000000e+00> : vector<16x8xf32>
    %114 = tpu.matmul %113, %101, %cst_178 {dimension_numbers = #tpu.dot_dimension_numbers<[1], [0], [0], [1], [0, 0, 1, 1], [], []>} : vector<16x16xf32>, vector<16x8xf32>, vector<16x8xf32> -> vector<16x8xf32>
    %115 = vector.extract_strided_slice %15 {offsets = [0, 0], sizes = [8, 32], strides = [1, 1]} : vector<16x32xf32> to vector<8x32xf32>
    %cst_179 = arith.constant dense<0.000000e+00> : vector<16x32xf32>
    %116 = tpu.matmul %114, %115, %cst_179 {dimension_numbers = #tpu.dot_dimension_numbers<[1], [0], [0], [1], [0, 0, 1, 1], [], []>} : vector<16x8xf32>, vector<8x32xf32>, vector<16x32xf32> -> vector<16x32xf32>
    %117 = arith.addf %98, %116 : vector<16x32xf32>
    %118 = vector.extract_strided_slice %93 {offsets = [0, 8], sizes = [16, 8], strides = [1, 1]} : vector<16x16xf32> to vector<16x8xf32>
    %119 = vector.extract_strided_slice %96 {offsets = [0, 8], sizes = [16, 8], strides = [1, 1]} : vector<16x32xf32> to vector<16x8xf32>
    %120 = vector.extract_strided_slice %96 {offsets = [0, 24], sizes = [16, 8], strides = [1, 1]} : vector<16x32xf32> to vector<16x8xf32>
    %cst_180 = arith.constant dense<0.000000e+00> : vector<16x16xf32>
    %121 = tpu.matmul %118, %119, %cst_180 {dimension_numbers = #tpu.dot_dimension_numbers<[1], [1], [0], [0], [0, 0, 1, 0], [], []>} : vector<16x8xf32>, vector<16x8xf32>, vector<16x16xf32> -> vector<16x16xf32>
    %122 = arith.addf %121, %4 : vector<16x16xf32>
    %cst_181 = arith.constant dense<0xFF800000> : vector<16xf32>
    %123 = vector.multi_reduction <maximumf>, %122, %cst_181 [1] : vector<16x16xf32> to vector<16xf32>
    %124 = vector.shape_cast %123 : vector<16xf32> to vector<16x1xf32>
    %125 = vector.broadcast %124 : vector<16x1xf32> to vector<16x16xf32>
    %126 = arith.subf %122, %125 : vector<16x16xf32>
    %127 = math.exp %126 : vector<16x16xf32>
    %cst_182 = arith.constant dense<0.000000e+00> : vector<16xf32>
    %128 = vector.multi_reduction <add>, %127, %cst_182 [1] : vector<16x16xf32> to vector<16xf32>
    %129 = vector.shape_cast %128 : vector<16xf32> to vector<16x1xf32>
    %130 = tpu.reciprocal %129 {approx = true} : vector<16x1xf32> -> vector<16x1xf32>
    %131 = vector.broadcast %130 : vector<16x1xf32> to vector<16x16xf32>
    %132 = arith.mulf %127, %131 : vector<16x16xf32>
    %cst_183 = arith.constant dense<0.000000e+00> : vector<16x8xf32>
    %133 = tpu.matmul %132, %120, %cst_183 {dimension_numbers = #tpu.dot_dimension_numbers<[1], [0], [0], [1], [0, 0, 1, 1], [], []>} : vector<16x16xf32>, vector<16x8xf32>, vector<16x8xf32> -> vector<16x8xf32>
    %134 = vector.extract_strided_slice %15 {offsets = [8, 0], sizes = [8, 32], strides = [1, 1]} : vector<16x32xf32> to vector<8x32xf32>
    %cst_184 = arith.constant dense<0.000000e+00> : vector<16x32xf32>
    %135 = tpu.matmul %133, %134, %cst_184 {dimension_numbers = #tpu.dot_dimension_numbers<[1], [0], [0], [1], [0, 0, 1, 1], [], []>} : vector<16x8xf32>, vector<8x32xf32>, vector<16x32xf32> -> vector<16x32xf32>
    %136 = arith.addf %117, %135 : vector<16x32xf32>
    %cst_185 = arith.constant dense<0.000000e+00> : vector<16xf32>
    %137 = vector.multi_reduction <add>, %136, %cst_185 [1] : vector<16x32xf32> to vector<16xf32>
    %138 = vector.shape_cast %137 : vector<16xf32> to vector<16x1xf32>
    %cst_186 = arith.constant 3.200000e+01 : f32
    %139 = vector.broadcast %cst_186 : f32 to vector<16x1xf32>
    %140 = arith.divf %138, %139 : vector<16x1xf32>
    %141 = vector.broadcast %140 : vector<16x1xf32> to vector<16x32xf32>
    %142 = arith.subf %136, %141 : vector<16x32xf32>
    %143 = arith.mulf %142, %142 : vector<16x32xf32>
    %cst_187 = arith.constant dense<0.000000e+00> : vector<16xf32>
    %144 = vector.multi_reduction <add>, %143, %cst_187 [1] : vector<16x32xf32> to vector<16xf32>
    %145 = vector.shape_cast %144 : vector<16xf32> to vector<16x1xf32>
    %cst_188 = arith.constant 3.200000e+01 : f32
    %146 = vector.broadcast %cst_188 : f32 to vector<16x1xf32>
    %147 = arith.divf %145, %146 : vector<16x1xf32>
    %148 = vector.broadcast %140 : vector<16x1xf32> to vector<16x32xf32>
    %149 = arith.subf %136, %148 : vector<16x32xf32>
    %cst_189 = arith.constant 9.99999974E-6 : f32
    %150 = vector.broadcast %cst_189 : f32 to vector<16x1xf32>
    %151 = arith.addf %147, %150 : vector<16x1xf32>
    %152 = math.rsqrt %151 : vector<16x1xf32>
    %153 = vector.broadcast %152 : vector<16x1xf32> to vector<16x32xf32>
    %154 = arith.mulf %149, %153 : vector<16x32xf32>
    %155 = vector.broadcast %17 : vector<1x32xf32> to vector<16x32xf32>
    %156 = arith.mulf %154, %155 : vector<16x32xf32>
    %157 = vector.broadcast %18 : vector<1x32xf32> to vector<16x32xf32>
    %158 = arith.addf %156, %157 : vector<16x32xf32>
    %cst_190 = arith.constant dense<0.000000e+00> : vector<16x64xf32>
    %159 = tpu.matmul %158, %19, %cst_190 {dimension_numbers = #tpu.dot_dimension_numbers<[1], [0], [0], [1], [0, 0, 1, 1], [], []>} : vector<16x32xf32>, vector<32x64xf32>, vector<16x64xf32> -> vector<16x64xf32>
    %160 = vector.broadcast %20 : vector<1x64xf32> to vector<16x64xf32>
    %161 = arith.addf %159, %160 : vector<16x64xf32>
    %cst_191 = arith.constant 0.000000e+00 : f32
    %162 = vector.broadcast %cst_191 : f32 to vector<16x64xf32>
    %163 = arith.maximumf %161, %162 : vector<16x64xf32>
    %cst_192 = arith.constant dense<0.000000e+00> : vector<16x32xf32>
    %164 = tpu.matmul %163, %21, %cst_192 {dimension_numbers = #tpu.dot_dimension_numbers<[1], [0], [0], [1], [0, 0, 1, 1], [], []>} : vector<16x64xf32>, vector<64x32xf32>, vector<16x32xf32> -> vector<16x32xf32>
    %165 = vector.broadcast %22 : vector<1x32xf32> to vector<16x32xf32>
    %166 = arith.addf %164, %165 : vector<16x32xf32>
    %167 = arith.addf %166, %158 : vector<16x32xf32>
    %cst_193 = arith.constant dense<0.000000e+00> : vector<16xf32>
    %168 = vector.multi_reduction <add>, %167, %cst_193 [1] : vector<16x32xf32> to vector<16xf32>
    %169 = vector.shape_cast %168 : vector<16xf32> to vector<16x1xf32>
    %cst_194 = arith.constant 3.200000e+01 : f32
    %170 = vector.broadcast %cst_194 : f32 to vector<16x1xf32>
    %171 = arith.divf %169, %170 : vector<16x1xf32>
    %172 = vector.broadcast %171 : vector<16x1xf32> to vector<16x32xf32>
    %173 = arith.subf %167, %172 : vector<16x32xf32>
    %174 = arith.mulf %173, %173 : vector<16x32xf32>
    %cst_195 = arith.constant dense<0.000000e+00> : vector<16xf32>
    %175 = vector.multi_reduction <add>, %174, %cst_195 [1] : vector<16x32xf32> to vector<16xf32>
    %176 = vector.shape_cast %175 : vector<16xf32> to vector<16x1xf32>
    %cst_196 = arith.constant 3.200000e+01 : f32
    %177 = vector.broadcast %cst_196 : f32 to vector<16x1xf32>
    %178 = arith.divf %176, %177 : vector<16x1xf32>
    %179 = vector.broadcast %171 : vector<16x1xf32> to vector<16x32xf32>
    %180 = arith.subf %167, %179 : vector<16x32xf32>
    %cst_197 = arith.constant 9.99999974E-6 : f32
    %181 = vector.broadcast %cst_197 : f32 to vector<16x1xf32>
    %182 = arith.addf %178, %181 : vector<16x1xf32>
    %183 = math.rsqrt %182 : vector<16x1xf32>
    %184 = vector.broadcast %183 : vector<16x1xf32> to vector<16x32xf32>
    %185 = arith.mulf %180, %184 : vector<16x32xf32>
    %186 = vector.broadcast %23 : vector<1x32xf32> to vector<16x32xf32>
    %187 = arith.mulf %185, %186 : vector<16x32xf32>
    %188 = vector.broadcast %24 : vector<1x32xf32> to vector<16x32xf32>
    %189 = arith.addf %187, %188 : vector<16x32xf32>
    %cst_198 = arith.constant dense<0.000000e+00> : vector<16x16xf32>
    %190 = tpu.matmul %189, %25, %cst_198 {dimension_numbers = #tpu.dot_dimension_numbers<[1], [0], [0], [1], [0, 0, 1, 1], [], []>} : vector<16x32xf32>, vector<32x16xf32>, vector<16x16xf32> -> vector<16x16xf32>
    %191 = vector.broadcast %26 : vector<1x16xf32> to vector<16x16xf32>
    %192 = arith.addf %190, %191 : vector<16x16xf32>
    %cst_199 = arith.constant dense<0.000000e+00> : vector<16x32xf32>
    %193 = tpu.matmul %189, %27, %cst_199 {dimension_numbers = #tpu.dot_dimension_numbers<[1], [0], [0], [1], [0, 0, 1, 1], [], []>} : vector<16x32xf32>, vector<32x32xf32>, vector<16x32xf32> -> vector<16x32xf32>
    %194 = vector.broadcast %28 : vector<1x32xf32> to vector<16x32xf32>
    %195 = arith.addf %193, %194 : vector<16x32xf32>
    %196 = vector.broadcast %30 : vector<1x32xf32> to vector<16x32xf32>
    %197 = arith.addf %196, %189 : vector<16x32xf32>
    %198 = vector.extract_strided_slice %192 {offsets = [0, 0], sizes = [16, 8], strides = [1, 1]} : vector<16x16xf32> to vector<16x8xf32>
    %199 = vector.extract_strided_slice %195 {offsets = [0, 0], sizes = [16, 8], strides = [1, 1]} : vector<16x32xf32> to vector<16x8xf32>
    %200 = vector.extract_strided_slice %195 {offsets = [0, 16], sizes = [16, 8], strides = [1, 1]} : vector<16x32xf32> to vector<16x8xf32>
    %cst_200 = arith.constant dense<0.000000e+00> : vector<16x16xf32>
    %201 = tpu.matmul %198, %199, %cst_200 {dimension_numbers = #tpu.dot_dimension_numbers<[1], [1], [0], [0], [0, 0, 1, 0], [], []>} : vector<16x8xf32>, vector<16x8xf32>, vector<16x16xf32> -> vector<16x16xf32>
    %202 = arith.addf %201, %4 : vector<16x16xf32>
    %cst_201 = arith.constant dense<0xFF800000> : vector<16xf32>
    %203 = vector.multi_reduction <maximumf>, %202, %cst_201 [1] : vector<16x16xf32> to vector<16xf32>
    %204 = vector.shape_cast %203 : vector<16xf32> to vector<16x1xf32>
    %205 = vector.broadcast %204 : vector<16x1xf32> to vector<16x16xf32>
    %206 = arith.subf %202, %205 : vector<16x16xf32>
    %207 = math.exp %206 : vector<16x16xf32>
    %cst_202 = arith.constant dense<0.000000e+00> : vector<16xf32>
    %208 = vector.multi_reduction <add>, %207, %cst_202 [1] : vector<16x16xf32> to vector<16xf32>
    %209 = vector.shape_cast %208 : vector<16xf32> to vector<16x1xf32>
    %210 = tpu.reciprocal %209 {approx = true} : vector<16x1xf32> -> vector<16x1xf32>
    %211 = vector.broadcast %210 : vector<16x1xf32> to vector<16x16xf32>
    %212 = arith.mulf %207, %211 : vector<16x16xf32>
    %cst_203 = arith.constant dense<0.000000e+00> : vector<16x8xf32>
    %213 = tpu.matmul %212, %200, %cst_203 {dimension_numbers = #tpu.dot_dimension_numbers<[1], [0], [0], [1], [0, 0, 1, 1], [], []>} : vector<16x16xf32>, vector<16x8xf32>, vector<16x8xf32> -> vector<16x8xf32>
    %214 = vector.extract_strided_slice %29 {offsets = [0, 0], sizes = [8, 32], strides = [1, 1]} : vector<16x32xf32> to vector<8x32xf32>
    %cst_204 = arith.constant dense<0.000000e+00> : vector<16x32xf32>
    %215 = tpu.matmul %213, %214, %cst_204 {dimension_numbers = #tpu.dot_dimension_numbers<[1], [0], [0], [1], [0, 0, 1, 1], [], []>} : vector<16x8xf32>, vector<8x32xf32>, vector<16x32xf32> -> vector<16x32xf32>
    %216 = arith.addf %197, %215 : vector<16x32xf32>
    %217 = vector.extract_strided_slice %192 {offsets = [0, 8], sizes = [16, 8], strides = [1, 1]} : vector<16x16xf32> to vector<16x8xf32>
    %218 = vector.extract_strided_slice %195 {offsets = [0, 8], sizes = [16, 8], strides = [1, 1]} : vector<16x32xf32> to vector<16x8xf32>
    %219 = vector.extract_strided_slice %195 {offsets = [0, 24], sizes = [16, 8], strides = [1, 1]} : vector<16x32xf32> to vector<16x8xf32>
    %cst_205 = arith.constant dense<0.000000e+00> : vector<16x16xf32>
    %220 = tpu.matmul %217, %218, %cst_205 {dimension_numbers = #tpu.dot_dimension_numbers<[1], [1], [0], [0], [0, 0, 1, 0], [], []>} : vector<16x8xf32>, vector<16x8xf32>, vector<16x16xf32> -> vector<16x16xf32>
    %221 = arith.addf %220, %4 : vector<16x16xf32>
    %cst_206 = arith.constant dense<0xFF800000> : vector<16xf32>
    %222 = vector.multi_reduction <maximumf>, %221, %cst_206 [1] : vector<16x16xf32> to vector<16xf32>
    %223 = vector.shape_cast %222 : vector<16xf32> to vector<16x1xf32>
    %224 = vector.broadcast %223 : vector<16x1xf32> to vector<16x16xf32>
    %225 = arith.subf %221, %224 : vector<16x16xf32>
    %226 = math.exp %225 : vector<16x16xf32>
    %cst_207 = arith.constant dense<0.000000e+00> : vector<16xf32>
    %227 = vector.multi_reduction <add>, %226, %cst_207 [1] : vector<16x16xf32> to vector<16xf32>
    %228 = vector.shape_cast %227 : vector<16xf32> to vector<16x1xf32>
    %229 = tpu.reciprocal %228 {approx = true} : vector<16x1xf32> -> vector<16x1xf32>
    %230 = vector.broadcast %229 : vector<16x1xf32> to vector<16x16xf32>
    %231 = arith.mulf %226, %230 : vector<16x16xf32>
    %cst_208 = arith.constant dense<0.000000e+00> : vector<16x8xf32>
    %232 = tpu.matmul %231, %219, %cst_208 {dimension_numbers = #tpu.dot_dimension_numbers<[1], [0], [0], [1], [0, 0, 1, 1], [], []>} : vector<16x16xf32>, vector<16x8xf32>, vector<16x8xf32> -> vector<16x8xf32>
    %233 = vector.extract_strided_slice %29 {offsets = [8, 0], sizes = [8, 32], strides = [1, 1]} : vector<16x32xf32> to vector<8x32xf32>
    %cst_209 = arith.constant dense<0.000000e+00> : vector<16x32xf32>
    %234 = tpu.matmul %232, %233, %cst_209 {dimension_numbers = #tpu.dot_dimension_numbers<[1], [0], [0], [1], [0, 0, 1, 1], [], []>} : vector<16x8xf32>, vector<8x32xf32>, vector<16x32xf32> -> vector<16x32xf32>
    %235 = arith.addf %216, %234 : vector<16x32xf32>
    %cst_210 = arith.constant dense<0.000000e+00> : vector<16xf32>
    %236 = vector.multi_reduction <add>, %235, %cst_210 [1] : vector<16x32xf32> to vector<16xf32>
    %237 = vector.shape_cast %236 : vector<16xf32> to vector<16x1xf32>
    %cst_211 = arith.constant 3.200000e+01 : f32
    %238 = vector.broadcast %cst_211 : f32 to vector<16x1xf32>
    %239 = arith.divf %237, %238 : vector<16x1xf32>
    %240 = vector.broadcast %239 : vector<16x1xf32> to vector<16x32xf32>
    %241 = arith.subf %235, %240 : vector<16x32xf32>
    %242 = arith.mulf %241, %241 : vector<16x32xf32>
    %cst_212 = arith.constant dense<0.000000e+00> : vector<16xf32>
    %243 = vector.multi_reduction <add>, %242, %cst_212 [1] : vector<16x32xf32> to vector<16xf32>
    %244 = vector.shape_cast %243 : vector<16xf32> to vector<16x1xf32>
    %cst_213 = arith.constant 3.200000e+01 : f32
    %245 = vector.broadcast %cst_213 : f32 to vector<16x1xf32>
    %246 = arith.divf %244, %245 : vector<16x1xf32>
    %247 = vector.broadcast %239 : vector<16x1xf32> to vector<16x32xf32>
    %248 = arith.subf %235, %247 : vector<16x32xf32>
    %cst_214 = arith.constant 9.99999974E-6 : f32
    %249 = vector.broadcast %cst_214 : f32 to vector<16x1xf32>
    %250 = arith.addf %246, %249 : vector<16x1xf32>
    %251 = math.rsqrt %250 : vector<16x1xf32>
    %252 = vector.broadcast %251 : vector<16x1xf32> to vector<16x32xf32>
    %253 = arith.mulf %248, %252 : vector<16x32xf32>
    %254 = vector.broadcast %31 : vector<1x32xf32> to vector<16x32xf32>
    %255 = arith.mulf %253, %254 : vector<16x32xf32>
    %256 = vector.broadcast %32 : vector<1x32xf32> to vector<16x32xf32>
    %257 = arith.addf %255, %256 : vector<16x32xf32>
    %cst_215 = arith.constant dense<0.000000e+00> : vector<16x64xf32>
    %258 = tpu.matmul %257, %33, %cst_215 {dimension_numbers = #tpu.dot_dimension_numbers<[1], [0], [0], [1], [0, 0, 1, 1], [], []>} : vector<16x32xf32>, vector<32x64xf32>, vector<16x64xf32> -> vector<16x64xf32>
    %259 = vector.broadcast %34 : vector<1x64xf32> to vector<16x64xf32>
    %260 = arith.addf %258, %259 : vector<16x64xf32>
    %cst_216 = arith.constant 0.000000e+00 : f32
    %261 = vector.broadcast %cst_216 : f32 to vector<16x64xf32>
    %262 = arith.maximumf %260, %261 : vector<16x64xf32>
    %cst_217 = arith.constant dense<0.000000e+00> : vector<16x32xf32>
    %263 = tpu.matmul %262, %35, %cst_217 {dimension_numbers = #tpu.dot_dimension_numbers<[1], [0], [0], [1], [0, 0, 1, 1], [], []>} : vector<16x64xf32>, vector<64x32xf32>, vector<16x32xf32> -> vector<16x32xf32>
    %264 = vector.broadcast %36 : vector<1x32xf32> to vector<16x32xf32>
    %265 = arith.addf %263, %264 : vector<16x32xf32>
    %266 = arith.addf %265, %257 : vector<16x32xf32>
    %cst_218 = arith.constant dense<0.000000e+00> : vector<16xf32>
    %267 = vector.multi_reduction <add>, %266, %cst_218 [1] : vector<16x32xf32> to vector<16xf32>
    %268 = vector.shape_cast %267 : vector<16xf32> to vector<16x1xf32>
    %cst_219 = arith.constant 3.200000e+01 : f32
    %269 = vector.broadcast %cst_219 : f32 to vector<16x1xf32>
    %270 = arith.divf %268, %269 : vector<16x1xf32>
    %271 = vector.broadcast %270 : vector<16x1xf32> to vector<16x32xf32>
    %272 = arith.subf %266, %271 : vector<16x32xf32>
    %273 = arith.mulf %272, %272 : vector<16x32xf32>
    %cst_220 = arith.constant dense<0.000000e+00> : vector<16xf32>
    %274 = vector.multi_reduction <add>, %273, %cst_220 [1] : vector<16x32xf32> to vector<16xf32>
    %275 = vector.shape_cast %274 : vector<16xf32> to vector<16x1xf32>
    %cst_221 = arith.constant 3.200000e+01 : f32
    %276 = vector.broadcast %cst_221 : f32 to vector<16x1xf32>
    %277 = arith.divf %275, %276 : vector<16x1xf32>
    %278 = vector.broadcast %270 : vector<16x1xf32> to vector<16x32xf32>
    %279 = arith.subf %266, %278 : vector<16x32xf32>
    %cst_222 = arith.constant 9.99999974E-6 : f32
    %280 = vector.broadcast %cst_222 : f32 to vector<16x1xf32>
    %281 = arith.addf %277, %280 : vector<16x1xf32>
    %282 = math.rsqrt %281 : vector<16x1xf32>
    %283 = vector.broadcast %282 : vector<16x1xf32> to vector<16x32xf32>
    %284 = arith.mulf %279, %283 : vector<16x32xf32>
    %285 = vector.broadcast %37 : vector<1x32xf32> to vector<16x32xf32>
    %286 = arith.mulf %284, %285 : vector<16x32xf32>
    %287 = vector.broadcast %38 : vector<1x32xf32> to vector<16x32xf32>
    %288 = arith.addf %286, %287 : vector<16x32xf32>
    %c0_223 = arith.constant 0 : index
    %c0_224 = arith.constant 0 : index
    %289 = vector.load %arg89[%c0_223, %c0_224] : memref<16x32xf32, #tpu.memory_space<vmem>>, vector<16x32xf32>
    tpu.vector_store %arg89[%c0_223, %c0_224], %288 {strides = array<i32>} : memref<16x32xf32, #tpu.memory_space<vmem>>, vector<16x32xf32>,
    %cst_225 = arith.constant dense<0.000000e+00> : vector<16x32xf32>
    %290 = tpu.matmul %1, %9, %cst_225 {dimension_numbers = #tpu.dot_dimension_numbers<[1], [0], [0], [1], [0, 0, 1, 1], [], []>} : vector<16x3xf32>, vector<3x32xf32>, vector<16x32xf32> -> vector<16x32xf32>
    %291 = vector.broadcast %10 : vector<1x32xf32> to vector<16x32xf32>
    %292 = arith.addf %290, %291 : vector<16x32xf32>
    %293 = arith.addf %292, %3 : vector<16x32xf32>
    %cst_226 = arith.constant dense<0.000000e+00> : vector<16x16xf32>
    %294 = tpu.matmul %293, %39, %cst_226 {dimension_numbers = #tpu.dot_dimension_numbers<[1], [0], [0], [1], [0, 0, 1, 1], [], []>} : vector<16x32xf32>, vector<32x16xf32>, vector<16x16xf32> -> vector<16x16xf32>
    %295 = vector.broadcast %40 : vector<1x16xf32> to vector<16x16xf32>
    %296 = arith.addf %294, %295 : vector<16x16xf32>
    %cst_227 = arith.constant dense<0.000000e+00> : vector<16x32xf32>
    %297 = tpu.matmul %293, %41, %cst_227 {dimension_numbers = #tpu.dot_dimension_numbers<[1], [0], [0], [1], [0, 0, 1, 1], [], []>} : vector<16x32xf32>, vector<32x32xf32>, vector<16x32xf32> -> vector<16x32xf32>
    %298 = vector.broadcast %42 : vector<1x32xf32> to vector<16x32xf32>
    %299 = arith.addf %297, %298 : vector<16x32xf32>
    %300 = vector.broadcast %44 : vector<1x32xf32> to vector<16x32xf32>
    %301 = arith.addf %300, %293 : vector<16x32xf32>
    %302 = vector.extract_strided_slice %296 {offsets = [0, 0], sizes = [16, 8], strides = [1, 1]} : vector<16x16xf32> to vector<16x8xf32>
    %303 = vector.extract_strided_slice %299 {offsets = [0, 0], sizes = [16, 8], strides = [1, 1]} : vector<16x32xf32> to vector<16x8xf32>
    %304 = vector.extract_strided_slice %299 {offsets = [0, 16], sizes = [16, 8], strides = [1, 1]} : vector<16x32xf32> to vector<16x8xf32>
    %cst_228 = arith.constant dense<0.000000e+00> : vector<16x16xf32>
    %305 = tpu.matmul %302, %303, %cst_228 {dimension_numbers = #tpu.dot_dimension_numbers<[1], [1], [0], [0], [0, 0, 1, 0], [], []>} : vector<16x8xf32>, vector<16x8xf32>, vector<16x16xf32> -> vector<16x16xf32>
    %306 = arith.addf %305, %5 : vector<16x16xf32>
    %cst_229 = arith.constant dense<0xFF800000> : vector<16xf32>
    %307 = vector.multi_reduction <maximumf>, %306, %cst_229 [1] : vector<16x16xf32> to vector<16xf32>
    %308 = vector.shape_cast %307 : vector<16xf32> to vector<16x1xf32>
    %309 = vector.broadcast %308 : vector<16x1xf32> to vector<16x16xf32>
    %310 = arith.subf %306, %309 : vector<16x16xf32>
    %311 = math.exp %310 : vector<16x16xf32>
    %cst_230 = arith.constant dense<0.000000e+00> : vector<16xf32>
    %312 = vector.multi_reduction <add>, %311, %cst_230 [1] : vector<16x16xf32> to vector<16xf32>
    %313 = vector.shape_cast %312 : vector<16xf32> to vector<16x1xf32>
    %314 = tpu.reciprocal %313 {approx = true} : vector<16x1xf32> -> vector<16x1xf32>
    %315 = vector.broadcast %314 : vector<16x1xf32> to vector<16x16xf32>
    %316 = arith.mulf %311, %315 : vector<16x16xf32>
    %cst_231 = arith.constant dense<0.000000e+00> : vector<16x8xf32>
    %317 = tpu.matmul %316, %304, %cst_231 {dimension_numbers = #tpu.dot_dimension_numbers<[1], [0], [0], [1], [0, 0, 1, 1], [], []>} : vector<16x16xf32>, vector<16x8xf32>, vector<16x8xf32> -> vector<16x8xf32>
    %318 = vector.extract_strided_slice %43 {offsets = [0, 0], sizes = [8, 32], strides = [1, 1]} : vector<16x32xf32> to vector<8x32xf32>
    %cst_232 = arith.constant dense<0.000000e+00> : vector<16x32xf32>
    %319 = tpu.matmul %317, %318, %cst_232 {dimension_numbers = #tpu.dot_dimension_numbers<[1], [0], [0], [1], [0, 0, 1, 1], [], []>} : vector<16x8xf32>, vector<8x32xf32>, vector<16x32xf32> -> vector<16x32xf32>
    %320 = arith.addf %301, %319 : vector<16x32xf32>
    %321 = vector.extract_strided_slice %296 {offsets = [0, 8], sizes = [16, 8], strides = [1, 1]} : vector<16x16xf32> to vector<16x8xf32>
    %322 = vector.extract_strided_slice %299 {offsets = [0, 8], sizes = [16, 8], strides = [1, 1]} : vector<16x32xf32> to vector<16x8xf32>
    %323 = vector.extract_strided_slice %299 {offsets = [0, 24], sizes = [16, 8], strides = [1, 1]} : vector<16x32xf32> to vector<16x8xf32>
    %cst_233 = arith.constant dense<0.000000e+00> : vector<16x16xf32>
    %324 = tpu.matmul %321, %322, %cst_233 {dimension_numbers = #tpu.dot_dimension_numbers<[1], [1], [0], [0], [0, 0, 1, 0], [], []>} : vector<16x8xf32>, vector<16x8xf32>, vector<16x16xf32> -> vector<16x16xf32>
    %325 = arith.addf %324, %5 : vector<16x16xf32>
    %cst_234 = arith.constant dense<0xFF800000> : vector<16xf32>
    %326 = vector.multi_reduction <maximumf>, %325, %cst_234 [1] : vector<16x16xf32> to vector<16xf32>
    %327 = vector.shape_cast %326 : vector<16xf32> to vector<16x1xf32>
    %328 = vector.broadcast %327 : vector<16x1xf32> to vector<16x16xf32>
    %329 = arith.subf %325, %328 : vector<16x16xf32>
    %330 = math.exp %329 : vector<16x16xf32>
    %cst_235 = arith.constant dense<0.000000e+00> : vector<16xf32>
    %331 = vector.multi_reduction <add>, %330, %cst_235 [1] : vector<16x16xf32> to vector<16xf32>
    %332 = vector.shape_cast %331 : vector<16xf32> to vector<16x1xf32>
    %333 = tpu.reciprocal %332 {approx = true} : vector<16x1xf32> -> vector<16x1xf32>
    %334 = vector.broadcast %333 : vector<16x1xf32> to vector<16x16xf32>
    %335 = arith.mulf %330, %334 : vector<16x16xf32>
    %cst_236 = arith.constant dense<0.000000e+00> : vector<16x8xf32>
    %336 = tpu.matmul %335, %323, %cst_236 {dimension_numbers = #tpu.dot_dimension_numbers<[1], [0], [0], [1], [0, 0, 1, 1], [], []>} : vector<16x16xf32>, vector<16x8xf32>, vector<16x8xf32> -> vector<16x8xf32>
    %337 = vector.extract_strided_slice %43 {offsets = [8, 0], sizes = [8, 32], strides = [1, 1]} : vector<16x32xf32> to vector<8x32xf32>
    %cst_237 = arith.constant dense<0.000000e+00> : vector<16x32xf32>
    %338 = tpu.matmul %336, %337, %cst_237 {dimension_numbers = #tpu.dot_dimension_numbers<[1], [0], [0], [1], [0, 0, 1, 1], [], []>} : vector<16x8xf32>, vector<8x32xf32>, vector<16x32xf32> -> vector<16x32xf32>
    %339 = arith.addf %320, %338 : vector<16x32xf32>
    %cst_238 = arith.constant dense<0.000000e+00> : vector<16xf32>
    %340 = vector.multi_reduction <add>, %339, %cst_238 [1] : vector<16x32xf32> to vector<16xf32>
    %341 = vector.shape_cast %340 : vector<16xf32> to vector<16x1xf32>
    %cst_239 = arith.constant 3.200000e+01 : f32
    %342 = vector.broadcast %cst_239 : f32 to vector<16x1xf32>
    %343 = arith.divf %341, %342 : vector<16x1xf32>
    %344 = vector.broadcast %343 : vector<16x1xf32> to vector<16x32xf32>
    %345 = arith.subf %339, %344 : vector<16x32xf32>
    %346 = arith.mulf %345, %345 : vector<16x32xf32>
    %cst_240 = arith.constant dense<0.000000e+00> : vector<16xf32>
    %347 = vector.multi_reduction <add>, %346, %cst_240 [1] : vector<16x32xf32> to vector<16xf32>
    %348 = vector.shape_cast %347 : vector<16xf32> to vector<16x1xf32>
    %cst_241 = arith.constant 3.200000e+01 : f32
    %349 = vector.broadcast %cst_241 : f32 to vector<16x1xf32>
    %350 = arith.divf %348, %349 : vector<16x1xf32>
    %351 = vector.broadcast %343 : vector<16x1xf32> to vector<16x32xf32>
    %352 = arith.subf %339, %351 : vector<16x32xf32>
    %cst_242 = arith.constant 9.99999974E-6 : f32
    %353 = vector.broadcast %cst_242 : f32 to vector<16x1xf32>
    %354 = arith.addf %350, %353 : vector<16x1xf32>
    %355 = math.rsqrt %354 : vector<16x1xf32>
    %356 = vector.broadcast %355 : vector<16x1xf32> to vector<16x32xf32>
    %357 = arith.mulf %352, %356 : vector<16x32xf32>
    %358 = vector.broadcast %45 : vector<1x32xf32> to vector<16x32xf32>
    %359 = arith.mulf %357, %358 : vector<16x32xf32>
    %360 = vector.broadcast %46 : vector<1x32xf32> to vector<16x32xf32>
    %361 = arith.addf %359, %360 : vector<16x32xf32>
    %cst_243 = arith.constant dense<0.000000e+00> : vector<16x16xf32>
    %362 = tpu.matmul %361, %47, %cst_243 {dimension_numbers = #tpu.dot_dimension_numbers<[1], [0], [0], [1], [0, 0, 1, 1], [], []>} : vector<16x32xf32>, vector<32x16xf32>, vector<16x16xf32> -> vector<16x16xf32>
    %363 = vector.broadcast %48 : vector<1x16xf32> to vector<16x16xf32>
    %364 = arith.addf %362, %363 : vector<16x16xf32>
    %cst_244 = arith.constant dense<0.000000e+00> : vector<16x32xf32>
    %365 = tpu.matmul %288, %49, %cst_244 {dimension_numbers = #tpu.dot_dimension_numbers<[1], [0], [0], [1], [0, 0, 1, 1], [], []>} : vector<16x32xf32>, vector<32x32xf32>, vector<16x32xf32> -> vector<16x32xf32>
    %366 = vector.broadcast %50 : vector<1x32xf32> to vector<16x32xf32>
    %367 = arith.addf %365, %366 : vector<16x32xf32>
    %368 = vector.broadcast %52 : vector<1x32xf32> to vector<16x32xf32>
    %369 = arith.addf %368, %361 : vector<16x32xf32>
    %370 = vector.extract_strided_slice %364 {offsets = [0, 0], sizes = [16, 8], strides = [1, 1]} : vector<16x16xf32> to vector<16x8xf32>
    %371 = vector.extract_strided_slice %367 {offsets = [0, 0], sizes = [16, 8], strides = [1, 1]} : vector<16x32xf32> to vector<16x8xf32>
    %372 = vector.extract_strided_slice %367 {offsets = [0, 16], sizes = [16, 8], strides = [1, 1]} : vector<16x32xf32> to vector<16x8xf32>
    %cst_245 = arith.constant dense<0.000000e+00> : vector<16x16xf32>
    %373 = tpu.matmul %370, %371, %cst_245 {dimension_numbers = #tpu.dot_dimension_numbers<[1], [1], [0], [0], [0, 0, 1, 0], [], []>} : vector<16x8xf32>, vector<16x8xf32>, vector<16x16xf32> -> vector<16x16xf32>
    %374 = arith.addf %373, %6 : vector<16x16xf32>
    %cst_246 = arith.constant dense<0xFF800000> : vector<16xf32>
    %375 = vector.multi_reduction <maximumf>, %374, %cst_246 [1] : vector<16x16xf32> to vector<16xf32>
    %376 = vector.shape_cast %375 : vector<16xf32> to vector<16x1xf32>
    %377 = vector.broadcast %376 : vector<16x1xf32> to vector<16x16xf32>
    %378 = arith.subf %374, %377 : vector<16x16xf32>
    %379 = math.exp %378 : vector<16x16xf32>
    %cst_247 = arith.constant dense<0.000000e+00> : vector<16xf32>
    %380 = vector.multi_reduction <add>, %379, %cst_247 [1] : vector<16x16xf32> to vector<16xf32>
    %381 = vector.shape_cast %380 : vector<16xf32> to vector<16x1xf32>
    %382 = tpu.reciprocal %381 {approx = true} : vector<16x1xf32> -> vector<16x1xf32>
    %383 = vector.broadcast %382 : vector<16x1xf32> to vector<16x16xf32>
    %384 = arith.mulf %379, %383 : vector<16x16xf32>
    %cst_248 = arith.constant dense<0.000000e+00> : vector<16x8xf32>
    %385 = tpu.matmul %384, %372, %cst_248 {dimension_numbers = #tpu.dot_dimension_numbers<[1], [0], [0], [1], [0, 0, 1, 1], [], []>} : vector<16x16xf32>, vector<16x8xf32>, vector<16x8xf32> -> vector<16x8xf32>
    %386 = vector.extract_strided_slice %51 {offsets = [0, 0], sizes = [8, 32], strides = [1, 1]} : vector<16x32xf32> to vector<8x32xf32>
    %cst_249 = arith.constant dense<0.000000e+00> : vector<16x32xf32>
    %387 = tpu.matmul %385, %386, %cst_249 {dimension_numbers = #tpu.dot_dimension_numbers<[1], [0], [0], [1], [0, 0, 1, 1], [], []>} : vector<16x8xf32>, vector<8x32xf32>, vector<16x32xf32> -> vector<16x32xf32>
    %388 = arith.addf %369, %387 : vector<16x32xf32>
    %389 = vector.extract_strided_slice %364 {offsets = [0, 8], sizes = [16, 8], strides = [1, 1]} : vector<16x16xf32> to vector<16x8xf32>
    %390 = vector.extract_strided_slice %367 {offsets = [0, 8], sizes = [16, 8], strides = [1, 1]} : vector<16x32xf32> to vector<16x8xf32>
    %391 = vector.extract_strided_slice %367 {offsets = [0, 24], sizes = [16, 8], strides = [1, 1]} : vector<16x32xf32> to vector<16x8xf32>
    %cst_250 = arith.constant dense<0.000000e+00> : vector<16x16xf32>
    %392 = tpu.matmul %389, %390, %cst_250 {dimension_numbers = #tpu.dot_dimension_numbers<[1], [1], [0], [0], [0, 0, 1, 0], [], []>} : vector<16x8xf32>, vector<16x8xf32>, vector<16x16xf32> -> vector<16x16xf32>
    %393 = arith.addf %392, %6 : vector<16x16xf32>
    %cst_251 = arith.constant dense<0xFF800000> : vector<16xf32>
    %394 = vector.multi_reduction <maximumf>, %393, %cst_251 [1] : vector<16x16xf32> to vector<16xf32>
    %395 = vector.shape_cast %394 : vector<16xf32> to vector<16x1xf32>
    %396 = vector.broadcast %395 : vector<16x1xf32> to vector<16x16xf32>
    %397 = arith.subf %393, %396 : vector<16x16xf32>
    %398 = math.exp %397 : vector<16x16xf32>
    %cst_252 = arith.constant dense<0.000000e+00> : vector<16xf32>
    %399 = vector.multi_reduction <add>, %398, %cst_252 [1] : vector<16x16xf32> to vector<16xf32>
    %400 = vector.shape_cast %399 : vector<16xf32> to vector<16x1xf32>
    %401 = tpu.reciprocal %400 {approx = true} : vector<16x1xf32> -> vector<16x1xf32>
    %402 = vector.broadcast %401 : vector<16x1xf32> to vector<16x16xf32>
    %403 = arith.mulf %398, %402 : vector<16x16xf32>
    %cst_253 = arith.constant dense<0.000000e+00> : vector<16x8xf32>
    %404 = tpu.matmul %403, %391, %cst_253 {dimension_numbers = #tpu.dot_dimension_numbers<[1], [0], [0], [1], [0, 0, 1, 1], [], []>} : vector<16x16xf32>, vector<16x8xf32>, vector<16x8xf32> -> vector<16x8xf32>
    %405 = vector.extract_strided_slice %51 {offsets = [8, 0], sizes = [8, 32], strides = [1, 1]} : vector<16x32xf32> to vector<8x32xf32>
    %cst_254 = arith.constant dense<0.000000e+00> : vector<16x32xf32>
    %406 = tpu.matmul %404, %405, %cst_254 {dimension_numbers = #tpu.dot_dimension_numbers<[1], [0], [0], [1], [0, 0, 1, 1], [], []>} : vector<16x8xf32>, vector<8x32xf32>, vector<16x32xf32> -> vector<16x32xf32>
    %407 = arith.addf %388, %406 : vector<16x32xf32>
    %cst_255 = arith.constant dense<0.000000e+00> : vector<16xf32>
    %408 = vector.multi_reduction <add>, %407, %cst_255 [1] : vector<16x32xf32> to vector<16xf32>
    %409 = vector.shape_cast %408 : vector<16xf32> to vector<16x1xf32>
    %cst_256 = arith.constant 3.200000e+01 : f32
    %410 = vector.broadcast %cst_256 : f32 to vector<16x1xf32>
    %411 = arith.divf %409, %410 : vector<16x1xf32>
    %412 = vector.broadcast %411 : vector<16x1xf32> to vector<16x32xf32>
    %413 = arith.subf %407, %412 : vector<16x32xf32>
    %414 = arith.mulf %413, %413 : vector<16x32xf32>
    %cst_257 = arith.constant dense<0.000000e+00> : vector<16xf32>
    %415 = vector.multi_reduction <add>, %414, %cst_257 [1] : vector<16x32xf32> to vector<16xf32>
    %416 = vector.shape_cast %415 : vector<16xf32> to vector<16x1xf32>
    %cst_258 = arith.constant 3.200000e+01 : f32
    %417 = vector.broadcast %cst_258 : f32 to vector<16x1xf32>
    %418 = arith.divf %416, %417 : vector<16x1xf32>
    %419 = vector.broadcast %411 : vector<16x1xf32> to vector<16x32xf32>
    %420 = arith.subf %407, %419 : vector<16x32xf32>
    %cst_259 = arith.constant 9.99999974E-6 : f32
    %421 = vector.broadcast %cst_259 : f32 to vector<16x1xf32>
    %422 = arith.addf %418, %421 : vector<16x1xf32>
    %423 = math.rsqrt %422 : vector<16x1xf32>
    %424 = vector.broadcast %423 : vector<16x1xf32> to vector<16x32xf32>
    %425 = arith.mulf %420, %424 : vector<16x32xf32>
    %426 = vector.broadcast %53 : vector<1x32xf32> to vector<16x32xf32>
    %427 = arith.mulf %425, %426 : vector<16x32xf32>
    %428 = vector.broadcast %54 : vector<1x32xf32> to vector<16x32xf32>
    %429 = arith.addf %427, %428 : vector<16x32xf32>
    %cst_260 = arith.constant dense<0.000000e+00> : vector<16x64xf32>
    %430 = tpu.matmul %429, %55, %cst_260 {dimension_numbers = #tpu.dot_dimension_numbers<[1], [0], [0], [1], [0, 0, 1, 1], [], []>} : vector<16x32xf32>, vector<32x64xf32>, vector<16x64xf32> -> vector<16x64xf32>
    %431 = vector.broadcast %56 : vector<1x64xf32> to vector<16x64xf32>
    %432 = arith.addf %430, %431 : vector<16x64xf32>
    %cst_261 = arith.constant 0.000000e+00 : f32
    %433 = vector.broadcast %cst_261 : f32 to vector<16x64xf32>
    %434 = arith.maximumf %432, %433 : vector<16x64xf32>
    %cst_262 = arith.constant dense<0.000000e+00> : vector<16x32xf32>
    %435 = tpu.matmul %434, %57, %cst_262 {dimension_numbers = #tpu.dot_dimension_numbers<[1], [0], [0], [1], [0, 0, 1, 1], [], []>} : vector<16x64xf32>, vector<64x32xf32>, vector<16x32xf32> -> vector<16x32xf32>
    %436 = vector.broadcast %58 : vector<1x32xf32> to vector<16x32xf32>
    %437 = arith.addf %435, %436 : vector<16x32xf32>
    %438 = arith.addf %437, %429 : vector<16x32xf32>
    %cst_263 = arith.constant dense<0.000000e+00> : vector<16xf32>
    %439 = vector.multi_reduction <add>, %438, %cst_263 [1] : vector<16x32xf32> to vector<16xf32>
    %440 = vector.shape_cast %439 : vector<16xf32> to vector<16x1xf32>
    %cst_264 = arith.constant 3.200000e+01 : f32
    %441 = vector.broadcast %cst_264 : f32 to vector<16x1xf32>
    %442 = arith.divf %440, %441 : vector<16x1xf32>
    %443 = vector.broadcast %442 : vector<16x1xf32> to vector<16x32xf32>
    %444 = arith.subf %438, %443 : vector<16x32xf32>
    %445 = arith.mulf %444, %444 : vector<16x32xf32>
    %cst_265 = arith.constant dense<0.000000e+00> : vector<16xf32>
    %446 = vector.multi_reduction <add>, %445, %cst_265 [1] : vector<16x32xf32> to vector<16xf32>
    %447 = vector.shape_cast %446 : vector<16xf32> to vector<16x1xf32>
    %cst_266 = arith.constant 3.200000e+01 : f32
    %448 = vector.broadcast %cst_266 : f32 to vector<16x1xf32>
    %449 = arith.divf %447, %448 : vector<16x1xf32>
    %450 = vector.broadcast %442 : vector<16x1xf32> to vector<16x32xf32>
    %451 = arith.subf %438, %450 : vector<16x32xf32>
    %cst_267 = arith.constant 9.99999974E-6 : f32
    %452 = vector.broadcast %cst_267 : f32 to vector<16x1xf32>
    %453 = arith.addf %449, %452 : vector<16x1xf32>
    %454 = math.rsqrt %453 : vector<16x1xf32>
    %455 = vector.broadcast %454 : vector<16x1xf32> to vector<16x32xf32>
    %456 = arith.mulf %451, %455 : vector<16x32xf32>
    %457 = vector.broadcast %59 : vector<1x32xf32> to vector<16x32xf32>
    %458 = arith.mulf %456, %457 : vector<16x32xf32>
    %459 = vector.broadcast %60 : vector<1x32xf32> to vector<16x32xf32>
    %460 = arith.addf %458, %459 : vector<16x32xf32>
    %cst_268 = arith.constant dense<0.000000e+00> : vector<16x16xf32>
    %461 = tpu.matmul %460, %61, %cst_268 {dimension_numbers = #tpu.dot_dimension_numbers<[1], [0], [0], [1], [0, 0, 1, 1], [], []>} : vector<16x32xf32>, vector<32x16xf32>, vector<16x16xf32> -> vector<16x16xf32>
    %462 = vector.broadcast %62 : vector<1x16xf32> to vector<16x16xf32>
    %463 = arith.addf %461, %462 : vector<16x16xf32>
    %cst_269 = arith.constant dense<0.000000e+00> : vector<16x32xf32>
    %464 = tpu.matmul %460, %63, %cst_269 {dimension_numbers = #tpu.dot_dimension_numbers<[1], [0], [0], [1], [0, 0, 1, 1], [], []>} : vector<16x32xf32>, vector<32x32xf32>, vector<16x32xf32> -> vector<16x32xf32>
    %465 = vector.broadcast %64 : vector<1x32xf32> to vector<16x32xf32>
    %466 = arith.addf %464, %465 : vector<16x32xf32>
    %467 = vector.broadcast %66 : vector<1x32xf32> to vector<16x32xf32>
    %468 = arith.addf %467, %460 : vector<16x32xf32>
    %469 = vector.extract_strided_slice %463 {offsets = [0, 0], sizes = [16, 8], strides = [1, 1]} : vector<16x16xf32> to vector<16x8xf32>
    %470 = vector.extract_strided_slice %466 {offsets = [0, 0], sizes = [16, 8], strides = [1, 1]} : vector<16x32xf32> to vector<16x8xf32>
    %471 = vector.extract_strided_slice %466 {offsets = [0, 16], sizes = [16, 8], strides = [1, 1]} : vector<16x32xf32> to vector<16x8xf32>
    %cst_270 = arith.constant dense<0.000000e+00> : vector<16x16xf32>
    %472 = tpu.matmul %469, %470, %cst_270 {dimension_numbers = #tpu.dot_dimension_numbers<[1], [1], [0], [0], [0, 0, 1, 0], [], []>} : vector<16x8xf32>, vector<16x8xf32>, vector<16x16xf32> -> vector<16x16xf32>
    %473 = arith.addf %472, %5 : vector<16x16xf32>
    %cst_271 = arith.constant dense<0xFF800000> : vector<16xf32>
    %474 = vector.multi_reduction <maximumf>, %473, %cst_271 [1] : vector<16x16xf32> to vector<16xf32>
    %475 = vector.shape_cast %474 : vector<16xf32> to vector<16x1xf32>
    %476 = vector.broadcast %475 : vector<16x1xf32> to vector<16x16xf32>
    %477 = arith.subf %473, %476 : vector<16x16xf32>
    %478 = math.exp %477 : vector<16x16xf32>
    %cst_272 = arith.constant dense<0.000000e+00> : vector<16xf32>
    %479 = vector.multi_reduction <add>, %478, %cst_272 [1] : vector<16x16xf32> to vector<16xf32>
    %480 = vector.shape_cast %479 : vector<16xf32> to vector<16x1xf32>
    %481 = tpu.reciprocal %480 {approx = true} : vector<16x1xf32> -> vector<16x1xf32>
    %482 = vector.broadcast %481 : vector<16x1xf32> to vector<16x16xf32>
    %483 = arith.mulf %478, %482 : vector<16x16xf32>
    %cst_273 = arith.constant dense<0.000000e+00> : vector<16x8xf32>
    %484 = tpu.matmul %483, %471, %cst_273 {dimension_numbers = #tpu.dot_dimension_numbers<[1], [0], [0], [1], [0, 0, 1, 1], [], []>} : vector<16x16xf32>, vector<16x8xf32>, vector<16x8xf32> -> vector<16x8xf32>
    %485 = vector.extract_strided_slice %65 {offsets = [0, 0], sizes = [8, 32], strides = [1, 1]} : vector<16x32xf32> to vector<8x32xf32>
    %cst_274 = arith.constant dense<0.000000e+00> : vector<16x32xf32>
    %486 = tpu.matmul %484, %485, %cst_274 {dimension_numbers = #tpu.dot_dimension_numbers<[1], [0], [0], [1], [0, 0, 1, 1], [], []>} : vector<16x8xf32>, vector<8x32xf32>, vector<16x32xf32> -> vector<16x32xf32>
    %487 = arith.addf %468, %486 : vector<16x32xf32>
    %488 = vector.extract_strided_slice %463 {offsets = [0, 8], sizes = [16, 8], strides = [1, 1]} : vector<16x16xf32> to vector<16x8xf32>
    %489 = vector.extract_strided_slice %466 {offsets = [0, 8], sizes = [16, 8], strides = [1, 1]} : vector<16x32xf32> to vector<16x8xf32>
    %490 = vector.extract_strided_slice %466 {offsets = [0, 24], sizes = [16, 8], strides = [1, 1]} : vector<16x32xf32> to vector<16x8xf32>
    %cst_275 = arith.constant dense<0.000000e+00> : vector<16x16xf32>
    %491 = tpu.matmul %488, %489, %cst_275 {dimension_numbers = #tpu.dot_dimension_numbers<[1], [1], [0], [0], [0, 0, 1, 0], [], []>} : vector<16x8xf32>, vector<16x8xf32>, vector<16x16xf32> -> vector<16x16xf32>
    %492 = arith.addf %491, %5 : vector<16x16xf32>
    %cst_276 = arith.constant dense<0xFF800000> : vector<16xf32>
    %493 = vector.multi_reduction <maximumf>, %492, %cst_276 [1] : vector<16x16xf32> to vector<16xf32>
    %494 = vector.shape_cast %493 : vector<16xf32> to vector<16x1xf32>
    %495 = vector.broadcast %494 : vector<16x1xf32> to vector<16x16xf32>
    %496 = arith.subf %492, %495 : vector<16x16xf32>
    %497 = math.exp %496 : vector<16x16xf32>
    %cst_277 = arith.constant dense<0.000000e+00> : vector<16xf32>
    %498 = vector.multi_reduction <add>, %497, %cst_277 [1] : vector<16x16xf32> to vector<16xf32>
    %499 = vector.shape_cast %498 : vector<16xf32> to vector<16x1xf32>
    %500 = tpu.reciprocal %499 {approx = true} : vector<16x1xf32> -> vector<16x1xf32>
    %501 = vector.broadcast %500 : vector<16x1xf32> to vector<16x16xf32>
    %502 = arith.mulf %497, %501 : vector<16x16xf32>
    %cst_278 = arith.constant dense<0.000000e+00> : vector<16x8xf32>
    %503 = tpu.matmul %502, %490, %cst_278 {dimension_numbers = #tpu.dot_dimension_numbers<[1], [0], [0], [1], [0, 0, 1, 1], [], []>} : vector<16x16xf32>, vector<16x8xf32>, vector<16x8xf32> -> vector<16x8xf32>
    %504 = vector.extract_strided_slice %65 {offsets = [8, 0], sizes = [8, 32], strides = [1, 1]} : vector<16x32xf32> to vector<8x32xf32>
    %cst_279 = arith.constant dense<0.000000e+00> : vector<16x32xf32>
    %505 = tpu.matmul %503, %504, %cst_279 {dimension_numbers = #tpu.dot_dimension_numbers<[1], [0], [0], [1], [0, 0, 1, 1], [], []>} : vector<16x8xf32>, vector<8x32xf32>, vector<16x32xf32> -> vector<16x32xf32>
    %506 = arith.addf %487, %505 : vector<16x32xf32>
    %cst_280 = arith.constant dense<0.000000e+00> : vector<16xf32>
    %507 = vector.multi_reduction <add>, %506, %cst_280 [1] : vector<16x32xf32> to vector<16xf32>
    %508 = vector.shape_cast %507 : vector<16xf32> to vector<16x1xf32>
    %cst_281 = arith.constant 3.200000e+01 : f32
    %509 = vector.broadcast %cst_281 : f32 to vector<16x1xf32>
    %510 = arith.divf %508, %509 : vector<16x1xf32>
    %511 = vector.broadcast %510 : vector<16x1xf32> to vector<16x32xf32>
    %512 = arith.subf %506, %511 : vector<16x32xf32>
    %513 = arith.mulf %512, %512 : vector<16x32xf32>
    %cst_282 = arith.constant dense<0.000000e+00> : vector<16xf32>
    %514 = vector.multi_reduction <add>, %513, %cst_282 [1] : vector<16x32xf32> to vector<16xf32>
    %515 = vector.shape_cast %514 : vector<16xf32> to vector<16x1xf32>
    %cst_283 = arith.constant 3.200000e+01 : f32
    %516 = vector.broadcast %cst_283 : f32 to vector<16x1xf32>
    %517 = arith.divf %515, %516 : vector<16x1xf32>
    %518 = vector.broadcast %510 : vector<16x1xf32> to vector<16x32xf32>
    %519 = arith.subf %506, %518 : vector<16x32xf32>
    %cst_284 = arith.constant 9.99999974E-6 : f32
    %520 = vector.broadcast %cst_284 : f32 to vector<16x1xf32>
    %521 = arith.addf %517, %520 : vector<16x1xf32>
    %522 = math.rsqrt %521 : vector<16x1xf32>
    %523 = vector.broadcast %522 : vector<16x1xf32> to vector<16x32xf32>
    %524 = arith.mulf %519, %523 : vector<16x32xf32>
    %525 = vector.broadcast %67 : vector<1x32xf32> to vector<16x32xf32>
    %526 = arith.mulf %524, %525 : vector<16x32xf32>
    %527 = vector.broadcast %68 : vector<1x32xf32> to vector<16x32xf32>
    %528 = arith.addf %526, %527 : vector<16x32xf32>
    %cst_285 = arith.constant dense<0.000000e+00> : vector<16x16xf32>
    %529 = tpu.matmul %528, %69, %cst_285 {dimension_numbers = #tpu.dot_dimension_numbers<[1], [0], [0], [1], [0, 0, 1, 1], [], []>} : vector<16x32xf32>, vector<32x16xf32>, vector<16x16xf32> -> vector<16x16xf32>
    %530 = vector.broadcast %70 : vector<1x16xf32> to vector<16x16xf32>
    %531 = arith.addf %529, %530 : vector<16x16xf32>
    %cst_286 = arith.constant dense<0.000000e+00> : vector<16x32xf32>
    %532 = tpu.matmul %288, %71, %cst_286 {dimension_numbers = #tpu.dot_dimension_numbers<[1], [0], [0], [1], [0, 0, 1, 1], [], []>} : vector<16x32xf32>, vector<32x32xf32>, vector<16x32xf32> -> vector<16x32xf32>
    %533 = vector.broadcast %72 : vector<1x32xf32> to vector<16x32xf32>
    %534 = arith.addf %532, %533 : vector<16x32xf32>
    %535 = vector.broadcast %74 : vector<1x32xf32> to vector<16x32xf32>
    %536 = arith.addf %535, %528 : vector<16x32xf32>
    %537 = vector.extract_strided_slice %531 {offsets = [0, 0], sizes = [16, 8], strides = [1, 1]} : vector<16x16xf32> to vector<16x8xf32>
    %538 = vector.extract_strided_slice %534 {offsets = [0, 0], sizes = [16, 8], strides = [1, 1]} : vector<16x32xf32> to vector<16x8xf32>
    %539 = vector.extract_strided_slice %534 {offsets = [0, 16], sizes = [16, 8], strides = [1, 1]} : vector<16x32xf32> to vector<16x8xf32>
    %cst_287 = arith.constant dense<0.000000e+00> : vector<16x16xf32>
    %540 = tpu.matmul %537, %538, %cst_287 {dimension_numbers = #tpu.dot_dimension_numbers<[1], [1], [0], [0], [0, 0, 1, 0], [], []>} : vector<16x8xf32>, vector<16x8xf32>, vector<16x16xf32> -> vector<16x16xf32>
    %541 = arith.addf %540, %6 : vector<16x16xf32>
    %cst_288 = arith.constant dense<0xFF800000> : vector<16xf32>
    %542 = vector.multi_reduction <maximumf>, %541, %cst_288 [1] : vector<16x16xf32> to vector<16xf32>
    %543 = vector.shape_cast %542 : vector<16xf32> to vector<16x1xf32>
    %544 = vector.broadcast %543 : vector<16x1xf32> to vector<16x16xf32>
    %545 = arith.subf %541, %544 : vector<16x16xf32>
    %546 = math.exp %545 : vector<16x16xf32>
    %cst_289 = arith.constant dense<0.000000e+00> : vector<16xf32>
    %547 = vector.multi_reduction <add>, %546, %cst_289 [1] : vector<16x16xf32> to vector<16xf32>
    %548 = vector.shape_cast %547 : vector<16xf32> to vector<16x1xf32>
    %549 = tpu.reciprocal %548 {approx = true} : vector<16x1xf32> -> vector<16x1xf32>
    %550 = vector.broadcast %549 : vector<16x1xf32> to vector<16x16xf32>
    %551 = arith.mulf %546, %550 : vector<16x16xf32>
    %cst_290 = arith.constant dense<0.000000e+00> : vector<16x8xf32>
    %552 = tpu.matmul %551, %539, %cst_290 {dimension_numbers = #tpu.dot_dimension_numbers<[1], [0], [0], [1], [0, 0, 1, 1], [], []>} : vector<16x16xf32>, vector<16x8xf32>, vector<16x8xf32> -> vector<16x8xf32>
    %553 = vector.extract_strided_slice %73 {offsets = [0, 0], sizes = [8, 32], strides = [1, 1]} : vector<16x32xf32> to vector<8x32xf32>
    %cst_291 = arith.constant dense<0.000000e+00> : vector<16x32xf32>
    %554 = tpu.matmul %552, %553, %cst_291 {dimension_numbers = #tpu.dot_dimension_numbers<[1], [0], [0], [1], [0, 0, 1, 1], [], []>} : vector<16x8xf32>, vector<8x32xf32>, vector<16x32xf32> -> vector<16x32xf32>
    %555 = arith.addf %536, %554 : vector<16x32xf32>
    %556 = vector.extract_strided_slice %531 {offsets = [0, 8], sizes = [16, 8], strides = [1, 1]} : vector<16x16xf32> to vector<16x8xf32>
    %557 = vector.extract_strided_slice %534 {offsets = [0, 8], sizes = [16, 8], strides = [1, 1]} : vector<16x32xf32> to vector<16x8xf32>
    %558 = vector.extract_strided_slice %534 {offsets = [0, 24], sizes = [16, 8], strides = [1, 1]} : vector<16x32xf32> to vector<16x8xf32>
    %cst_292 = arith.constant dense<0.000000e+00> : vector<16x16xf32>
    %559 = tpu.matmul %556, %557, %cst_292 {dimension_numbers = #tpu.dot_dimension_numbers<[1], [1], [0], [0], [0, 0, 1, 0], [], []>} : vector<16x8xf32>, vector<16x8xf32>, vector<16x16xf32> -> vector<16x16xf32>
    %560 = arith.addf %559, %6 : vector<16x16xf32>
    %cst_293 = arith.constant dense<0xFF800000> : vector<16xf32>
    %561 = vector.multi_reduction <maximumf>, %560, %cst_293 [1] : vector<16x16xf32> to vector<16xf32>
    %562 = vector.shape_cast %561 : vector<16xf32> to vector<16x1xf32>
    %563 = vector.broadcast %562 : vector<16x1xf32> to vector<16x16xf32>
    %564 = arith.subf %560, %563 : vector<16x16xf32>
    %565 = math.exp %564 : vector<16x16xf32>
    %cst_294 = arith.constant dense<0.000000e+00> : vector<16xf32>
    %566 = vector.multi_reduction <add>, %565, %cst_294 [1] : vector<16x16xf32> to vector<16xf32>
    %567 = vector.shape_cast %566 : vector<16xf32> to vector<16x1xf32>
    %568 = tpu.reciprocal %567 {approx = true} : vector<16x1xf32> -> vector<16x1xf32>
    %569 = vector.broadcast %568 : vector<16x1xf32> to vector<16x16xf32>
    %570 = arith.mulf %565, %569 : vector<16x16xf32>
    %cst_295 = arith.constant dense<0.000000e+00> : vector<16x8xf32>
    %571 = tpu.matmul %570, %558, %cst_295 {dimension_numbers = #tpu.dot_dimension_numbers<[1], [0], [0], [1], [0, 0, 1, 1], [], []>} : vector<16x16xf32>, vector<16x8xf32>, vector<16x8xf32> -> vector<16x8xf32>
    %572 = vector.extract_strided_slice %73 {offsets = [8, 0], sizes = [8, 32], strides = [1, 1]} : vector<16x32xf32> to vector<8x32xf32>
    %cst_296 = arith.constant dense<0.000000e+00> : vector<16x32xf32>
    %573 = tpu.matmul %571, %572, %cst_296 {dimension_numbers = #tpu.dot_dimension_numbers<[1], [0], [0], [1], [0, 0, 1, 1], [], []>} : vector<16x8xf32>, vector<8x32xf32>, vector<16x32xf32> -> vector<16x32xf32>
    %574 = arith.addf %555, %573 : vector<16x32xf32>
    %cst_297 = arith.constant dense<0.000000e+00> : vector<16xf32>
    %575 = vector.multi_reduction <add>, %574, %cst_297 [1] : vector<16x32xf32> to vector<16xf32>
    %576 = vector.shape_cast %575 : vector<16xf32> to vector<16x1xf32>
    %cst_298 = arith.constant 3.200000e+01 : f32
    %577 = vector.broadcast %cst_298 : f32 to vector<16x1xf32>
    %578 = arith.divf %576, %577 : vector<16x1xf32>
    %579 = vector.broadcast %578 : vector<16x1xf32> to vector<16x32xf32>
    %580 = arith.subf %574, %579 : vector<16x32xf32>
    %581 = arith.mulf %580, %580 : vector<16x32xf32>
    %cst_299 = arith.constant dense<0.000000e+00> : vector<16xf32>
    %582 = vector.multi_reduction <add>, %581, %cst_299 [1] : vector<16x32xf32> to vector<16xf32>
    %583 = vector.shape_cast %582 : vector<16xf32> to vector<16x1xf32>
    %cst_300 = arith.constant 3.200000e+01 : f32
    %584 = vector.broadcast %cst_300 : f32 to vector<16x1xf32>
    %585 = arith.divf %583, %584 : vector<16x1xf32>
    %586 = vector.broadcast %578 : vector<16x1xf32> to vector<16x32xf32>
    %587 = arith.subf %574, %586 : vector<16x32xf32>
    %cst_301 = arith.constant 9.99999974E-6 : f32
    %588 = vector.broadcast %cst_301 : f32 to vector<16x1xf32>
    %589 = arith.addf %585, %588 : vector<16x1xf32>
    %590 = math.rsqrt %589 : vector<16x1xf32>
    %591 = vector.broadcast %590 : vector<16x1xf32> to vector<16x32xf32>
    %592 = arith.mulf %587, %591 : vector<16x32xf32>
    %593 = vector.broadcast %75 : vector<1x32xf32> to vector<16x32xf32>
    %594 = arith.mulf %592, %593 : vector<16x32xf32>
    %595 = vector.broadcast %76 : vector<1x32xf32> to vector<16x32xf32>
    %596 = arith.addf %594, %595 : vector<16x32xf32>
    %cst_302 = arith.constant dense<0.000000e+00> : vector<16x64xf32>
    %597 = tpu.matmul %596, %77, %cst_302 {dimension_numbers = #tpu.dot_dimension_numbers<[1], [0], [0], [1], [0, 0, 1, 1], [], []>} : vector<16x32xf32>, vector<32x64xf32>, vector<16x64xf32> -> vector<16x64xf32>
    %598 = vector.broadcast %78 : vector<1x64xf32> to vector<16x64xf32>
    %599 = arith.addf %597, %598 : vector<16x64xf32>
    %cst_303 = arith.constant 0.000000e+00 : f32
    %600 = vector.broadcast %cst_303 : f32 to vector<16x64xf32>
    %601 = arith.maximumf %599, %600 : vector<16x64xf32>
    %cst_304 = arith.constant dense<0.000000e+00> : vector<16x32xf32>
    %602 = tpu.matmul %601, %79, %cst_304 {dimension_numbers = #tpu.dot_dimension_numbers<[1], [0], [0], [1], [0, 0, 1, 1], [], []>} : vector<16x64xf32>, vector<64x32xf32>, vector<16x32xf32> -> vector<16x32xf32>
    %603 = vector.broadcast %80 : vector<1x32xf32> to vector<16x32xf32>
    %604 = arith.addf %602, %603 : vector<16x32xf32>
    %605 = arith.addf %604, %596 : vector<16x32xf32>
    %cst_305 = arith.constant dense<0.000000e+00> : vector<16xf32>
    %606 = vector.multi_reduction <add>, %605, %cst_305 [1] : vector<16x32xf32> to vector<16xf32>
    %607 = vector.shape_cast %606 : vector<16xf32> to vector<16x1xf32>
    %cst_306 = arith.constant 3.200000e+01 : f32
    %608 = vector.broadcast %cst_306 : f32 to vector<16x1xf32>
    %609 = arith.divf %607, %608 : vector<16x1xf32>
    %610 = vector.broadcast %609 : vector<16x1xf32> to vector<16x32xf32>
    %611 = arith.subf %605, %610 : vector<16x32xf32>
    %612 = arith.mulf %611, %611 : vector<16x32xf32>
    %cst_307 = arith.constant dense<0.000000e+00> : vector<16xf32>
    %613 = vector.multi_reduction <add>, %612, %cst_307 [1] : vector<16x32xf32> to vector<16xf32>
    %614 = vector.shape_cast %613 : vector<16xf32> to vector<16x1xf32>
    %cst_308 = arith.constant 3.200000e+01 : f32
    %615 = vector.broadcast %cst_308 : f32 to vector<16x1xf32>
    %616 = arith.divf %614, %615 : vector<16x1xf32>
    %617 = vector.broadcast %609 : vector<16x1xf32> to vector<16x32xf32>
    %618 = arith.subf %605, %617 : vector<16x32xf32>
    %cst_309 = arith.constant 9.99999974E-6 : f32
    %619 = vector.broadcast %cst_309 : f32 to vector<16x1xf32>
    %620 = arith.addf %616, %619 : vector<16x1xf32>
    %621 = math.rsqrt %620 : vector<16x1xf32>
    %622 = vector.broadcast %621 : vector<16x1xf32> to vector<16x32xf32>
    %623 = arith.mulf %618, %622 : vector<16x32xf32>
    %624 = vector.broadcast %81 : vector<1x32xf32> to vector<16x32xf32>
    %625 = arith.mulf %623, %624 : vector<16x32xf32>
    %626 = vector.broadcast %82 : vector<1x32xf32> to vector<16x32xf32>
    %627 = arith.addf %625, %626 : vector<16x32xf32>
    %cst_310 = arith.constant dense<0.000000e+00> : vector<16x128xf32>
    %628 = tpu.matmul %627, %83, %cst_310 {dimension_numbers = #tpu.dot_dimension_numbers<[1], [0], [0], [1], [0, 0, 1, 1], [], []>} : vector<16x32xf32>, vector<32x128xf32>, vector<16x128xf32> -> vector<16x128xf32>
    %629 = vector.broadcast %84 : vector<1x128xf32> to vector<16x128xf32>
    %630 = arith.addf %628, %629 : vector<16x128xf32>
    %c0_311 = arith.constant 0 : index
    %c0_312 = arith.constant 0 : index
    %631 = vector.load %arg87[%c0_311, %c0_312] : memref<16x128xf32, #tpu.memory_space<vmem>>, vector<16x128xf32>
    tpu.vector_store %arg87[%c0_311, %c0_312], %630 {strides = array<i32>} : memref<16x128xf32, #tpu.memory_space<vmem>>, vector<16x128xf32>,
    %632 = vector.extract_strided_slice %288 {offsets = [0, 0], sizes = [1, 32], strides = [1, 1]} : vector<16x32xf32> to vector<1x32xf32>
    %633 = vector.extract_strided_slice %85 {offsets = [0, 0], sizes = [32, 128], strides = [1, 1]} : vector<256x128xf32> to vector<32x128xf32>
    %cst_313 = arith.constant dense<0.000000e+00> : vector<1x128xf32>
    %634 = tpu.matmul %632, %633, %cst_313 {dimension_numbers = #tpu.dot_dimension_numbers<[1], [0], [0], [1], [0, 0, 1, 1], [], []>} : vector<1x32xf32>, vector<32x128xf32>, vector<1x128xf32> -> vector<1x128xf32>
    %635 = arith.addf %86, %634 : vector<1x128xf32>
    %636 = vector.extract_strided_slice %288 {offsets = [1, 0], sizes = [1, 32], strides = [1, 1]} : vector<16x32xf32> to vector<1x32xf32>
    %637 = vector.extract_strided_slice %85 {offsets = [32, 0], sizes = [32, 128], strides = [1, 1]} : vector<256x128xf32> to vector<32x128xf32>
    %cst_314 = arith.constant dense<0.000000e+00> : vector<1x128xf32>
    %638 = tpu.matmul %636, %637, %cst_314 {dimension_numbers = #tpu.dot_dimension_numbers<[1], [0], [0], [1], [0, 0, 1, 1], [], []>} : vector<1x32xf32>, vector<32x128xf32>, vector<1x128xf32> -> vector<1x128xf32>
    %639 = arith.addf %635, %638 : vector<1x128xf32>
    %640 = vector.extract_strided_slice %288 {offsets = [2, 0], sizes = [1, 32], strides = [1, 1]} : vector<16x32xf32> to vector<1x32xf32>
    %641 = vector.extract_strided_slice %85 {offsets = [64, 0], sizes = [32, 128], strides = [1, 1]} : vector<256x128xf32> to vector<32x128xf32>
    %cst_315 = arith.constant dense<0.000000e+00> : vector<1x128xf32>
    %642 = tpu.matmul %640, %641, %cst_315 {dimension_numbers = #tpu.dot_dimension_numbers<[1], [0], [0], [1], [0, 0, 1, 1], [], []>} : vector<1x32xf32>, vector<32x128xf32>, vector<1x128xf32> -> vector<1x128xf32>
    %643 = arith.addf %639, %642 : vector<1x128xf32>
    %644 = vector.extract_strided_slice %288 {offsets = [3, 0], sizes = [1, 32], strides = [1, 1]} : vector<16x32xf32> to vector<1x32xf32>
    %645 = vector.extract_strided_slice %85 {offsets = [96, 0], sizes = [32, 128], strides = [1, 1]} : vector<256x128xf32> to vector<32x128xf32>
    %cst_316 = arith.constant dense<0.000000e+00> : vector<1x128xf32>
    %646 = tpu.matmul %644, %645, %cst_316 {dimension_numbers = #tpu.dot_dimension_numbers<[1], [0], [0], [1], [0, 0, 1, 1], [], []>} : vector<1x32xf32>, vector<32x128xf32>, vector<1x128xf32> -> vector<1x128xf32>
    %647 = arith.addf %643, %646 : vector<1x128xf32>
    %648 = vector.extract_strided_slice %288 {offsets = [4, 0], sizes = [1, 32], strides = [1, 1]} : vector<16x32xf32> to vector<1x32xf32>
    %649 = vector.extract_strided_slice %85 {offsets = [128, 0], sizes = [32, 128], strides = [1, 1]} : vector<256x128xf32> to vector<32x128xf32>
    %cst_317 = arith.constant dense<0.000000e+00> : vector<1x128xf32>
    %650 = tpu.matmul %648, %649, %cst_317 {dimension_numbers = #tpu.dot_dimension_numbers<[1], [0], [0], [1], [0, 0, 1, 1], [], []>} : vector<1x32xf32>, vector<32x128xf32>, vector<1x128xf32> -> vector<1x128xf32>
    %651 = arith.addf %647, %650 : vector<1x128xf32>
    %652 = vector.extract_strided_slice %288 {offsets = [5, 0], sizes = [1, 32], strides = [1, 1]} : vector<16x32xf32> to vector<1x32xf32>
    %653 = vector.extract_strided_slice %85 {offsets = [160, 0], sizes = [32, 128], strides = [1, 1]} : vector<256x128xf32> to vector<32x128xf32>
    %cst_318 = arith.constant dense<0.000000e+00> : vector<1x128xf32>
    %654 = tpu.matmul %652, %653, %cst_318 {dimension_numbers = #tpu.dot_dimension_numbers<[1], [0], [0], [1], [0, 0, 1, 1], [], []>} : vector<1x32xf32>, vector<32x128xf32>, vector<1x128xf32> -> vector<1x128xf32>
    %655 = arith.addf %651, %654 : vector<1x128xf32>
    %656 = vector.extract_strided_slice %288 {offsets = [6, 0], sizes = [1, 32], strides = [1, 1]} : vector<16x32xf32> to vector<1x32xf32>
    %657 = vector.extract_strided_slice %85 {offsets = [192, 0], sizes = [32, 128], strides = [1, 1]} : vector<256x128xf32> to vector<32x128xf32>
    %cst_319 = arith.constant dense<0.000000e+00> : vector<1x128xf32>
    %658 = tpu.matmul %656, %657, %cst_319 {dimension_numbers = #tpu.dot_dimension_numbers<[1], [0], [0], [1], [0, 0, 1, 1], [], []>} : vector<1x32xf32>, vector<32x128xf32>, vector<1x128xf32> -> vector<1x128xf32>
    %659 = arith.addf %655, %658 : vector<1x128xf32>
    %660 = vector.extract_strided_slice %288 {offsets = [7, 0], sizes = [1, 32], strides = [1, 1]} : vector<16x32xf32> to vector<1x32xf32>
    %661 = vector.extract_strided_slice %85 {offsets = [224, 0], sizes = [32, 128], strides = [1, 1]} : vector<256x128xf32> to vector<32x128xf32>
    %cst_320 = arith.constant dense<0.000000e+00> : vector<1x128xf32>
    %662 = tpu.matmul %660, %661, %cst_320 {dimension_numbers = #tpu.dot_dimension_numbers<[1], [0], [0], [1], [0, 0, 1, 1], [], []>} : vector<1x32xf32>, vector<32x128xf32>, vector<1x128xf32> -> vector<1x128xf32>
    %663 = arith.addf %659, %662 : vector<1x128xf32>
    %c0_321 = arith.constant 0 : index
    %c0_322 = arith.constant 0 : index
    %664 = vector.load %arg88[%c0_321, %c0_322] : memref<2x128xf32, #tpu.memory_space<vmem>>, vector<1x128xf32>
    tpu.vector_store %arg88[%c0_321, %c0_322], %663 {strides = array<i32>} : memref<2x128xf32, #tpu.memory_space<vmem>>, vector<1x128xf32>,
    %665 = vector.extract_strided_slice %288 {offsets = [8, 0], sizes = [1, 32], strides = [1, 1]} : vector<16x32xf32> to vector<1x32xf32>
    %666 = vector.extract_strided_slice %85 {offsets = [0, 0], sizes = [32, 128], strides = [1, 1]} : vector<256x128xf32> to vector<32x128xf32>
    %cst_323 = arith.constant dense<0.000000e+00> : vector<1x128xf32>
    %667 = tpu.matmul %665, %666, %cst_323 {dimension_numbers = #tpu.dot_dimension_numbers<[1], [0], [0], [1], [0, 0, 1, 1], [], []>} : vector<1x32xf32>, vector<32x128xf32>, vector<1x128xf32> -> vector<1x128xf32>
    %668 = arith.addf %86, %667 : vector<1x128xf32>
    %669 = vector.extract_strided_slice %288 {offsets = [9, 0], sizes = [1, 32], strides = [1, 1]} : vector<16x32xf32> to vector<1x32xf32>
    %670 = vector.extract_strided_slice %85 {offsets = [32, 0], sizes = [32, 128], strides = [1, 1]} : vector<256x128xf32> to vector<32x128xf32>
    %cst_324 = arith.constant dense<0.000000e+00> : vector<1x128xf32>
    %671 = tpu.matmul %669, %670, %cst_324 {dimension_numbers = #tpu.dot_dimension_numbers<[1], [0], [0], [1], [0, 0, 1, 1], [], []>} : vector<1x32xf32>, vector<32x128xf32>, vector<1x128xf32> -> vector<1x128xf32>
    %672 = arith.addf %668, %671 : vector<1x128xf32>
    %673 = vector.extract_strided_slice %288 {offsets = [10, 0], sizes = [1, 32], strides = [1, 1]} : vector<16x32xf32> to vector<1x32xf32>
    %674 = vector.extract_strided_slice %85 {offsets = [64, 0], sizes = [32, 128], strides = [1, 1]} : vector<256x128xf32> to vector<32x128xf32>
    %cst_325 = arith.constant dense<0.000000e+00> : vector<1x128xf32>
    %675 = tpu.matmul %673, %674, %cst_325 {dimension_numbers = #tpu.dot_dimension_numbers<[1], [0], [0], [1], [0, 0, 1, 1], [], []>} : vector<1x32xf32>, vector<32x128xf32>, vector<1x128xf32> -> vector<1x128xf32>
    %676 = arith.addf %672, %675 : vector<1x128xf32>
    %677 = vector.extract_strided_slice %288 {offsets = [11, 0], sizes = [1, 32], strides = [1, 1]} : vector<16x32xf32> to vector<1x32xf32>
    %678 = vector.extract_strided_slice %85 {offsets = [96, 0], sizes = [32, 128], strides = [1, 1]} : vector<256x128xf32> to vector<32x128xf32>
    %cst_326 = arith.constant dense<0.000000e+00> : vector<1x128xf32>
    %679 = tpu.matmul %677, %678, %cst_326 {dimension_numbers = #tpu.dot_dimension_numbers<[1], [0], [0], [1], [0, 0, 1, 1], [], []>} : vector<1x32xf32>, vector<32x128xf32>, vector<1x128xf32> -> vector<1x128xf32>
    %680 = arith.addf %676, %679 : vector<1x128xf32>
    %681 = vector.extract_strided_slice %288 {offsets = [12, 0], sizes = [1, 32], strides = [1, 1]} : vector<16x32xf32> to vector<1x32xf32>
    %682 = vector.extract_strided_slice %85 {offsets = [128, 0], sizes = [32, 128], strides = [1, 1]} : vector<256x128xf32> to vector<32x128xf32>
    %cst_327 = arith.constant dense<0.000000e+00> : vector<1x128xf32>
    %683 = tpu.matmul %681, %682, %cst_327 {dimension_numbers = #tpu.dot_dimension_numbers<[1], [0], [0], [1], [0, 0, 1, 1], [], []>} : vector<1x32xf32>, vector<32x128xf32>, vector<1x128xf32> -> vector<1x128xf32>
    %684 = arith.addf %680, %683 : vector<1x128xf32>
    %685 = vector.extract_strided_slice %288 {offsets = [13, 0], sizes = [1, 32], strides = [1, 1]} : vector<16x32xf32> to vector<1x32xf32>
    %686 = vector.extract_strided_slice %85 {offsets = [160, 0], sizes = [32, 128], strides = [1, 1]} : vector<256x128xf32> to vector<32x128xf32>
    %cst_328 = arith.constant dense<0.000000e+00> : vector<1x128xf32>
    %687 = tpu.matmul %685, %686, %cst_328 {dimension_numbers = #tpu.dot_dimension_numbers<[1], [0], [0], [1], [0, 0, 1, 1], [], []>} : vector<1x32xf32>, vector<32x128xf32>, vector<1x128xf32> -> vector<1x128xf32>
    %688 = arith.addf %684, %687 : vector<1x128xf32>
    %689 = vector.extract_strided_slice %288 {offsets = [14, 0], sizes = [1, 32], strides = [1, 1]} : vector<16x32xf32> to vector<1x32xf32>
    %690 = vector.extract_strided_slice %85 {offsets = [192, 0], sizes = [32, 128], strides = [1, 1]} : vector<256x128xf32> to vector<32x128xf32>
    %cst_329 = arith.constant dense<0.000000e+00> : vector<1x128xf32>
    %691 = tpu.matmul %689, %690, %cst_329 {dimension_numbers = #tpu.dot_dimension_numbers<[1], [0], [0], [1], [0, 0, 1, 1], [], []>} : vector<1x32xf32>, vector<32x128xf32>, vector<1x128xf32> -> vector<1x128xf32>
    %692 = arith.addf %688, %691 : vector<1x128xf32>
    %693 = vector.extract_strided_slice %288 {offsets = [15, 0], sizes = [1, 32], strides = [1, 1]} : vector<16x32xf32> to vector<1x32xf32>
    %694 = vector.extract_strided_slice %85 {offsets = [224, 0], sizes = [32, 128], strides = [1, 1]} : vector<256x128xf32> to vector<32x128xf32>
    %cst_330 = arith.constant dense<0.000000e+00> : vector<1x128xf32>
    %695 = tpu.matmul %693, %694, %cst_330 {dimension_numbers = #tpu.dot_dimension_numbers<[1], [0], [0], [1], [0, 0, 1, 1], [], []>} : vector<1x32xf32>, vector<32x128xf32>, vector<1x128xf32> -> vector<1x128xf32>
    %696 = arith.addf %692, %695 : vector<1x128xf32>
    %c1 = arith.constant 1 : index
    %c0_331 = arith.constant 0 : index
    %697 = vector.load %arg88[%c1, %c0_331] : memref<2x128xf32, #tpu.memory_space<vmem>>, vector<1x128xf32>
    tpu.vector_store %arg88[%c1, %c0_331], %696 {strides = array<i32>} : memref<2x128xf32, #tpu.memory_space<vmem>>, vector<1x128xf32>,
    return
  }
}

</mosaic_0001>

<llo_original>
// kernel: _lambda_.1
$region0: #{_lambda_.1}
  #allocation0 [shape = 'u32[]', space=smem, size = 0x4, offset = 0x4, fixed_abs, tag = 'smem constant byte address 0x4 - core index']
  #allocation1 [shape = 'u32[144,128]{1,0:T(1,128)}', space=vmem, size = 0x12000, scoped, tag = 'internal scratch']
  %s0 = inlined_call_operand.smem [shape: u32[90], index: -1, kind: input, shape index: {}]
  %s1 = sld [smem:[%s0]]
  %s2 = scalar_lea.smem %s0, 1
  %s3 = sld [smem:[%s2]]
  %s4 = scalar_lea.smem %s0, 2
  %s5 = sld [smem:[%s4]]
  %s6 = scalar_lea.smem %s0, 3
  %s7 = sld [smem:[%s6]]
  %s8 = scalar_lea.smem %s0, 4
  %s9 = sld [smem:[%s8]]
  %s10 = scalar_lea.smem %s0, 5
  %s11 = sld [smem:[%s10]]
  %s12 = scalar_lea.smem %s0, 6
  %s13 = sld [smem:[%s12]]
  %s14 = scalar_lea.smem %s0, 7
  %s15 = sld [smem:[%s14]]
  %s16 = scalar_lea.smem %s0, 8
  %s17 = sld [smem:[%s16]]
  %s18 = scalar_lea.smem %s0, 9
  %s19 = sld [smem:[%s18]]
  %s20 = scalar_lea.smem %s0, 10
  %s21 = sld [smem:[%s20]]
  %s22 = scalar_lea.smem %s0, 11
  %s23 = sld [smem:[%s22]]
  %s24 = scalar_lea.smem %s0, 12
  %s25 = sld [smem:[%s24]]
  %s26 = scalar_lea.smem %s0, 13
  %s27 = sld [smem:[%s26]]
  %s28 = scalar_lea.smem %s0, 14
  %s29 = sld [smem:[%s28]]
  %s30 = scalar_lea.smem %s0, 15
  %s31 = sld [smem:[%s30]]
  %s32 = scalar_lea.smem %s0, 16
  %s33 = sld [smem:[%s32]]
  %s34 = scalar_lea.smem %s0, 17
  %s35 = sld [smem:[%s34]]
  %s36 = scalar_lea.smem %s0, 18
  %s37 = sld [smem:[%s36]]
  %s38 = scalar_lea.smem %s0, 19
  %s39 = sld [smem:[%s38]]
  %s40 = scalar_lea.smem %s0, 20
  %s41 = sld [smem:[%s40]]
  %s42 = scalar_lea.smem %s0, 21
  %s43 = sld [smem:[%s42]]
  %s44 = scalar_lea.smem %s0, 22
  %s45 = sld [smem:[%s44]]
  %s46 = scalar_lea.smem %s0, 23
  %s47 = sld [smem:[%s46]]
  %s48 = scalar_lea.smem %s0, 24
  %s49 = sld [smem:[%s48]]
  %s50 = scalar_lea.smem %s0, 25
  %s51 = sld [smem:[%s50]]
  %s52 = scalar_lea.smem %s0, 26
  %s53 = sld [smem:[%s52]]
  %s54 = scalar_lea.smem %s0, 27
  %s55 = sld [smem:[%s54]]
  %s56 = scalar_lea.smem %s0, 28
  %s57 = sld [smem:[%s56]]
  %s58 = scalar_lea.smem %s0, 29
  %s59 = sld [smem:[%s58]]
  %s60 = scalar_lea.smem %s0, 30
  %s61 = sld [smem:[%s60]]
  %s62 = scalar_lea.smem %s0, 31
  %s63 = sld [smem:[%s62]]
  %s64 = scalar_lea.smem %s0, 32
  %s65 = sld [smem:[%s64]]
  %s66 = scalar_lea.smem %s0, 33
  %s67 = sld [smem:[%s66]]
  %s68 = scalar_lea.smem %s0, 34
  %s69 = sld [smem:[%s68]]
  %s70 = scalar_lea.smem %s0, 35
  %s71 = sld [smem:[%s70]]
  %s72 = scalar_lea.smem %s0, 36
  %s73 = sld [smem:[%s72]]
  %s74 = scalar_lea.smem %s0, 37
  %s75 = sld [smem:[%s74]]
  %s76 = scalar_lea.smem %s0, 38
  %s77 = sld [smem:[%s76]]
  %s78 = scalar_lea.smem %s0, 39
  %s79 = sld [smem:[%s78]]
  %s80 = scalar_lea.smem %s0, 40
  %s81 = sld [smem:[%s80]]
  %s82 = scalar_lea.smem %s0, 41
  %s83 = sld [smem:[%s82]]
  %s84 = scalar_lea.smem %s0, 42
  %s85 = sld [smem:[%s84]]
  %s86 = scalar_lea.smem %s0, 43
  %s87 = sld [smem:[%s86]]
  %s88 = scalar_lea.smem %s0, 44
  %s89 = sld [smem:[%s88]]
  %s90 = scalar_lea.smem %s0, 45
  %s91 = sld [smem:[%s90]]
  %s92 = scalar_lea.smem %s0, 46
  %s93 = sld [smem:[%s92]]
  %s94 = scalar_lea.smem %s0, 47
  %s95 = sld [smem:[%s94]]
  %s96 = scalar_lea.smem %s0, 48
  %s97 = sld [smem:[%s96]]
  %s98 = scalar_lea.smem %s0, 49
  %s99 = sld [smem:[%s98]]
  %s100 = scalar_lea.smem %s0, 50
  %s101 = sld [smem:[%s100]]
  %s102 = scalar_lea.smem %s0, 51
  %s103 = sld [smem:[%s102]]
  %s104 = scalar_lea.smem %s0, 52
  %s105 = sld [smem:[%s104]]
  %s106 = scalar_lea.smem %s0, 53
  %s107 = sld [smem:[%s106]]
  %s108 = scalar_lea.smem %s0, 54
  %s109 = sld [smem:[%s108]]
  %s110 = scalar_lea.smem %s0, 55
  %s111 = sld [smem:[%s110]]
  %s112 = scalar_lea.smem %s0, 56
  %s113 = sld [smem:[%s112]]
  %s114 = scalar_lea.smem %s0, 57
  %s115 = sld [smem:[%s114]]
  %s116 = scalar_lea.smem %s0, 58
  %s117 = sld [smem:[%s116]]
  %s118 = scalar_lea.smem %s0, 59
  %s119 = sld [smem:[%s118]]
  %s120 = scalar_lea.smem %s0, 60
  %s121 = sld [smem:[%s120]]
  %s122 = scalar_lea.smem %s0, 61
  %s123 = sld [smem:[%s122]]
  %s124 = scalar_lea.smem %s0, 62
  %s125 = sld [smem:[%s124]]
  %s126 = scalar_lea.smem %s0, 63
  %s127 = sld [smem:[%s126]]
  %s128 = scalar_lea.smem %s0, 64
  %s129 = sld [smem:[%s128]]
  %s130 = scalar_lea.smem %s0, 65
  %s131 = sld [smem:[%s130]]
  %s132 = scalar_lea.smem %s0, 66
  %s133 = sld [smem:[%s132]]
  %s134 = scalar_lea.smem %s0, 67
  %s135 = sld [smem:[%s134]]
  %s136 = scalar_lea.smem %s0, 68
  %s137 = sld [smem:[%s136]]
  %s138 = scalar_lea.smem %s0, 69
  %s139 = sld [smem:[%s138]]
  %s140 = scalar_lea.smem %s0, 70
  %s141 = sld [smem:[%s140]]
  %s142 = scalar_lea.smem %s0, 71
  %s143 = sld [smem:[%s142]]
  %s144 = scalar_lea.smem %s0, 72
  %s145 = sld [smem:[%s144]]
  %s146 = scalar_lea.smem %s0, 73
  %s147 = sld [smem:[%s146]]
  %s148 = scalar_lea.smem %s0, 74
  %s149 = sld [smem:[%s148]]
  %s150 = scalar_lea.smem %s0, 75
  %s151 = sld [smem:[%s150]]
  %s152 = scalar_lea.smem %s0, 76
  %s153 = sld [smem:[%s152]]
  %s154 = scalar_lea.smem %s0, 77
  %s155 = sld [smem:[%s154]]
  %s156 = scalar_lea.smem %s0, 78
  %s157 = sld [smem:[%s156]]
  %s158 = scalar_lea.smem %s0, 79
  %s159 = sld [smem:[%s158]]
  %s160 = scalar_lea.smem %s0, 80
  %s161 = sld [smem:[%s160]]
  %s162 = scalar_lea.smem %s0, 81
  %s163 = sld [smem:[%s162]]
  %s164 = scalar_lea.smem %s0, 82
  %s165 = sld [smem:[%s164]]
  %s166 = scalar_lea.smem %s0, 83
  %s167 = sld [smem:[%s166]]
  %s168 = scalar_lea.smem %s0, 84
  %s169 = sld [smem:[%s168]]
  %s170 = scalar_lea.smem %s0, 85
  %s171 = sld [smem:[%s170]]
  %s172 = scalar_lea.smem %s0, 86
  %s173 = sld [smem:[%s172]]
  %s174 = scalar_lea.smem %s0, 87
  %s175 = sld [smem:[%s174]]
  %s176 = scalar_lea.smem %s0, 88
  %s177 = sld [smem:[%s176]]
  %s178 = scalar_lea.smem %s0, 89
  %s179 = sld [smem:[%s178]]
  %180 = xla_tuple %s175, %s177, %s179
  %s181 = sld [smem:[#allocation0]]
  $region586: #{_lambda_.1} parent=0
    _
  %s183 = ssub.s32 1, %s181
  %s184 = scalar_select 0, %s183, %s181
  $region1: #{_lambda_.1} parent=0
    #allocation2 [shape = 'u8[512]{0}', space=vmem, size = 0x400, scoped, tag = 'input window, operand 12, single buffered']
    #allocation3 [shape = 's32[1]{0}', space=sflag, size = 0x4, scoped, tag = 'scoped memory for _lambda_.1']
    #allocation4 [shape = 's32[1]{0}', space=sflag, size = 0x4, scoped, tag = 'scoped memory for _lambda_.1']
    #allocation5 [shape = 'u8[512]{0}', space=vmem, size = 0x400, scoped, tag = 'input window, operand 14, single buffered']
    #allocation6 [shape = 's32[1]{0}', space=sflag, size = 0x4, scoped, tag = 'scoped memory for _lambda_.1']
    #allocation7 [shape = 'u8[8192]{0}', space=vmem, size = 0x2000, scoped, tag = 'input window, operand 15, single buffered']
    #allocation8 [shape = 'u8[512]{0}', space=vmem, size = 0x400, scoped, tag = 'input window, operand 16, single buffered']
    #allocation9 [shape = 's32[1]{0}', space=sflag, size = 0x4, scoped, tag = 'scoped memory for _lambda_.1']
    #allocation10 [shape = 'u8[512]{0}', space=vmem, size = 0x400, scoped, tag = 'input window, operand 17, single buffered']
    #allocation11 [shape = 'u8[512]{0}', space=vmem, size = 0x400, scoped, tag = 'input window, operand 18, single buffered']
    #allocation12 [shape = 's32[1]{0}', space=sflag, size = 0x4, scoped, tag = 'scoped memory for _lambda_.1']
    #allocation13 [shape = 'u8[512]{0}', space=vmem, size = 0x400, scoped, tag = 'input window, operand 20, single buffered']
    #allocation14 [shape = 'u8[512]{0}', space=vmem, size = 0x400, scoped, tag = 'input window, operand 22, single buffered']
    #allocation15 [shape = 's32[1]{0}', space=sflag, size = 0x4, scoped, tag = 'scoped memory for _lambda_.1']
    #allocation16 [shape = 'u8[512]{0}', space=vmem, size = 0x400, scoped, tag = 'input window, operand 23, single buffered']
    #allocation17 [shape = 'u8[512]{0}', space=vmem, size = 0x400, scoped, tag = 'input window, operand 24, single buffered']
    #allocation18 [shape = 's32[1]{0}', space=sflag, size = 0x4, scoped, tag = 'scoped memory for _lambda_.1']
    #allocation19 [shape = 'u8[512]{0}', space=vmem, size = 0x400, scoped, tag = 'input window, operand 26, single buffered']
    #allocation20 [shape = 'u8[512]{0}', space=vmem, size = 0x400, scoped, tag = 'input window, operand 28, single buffered']
    #allocation21 [shape = 's32[1]{0}', space=sflag, size = 0x4, scoped, tag = 'scoped memory for _lambda_.1']
    #allocation22 [shape = 'u8[8192]{0}', space=vmem, size = 0x2000, scoped, tag = 'input window, operand 29, single buffered']
    #allocation23 [shape = 'u8[512]{0}', space=vmem, size = 0x400, scoped, tag = 'input window, operand 30, single buffered']
    #allocation24 [shape = 's32[1]{0}', space=sflag, size = 0x4, scoped, tag = 'scoped memory for _lambda_.1']
    #allocation25 [shape = 'u8[512]{0}', space=vmem, size = 0x400, scoped, tag = 'input window, operand 31, single buffered']
    #allocation26 [shape = 'u8[512]{0}', space=vmem, size = 0x400, scoped, tag = 'input window, operand 32, single buffered']
    #allocation27 [shape = 's32[1]{0}', space=sflag, size = 0x4, scoped, tag = 'scoped memory for _lambda_.1']
    #allocation28 [shape = 'u8[512]{0}', space=vmem, size = 0x400, scoped, tag = 'input window, operand 34, single buffered']
    #allocation29 [shape = 'u8[512]{0}', space=vmem, size = 0x400, scoped, tag = 'input window, operand 36, single buffered']
    #allocation30 [shape = 's32[1]{0}', space=sflag, size = 0x4, scoped, tag = 'scoped memory for _lambda_.1']
    #allocation31 [shape = 'u8[512]{0}', space=vmem, size = 0x400, scoped, tag = 'input window, operand 37, single buffered']
    #allocation32 [shape = 'u8[512]{0}', space=vmem, size = 0x400, scoped, tag = 'input window, operand 38, single buffered']
    #allocation33 [shape = 's32[1]{0}', space=sflag, size = 0x4, scoped, tag = 'scoped memory for _lambda_.1']
    #allocation34 [shape = 'u8[512]{0}', space=vmem, size = 0x400, scoped, tag = 'input window, operand 40, single buffered']
    #allocation35 [shape = 'u8[512]{0}', space=vmem, size = 0x400, scoped, tag = 'input window, operand 42, single buffered']
    #allocation36 [shape = 's32[1]{0}', space=sflag, size = 0x4, scoped, tag = 'scoped memory for _lambda_.1']
    #allocation37 [shape = 'u8[8192]{0}', space=vmem, size = 0x2000, scoped, tag = 'input window, operand 43, single buffered']
    #allocation38 [shape = 'u8[512]{0}', space=vmem, size = 0x400, scoped, tag = 'input window, operand 44, single buffered']
    #allocation39 [shape = 's32[1]{0}', space=sflag, size = 0x4, scoped, tag = 'scoped memory for _lambda_.1']
    #allocation40 [shape = 'u8[512]{0}', space=vmem, size = 0x400, scoped, tag = 'input window, operand 45, single buffered']
    #allocation41 [shape = 'u8[512]{0}', space=vmem, size = 0x400, scoped, tag = 'input window, operand 46, single buffered']
    #allocation42 [shape = 's32[1]{0}', space=sflag, size = 0x4, scoped, tag = 'scoped memory for _lambda_.1']
    #allocation43 [shape = 'u8[512]{0}', space=vmem, size = 0x400, scoped, tag = 'input window, operand 48, single buffered']
    #allocation44 [shape = 'u8[512]{0}', space=vmem, size = 0x400, scoped, tag = 'input window, operand 50, single buffered']
    #allocation45 [shape = 's32[1]{0}', space=sflag, size = 0x4, scoped, tag = 'scoped memory for _lambda_.1']
    #allocation46 [shape = 'u8[8192]{0}', space=vmem, size = 0x2000, scoped, tag = 'input window, operand 51, single buffered']
    #allocation47 [shape = 'u8[512]{0}', space=vmem, size = 0x400, scoped, tag = 'input window, operand 52, single buffered']
    #allocation48 [shape = 's32[1]{0}', space=sflag, size = 0x4, scoped, tag = 'scoped memory for _lambda_.1']
    #allocation49 [shape = 'u8[512]{0}', space=vmem, size = 0x400, scoped, tag = 'input window, operand 53, single buffered']
    #allocation50 [shape = 'u8[512]{0}', space=vmem, size = 0x400, scoped, tag = 'input window, operand 54, single buffered']
    #allocation51 [shape = 's32[1]{0}', space=sflag, size = 0x4, scoped, tag = 'scoped memory for _lambda_.1']
    #allocation52 [shape = 'u8[512]{0}', space=vmem, size = 0x400, scoped, tag = 'input window, operand 56, single buffered']
    #allocation53 [shape = 'u8[512]{0}', space=vmem, size = 0x400, scoped, tag = 'input window, operand 58, single buffered']
    #allocation54 [shape = 's32[1]{0}', space=sflag, size = 0x4, scoped, tag = 'scoped memory for _lambda_.1']
    #allocation55 [shape = 'u8[512]{0}', space=vmem, size = 0x400, scoped, tag = 'input window, operand 59, single buffered']
    #allocation56 [shape = 'u8[512]{0}', space=vmem, size = 0x400, scoped, tag = 'input window, operand 60, single buffered']
    #allocation57 [shape = 's32[1]{0}', space=sflag, size = 0x4, scoped, tag = 'scoped memory for _lambda_.1']
    #allocation58 [shape = 'u8[512]{0}', space=vmem, size = 0x400, scoped, tag = 'input window, operand 62, single buffered']
    #allocation59 [shape = 'u8[512]{0}', space=vmem, size = 0x400, scoped, tag = 'input window, operand 64, single buffered']
    #allocation60 [shape = 's32[1]{0}', space=sflag, size = 0x4, scoped, tag = 'scoped memory for _lambda_.1']
    #allocation61 [shape = 'u8[8192]{0}', space=vmem, size = 0x2000, scoped, tag = 'input window, operand 65, single buffered']
    #allocation62 [shape = 'u8[512]{0}', space=vmem, size = 0x400, scoped, tag = 'input window, operand 66, single buffered']
    #allocation63 [shape = 's32[1]{0}', space=sflag, size = 0x4, scoped, tag = 'scoped memory for _lambda_.1']
    #allocation64 [shape = 'u8[512]{0}', space=vmem, size = 0x400, scoped, tag = 'input window, operand 67, single buffered']
    #allocation65 [shape = 'u8[512]{0}', space=vmem, size = 0x400, scoped, tag = 'input window, operand 68, single buffered']
    #allocation66 [shape = 's32[1]{0}', space=sflag, size = 0x4, scoped, tag = 'scoped memory for _lambda_.1']
    #allocation67 [shape = 'u8[512]{0}', space=vmem, size = 0x400, scoped, tag = 'input window, operand 70, single buffered']
    #allocation68 [shape = 'u8[512]{0}', space=vmem, size = 0x400, scoped, tag = 'input window, operand 72, single buffered']
    #allocation69 [shape = 's32[1]{0}', space=sflag, size = 0x4, scoped, tag = 'scoped memory for _lambda_.1']
    #allocation70 [shape = 'u8[8192]{0}', space=vmem, size = 0x2000, scoped, tag = 'input window, operand 73, single buffered']
    #allocation71 [shape = 'u8[512]{0}', space=vmem, size = 0x400, scoped, tag = 'input window, operand 74, single buffered']
    #allocation72 [shape = 's32[1]{0}', space=sflag, size = 0x4, scoped, tag = 'scoped memory for _lambda_.1']
    #allocation73 [shape = 'u8[512]{0}', space=vmem, size = 0x400, scoped, tag = 'input window, operand 75, single buffered']
    #allocation74 [shape = 'u8[512]{0}', space=vmem, size = 0x400, scoped, tag = 'input window, operand 76, single buffered']
    #allocation75 [shape = 's32[1]{0}', space=sflag, size = 0x4, scoped, tag = 'scoped memory for _lambda_.1']
    #allocation76 [shape = 'u8[512]{0}', space=vmem, size = 0x400, scoped, tag = 'input window, operand 78, single buffered']
    #allocation77 [shape = 'u8[512]{0}', space=vmem, size = 0x400, scoped, tag = 'input window, operand 80, single buffered']
    #allocation78 [shape = 's32[1]{0}', space=sflag, size = 0x4, scoped, tag = 'scoped memory for _lambda_.1']
    #allocation79 [shape = 'u8[512]{0}', space=vmem, size = 0x400, scoped, tag = 'input window, operand 81, single buffered']
    #allocation80 [shape = 'u8[512]{0}', space=vmem, size = 0x400, scoped, tag = 'input window, operand 82, single buffered']
    #allocation81 [shape = 's32[1]{0}', space=sflag, size = 0x4, scoped, tag = 'scoped memory for _lambda_.1']
    #allocation82 [shape = 'u8[512]{0}', space=vmem, size = 0x400, scoped, tag = 'input window, operand 86, single buffered']
    #allocation83 [shape = 'u8[1024]{0}', space=vmem, size = 0x400, scoped, tag = 'output window, operand 1, single buffered']
    #allocation84 [shape = 'u8[8192]{0}', space=vmem, size = 0x2000, scoped, tag = 'output window, operand 2, single buffered']
    #allocation85 [shape = 's32[1]{0}', space=sflag, size = 0x4, scoped, tag = 'scoped memory for _lambda_.1']
    %185 = vsyncpa [#allocation3], 0
    %186 = vsyncpa [#allocation6], 0
    %187 = vsyncpa [#allocation9], 0
    %188 = vsyncpa [#allocation12], 0
    %189 = vsyncpa [#allocation15], 0
    %190 = vsyncpa [#allocation18], 0
    %191 = vsyncpa [#allocation21], 0
    %192 = vsyncpa [#allocation24], 0
    %193 = vsyncpa [#allocation27], 0
    %194 = vsyncpa [#allocation30], 0
    %195 = vsyncpa [#allocation33], 0
    %196 = vsyncpa [#allocation36], 0
    %197 = vsyncpa [#allocation39], 0
    %198 = vsyncpa [#allocation42], 0
    %199 = vsyncpa [#allocation45], 0
    %200 = vsyncpa [#allocation48], 0
    %201 = vsyncpa [#allocation51], 0
    %202 = vsyncpa [#allocation54], 0
    %203 = vsyncpa [#allocation57], 0
    %204 = vsyncpa [#allocation60], 0
    %205 = vsyncpa [#allocation63], 0
    %206 = vsyncpa [#allocation66], 0
    %207 = vsyncpa [#allocation69], 0
    %208 = vsyncpa [#allocation72], 0
    %209 = vsyncpa [#allocation75], 0
    %210 = vsyncpa [#allocation78], 0
    %211 = vsyncpa [#allocation81], 0
    %212 = vsyncpa [#allocation4], 0
    %213 = vsyncpa [#allocation85], 0
    // Predicated region
    $region2: #{_lambda_.1} parent=1 // pred_check
      _
    $region3: #{_lambda_.1} parent=1 // pred_check_branch
      %215 = sbr.rel (0) target = $region5
    $region4: #{_lambda_.1} parent=1 // pred_region
      _
    $region5: #{_lambda_.1} parent=1 // pred_fallthru
      _
    // Predicated region
    $region6: #{_lambda_.1} parent=1 // pred_check
      _
    $region7: #{_lambda_.1} parent=1 // pred_check_branch
      %217 = sbr.rel (0) target = $region9
    $region8: #{_lambda_.1} parent=1 // pred_region
      _
    $region9: #{_lambda_.1} parent=1 // pred_fallthru
      _
    // Predicated region
    $region10: #{_lambda_.1} parent=1 // pred_check
      _
    $region11: #{_lambda_.1} parent=1 // pred_check_branch
      %219 = sbr.rel (0) target = $region13
    $region12: #{_lambda_.1} parent=1 // pred_region
      _
    $region13: #{_lambda_.1} parent=1 // pred_fallthru
      _
    // Predicated region
    $region14: #{_lambda_.1} parent=1 // pred_check
      _
    $region15: #{_lambda_.1} parent=1 // pred_check_branch
      %221 = sbr.rel (0) target = $region17
    $region16: #{_lambda_.1} parent=1 // pred_region
      _
    $region17: #{_lambda_.1} parent=1 // pred_fallthru
      _
    // Predicated region
    $region18: #{_lambda_.1} parent=1 // pred_check
      _
    $region19: #{_lambda_.1} parent=1 // pred_check_branch
      %223 = sbr.rel (0) target = $region21
    $region20: #{_lambda_.1} parent=1 // pred_region
      _
    $region21: #{_lambda_.1} parent=1 // pred_fallthru
      _
    // Predicated region
    $region22: #{_lambda_.1} parent=1 // pred_check
      _
    $region23: #{_lambda_.1} parent=1 // pred_check_branch
      %225 = sbr.rel (0) target = $region25
    $region24: #{_lambda_.1} parent=1 // pred_region
      _
    $region25: #{_lambda_.1} parent=1 // pred_fallthru
      _
    // Predicated region
    $region26: #{_lambda_.1} parent=1 // pred_check
      _
    $region27: #{_lambda_.1} parent=1 // pred_check_branch
      %227 = sbr.rel (0) target = $region29
    $region28: #{_lambda_.1} parent=1 // pred_region
      _
    $region29: #{_lambda_.1} parent=1 // pred_fallthru
      _
    // Predicated region
    $region30: #{_lambda_.1} parent=1 // pred_check
      _
    $region31: #{_lambda_.1} parent=1 // pred_check_branch
      %229 = sbr.rel (0) target = $region33
    $region32: #{_lambda_.1} parent=1 // pred_region
      _
    $region33: #{_lambda_.1} parent=1 // pred_fallthru
      _
    // Predicated region
    $region34: #{_lambda_.1} parent=1 // pred_check
      _
    $region35: #{_lambda_.1} parent=1 // pred_check_branch
      %231 = sbr.rel (0) target = $region37
    $region36: #{_lambda_.1} parent=1 // pred_region
      _
    $region37: #{_lambda_.1} parent=1 // pred_fallthru
      _
    // Predicated region
    $region38: #{_lambda_.1} parent=1 // pred_check
      _
    $region39: #{_lambda_.1} parent=1 // pred_check_branch
      %233 = sbr.rel (0) target = $region41
    $region40: #{_lambda_.1} parent=1 // pred_region
      _
    $region41: #{_lambda_.1} parent=1 // pred_fallthru
      _
    // Predicated region
    $region42: #{_lambda_.1} parent=1 // pred_check
      _
    $region43: #{_lambda_.1} parent=1 // pred_check_branch
      %235 = sbr.rel (0) target = $region45
    $region44: #{_lambda_.1} parent=1 // pred_region
      _
    $region45: #{_lambda_.1} parent=1 // pred_fallthru
      _
    // Predicated region
    $region46: #{_lambda_.1} parent=1 // pred_check
      _
    $region47: #{_lambda_.1} parent=1 // pred_check_branch
      %237 = sbr.rel (0) target = $region49
    $region48: #{_lambda_.1} parent=1 // pred_region
      _
    $region49: #{_lambda_.1} parent=1 // pred_fallthru
      _
    // Predicated region
    $region50: #{_lambda_.1} parent=1 // pred_check
      _
    $region51: #{_lambda_.1} parent=1 // pred_check_branch
      %239 = sbr.rel (0) target = $region53
    $region52: #{_lambda_.1} parent=1 // pred_region
      %s241 = ssub.s32 16, 16
      %242 = vsyncadd [#allocation3], %s241
      %s244 = sshll.u32 [#allocation2], 4
      %s245 = int_to_ptr.vmem [resolvable:$true] %s244
      %247 = dma.hbm_to_vmem [thread:$0]  %s25, 16, %s245, [#allocation3]
    $region53: #{_lambda_.1} parent=1 // pred_fallthru
      _
    // Predicated region
    $region54: #{_lambda_.1} parent=1 // pred_check
      _
    $region55: #{_lambda_.1} parent=1 // pred_check_branch
      %249 = sbr.rel (0) target = $region57
    $region56: #{_lambda_.1} parent=1 // pred_region
      _
    $region57: #{_lambda_.1} parent=1 // pred_fallthru
      _
    // Predicated region
    $region58: #{_lambda_.1} parent=1 // pred_check
      _
    $region59: #{_lambda_.1} parent=1 // pred_check_branch
      %251 = sbr.rel (0) target = $region61
    $region60: #{_lambda_.1} parent=1 // pred_region
      %s253 = ssub.s32 16, 16
      %254 = vsyncadd [#allocation6], %s253
      %s256 = sshll.u32 [#allocation5], 4
      %s257 = int_to_ptr.vmem [resolvable:$true] %s256
      %259 = dma.hbm_to_vmem [thread:$0]  %s29, 16, %s257, [#allocation6]
    $region61: #{_lambda_.1} parent=1 // pred_fallthru
      _
    // Predicated region
    $region62: #{_lambda_.1} parent=1 // pred_check
      _
    $region63: #{_lambda_.1} parent=1 // pred_check_branch
      %261 = sbr.rel (0) target = $region65
    $region64: #{_lambda_.1} parent=1 // pred_region
      %s263 = ssub.s32 256, 256
      %264 = vsyncadd [#allocation6], %s263
      %s265 = sshll.u32 [#allocation7], 4
      %s266 = int_to_ptr.vmem [resolvable:$true] %s265
      %271 = dma.hbm_to_vmem [thread:$0]  %s31, 256, %s266, [#allocation6], 128, 128, 8
    $region65: #{_lambda_.1} parent=1 // pred_fallthru
      _
    // Predicated region
    $region66: #{_lambda_.1} parent=1 // pred_check
      _
    $region67: #{_lambda_.1} parent=1 // pred_check_branch
      %273 = sbr.rel (0) target = $region69
    $region68: #{_lambda_.1} parent=1 // pred_region
      %s275 = ssub.s32 16, 16
      %276 = vsyncadd [#allocation9], %s275
      %s278 = sshll.u32 [#allocation8], 4
      %s279 = int_to_ptr.vmem [resolvable:$true] %s278
      %281 = dma.hbm_to_vmem [thread:$0]  %s33, 16, %s279, [#allocation9]
    $region69: #{_lambda_.1} parent=1 // pred_fallthru
      _
    // Predicated region
    $region70: #{_lambda_.1} parent=1 // pred_check
      _
    $region71: #{_lambda_.1} parent=1 // pred_check_branch
      %283 = sbr.rel (0) target = $region73
    $region72: #{_lambda_.1} parent=1 // pred_region
      %s285 = ssub.s32 16, 16
      %286 = vsyncadd [#allocation9], %s285
      %s288 = sshll.u32 [#allocation10], 4
      %s289 = int_to_ptr.vmem [resolvable:$true] %s288
      %291 = dma.hbm_to_vmem [thread:$0]  %s35, 16, %s289, [#allocation9]
    $region73: #{_lambda_.1} parent=1 // pred_fallthru
      _
    // Predicated region
    $region74: #{_lambda_.1} parent=1 // pred_check
      _
    $region75: #{_lambda_.1} parent=1 // pred_check_branch
      %293 = sbr.rel (0) target = $region77
    $region76: #{_lambda_.1} parent=1 // pred_region
      %s295 = ssub.s32 16, 16
      %296 = vsyncadd [#allocation12], %s295
      %s298 = sshll.u32 [#allocation11], 4
      %s299 = int_to_ptr.vmem [resolvable:$true] %s298
      %301 = dma.hbm_to_vmem [thread:$0]  %s37, 16, %s299, [#allocation12]
    $region77: #{_lambda_.1} parent=1 // pred_fallthru
      _
    // Predicated region
    $region78: #{_lambda_.1} parent=1 // pred_check
      _
    $region79: #{_lambda_.1} parent=1 // pred_check_branch
      %303 = sbr.rel (0) target = $region81
    $region80: #{_lambda_.1} parent=1 // pred_region
      _
    $region81: #{_lambda_.1} parent=1 // pred_fallthru
      _
    // Predicated region
    $region82: #{_lambda_.1} parent=1 // pred_check
      _
    $region83: #{_lambda_.1} parent=1 // pred_check_branch
      %305 = sbr.rel (0) target = $region85
    $region84: #{_lambda_.1} parent=1 // pred_region
      %s307 = ssub.s32 16, 16
      %308 = vsyncadd [#allocation12], %s307
      %s310 = sshll.u32 [#allocation13], 4
      %s311 = int_to_ptr.vmem [resolvable:$true] %s310
      %313 = dma.hbm_to_vmem [thread:$0]  %s41, 16, %s311, [#allocation12]
    $region85: #{_lambda_.1} parent=1 // pred_fallthru
      _
    // Predicated region
    $region86: #{_lambda_.1} parent=1 // pred_check
      _
    $region87: #{_lambda_.1} parent=1 // pred_check_branch
      %315 = sbr.rel (0) target = $region89
    $region88: #{_lambda_.1} parent=1 // pred_region
      _
    $region89: #{_lambda_.1} parent=1 // pred_fallthru
      _
    // Predicated region
    $region90: #{_lambda_.1} parent=1 // pred_check
      _
    $region91: #{_lambda_.1} parent=1 // pred_check_branch
      %317 = sbr.rel (0) target = $region93
    $region92: #{_lambda_.1} parent=1 // pred_region
      %s319 = ssub.s32 16, 16
      %320 = vsyncadd [#allocation15], %s319
      %s322 = sshll.u32 [#allocation14], 4
      %s323 = int_to_ptr.vmem [resolvable:$true] %s322
      %325 = dma.hbm_to_vmem [thread:$0]  %s45, 16, %s323, [#allocation15]
    $region93: #{_lambda_.1} parent=1 // pred_fallthru
      _
    // Predicated region
    $region94: #{_lambda_.1} parent=1 // pred_check
      _
    $region95: #{_lambda_.1} parent=1 // pred_check_branch
      %327 = sbr.rel (0) target = $region97
    $region96: #{_lambda_.1} parent=1 // pred_region
      %s329 = ssub.s32 16, 16
      %330 = vsyncadd [#allocation15], %s329
      %s332 = sshll.u32 [#allocation16], 4
      %s333 = int_to_ptr.vmem [resolvable:$true] %s332
      %335 = dma.hbm_to_vmem [thread:$0]  %s47, 16, %s333, [#allocation15]
    $region97: #{_lambda_.1} parent=1 // pred_fallthru
      _
    // Predicated region
    $region98: #{_lambda_.1} parent=1 // pred_check
      _
    $region99: #{_lambda_.1} parent=1 // pred_check_branch
      %337 = sbr.rel (0) target = $region101
    $region100: #{_lambda_.1} parent=1 // pred_region
      %s339 = ssub.s32 16, 16
      %340 = vsyncadd [#allocation18], %s339
      %s342 = sshll.u32 [#allocation17], 4
      %s343 = int_to_ptr.vmem [resolvable:$true] %s342
      %345 = dma.hbm_to_vmem [thread:$0]  %s49, 16, %s343, [#allocation18]
    $region101: #{_lambda_.1} parent=1 // pred_fallthru
      _
    // Predicated region
    $region102: #{_lambda_.1} parent=1 // pred_check
      _
    $region103: #{_lambda_.1} parent=1 // pred_check_branch
      %347 = sbr.rel (0) target = $region105
    $region104: #{_lambda_.1} parent=1 // pred_region
      _
    $region105: #{_lambda_.1} parent=1 // pred_fallthru
      _
    // Predicated region
    $region106: #{_lambda_.1} parent=1 // pred_check
      _
    $region107: #{_lambda_.1} parent=1 // pred_check_branch
      %349 = sbr.rel (0) target = $region109
    $region108: #{_lambda_.1} parent=1 // pred_region
      %s351 = ssub.s32 16, 16
      %352 = vsyncadd [#allocation18], %s351
      %s354 = sshll.u32 [#allocation19], 4
      %s355 = int_to_ptr.vmem [resolvable:$true] %s354
      %357 = dma.hbm_to_vmem [thread:$0]  %s53, 16, %s355, [#allocation18]
    $region109: #{_lambda_.1} parent=1 // pred_fallthru
      _
    // Predicated region
    $region110: #{_lambda_.1} parent=1 // pred_check
      _
    $region111: #{_lambda_.1} parent=1 // pred_check_branch
      %359 = sbr.rel (0) target = $region113
    $region112: #{_lambda_.1} parent=1 // pred_region
      _
    $region113: #{_lambda_.1} parent=1 // pred_fallthru
      _
    // Predicated region
    $region114: #{_lambda_.1} parent=1 // pred_check
      _
    $region115: #{_lambda_.1} parent=1 // pred_check_branch
      %361 = sbr.rel (0) target = $region117
    $region116: #{_lambda_.1} parent=1 // pred_region
      %s363 = ssub.s32 16, 16
      %364 = vsyncadd [#allocation21], %s363
      %s366 = sshll.u32 [#allocation20], 4
      %s367 = int_to_ptr.vmem [resolvable:$true] %s366
      %369 = dma.hbm_to_vmem [thread:$0]  %s57, 16, %s367, [#allocation21]
    $region117: #{_lambda_.1} parent=1 // pred_fallthru
      _
    // Predicated region
    $region118: #{_lambda_.1} parent=1 // pred_check
      _
    $region119: #{_lambda_.1} parent=1 // pred_check_branch
      %371 = sbr.rel (0) target = $region121
    $region120: #{_lambda_.1} parent=1 // pred_region
      %s373 = ssub.s32 256, 256
      %374 = vsyncadd [#allocation21], %s373
      %s375 = sshll.u32 [#allocation22], 4
      %s376 = int_to_ptr.vmem [resolvable:$true] %s375
      %381 = dma.hbm_to_vmem [thread:$0]  %s59, 256, %s376, [#allocation21], 128, 128, 8
    $region121: #{_lambda_.1} parent=1 // pred_fallthru
      _
    // Predicated region
    $region122: #{_lambda_.1} parent=1 // pred_check
      _
    $region123: #{_lambda_.1} parent=1 // pred_check_branch
      %383 = sbr.rel (0) target = $region125
    $region124: #{_lambda_.1} parent=1 // pred_region
      %s385 = ssub.s32 16, 16
      %386 = vsyncadd [#allocation24], %s385
      %s388 = sshll.u32 [#allocation23], 4
      %s389 = int_to_ptr.vmem [resolvable:$true] %s388
      %391 = dma.hbm_to_vmem [thread:$0]  %s61, 16, %s389, [#allocation24]
    $region125: #{_lambda_.1} parent=1 // pred_fallthru
      _
    // Predicated region
    $region126: #{_lambda_.1} parent=1 // pred_check
      _
    $region127: #{_lambda_.1} parent=1 // pred_check_branch
      %393 = sbr.rel (0) target = $region129
    $region128: #{_lambda_.1} parent=1 // pred_region
      %s395 = ssub.s32 16, 16
      %396 = vsyncadd [#allocation24], %s395
      %s398 = sshll.u32 [#allocation25], 4
      %s399 = int_to_ptr.vmem [resolvable:$true] %s398
      %401 = dma.hbm_to_vmem [thread:$0]  %s63, 16, %s399, [#allocation24]
    $region129: #{_lambda_.1} parent=1 // pred_fallthru
      _
    // Predicated region
    $region130: #{_lambda_.1} parent=1 // pred_check
      _
    $region131: #{_lambda_.1} parent=1 // pred_check_branch
      %403 = sbr.rel (0) target = $region133
    $region132: #{_lambda_.1} parent=1 // pred_region
      %s405 = ssub.s32 16, 16
      %406 = vsyncadd [#allocation27], %s405
      %s408 = sshll.u32 [#allocation26], 4
      %s409 = int_to_ptr.vmem [resolvable:$true] %s408
      %411 = dma.hbm_to_vmem [thread:$0]  %s65, 16, %s409, [#allocation27]
    $region133: #{_lambda_.1} parent=1 // pred_fallthru
      _
    // Predicated region
    $region134: #{_lambda_.1} parent=1 // pred_check
      _
    $region135: #{_lambda_.1} parent=1 // pred_check_branch
      %413 = sbr.rel (0) target = $region137
    $region136: #{_lambda_.1} parent=1 // pred_region
      _
    $region137: #{_lambda_.1} parent=1 // pred_fallthru
      _
    // Predicated region
    $region138: #{_lambda_.1} parent=1 // pred_check
      _
    $region139: #{_lambda_.1} parent=1 // pred_check_branch
      %415 = sbr.rel (0) target = $region141
    $region140: #{_lambda_.1} parent=1 // pred_region
      %s417 = ssub.s32 16, 16
      %418 = vsyncadd [#allocation27], %s417
      %s420 = sshll.u32 [#allocation28], 4
      %s421 = int_to_ptr.vmem [resolvable:$true] %s420
      %423 = dma.hbm_to_vmem [thread:$0]  %s69, 16, %s421, [#allocation27]
    $region141: #{_lambda_.1} parent=1 // pred_fallthru
      _
    // Predicated region
    $region142: #{_lambda_.1} parent=1 // pred_check
      _
    $region143: #{_lambda_.1} parent=1 // pred_check_branch
      %425 = sbr.rel (0) target = $region145
    $region144: #{_lambda_.1} parent=1 // pred_region
      _
    $region145: #{_lambda_.1} parent=1 // pred_fallthru
      _
    // Predicated region
    $region146: #{_lambda_.1} parent=1 // pred_check
      _
    $region147: #{_lambda_.1} parent=1 // pred_check_branch
      %427 = sbr.rel (0) target = $region149
    $region148: #{_lambda_.1} parent=1 // pred_region
      %s429 = ssub.s32 16, 16
      %430 = vsyncadd [#allocation30], %s429
      %s432 = sshll.u32 [#allocation29], 4
      %s433 = int_to_ptr.vmem [resolvable:$true] %s432
      %435 = dma.hbm_to_vmem [thread:$0]  %s73, 16, %s433, [#allocation30]
    $region149: #{_lambda_.1} parent=1 // pred_fallthru
      _
    // Predicated region
    $region150: #{_lambda_.1} parent=1 // pred_check
      _
    $region151: #{_lambda_.1} parent=1 // pred_check_branch
      %437 = sbr.rel (0) target = $region153
    $region152: #{_lambda_.1} parent=1 // pred_region
      %s439 = ssub.s32 16, 16
      %440 = vsyncadd [#allocation30], %s439
      %s442 = sshll.u32 [#allocation31], 4
      %s443 = int_to_ptr.vmem [resolvable:$true] %s442
      %445 = dma.hbm_to_vmem [thread:$0]  %s75, 16, %s443, [#allocation30]
    $region153: #{_lambda_.1} parent=1 // pred_fallthru
      _
    // Predicated region
    $region154: #{_lambda_.1} parent=1 // pred_check
      _
    $region155: #{_lambda_.1} parent=1 // pred_check_branch
      %447 = sbr.rel (0) target = $region157
    $region156: #{_lambda_.1} parent=1 // pred_region
      %s449 = ssub.s32 16, 16
      %450 = vsyncadd [#allocation33], %s449
      %s452 = sshll.u32 [#allocation32], 4
      %s453 = int_to_ptr.vmem [resolvable:$true] %s452
      %455 = dma.hbm_to_vmem [thread:$0]  %s77, 16, %s453, [#allocation33]
    $region157: #{_lambda_.1} parent=1 // pred_fallthru
      _
    // Predicated region
    $region158: #{_lambda_.1} parent=1 // pred_check
      _
    $region159: #{_lambda_.1} parent=1 // pred_check_branch
      %457 = sbr.rel (0) target = $region161
    $region160: #{_lambda_.1} parent=1 // pred_region
      _
    $region161: #{_lambda_.1} parent=1 // pred_fallthru
      _
    // Predicated region
    $region162: #{_lambda_.1} parent=1 // pred_check
      _
    $region163: #{_lambda_.1} parent=1 // pred_check_branch
      %459 = sbr.rel (0) target = $region165
    $region164: #{_lambda_.1} parent=1 // pred_region
      %s461 = ssub.s32 16, 16
      %462 = vsyncadd [#allocation33], %s461
      %s464 = sshll.u32 [#allocation34], 4
      %s465 = int_to_ptr.vmem [resolvable:$true] %s464
      %467 = dma.hbm_to_vmem [thread:$0]  %s81, 16, %s465, [#allocation33]
    $region165: #{_lambda_.1} parent=1 // pred_fallthru
      _
    // Predicated region
    $region166: #{_lambda_.1} parent=1 // pred_check
      _
    $region167: #{_lambda_.1} parent=1 // pred_check_branch
      %469 = sbr.rel (0) target = $region169
    $region168: #{_lambda_.1} parent=1 // pred_region
      _
    $region169: #{_lambda_.1} parent=1 // pred_fallthru
      _
    // Predicated region
    $region170: #{_lambda_.1} parent=1 // pred_check
      _
    $region171: #{_lambda_.1} parent=1 // pred_check_branch
      %471 = sbr.rel (0) target = $region173
    $region172: #{_lambda_.1} parent=1 // pred_region
      %s473 = ssub.s32 16, 16
      %474 = vsyncadd [#allocation36], %s473
      %s476 = sshll.u32 [#allocation35], 4
      %s477 = int_to_ptr.vmem [resolvable:$true] %s476
      %479 = dma.hbm_to_vmem [thread:$0]  %s85, 16, %s477, [#allocation36]
    $region173: #{_lambda_.1} parent=1 // pred_fallthru
      _
    // Predicated region
    $region174: #{_lambda_.1} parent=1 // pred_check
      _
    $region175: #{_lambda_.1} parent=1 // pred_check_branch
      %481 = sbr.rel (0) target = $region177
    $region176: #{_lambda_.1} parent=1 // pred_region
      %s483 = ssub.s32 256, 256
      %484 = vsyncadd [#allocation36], %s483
      %s485 = sshll.u32 [#allocation37], 4
      %s486 = int_to_ptr.vmem [resolvable:$true] %s485
      %491 = dma.hbm_to_vmem [thread:$0]  %s87, 256, %s486, [#allocation36], 128, 128, 8
    $region177: #{_lambda_.1} parent=1 // pred_fallthru
      _
    // Predicated region
    $region178: #{_lambda_.1} parent=1 // pred_check
      _
    $region179: #{_lambda_.1} parent=1 // pred_check_branch
      %493 = sbr.rel (0) target = $region181
    $region180: #{_lambda_.1} parent=1 // pred_region
      %s495 = ssub.s32 16, 16
      %496 = vsyncadd [#allocation39], %s495
      %s498 = sshll.u32 [#allocation38], 4
      %s499 = int_to_ptr.vmem [resolvable:$true] %s498
      %501 = dma.hbm_to_vmem [thread:$0]  %s89, 16, %s499, [#allocation39]
    $region181: #{_lambda_.1} parent=1 // pred_fallthru
      _
    // Predicated region
    $region182: #{_lambda_.1} parent=1 // pred_check
      _
    $region183: #{_lambda_.1} parent=1 // pred_check_branch
      %503 = sbr.rel (0) target = $region185
    $region184: #{_lambda_.1} parent=1 // pred_region
      %s505 = ssub.s32 16, 16
      %506 = vsyncadd [#allocation39], %s505
      %s508 = sshll.u32 [#allocation40], 4
      %s509 = int_to_ptr.vmem [resolvable:$true] %s508
      %511 = dma.hbm_to_vmem [thread:$0]  %s91, 16, %s509, [#allocation39]
    $region185: #{_lambda_.1} parent=1 // pred_fallthru
      _
    // Predicated region
    $region186: #{_lambda_.1} parent=1 // pred_check
      _
    $region187: #{_lambda_.1} parent=1 // pred_check_branch
      %513 = sbr.rel (0) target = $region189
    $region188: #{_lambda_.1} parent=1 // pred_region
      %s515 = ssub.s32 16, 16
      %516 = vsyncadd [#allocation42], %s515
      %s518 = sshll.u32 [#allocation41], 4
      %s519 = int_to_ptr.vmem [resolvable:$true] %s518
      %521 = dma.hbm_to_vmem [thread:$0]  %s93, 16, %s519, [#allocation42]
    $region189: #{_lambda_.1} parent=1 // pred_fallthru
      _
    // Predicated region
    $region190: #{_lambda_.1} parent=1 // pred_check
      _
    $region191: #{_lambda_.1} parent=1 // pred_check_branch
      %523 = sbr.rel (0) target = $region193
    $region192: #{_lambda_.1} parent=1 // pred_region
      _
    $region193: #{_lambda_.1} parent=1 // pred_fallthru
      _
    // Predicated region
    $region194: #{_lambda_.1} parent=1 // pred_check
      _
    $region195: #{_lambda_.1} parent=1 // pred_check_branch
      %525 = sbr.rel (0) target = $region197
    $region196: #{_lambda_.1} parent=1 // pred_region
      %s527 = ssub.s32 16, 16
      %528 = vsyncadd [#allocation42], %s527
      %s530 = sshll.u32 [#allocation43], 4
      %s531 = int_to_ptr.vmem [resolvable:$true] %s530
      %533 = dma.hbm_to_vmem [thread:$0]  %s97, 16, %s531, [#allocation42]
    $region197: #{_lambda_.1} parent=1 // pred_fallthru
      _
    // Predicated region
    $region198: #{_lambda_.1} parent=1 // pred_check
      _
    $region199: #{_lambda_.1} parent=1 // pred_check_branch
      %535 = sbr.rel (0) target = $region201
    $region200: #{_lambda_.1} parent=1 // pred_region
      _
    $region201: #{_lambda_.1} parent=1 // pred_fallthru
      _
    // Predicated region
    $region202: #{_lambda_.1} parent=1 // pred_check
      _
    $region203: #{_lambda_.1} parent=1 // pred_check_branch
      %537 = sbr.rel (0) target = $region205
    $region204: #{_lambda_.1} parent=1 // pred_region
      %s539 = ssub.s32 16, 16
      %540 = vsyncadd [#allocation45], %s539
      %s542 = sshll.u32 [#allocation44], 4
      %s543 = int_to_ptr.vmem [resolvable:$true] %s542
      %545 = dma.hbm_to_vmem [thread:$0]  %s101, 16, %s543, [#allocation45]
    $region205: #{_lambda_.1} parent=1 // pred_fallthru
      _
    // Predicated region
    $region206: #{_lambda_.1} parent=1 // pred_check
      _
    $region207: #{_lambda_.1} parent=1 // pred_check_branch
      %547 = sbr.rel (0) target = $region209
    $region208: #{_lambda_.1} parent=1 // pred_region
      %s549 = ssub.s32 256, 256
      %550 = vsyncadd [#allocation45], %s549
      %s551 = sshll.u32 [#allocation46], 4
      %s552 = int_to_ptr.vmem [resolvable:$true] %s551
      %557 = dma.hbm_to_vmem [thread:$0]  %s103, 256, %s552, [#allocation45], 128, 128, 8
    $region209: #{_lambda_.1} parent=1 // pred_fallthru
      _
    // Predicated region
    $region210: #{_lambda_.1} parent=1 // pred_check
      _
    $region211: #{_lambda_.1} parent=1 // pred_check_branch
      %559 = sbr.rel (0) target = $region213
    $region212: #{_lambda_.1} parent=1 // pred_region
      %s561 = ssub.s32 16, 16
      %562 = vsyncadd [#allocation48], %s561
      %s564 = sshll.u32 [#allocation47], 4
      %s565 = int_to_ptr.vmem [resolvable:$true] %s564
      %567 = dma.hbm_to_vmem [thread:$0]  %s105, 16, %s565, [#allocation48]
    $region213: #{_lambda_.1} parent=1 // pred_fallthru
      _
    // Predicated region
    $region214: #{_lambda_.1} parent=1 // pred_check
      _
    $region215: #{_lambda_.1} parent=1 // pred_check_branch
      %569 = sbr.rel (0) target = $region217
    $region216: #{_lambda_.1} parent=1 // pred_region
      %s571 = ssub.s32 16, 16
      %572 = vsyncadd [#allocation48], %s571
      %s574 = sshll.u32 [#allocation49], 4
      %s575 = int_to_ptr.vmem [resolvable:$true] %s574
      %577 = dma.hbm_to_vmem [thread:$0]  %s107, 16, %s575, [#allocation48]
    $region217: #{_lambda_.1} parent=1 // pred_fallthru
      _
    // Predicated region
    $region218: #{_lambda_.1} parent=1 // pred_check
      _
    $region219: #{_lambda_.1} parent=1 // pred_check_branch
      %579 = sbr.rel (0) target = $region221
    $region220: #{_lambda_.1} parent=1 // pred_region
      %s581 = ssub.s32 16, 16
      %582 = vsyncadd [#allocation51], %s581
      %s584 = sshll.u32 [#allocation50], 4
      %s585 = int_to_ptr.vmem [resolvable:$true] %s584
      %587 = dma.hbm_to_vmem [thread:$0]  %s109, 16, %s585, [#allocation51]
    $region221: #{_lambda_.1} parent=1 // pred_fallthru
      _
    // Predicated region
    $region222: #{_lambda_.1} parent=1 // pred_check
      _
    $region223: #{_lambda_.1} parent=1 // pred_check_branch
      %589 = sbr.rel (0) target = $region225
    $region224: #{_lambda_.1} parent=1 // pred_region
      _
    $region225: #{_lambda_.1} parent=1 // pred_fallthru
      _
    // Predicated region
    $region226: #{_lambda_.1} parent=1 // pred_check
      _
    $region227: #{_lambda_.1} parent=1 // pred_check_branch
      %591 = sbr.rel (0) target = $region229
    $region228: #{_lambda_.1} parent=1 // pred_region
      %s593 = ssub.s32 16, 16
      %594 = vsyncadd [#allocation51], %s593
      %s596 = sshll.u32 [#allocation52], 4
      %s597 = int_to_ptr.vmem [resolvable:$true] %s596
      %599 = dma.hbm_to_vmem [thread:$0]  %s113, 16, %s597, [#allocation51]
    $region229: #{_lambda_.1} parent=1 // pred_fallthru
      _
    // Predicated region
    $region230: #{_lambda_.1} parent=1 // pred_check
      _
    $region231: #{_lambda_.1} parent=1 // pred_check_branch
      %601 = sbr.rel (0) target = $region233
    $region232: #{_lambda_.1} parent=1 // pred_region
      _
    $region233: #{_lambda_.1} parent=1 // pred_fallthru
      _
    // Predicated region
    $region234: #{_lambda_.1} parent=1 // pred_check
      _
    $region235: #{_lambda_.1} parent=1 // pred_check_branch
      %603 = sbr.rel (0) target = $region237
    $region236: #{_lambda_.1} parent=1 // pred_region
      %s605 = ssub.s32 16, 16
      %606 = vsyncadd [#allocation54], %s605
      %s608 = sshll.u32 [#allocation53], 4
      %s609 = int_to_ptr.vmem [resolvable:$true] %s608
      %611 = dma.hbm_to_vmem [thread:$0]  %s117, 16, %s609, [#allocation54]
    $region237: #{_lambda_.1} parent=1 // pred_fallthru
      _
    // Predicated region
    $region238: #{_lambda_.1} parent=1 // pred_check
      _
    $region239: #{_lambda_.1} parent=1 // pred_check_branch
      %613 = sbr.rel (0) target = $region241
    $region240: #{_lambda_.1} parent=1 // pred_region
      %s615 = ssub.s32 16, 16
      %616 = vsyncadd [#allocation54], %s615
      %s618 = sshll.u32 [#allocation55], 4
      %s619 = int_to_ptr.vmem [resolvable:$true] %s618
      %621 = dma.hbm_to_vmem [thread:$0]  %s119, 16, %s619, [#allocation54]
    $region241: #{_lambda_.1} parent=1 // pred_fallthru
      _
    // Predicated region
    $region242: #{_lambda_.1} parent=1 // pred_check
      _
    $region243: #{_lambda_.1} parent=1 // pred_check_branch
      %623 = sbr.rel (0) target = $region245
    $region244: #{_lambda_.1} parent=1 // pred_region
      %s625 = ssub.s32 16, 16
      %626 = vsyncadd [#allocation57], %s625
      %s628 = sshll.u32 [#allocation56], 4
      %s629 = int_to_ptr.vmem [resolvable:$true] %s628
      %631 = dma.hbm_to_vmem [thread:$0]  %s121, 16, %s629, [#allocation57]
    $region245: #{_lambda_.1} parent=1 // pred_fallthru
      _
    // Predicated region
    $region246: #{_lambda_.1} parent=1 // pred_check
      _
    $region247: #{_lambda_.1} parent=1 // pred_check_branch
      %633 = sbr.rel (0) target = $region249
    $region248: #{_lambda_.1} parent=1 // pred_region
      _
    $region249: #{_lambda_.1} parent=1 // pred_fallthru
      _
    // Predicated region
    $region250: #{_lambda_.1} parent=1 // pred_check
      _
    $region251: #{_lambda_.1} parent=1 // pred_check_branch
      %635 = sbr.rel (0) target = $region253
    $region252: #{_lambda_.1} parent=1 // pred_region
      %s637 = ssub.s32 16, 16
      %638 = vsyncadd [#allocation57], %s637
      %s640 = sshll.u32 [#allocation58], 4
      %s641 = int_to_ptr.vmem [resolvable:$true] %s640
      %643 = dma.hbm_to_vmem [thread:$0]  %s125, 16, %s641, [#allocation57]
    $region253: #{_lambda_.1} parent=1 // pred_fallthru
      _
    // Predicated region
    $region254: #{_lambda_.1} parent=1 // pred_check
      _
    $region255: #{_lambda_.1} parent=1 // pred_check_branch
      %645 = sbr.rel (0) target = $region257
    $region256: #{_lambda_.1} parent=1 // pred_region
      _
    $region257: #{_lambda_.1} parent=1 // pred_fallthru
      _
    // Predicated region
    $region258: #{_lambda_.1} parent=1 // pred_check
      _
    $region259: #{_lambda_.1} parent=1 // pred_check_branch
      %647 = sbr.rel (0) target = $region261
    $region260: #{_lambda_.1} parent=1 // pred_region
      %s649 = ssub.s32 16, 16
      %650 = vsyncadd [#allocation60], %s649
      %s652 = sshll.u32 [#allocation59], 4
      %s653 = int_to_ptr.vmem [resolvable:$true] %s652
      %655 = dma.hbm_to_vmem [thread:$0]  %s129, 16, %s653, [#allocation60]
    $region261: #{_lambda_.1} parent=1 // pred_fallthru
      _
    // Predicated region
    $region262: #{_lambda_.1} parent=1 // pred_check
      _
    $region263: #{_lambda_.1} parent=1 // pred_check_branch
      %657 = sbr.rel (0) target = $region265
    $region264: #{_lambda_.1} parent=1 // pred_region
      %s659 = ssub.s32 256, 256
      %660 = vsyncadd [#allocation60], %s659
      %s661 = sshll.u32 [#allocation61], 4
      %s662 = int_to_ptr.vmem [resolvable:$true] %s661
      %667 = dma.hbm_to_vmem [thread:$0]  %s131, 256, %s662, [#allocation60], 128, 128, 8
    $region265: #{_lambda_.1} parent=1 // pred_fallthru
      _
    // Predicated region
    $region266: #{_lambda_.1} parent=1 // pred_check
      _
    $region267: #{_lambda_.1} parent=1 // pred_check_branch
      %669 = sbr.rel (0) target = $region269
    $region268: #{_lambda_.1} parent=1 // pred_region
      %s671 = ssub.s32 16, 16
      %672 = vsyncadd [#allocation63], %s671
      %s674 = sshll.u32 [#allocation62], 4
      %s675 = int_to_ptr.vmem [resolvable:$true] %s674
      %677 = dma.hbm_to_vmem [thread:$0]  %s133, 16, %s675, [#allocation63]
    $region269: #{_lambda_.1} parent=1 // pred_fallthru
      _
    // Predicated region
    $region270: #{_lambda_.1} parent=1 // pred_check
      _
    $region271: #{_lambda_.1} parent=1 // pred_check_branch
      %679 = sbr.rel (0) target = $region273
    $region272: #{_lambda_.1} parent=1 // pred_region
      %s681 = ssub.s32 16, 16
      %682 = vsyncadd [#allocation63], %s681
      %s684 = sshll.u32 [#allocation64], 4
      %s685 = int_to_ptr.vmem [resolvable:$true] %s684
      %687 = dma.hbm_to_vmem [thread:$0]  %s135, 16, %s685, [#allocation63]
    $region273: #{_lambda_.1} parent=1 // pred_fallthru
      _
    // Predicated region
    $region274: #{_lambda_.1} parent=1 // pred_check
      _
    $region275: #{_lambda_.1} parent=1 // pred_check_branch
      %689 = sbr.rel (0) target = $region277
    $region276: #{_lambda_.1} parent=1 // pred_region
      %s691 = ssub.s32 16, 16
      %692 = vsyncadd [#allocation66], %s691
      %s694 = sshll.u32 [#allocation65], 4
      %s695 = int_to_ptr.vmem [resolvable:$true] %s694
      %697 = dma.hbm_to_vmem [thread:$0]  %s137, 16, %s695, [#allocation66]
    $region277: #{_lambda_.1} parent=1 // pred_fallthru
      _
    // Predicated region
    $region278: #{_lambda_.1} parent=1 // pred_check
      _
    $region279: #{_lambda_.1} parent=1 // pred_check_branch
      %699 = sbr.rel (0) target = $region281
    $region280: #{_lambda_.1} parent=1 // pred_region
      _
    $region281: #{_lambda_.1} parent=1 // pred_fallthru
      _
    // Predicated region
    $region282: #{_lambda_.1} parent=1 // pred_check
      _
    $region283: #{_lambda_.1} parent=1 // pred_check_branch
      %701 = sbr.rel (0) target = $region285
    $region284: #{_lambda_.1} parent=1 // pred_region
      %s703 = ssub.s32 16, 16
      %704 = vsyncadd [#allocation66], %s703
      %s706 = sshll.u32 [#allocation67], 4
      %s707 = int_to_ptr.vmem [resolvable:$true] %s706
      %709 = dma.hbm_to_vmem [thread:$0]  %s141, 16, %s707, [#allocation66]
    $region285: #{_lambda_.1} parent=1 // pred_fallthru
      _
    // Predicated region
    $region286: #{_lambda_.1} parent=1 // pred_check
      _
    $region287: #{_lambda_.1} parent=1 // pred_check_branch
      %711 = sbr.rel (0) target = $region289
    $region288: #{_lambda_.1} parent=1 // pred_region
      _
    $region289: #{_lambda_.1} parent=1 // pred_fallthru
      _
    // Predicated region
    $region290: #{_lambda_.1} parent=1 // pred_check
      _
    $region291: #{_lambda_.1} parent=1 // pred_check_branch
      %713 = sbr.rel (0) target = $region293
    $region292: #{_lambda_.1} parent=1 // pred_region
      %s715 = ssub.s32 16, 16
      %716 = vsyncadd [#allocation69], %s715
      %s718 = sshll.u32 [#allocation68], 4
      %s719 = int_to_ptr.vmem [resolvable:$true] %s718
      %721 = dma.hbm_to_vmem [thread:$0]  %s145, 16, %s719, [#allocation69]
    $region293: #{_lambda_.1} parent=1 // pred_fallthru
      _
    // Predicated region
    $region294: #{_lambda_.1} parent=1 // pred_check
      _
    $region295: #{_lambda_.1} parent=1 // pred_check_branch
      %723 = sbr.rel (0) target = $region297
    $region296: #{_lambda_.1} parent=1 // pred_region
      %s725 = ssub.s32 256, 256
      %726 = vsyncadd [#allocation69], %s725
      %s727 = sshll.u32 [#allocation70], 4
      %s728 = int_to_ptr.vmem [resolvable:$true] %s727
      %733 = dma.hbm_to_vmem [thread:$0]  %s147, 256, %s728, [#allocation69], 128, 128, 8
    $region297: #{_lambda_.1} parent=1 // pred_fallthru
      _
    // Predicated region
    $region298: #{_lambda_.1} parent=1 // pred_check
      _
    $region299: #{_lambda_.1} parent=1 // pred_check_branch
      %735 = sbr.rel (0) target = $region301
    $region300: #{_lambda_.1} parent=1 // pred_region
      %s737 = ssub.s32 16, 16
      %738 = vsyncadd [#allocation72], %s737
      %s740 = sshll.u32 [#allocation71], 4
      %s741 = int_to_ptr.vmem [resolvable:$true] %s740
      %743 = dma.hbm_to_vmem [thread:$0]  %s149, 16, %s741, [#allocation72]
    $region301: #{_lambda_.1} parent=1 // pred_fallthru
      _
    // Predicated region
    $region302: #{_lambda_.1} parent=1 // pred_check
      _
    $region303: #{_lambda_.1} parent=1 // pred_check_branch
      %745 = sbr.rel (0) target = $region305
    $region304: #{_lambda_.1} parent=1 // pred_region
      %s747 = ssub.s32 16, 16
      %748 = vsyncadd [#allocation72], %s747
      %s750 = sshll.u32 [#allocation73], 4
      %s751 = int_to_ptr.vmem [resolvable:$true] %s750
      %753 = dma.hbm_to_vmem [thread:$0]  %s151, 16, %s751, [#allocation72]
    $region305: #{_lambda_.1} parent=1 // pred_fallthru
      _
    // Predicated region
    $region306: #{_lambda_.1} parent=1 // pred_check
      _
    $region307: #{_lambda_.1} parent=1 // pred_check_branch
      %755 = sbr.rel (0) target = $region309
    $region308: #{_lambda_.1} parent=1 // pred_region
      %s757 = ssub.s32 16, 16
      %758 = vsyncadd [#allocation75], %s757
      %s760 = sshll.u32 [#allocation74], 4
      %s761 = int_to_ptr.vmem [resolvable:$true] %s760
      %763 = dma.hbm_to_vmem [thread:$0]  %s153, 16, %s761, [#allocation75]
    $region309: #{_lambda_.1} parent=1 // pred_fallthru
      _
    // Predicated region
    $region310: #{_lambda_.1} parent=1 // pred_check
      _
    $region311: #{_lambda_.1} parent=1 // pred_check_branch
      %765 = sbr.rel (0) target = $region313
    $region312: #{_lambda_.1} parent=1 // pred_region
      _
    $region313: #{_lambda_.1} parent=1 // pred_fallthru
      _
    // Predicated region
    $region314: #{_lambda_.1} parent=1 // pred_check
      _
    $region315: #{_lambda_.1} parent=1 // pred_check_branch
      %767 = sbr.rel (0) target = $region317
    $region316: #{_lambda_.1} parent=1 // pred_region
      %s769 = ssub.s32 16, 16
      %770 = vsyncadd [#allocation75], %s769
      %s772 = sshll.u32 [#allocation76], 4
      %s773 = int_to_ptr.vmem [resolvable:$true] %s772
      %775 = dma.hbm_to_vmem [thread:$0]  %s157, 16, %s773, [#allocation75]
    $region317: #{_lambda_.1} parent=1 // pred_fallthru
      _
    // Predicated region
    $region318: #{_lambda_.1} parent=1 // pred_check
      _
    $region319: #{_lambda_.1} parent=1 // pred_check_branch
      %777 = sbr.rel (0) target = $region321
    $region320: #{_lambda_.1} parent=1 // pred_region
      _
    $region321: #{_lambda_.1} parent=1 // pred_fallthru
      _
    // Predicated region
    $region322: #{_lambda_.1} parent=1 // pred_check
      _
    $region323: #{_lambda_.1} parent=1 // pred_check_branch
      %779 = sbr.rel (0) target = $region325
    $region324: #{_lambda_.1} parent=1 // pred_region
      %s781 = ssub.s32 16, 16
      %782 = vsyncadd [#allocation78], %s781
      %s784 = sshll.u32 [#allocation77], 4
      %s785 = int_to_ptr.vmem [resolvable:$true] %s784
      %787 = dma.hbm_to_vmem [thread:$0]  %s161, 16, %s785, [#allocation78]
    $region325: #{_lambda_.1} parent=1 // pred_fallthru
      _
    // Predicated region
    $region326: #{_lambda_.1} parent=1 // pred_check
      _
    $region327: #{_lambda_.1} parent=1 // pred_check_branch
      %789 = sbr.rel (0) target = $region329
    $region328: #{_lambda_.1} parent=1 // pred_region
      %s791 = ssub.s32 16, 16
      %792 = vsyncadd [#allocation78], %s791
      %s794 = sshll.u32 [#allocation79], 4
      %s795 = int_to_ptr.vmem [resolvable:$true] %s794
      %797 = dma.hbm_to_vmem [thread:$0]  %s163, 16, %s795, [#allocation78]
    $region329: #{_lambda_.1} parent=1 // pred_fallthru
      _
    // Predicated region
    $region330: #{_lambda_.1} parent=1 // pred_check
      _
    $region331: #{_lambda_.1} parent=1 // pred_check_branch
      %799 = sbr.rel (0) target = $region333
    $region332: #{_lambda_.1} parent=1 // pred_region
      %s801 = ssub.s32 16, 16
      %802 = vsyncadd [#allocation81], %s801
      %s804 = sshll.u32 [#allocation80], 4
      %s805 = int_to_ptr.vmem [resolvable:$true] %s804
      %807 = dma.hbm_to_vmem [thread:$0]  %s165, 16, %s805, [#allocation81]
    $region333: #{_lambda_.1} parent=1 // pred_fallthru
      _
    // Predicated region
    $region334: #{_lambda_.1} parent=1 // pred_check
      _
    $region335: #{_lambda_.1} parent=1 // pred_check_branch
      %809 = sbr.rel (0) target = $region337
    $region336: #{_lambda_.1} parent=1 // pred_region
      _
    $region337: #{_lambda_.1} parent=1 // pred_fallthru
      _
    // Predicated region
    $region338: #{_lambda_.1} parent=1 // pred_check
      _
    $region339: #{_lambda_.1} parent=1 // pred_check_branch
      %811 = sbr.rel (0) target = $region341
    $region340: #{_lambda_.1} parent=1 // pred_region
      _
    $region341: #{_lambda_.1} parent=1 // pred_fallthru
      _
    // Predicated region
    $region342: #{_lambda_.1} parent=1 // pred_check
      _
    $region343: #{_lambda_.1} parent=1 // pred_check_branch
      %813 = sbr.rel (0) target = $region345
    $region344: #{_lambda_.1} parent=1 // pred_region
      _
    $region345: #{_lambda_.1} parent=1 // pred_fallthru
      _
    // Predicated region
    $region346: #{_lambda_.1} parent=1 // pred_check
      _
    $region347: #{_lambda_.1} parent=1 // pred_check_branch
      %815 = sbr.rel (0) target = $region349
    $region348: #{_lambda_.1} parent=1 // pred_region
      %s817 = ssub.s32 16, 16
      %818 = vsyncadd [#allocation81], %s817
      %s820 = sshll.u32 [#allocation82], 4
      %s821 = int_to_ptr.vmem [resolvable:$true] %s820
      %823 = dma.hbm_to_vmem [thread:$0]  %s173, 16, %s821, [#allocation81]
    $region349: #{_lambda_.1} parent=1 // pred_fallthru
      _
    // Predicated region
    $region350: #{_lambda_.1} parent=1 // pred_check
      _
    $region351: #{_lambda_.1} parent=1 // pred_check_branch
      %825 = sbr.rel (0) target = $region353
    $region352: #{_lambda_.1} parent=1 // pred_region
      %826 = dma.done [#allocation3], 16
    $region353: #{_lambda_.1} parent=1 // pred_fallthru
      _
    // Predicated region
    $region354: #{_lambda_.1} parent=1 // pred_check
      _
    $region355: #{_lambda_.1} parent=1 // pred_check_branch
      %828 = sbr.rel (0) target = $region357
    $region356: #{_lambda_.1} parent=1 // pred_region
      %829 = dma.done [#allocation6], 16
    $region357: #{_lambda_.1} parent=1 // pred_fallthru
      _
    // Predicated region
    $region358: #{_lambda_.1} parent=1 // pred_check
      _
    $region359: #{_lambda_.1} parent=1 // pred_check_branch
      %831 = sbr.rel (0) target = $region361
    $region360: #{_lambda_.1} parent=1 // pred_region
      %832 = dma.done [#allocation6], 256
    $region361: #{_lambda_.1} parent=1 // pred_fallthru
      _
    // Predicated region
    $region362: #{_lambda_.1} parent=1 // pred_check
      _
    $region363: #{_lambda_.1} parent=1 // pred_check_branch
      %834 = sbr.rel (0) target = $region365
    $region364: #{_lambda_.1} parent=1 // pred_region
      %835 = dma.done [#allocation9], 16
    $region365: #{_lambda_.1} parent=1 // pred_fallthru
      _
    // Predicated region
    $region366: #{_lambda_.1} parent=1 // pred_check
      _
    $region367: #{_lambda_.1} parent=1 // pred_check_branch
      %837 = sbr.rel (0) target = $region369
    $region368: #{_lambda_.1} parent=1 // pred_region
      %838 = dma.done [#allocation9], 16
    $region369: #{_lambda_.1} parent=1 // pred_fallthru
      _
    // Predicated region
    $region370: #{_lambda_.1} parent=1 // pred_check
      _
    $region371: #{_lambda_.1} parent=1 // pred_check_branch
      %840 = sbr.rel (0) target = $region373
    $region372: #{_lambda_.1} parent=1 // pred_region
      %841 = dma.done [#allocation12], 16
    $region373: #{_lambda_.1} parent=1 // pred_fallthru
      _
    // Predicated region
    $region374: #{_lambda_.1} parent=1 // pred_check
      _
    $region375: #{_lambda_.1} parent=1 // pred_check_branch
      %843 = sbr.rel (0) target = $region377
    $region376: #{_lambda_.1} parent=1 // pred_region
      %844 = dma.done [#allocation12], 16
    $region377: #{_lambda_.1} parent=1 // pred_fallthru
      _
    // Predicated region
    $region378: #{_lambda_.1} parent=1 // pred_check
      _
    $region379: #{_lambda_.1} parent=1 // pred_check_branch
      %846 = sbr.rel (0) target = $region381
    $region380: #{_lambda_.1} parent=1 // pred_region
      %847 = dma.done [#allocation15], 16
    $region381: #{_lambda_.1} parent=1 // pred_fallthru
      _
    // Predicated region
    $region382: #{_lambda_.1} parent=1 // pred_check
      _
    $region383: #{_lambda_.1} parent=1 // pred_check_branch
      %849 = sbr.rel (0) target = $region385
    $region384: #{_lambda_.1} parent=1 // pred_region
      %850 = dma.done [#allocation15], 16
    $region385: #{_lambda_.1} parent=1 // pred_fallthru
      _
    // Predicated region
    $region386: #{_lambda_.1} parent=1 // pred_check
      _
    $region387: #{_lambda_.1} parent=1 // pred_check_branch
      %852 = sbr.rel (0) target = $region389
    $region388: #{_lambda_.1} parent=1 // pred_region
      %853 = dma.done [#allocation18], 16
    $region389: #{_lambda_.1} parent=1 // pred_fallthru
      _
    // Predicated region
    $region390: #{_lambda_.1} parent=1 // pred_check
      _
    $region391: #{_lambda_.1} parent=1 // pred_check_branch
      %855 = sbr.rel (0) target = $region393
    $region392: #{_lambda_.1} parent=1 // pred_region
      %856 = dma.done [#allocation18], 16
    $region393: #{_lambda_.1} parent=1 // pred_fallthru
      _
    // Predicated region
    $region394: #{_lambda_.1} parent=1 // pred_check
      _
    $region395: #{_lambda_.1} parent=1 // pred_check_branch
      %858 = sbr.rel (0) target = $region397
    $region396: #{_lambda_.1} parent=1 // pred_region
      %859 = dma.done [#allocation21], 16
    $region397: #{_lambda_.1} parent=1 // pred_fallthru
      _
    // Predicated region
    $region398: #{_lambda_.1} parent=1 // pred_check
      _
    $region399: #{_lambda_.1} parent=1 // pred_check_branch
      %861 = sbr.rel (0) target = $region401
    $region400: #{_lambda_.1} parent=1 // pred_region
      %862 = dma.done [#allocation21], 256
    $region401: #{_lambda_.1} parent=1 // pred_fallthru
      _
    // Predicated region
    $region402: #{_lambda_.1} parent=1 // pred_check
      _
    $region403: #{_lambda_.1} parent=1 // pred_check_branch
      %864 = sbr.rel (0) target = $region405
    $region404: #{_lambda_.1} parent=1 // pred_region
      %865 = dma.done [#allocation24], 16
    $region405: #{_lambda_.1} parent=1 // pred_fallthru
      _
    // Predicated region
    $region406: #{_lambda_.1} parent=1 // pred_check
      _
    $region407: #{_lambda_.1} parent=1 // pred_check_branch
      %867 = sbr.rel (0) target = $region409
    $region408: #{_lambda_.1} parent=1 // pred_region
      %868 = dma.done [#allocation24], 16
    $region409: #{_lambda_.1} parent=1 // pred_fallthru
      _
    // Predicated region
    $region410: #{_lambda_.1} parent=1 // pred_check
      _
    $region411: #{_lambda_.1} parent=1 // pred_check_branch
      %870 = sbr.rel (0) target = $region413
    $region412: #{_lambda_.1} parent=1 // pred_region
      %871 = dma.done [#allocation27], 16
    $region413: #{_lambda_.1} parent=1 // pred_fallthru
      _
    // Predicated region
    $region414: #{_lambda_.1} parent=1 // pred_check
      _
    $region415: #{_lambda_.1} parent=1 // pred_check_branch
      %873 = sbr.rel (0) target = $region417
    $region416: #{_lambda_.1} parent=1 // pred_region
      %874 = dma.done [#allocation27], 16
    $region417: #{_lambda_.1} parent=1 // pred_fallthru
      _
    // Predicated region
    $region418: #{_lambda_.1} parent=1 // pred_check
      _
    $region419: #{_lambda_.1} parent=1 // pred_check_branch
      %876 = sbr.rel (0) target = $region421
    $region420: #{_lambda_.1} parent=1 // pred_region
      %877 = dma.done [#allocation30], 16
    $region421: #{_lambda_.1} parent=1 // pred_fallthru
      _
    // Predicated region
    $region422: #{_lambda_.1} parent=1 // pred_check
      _
    $region423: #{_lambda_.1} parent=1 // pred_check_branch
      %879 = sbr.rel (0) target = $region425
    $region424: #{_lambda_.1} parent=1 // pred_region
      %880 = dma.done [#allocation30], 16
    $region425: #{_lambda_.1} parent=1 // pred_fallthru
      _
    // Predicated region
    $region426: #{_lambda_.1} parent=1 // pred_check
      _
    $region427: #{_lambda_.1} parent=1 // pred_check_branch
      %882 = sbr.rel (0) target = $region429
    $region428: #{_lambda_.1} parent=1 // pred_region
      %883 = dma.done [#allocation33], 16
    $region429: #{_lambda_.1} parent=1 // pred_fallthru
      _
    // Predicated region
    $region430: #{_lambda_.1} parent=1 // pred_check
      _
    $region431: #{_lambda_.1} parent=1 // pred_check_branch
      %885 = sbr.rel (0) target = $region433
    $region432: #{_lambda_.1} parent=1 // pred_region
      %886 = dma.done [#allocation33], 16
    $region433: #{_lambda_.1} parent=1 // pred_fallthru
      _
    // Predicated region
    $region434: #{_lambda_.1} parent=1 // pred_check
      _
    $region435: #{_lambda_.1} parent=1 // pred_check_branch
      %888 = sbr.rel (0) target = $region437
    $region436: #{_lambda_.1} parent=1 // pred_region
      %889 = dma.done [#allocation36], 16
    $region437: #{_lambda_.1} parent=1 // pred_fallthru
      _
    // Predicated region
    $region438: #{_lambda_.1} parent=1 // pred_check
      _
    $region439: #{_lambda_.1} parent=1 // pred_check_branch
      %891 = sbr.rel (0) target = $region441
    $region440: #{_lambda_.1} parent=1 // pred_region
      %892 = dma.done [#allocation36], 256
    $region441: #{_lambda_.1} parent=1 // pred_fallthru
      _
    // Predicated region
    $region442: #{_lambda_.1} parent=1 // pred_check
      _
    $region443: #{_lambda_.1} parent=1 // pred_check_branch
      %894 = sbr.rel (0) target = $region445
    $region444: #{_lambda_.1} parent=1 // pred_region
      %895 = dma.done [#allocation39], 16
    $region445: #{_lambda_.1} parent=1 // pred_fallthru
      _
    // Predicated region
    $region446: #{_lambda_.1} parent=1 // pred_check
      _
    $region447: #{_lambda_.1} parent=1 // pred_check_branch
      %897 = sbr.rel (0) target = $region449
    $region448: #{_lambda_.1} parent=1 // pred_region
      %898 = dma.done [#allocation39], 16
    $region449: #{_lambda_.1} parent=1 // pred_fallthru
      _
    // Predicated region
    $region450: #{_lambda_.1} parent=1 // pred_check
      _
    $region451: #{_lambda_.1} parent=1 // pred_check_branch
      %900 = sbr.rel (0) target = $region453
    $region452: #{_lambda_.1} parent=1 // pred_region
      %901 = dma.done [#allocation42], 16
    $region453: #{_lambda_.1} parent=1 // pred_fallthru
      _
    // Predicated region
    $region454: #{_lambda_.1} parent=1 // pred_check
      _
    $region455: #{_lambda_.1} parent=1 // pred_check_branch
      %903 = sbr.rel (0) target = $region457
    $region456: #{_lambda_.1} parent=1 // pred_region
      %904 = dma.done [#allocation42], 16
    $region457: #{_lambda_.1} parent=1 // pred_fallthru
      _
    // Predicated region
    $region458: #{_lambda_.1} parent=1 // pred_check
      _
    $region459: #{_lambda_.1} parent=1 // pred_check_branch
      %906 = sbr.rel (0) target = $region461
    $region460: #{_lambda_.1} parent=1 // pred_region
      %907 = dma.done [#allocation45], 16
    $region461: #{_lambda_.1} parent=1 // pred_fallthru
      _
    // Predicated region
    $region462: #{_lambda_.1} parent=1 // pred_check
      _
    $region463: #{_lambda_.1} parent=1 // pred_check_branch
      %909 = sbr.rel (0) target = $region465
    $region464: #{_lambda_.1} parent=1 // pred_region
      %910 = dma.done [#allocation45], 256
    $region465: #{_lambda_.1} parent=1 // pred_fallthru
      _
    // Predicated region
    $region466: #{_lambda_.1} parent=1 // pred_check
      _
    $region467: #{_lambda_.1} parent=1 // pred_check_branch
      %912 = sbr.rel (0) target = $region469
    $region468: #{_lambda_.1} parent=1 // pred_region
      %913 = dma.done [#allocation48], 16
    $region469: #{_lambda_.1} parent=1 // pred_fallthru
      _
    // Predicated region
    $region470: #{_lambda_.1} parent=1 // pred_check
      _
    $region471: #{_lambda_.1} parent=1 // pred_check_branch
      %915 = sbr.rel (0) target = $region473
    $region472: #{_lambda_.1} parent=1 // pred_region
      %916 = dma.done [#allocation48], 16
    $region473: #{_lambda_.1} parent=1 // pred_fallthru
      _
    // Predicated region
    $region474: #{_lambda_.1} parent=1 // pred_check
      _
    $region475: #{_lambda_.1} parent=1 // pred_check_branch
      %918 = sbr.rel (0) target = $region477
    $region476: #{_lambda_.1} parent=1 // pred_region
      %919 = dma.done [#allocation51], 16
    $region477: #{_lambda_.1} parent=1 // pred_fallthru
      _
    // Predicated region
    $region478: #{_lambda_.1} parent=1 // pred_check
      _
    $region479: #{_lambda_.1} parent=1 // pred_check_branch
      %921 = sbr.rel (0) target = $region481
    $region480: #{_lambda_.1} parent=1 // pred_region
      %922 = dma.done [#allocation51], 16
    $region481: #{_lambda_.1} parent=1 // pred_fallthru
      _
    // Predicated region
    $region482: #{_lambda_.1} parent=1 // pred_check
      _
    $region483: #{_lambda_.1} parent=1 // pred_check_branch
      %924 = sbr.rel (0) target = $region485
    $region484: #{_lambda_.1} parent=1 // pred_region
      %925 = dma.done [#allocation54], 16
    $region485: #{_lambda_.1} parent=1 // pred_fallthru
      _
    // Predicated region
    $region486: #{_lambda_.1} parent=1 // pred_check
      _
    $region487: #{_lambda_.1} parent=1 // pred_check_branch
      %927 = sbr.rel (0) target = $region489
    $region488: #{_lambda_.1} parent=1 // pred_region
      %928 = dma.done [#allocation54], 16
    $region489: #{_lambda_.1} parent=1 // pred_fallthru
      _
    // Predicated region
    $region490: #{_lambda_.1} parent=1 // pred_check
      _
    $region491: #{_lambda_.1} parent=1 // pred_check_branch
      %930 = sbr.rel (0) target = $region493
    $region492: #{_lambda_.1} parent=1 // pred_region
      %931 = dma.done [#allocation57], 16
    $region493: #{_lambda_.1} parent=1 // pred_fallthru
      _
    // Predicated region
    $region494: #{_lambda_.1} parent=1 // pred_check
      _
    $region495: #{_lambda_.1} parent=1 // pred_check_branch
      %933 = sbr.rel (0) target = $region497
    $region496: #{_lambda_.1} parent=1 // pred_region
      %934 = dma.done [#allocation57], 16
    $region497: #{_lambda_.1} parent=1 // pred_fallthru
      _
    // Predicated region
    $region498: #{_lambda_.1} parent=1 // pred_check
      _
    $region499: #{_lambda_.1} parent=1 // pred_check_branch
      %936 = sbr.rel (0) target = $region501
    $region500: #{_lambda_.1} parent=1 // pred_region
      %937 = dma.done [#allocation60], 16
    $region501: #{_lambda_.1} parent=1 // pred_fallthru
      _
    // Predicated region
    $region502: #{_lambda_.1} parent=1 // pred_check
      _
    $region503: #{_lambda_.1} parent=1 // pred_check_branch
      %939 = sbr.rel (0) target = $region505
    $region504: #{_lambda_.1} parent=1 // pred_region
      %940 = dma.done [#allocation60], 256
    $region505: #{_lambda_.1} parent=1 // pred_fallthru
      _
    // Predicated region
    $region506: #{_lambda_.1} parent=1 // pred_check
      _
    $region507: #{_lambda_.1} parent=1 // pred_check_branch
      %942 = sbr.rel (0) target = $region509
    $region508: #{_lambda_.1} parent=1 // pred_region
      %943 = dma.done [#allocation63], 16
    $region509: #{_lambda_.1} parent=1 // pred_fallthru
      _
    // Predicated region
    $region510: #{_lambda_.1} parent=1 // pred_check
      _
    $region511: #{_lambda_.1} parent=1 // pred_check_branch
      %945 = sbr.rel (0) target = $region513
    $region512: #{_lambda_.1} parent=1 // pred_region
      %946 = dma.done [#allocation63], 16
    $region513: #{_lambda_.1} parent=1 // pred_fallthru
      _
    // Predicated region
    $region514: #{_lambda_.1} parent=1 // pred_check
      _
    $region515: #{_lambda_.1} parent=1 // pred_check_branch
      %948 = sbr.rel (0) target = $region517
    $region516: #{_lambda_.1} parent=1 // pred_region
      %949 = dma.done [#allocation66], 16
    $region517: #{_lambda_.1} parent=1 // pred_fallthru
      _
    // Predicated region
    $region518: #{_lambda_.1} parent=1 // pred_check
      _
    $region519: #{_lambda_.1} parent=1 // pred_check_branch
      %951 = sbr.rel (0) target = $region521
    $region520: #{_lambda_.1} parent=1 // pred_region
      %952 = dma.done [#allocation66], 16
    $region521: #{_lambda_.1} parent=1 // pred_fallthru
      _
    // Predicated region
    $region522: #{_lambda_.1} parent=1 // pred_check
      _
    $region523: #{_lambda_.1} parent=1 // pred_check_branch
      %954 = sbr.rel (0) target = $region525
    $region524: #{_lambda_.1} parent=1 // pred_region
      %955 = dma.done [#allocation69], 16
    $region525: #{_lambda_.1} parent=1 // pred_fallthru
      _
    // Predicated region
    $region526: #{_lambda_.1} parent=1 // pred_check
      _
    $region527: #{_lambda_.1} parent=1 // pred_check_branch
      %957 = sbr.rel (0) target = $region529
    $region528: #{_lambda_.1} parent=1 // pred_region
      %958 = dma.done [#allocation69], 256
    $region529: #{_lambda_.1} parent=1 // pred_fallthru
      _
    // Predicated region
    $region530: #{_lambda_.1} parent=1 // pred_check
      _
    $region531: #{_lambda_.1} parent=1 // pred_check_branch
      %960 = sbr.rel (0) target = $region533
    $region532: #{_lambda_.1} parent=1 // pred_region
      %961 = dma.done [#allocation72], 16
    $region533: #{_lambda_.1} parent=1 // pred_fallthru
      _
    // Predicated region
    $region534: #{_lambda_.1} parent=1 // pred_check
      _
    $region535: #{_lambda_.1} parent=1 // pred_check_branch
      %963 = sbr.rel (0) target = $region537
    $region536: #{_lambda_.1} parent=1 // pred_region
      %964 = dma.done [#allocation72], 16
    $region537: #{_lambda_.1} parent=1 // pred_fallthru
      _
    // Predicated region
    $region538: #{_lambda_.1} parent=1 // pred_check
      _
    $region539: #{_lambda_.1} parent=1 // pred_check_branch
      %966 = sbr.rel (0) target = $region541
    $region540: #{_lambda_.1} parent=1 // pred_region
      %967 = dma.done [#allocation75], 16
    $region541: #{_lambda_.1} parent=1 // pred_fallthru
      _
    // Predicated region
    $region542: #{_lambda_.1} parent=1 // pred_check
      _
    $region543: #{_lambda_.1} parent=1 // pred_check_branch
      %969 = sbr.rel (0) target = $region545
    $region544: #{_lambda_.1} parent=1 // pred_region
      %970 = dma.done [#allocation75], 16
    $region545: #{_lambda_.1} parent=1 // pred_fallthru
      _
    // Predicated region
    $region546: #{_lambda_.1} parent=1 // pred_check
      _
    $region547: #{_lambda_.1} parent=1 // pred_check_branch
      %972 = sbr.rel (0) target = $region549
    $region548: #{_lambda_.1} parent=1 // pred_region
      %973 = dma.done [#allocation78], 16
    $region549: #{_lambda_.1} parent=1 // pred_fallthru
      _
    // Predicated region
    $region550: #{_lambda_.1} parent=1 // pred_check
      _
    $region551: #{_lambda_.1} parent=1 // pred_check_branch
      %975 = sbr.rel (0) target = $region553
    $region552: #{_lambda_.1} parent=1 // pred_region
      %976 = dma.done [#allocation78], 16
    $region553: #{_lambda_.1} parent=1 // pred_fallthru
      _
    // Predicated region
    $region554: #{_lambda_.1} parent=1 // pred_check
      _
    $region555: #{_lambda_.1} parent=1 // pred_check_branch
      %978 = sbr.rel (0) target = $region557
    $region556: #{_lambda_.1} parent=1 // pred_region
      %979 = dma.done [#allocation81], 16
    $region557: #{_lambda_.1} parent=1 // pred_fallthru
      _
    // Predicated region
    $region558: #{_lambda_.1} parent=1 // pred_check
      _
    $region559: #{_lambda_.1} parent=1 // pred_check_branch
      %981 = sbr.rel (0) target = $region561
    $region560: #{_lambda_.1} parent=1 // pred_region
      %982 = dma.done [#allocation81], 16
    $region561: #{_lambda_.1} parent=1 // pred_fallthru
      _
    %v983 = vld [vmem:[%s1] sm:$0xff]
    %v984 = vld [vmem:[%s1 + $0x8] sm:$0xff]
    %v985 = vld [vmem:[%s3] sm:$0xff]
    %v986 = vld [vmem:[%s3 + $0x8] sm:$0xff]
    %v987 = vld [vmem:[%s5] sm:$0xff]
    %v988 = vld [vmem:[%s5 + $0x8] sm:$0xff]
    %v989 = vld [vmem:[%s7] sm:$0xff]
    %v990 = vld [vmem:[%s7 + $0x8] sm:$0xff]
    %v991 = vld [vmem:[%s9] sm:$0xff]
    %v992 = vld [vmem:[%s9 + $0x8] sm:$0xff]
    %v993 = vld [vmem:[%s11] sm:$0xff]
    %v994 = vld [vmem:[%s11 + $0x8] sm:$0xff]
    %v995 = vld [vmem:[%s13] sm:$0xff]
    %v996 = vld [vmem:[%s13 + $0x8] sm:$0xff]
    %v997 = vld [vmem:[%s15] sm:$0xf]
    %v998 = vld [vmem:[%s17] sm:$0x1]
    %v999 = vld [vmem:[%s19] sm:$0x7]
    %v1000 = vld [vmem:[%s21] sm:$0x1]
    %v1001 = vld [vmem:[%s23] sm:$0xff]
    %v1002 = vld [vmem:[%s23 + $0x8] sm:$0xff]
    %v1003 = vld [vmem:[%s23 + $0x10] sm:$0xff]
    %v1004 = vld [vmem:[%s23 + $0x18] sm:$0xff]
    %v1005 = vld [vmem:[#allocation2] sm:$0x1]
    %v1006 = vld [vmem:[%s27] sm:$0xff]
    %v1007 = vld [vmem:[%s27 + $0x8] sm:$0xff]
    %v1008 = vld [vmem:[%s27 + $0x10] sm:$0xff]
    %v1009 = vld [vmem:[%s27 + $0x18] sm:$0xff]
    %v1010 = vld [vmem:[#allocation5] sm:$0x1]
    %v1011 = vld [vmem:[#allocation7] sm:$0xff]
    %v1012 = vld [vmem:[#allocation7 + $0x8] sm:$0xff]
    %v1013 = vld [vmem:[#allocation8] sm:$0x1]
    %v1014 = vld [vmem:[#allocation10] sm:$0x1]
    %v1015 = vld [vmem:[#allocation11] sm:$0x1]
    %v1016 = vld [vmem:[%s39] sm:$0xff]
    %v1017 = vld [vmem:[%s39 + $0x8] sm:$0xff]
    %v1018 = vld [vmem:[%s39 + $0x10] sm:$0xff]
    %v1019 = vld [vmem:[%s39 + $0x18] sm:$0xff]
    %v1020 = vld [vmem:[#allocation13] sm:$0x1]
    %v1021 = vld [vmem:[%s43] sm:$0xff]
    %v1022 = vld [vmem:[%s43 + $0x8] sm:$0xff]
    %v1023 = vld [vmem:[%s43 + $0x10] sm:$0xff]
    %v1024 = vld [vmem:[%s43 + $0x18] sm:$0xff]
    %v1025 = vld [vmem:[%s43 + $0x20] sm:$0xff]
    %v1026 = vld [vmem:[%s43 + $0x28] sm:$0xff]
    %v1027 = vld [vmem:[%s43 + $0x30] sm:$0xff]
    %v1028 = vld [vmem:[%s43 + $0x38] sm:$0xff]
    %v1029 = vld [vmem:[#allocation14] sm:$0x1]
    %v1030 = vld [vmem:[#allocation16] sm:$0x1]
    %v1031 = vld [vmem:[#allocation17] sm:$0x1]
    %v1032 = vld [vmem:[%s51] sm:$0xff]
    %v1033 = vld [vmem:[%s51 + $0x8] sm:$0xff]
    %v1034 = vld [vmem:[%s51 + $0x10] sm:$0xff]
    %v1035 = vld [vmem:[%s51 + $0x18] sm:$0xff]
    %v1036 = vld [vmem:[#allocation19] sm:$0x1]
    %v1037 = vld [vmem:[%s55] sm:$0xff]
    %v1038 = vld [vmem:[%s55 + $0x8] sm:$0xff]
    %v1039 = vld [vmem:[%s55 + $0x10] sm:$0xff]
    %v1040 = vld [vmem:[%s55 + $0x18] sm:$0xff]
    %v1041 = vld [vmem:[#allocation20] sm:$0x1]
    %v1042 = vld [vmem:[#allocation22] sm:$0xff]
    %v1043 = vld [vmem:[#allocation22 + $0x8] sm:$0xff]
    %v1044 = vld [vmem:[#allocation23] sm:$0x1]
    %v1045 = vld [vmem:[#allocation25] sm:$0x1]
    %v1046 = vld [vmem:[#allocation26] sm:$0x1]
    %v1047 = vld [vmem:[%s67] sm:$0xff]
    %v1048 = vld [vmem:[%s67 + $0x8] sm:$0xff]
    %v1049 = vld [vmem:[%s67 + $0x10] sm:$0xff]
    %v1050 = vld [vmem:[%s67 + $0x18] sm:$0xff]
    %v1051 = vld [vmem:[#allocation28] sm:$0x1]
    %v1052 = vld [vmem:[%s71] sm:$0xff]
    %v1053 = vld [vmem:[%s71 + $0x8] sm:$0xff]
    %v1054 = vld [vmem:[%s71 + $0x10] sm:$0xff]
    %v1055 = vld [vmem:[%s71 + $0x18] sm:$0xff]
    %v1056 = vld [vmem:[%s71 + $0x20] sm:$0xff]
    %v1057 = vld [vmem:[%s71 + $0x28] sm:$0xff]
    %v1058 = vld [vmem:[%s71 + $0x30] sm:$0xff]
    %v1059 = vld [vmem:[%s71 + $0x38] sm:$0xff]
    %v1060 = vld [vmem:[#allocation29] sm:$0x1]
    %v1061 = vld [vmem:[#allocation31] sm:$0x1]
    %v1062 = vld [vmem:[#allocation32] sm:$0x1]
    %v1063 = vld [vmem:[%s79] sm:$0xff]
    %v1064 = vld [vmem:[%s79 + $0x8] sm:$0xff]
    %v1065 = vld [vmem:[%s79 + $0x10] sm:$0xff]
    %v1066 = vld [vmem:[%s79 + $0x18] sm:$0xff]
    %v1067 = vld [vmem:[#allocation34] sm:$0x1]
    %v1068 = vld [vmem:[%s83] sm:$0xff]
    %v1069 = vld [vmem:[%s83 + $0x8] sm:$0xff]
    %v1070 = vld [vmem:[%s83 + $0x10] sm:$0xff]
    %v1071 = vld [vmem:[%s83 + $0x18] sm:$0xff]
    %v1072 = vld [vmem:[#allocation35] sm:$0x1]
    %v1073 = vld [vmem:[#allocation37] sm:$0xff]
    %v1074 = vld [vmem:[#allocation37 + $0x8] sm:$0xff]
    %v1075 = vld [vmem:[#allocation38] sm:$0x1]
    %v1076 = vld [vmem:[#allocation40] sm:$0x1]
    %v1077 = vld [vmem:[#allocation41] sm:$0x1]
    %v1078 = vld [vmem:[%s95] sm:$0xff]
    %v1079 = vld [vmem:[%s95 + $0x8] sm:$0xff]
    %v1080 = vld [vmem:[%s95 + $0x10] sm:$0xff]
    %v1081 = vld [vmem:[%s95 + $0x18] sm:$0xff]
    %v1082 = vld [vmem:[#allocation43] sm:$0x1]
    %v1083 = vld [vmem:[%s99] sm:$0xff]
    %v1084 = vld [vmem:[%s99 + $0x8] sm:$0xff]
    %v1085 = vld [vmem:[%s99 + $0x10] sm:$0xff]
    %v1086 = vld [vmem:[%s99 + $0x18] sm:$0xff]
    %v1087 = vld [vmem:[#allocation44] sm:$0x1]
    %v1088 = vld [vmem:[#allocation46] sm:$0xff]
    %v1089 = vld [vmem:[#allocation46 + $0x8] sm:$0xff]
    %v1090 = vld [vmem:[#allocation47] sm:$0x1]
    %v1091 = vld [vmem:[#allocation49] sm:$0x1]
    %v1092 = vld [vmem:[#allocation50] sm:$0x1]
    %v1093 = vld [vmem:[%s111] sm:$0xff]
    %v1094 = vld [vmem:[%s111 + $0x8] sm:$0xff]
    %v1095 = vld [vmem:[%s111 + $0x10] sm:$0xff]
    %v1096 = vld [vmem:[%s111 + $0x18] sm:$0xff]
    %v1097 = vld [vmem:[#allocation52] sm:$0x1]
    %v1098 = vld [vmem:[%s115] sm:$0xff]
    %v1099 = vld [vmem:[%s115 + $0x8] sm:$0xff]
    %v1100 = vld [vmem:[%s115 + $0x10] sm:$0xff]
    %v1101 = vld [vmem:[%s115 + $0x18] sm:$0xff]
    %v1102 = vld [vmem:[%s115 + $0x20] sm:$0xff]
    %v1103 = vld [vmem:[%s115 + $0x28] sm:$0xff]
    %v1104 = vld [vmem:[%s115 + $0x30] sm:$0xff]
    %v1105 = vld [vmem:[%s115 + $0x38] sm:$0xff]
    %v1106 = vld [vmem:[#allocation53] sm:$0x1]
    %v1107 = vld [vmem:[#allocation55] sm:$0x1]
    %v1108 = vld [vmem:[#allocation56] sm:$0x1]
    %v1109 = vld [vmem:[%s123] sm:$0xff]
    %v1110 = vld [vmem:[%s123 + $0x8] sm:$0xff]
    %v1111 = vld [vmem:[%s123 + $0x10] sm:$0xff]
    %v1112 = vld [vmem:[%s123 + $0x18] sm:$0xff]
    %v1113 = vld [vmem:[#allocation58] sm:$0x1]
    %v1114 = vld [vmem:[%s127] sm:$0xff]
    %v1115 = vld [vmem:[%s127 + $0x8] sm:$0xff]
    %v1116 = vld [vmem:[%s127 + $0x10] sm:$0xff]
    %v1117 = vld [vmem:[%s127 + $0x18] sm:$0xff]
    %v1118 = vld [vmem:[#allocation59] sm:$0x1]
    %v1119 = vld [vmem:[#allocation61] sm:$0xff]
    %v1120 = vld [vmem:[#allocation61 + $0x8] sm:$0xff]
    %v1121 = vld [vmem:[#allocation62] sm:$0x1]
    %v1122 = vld [vmem:[#allocation64] sm:$0x1]
    %v1123 = vld [vmem:[#allocation65] sm:$0x1]
    %v1124 = vld [vmem:[%s139] sm:$0xff]
    %v1125 = vld [vmem:[%s139 + $0x8] sm:$0xff]
    %v1126 = vld [vmem:[%s139 + $0x10] sm:$0xff]
    %v1127 = vld [vmem:[%s139 + $0x18] sm:$0xff]
    %v1128 = vld [vmem:[#allocation67] sm:$0x1]
    %v1129 = vld [vmem:[%s143] sm:$0xff]
    %v1130 = vld [vmem:[%s143 + $0x8] sm:$0xff]
    %v1131 = vld [vmem:[%s143 + $0x10] sm:$0xff]
    %v1132 = vld [vmem:[%s143 + $0x18] sm:$0xff]
    %v1133 = vld [vmem:[#allocation68] sm:$0x1]
    %v1134 = vld [vmem:[#allocation70] sm:$0xff]
    %v1135 = vld [vmem:[#allocation70 + $0x8] sm:$0xff]
    %v1136 = vld [vmem:[#allocation71] sm:$0x1]
    %v1137 = vld [vmem:[#allocation73] sm:$0x1]
    %v1138 = vld [vmem:[#allocation74] sm:$0x1]
    %v1139 = vld [vmem:[%s155] sm:$0xff]
    %v1140 = vld [vmem:[%s155 + $0x8] sm:$0xff]
    %v1141 = vld [vmem:[%s155 + $0x10] sm:$0xff]
    %v1142 = vld [vmem:[%s155 + $0x18] sm:$0xff]
    %v1143 = vld [vmem:[#allocation76] sm:$0x1]
    %v1144 = vld [vmem:[%s159] sm:$0xff]
    %v1145 = vld [vmem:[%s159 + $0x8] sm:$0xff]
    %v1146 = vld [vmem:[%s159 + $0x10] sm:$0xff]
    %v1147 = vld [vmem:[%s159 + $0x18] sm:$0xff]
    %v1148 = vld [vmem:[%s159 + $0x20] sm:$0xff]
    %v1149 = vld [vmem:[%s159 + $0x28] sm:$0xff]
    %v1150 = vld [vmem:[%s159 + $0x30] sm:$0xff]
    %v1151 = vld [vmem:[%s159 + $0x38] sm:$0xff]
    %v1152 = vld [vmem:[#allocation77] sm:$0x1]
    %v1153 = vld [vmem:[#allocation79] sm:$0x1]
    %v1154 = vld [vmem:[#allocation80] sm:$0x1]
    %v1155 = vld [vmem:[%s167] sm:$0xff]
    %v1156 = vld [vmem:[%s167 + $0x8] sm:$0xff]
    %v1157 = vld [vmem:[%s167 + $0x10] sm:$0xff]
    %v1158 = vld [vmem:[%s167 + $0x18] sm:$0xff]
    %v1159 = vld [vmem:[%s169] sm:$0x1]
    %v1160 = vld [vmem:[%s171] sm:$0xff]
    %v1161 = vld [vmem:[%s171 + $0x8] sm:$0xff]
    %v1162 = vld [vmem:[%s171 + $0x10] sm:$0xff]
    %v1163 = vld [vmem:[%s171 + $0x18] sm:$0xff]
    %v1164 = vld [vmem:[%s171 + $0x20] sm:$0xff]
    %v1165 = vld [vmem:[%s171 + $0x28] sm:$0xff]
    %v1166 = vld [vmem:[%s171 + $0x30] sm:$0xff]
    %v1167 = vld [vmem:[%s171 + $0x38] sm:$0xff]
    %v1168 = vld [vmem:[%s171 + $0x40] sm:$0xff]
    %v1169 = vld [vmem:[%s171 + $0x48] sm:$0xff]
    %v1170 = vld [vmem:[%s171 + $0x50] sm:$0xff]
    %v1171 = vld [vmem:[%s171 + $0x58] sm:$0xff]
    %v1172 = vld [vmem:[%s171 + $0x60] sm:$0xff]
    %v1173 = vld [vmem:[%s171 + $0x68] sm:$0xff]
    %v1174 = vld [vmem:[%s171 + $0x70] sm:$0xff]
    %v1175 = vld [vmem:[%s171 + $0x78] sm:$0xff]
    %v1176 = vld [vmem:[%s171 + $0x80] sm:$0xff]
    %v1177 = vld [vmem:[%s171 + $0x88] sm:$0xff]
    %v1178 = vld [vmem:[%s171 + $0x90] sm:$0xff]
    %v1179 = vld [vmem:[%s171 + $0x98] sm:$0xff]
    %v1180 = vld [vmem:[%s171 + $0xa0] sm:$0xff]
    %v1181 = vld [vmem:[%s171 + $0xa8] sm:$0xff]
    %v1182 = vld [vmem:[%s171 + $0xb0] sm:$0xff]
    %v1183 = vld [vmem:[%s171 + $0xb8] sm:$0xff]
    %v1184 = vld [vmem:[%s171 + $0xc0] sm:$0xff]
    %v1185 = vld [vmem:[%s171 + $0xc8] sm:$0xff]
    %v1186 = vld [vmem:[%s171 + $0xd0] sm:$0xff]
    %v1187 = vld [vmem:[%s171 + $0xd8] sm:$0xff]
    %v1188 = vld [vmem:[%s171 + $0xe0] sm:$0xff]
    %v1189 = vld [vmem:[%s171 + $0xe8] sm:$0xff]
    %v1190 = vld [vmem:[%s171 + $0xf0] sm:$0xff]
    %v1191 = vld [vmem:[%s171 + $0xf8] sm:$0xff]
    %v1192 = vld [vmem:[#allocation82] sm:$0x1]
    %v1194 = vlaneseq
    %v1195 = vshrl.u32 %v1194, 7
    %v1196 = vsub.s32 0, %v1195
    %v1197 = vrot.slane %v998, %v1196
    %vm1199 = vcmask 31744
    %v1201 = vsel %vm1199, %v983, 0
    %v1204 = vsel %vm1199, %v984, 0
    %vm1206 = vcmask 1043456
    %v1208 = vsel %vm1206, %v997, 0
    %1210 = vmatprep.subr.mxu0 0.0
    %1211 = vmatpush1.msra.mxu0 0.0
    %1212 = vmatprep.subr.mxu0 0.0
    %1213 = vmatpush1.msra.mxu0 0.0
    %1214 = vmatprep.subr.mxu0 0.0
    %1215 = vmatpush1.msra.mxu0 0.0
    %1216 = vmatprep.subr.mxu0 0.0
    %1217 = vmatpush1.msra.mxu0 0.0
    %1218 = vmatprep.subr.mxu0 0.0
    %1219 = vmatpush1.msra.mxu0 0.0
    %1220 = vmatprep.subr.mxu0 0.0
    %1221 = vmatpush1.msra.mxu0 0.0
    %1222 = vmatprep.subr.mxu0 0.0
    %1223 = vmatpush1.msra.mxu0 0.0
    %1224 = vmatprep.subr.mxu0 0.0
    %1225 = vmatpush1.msra.mxu0 0.0
    %1226 = vmatprep.subr.mxu0 0.0
    %1227 = vmatpush1.msra.mxu0 0.0
    %1228 = vmatprep.subr.mxu0 0.0
    %1229 = vmatpush1.msra.mxu0 0.0
    %1230 = vmatprep.subr.mxu0 0.0
    %1231 = vmatpush1.msra.mxu0 0.0
    %1232 = vmatprep.subr.mxu0 0.0
    %1233 = vmatpush1.msra.mxu0 0.0
    %1234 = vmatprep.subr.mxu0 0.0
    %1235 = vmatpush1.msra.mxu0 0.0
    %1236 = vmatprep.subr.mxu0 0.0
    %1237 = vmatpush1.msra.mxu0 0.0
    %1238 = vmatprep.subr.mxu0 0.0
    %1239 = vmatpush1.msra.mxu0 0.0
    %1240 = vmatprep.subr.mxu0 0.0
    %1241 = vmatpush1.msra.mxu0 %v1208
    %1242 = vmatprep.subr.mxu0 0.0
    %1243 = vmatpush2.msra.mxu0 0.0
    %1244 = vmatprep.subr.mxu0 0.0
    %1245 = vmatpush2.msra.mxu0 0.0
    %1246 = vmatprep.subr.mxu0 0.0
    %1247 = vmatpush2.msra.mxu0 0.0
    %1248 = vmatprep.subr.mxu0 0.0
    %1249 = vmatpush2.msra.mxu0 0.0
    %1250 = vmatprep.subr.mxu0 0.0
    %1251 = vmatpush2.msra.mxu0 0.0
    %1252 = vmatprep.subr.mxu0 0.0
    %1253 = vmatpush2.msra.mxu0 0.0
    %1254 = vmatprep.subr.mxu0 0.0
    %1255 = vmatpush2.msra.mxu0 0.0
    %1256 = vmatprep.subr.mxu0 0.0
    %1257 = vmatpush2.msra.mxu0 0.0
    %1258 = vmatprep.subr.mxu0 0.0
    %1259 = vmatpush2.msra.mxu0 0.0
    %1260 = vmatprep.subr.mxu0 0.0
    %1261 = vmatpush2.msra.mxu0 0.0
    %1262 = vmatprep.subr.mxu0 0.0
    %1263 = vmatpush2.msra.mxu0 0.0
    %1264 = vmatprep.subr.mxu0 0.0
    %1265 = vmatpush2.msra.mxu0 0.0
    %1266 = vmatprep.subr.mxu0 0.0
    %1267 = vmatpush2.msra.mxu0 0.0
    %1268 = vmatprep.subr.mxu0 0.0
    %1269 = vmatpush2.msra.mxu0 0.0
    %1270 = vmatprep.subr.mxu0 0.0
    %1271 = vmatpush2.msra.mxu0 0.0
    %1272 = vmatprep.subr.mxu0 0.0
    %1273 = vmatpush2.msra.mxu0 0.0
    %1274 = vmatprep.mubr.f32.mxu0 0.0
    %1275 = vmatmul.mubr.f32.gmra.mxu0 %v1201
    %v1276 = vpop.f32.mrf.mxu0
    %v1277 = vadd.f32 %v1197, %v1276
    %v1278 = vpop.f32.mrf.mxu0
    %1279 = vmatprep.mubr.f32.mxu0 0.0
    %1280 = vmatmul.mubr.f32.gmra.mxu0 %v1204
    %v1281 = vpop.f32.mrf.mxu0
    %v1282 = vadd.f32 %v1197, %v1281
    %v1283 = vpop.f32.mrf.mxu0
    %1284 = vdwg.mxu0
    %v1285 = vadd.f32 %v1277, %v987
    %v1286 = vadd.f32 %v1282, %v988
    %v1288 = vlaneseq
    %v1289 = vshrl.u32 %v1288, 7
    %v1290 = vsub.s32 0, %v1289
    %v1291 = vrot.slane %v1005, %v1290
    %vm1293 = vcmask 261120
    %v1295 = vsel %vm1293, %v1285, 0
    %v1298 = vsel %vm1293, %v1286, 0
    %1300 = vmatprep.subr.mxu0 0.0
    %1301 = vmatpush1.msra.mxu0 0.0
    %1302 = vmatprep.subr.mxu0 0.0
    %1303 = vmatpush1.msra.mxu0 0.0
    %1304 = vmatprep.subr.mxu0 0.0
    %1305 = vmatpush1.msra.mxu0 0.0
    %1306 = vmatprep.subr.mxu0 0.0
    %1307 = vmatpush1.msra.mxu0 0.0
    %1308 = vmatprep.subr.mxu0 0.0
    %1309 = vmatpush1.msra.mxu0 0.0
    %1310 = vmatprep.subr.mxu0 0.0
    %1311 = vmatpush1.msra.mxu0 0.0
    %1312 = vmatprep.subr.mxu0 0.0
    %1313 = vmatpush1.msra.mxu0 0.0
    %1314 = vmatprep.subr.mxu0 0.0
    %1315 = vmatpush1.msra.mxu0 0.0
    %1316 = vmatprep.subr.mxu0 0.0
    %1317 = vmatpush1.msra.mxu0 0.0
    %1318 = vmatprep.subr.mxu0 0.0
    %1319 = vmatpush1.msra.mxu0 0.0
    %1320 = vmatprep.subr.mxu0 0.0
    %1321 = vmatpush1.msra.mxu0 0.0
    %1322 = vmatprep.subr.mxu0 0.0
    %1323 = vmatpush1.msra.mxu0 0.0
    %1324 = vmatprep.subr.mxu0 0.0
    %1325 = vmatpush1.msra.mxu0 %v1004
    %1326 = vmatprep.subr.mxu0 0.0
    %1327 = vmatpush1.msra.mxu0 %v1003
    %1328 = vmatprep.subr.mxu0 0.0
    %1329 = vmatpush1.msra.mxu0 %v1002
    %1330 = vmatprep.subr.mxu0 0.0
    %1331 = vmatpush1.msra.mxu0 %v1001
    %1332 = vmatprep.subr.mxu0 0.0
    %1333 = vmatpush2.msra.mxu0 0.0
    %1334 = vmatprep.subr.mxu0 0.0
    %1335 = vmatpush2.msra.mxu0 0.0
    %1336 = vmatprep.subr.mxu0 0.0
    %1337 = vmatpush2.msra.mxu0 0.0
    %1338 = vmatprep.subr.mxu0 0.0
    %1339 = vmatpush2.msra.mxu0 0.0
    %1340 = vmatprep.subr.mxu0 0.0
    %1341 = vmatpush2.msra.mxu0 0.0
    %1342 = vmatprep.subr.mxu0 0.0
    %1343 = vmatpush2.msra.mxu0 0.0
    %1344 = vmatprep.subr.mxu0 0.0
    %1345 = vmatpush2.msra.mxu0 0.0
    %1346 = vmatprep.subr.mxu0 0.0
    %1347 = vmatpush2.msra.mxu0 0.0
    %1348 = vmatprep.subr.mxu0 0.0
    %1349 = vmatpush2.msra.mxu0 0.0
    %1350 = vmatprep.subr.mxu0 0.0
    %1351 = vmatpush2.msra.mxu0 0.0
    %1352 = vmatprep.subr.mxu0 0.0
    %1353 = vmatpush2.msra.mxu0 0.0
    %1354 = vmatprep.subr.mxu0 0.0
    %1355 = vmatpush2.msra.mxu0 0.0
    %1356 = vmatprep.subr.mxu0 0.0
    %1357 = vmatpush2.msra.mxu0 0.0
    %1358 = vmatprep.subr.mxu0 0.0
    %1359 = vmatpush2.msra.mxu0 0.0
    %1360 = vmatprep.subr.mxu0 0.0
    %1361 = vmatpush2.msra.mxu0 0.0
    %1362 = vmatprep.subr.mxu0 0.0
    %1363 = vmatpush2.msra.mxu0 0.0
    %1364 = vmatprep.mubr.f32.mxu0 0.0
    %1365 = vmatmul.mubr.f32.gmra.mxu0 %v1295
    %v1366 = vpop.f32.mrf.mxu0
    %v1367 = vadd.f32 %v1291, %v1366
    %v1368 = vpop.f32.mrf.mxu0
    %1369 = vmatprep.mubr.f32.mxu0 0.0
    %1370 = vmatmul.mubr.f32.gmra.mxu0 %v1298
    %v1371 = vpop.f32.mrf.mxu0
    %v1372 = vadd.f32 %v1291, %v1371
    %v1373 = vpop.f32.mrf.mxu0
    %1374 = vdwg.mxu0
    %v1376 = vlaneseq
    %v1377 = vshrl.u32 %v1376, 7
    %v1378 = vsub.s32 0, %v1377
    %v1379 = vrot.slane %v1010, %v1378
    %1381 = vmatprep.subr.mxu0 0.0
    %1382 = vmatpush1.msra.mxu0 0.0
    %1383 = vmatprep.subr.mxu0 0.0
    %1384 = vmatpush1.msra.mxu0 0.0
    %1385 = vmatprep.subr.mxu0 0.0
    %1386 = vmatpush1.msra.mxu0 0.0
    %1387 = vmatprep.subr.mxu0 0.0
    %1388 = vmatpush1.msra.mxu0 0.0
    %1389 = vmatprep.subr.mxu0 0.0
    %1390 = vmatpush1.msra.mxu0 0.0
    %1391 = vmatprep.subr.mxu0 0.0
    %1392 = vmatpush1.msra.mxu0 0.0
    %1393 = vmatprep.subr.mxu0 0.0
    %1394 = vmatpush1.msra.mxu0 0.0
    %1395 = vmatprep.subr.mxu0 0.0
    %1396 = vmatpush1.msra.mxu0 0.0
    %1397 = vmatprep.subr.mxu0 0.0
    %1398 = vmatpush1.msra.mxu0 0.0
    %1399 = vmatprep.subr.mxu0 0.0
    %1400 = vmatpush1.msra.mxu0 0.0
    %1401 = vmatprep.subr.mxu0 0.0
    %1402 = vmatpush1.msra.mxu0 0.0
    %1403 = vmatprep.subr.mxu0 0.0
    %1404 = vmatpush1.msra.mxu0 0.0
    %1405 = vmatprep.subr.mxu0 0.0
    %1406 = vmatpush1.msra.mxu0 %v1009
    %1407 = vmatprep.subr.mxu0 0.0
    %1408 = vmatpush1.msra.mxu0 %v1008
    %1409 = vmatprep.subr.mxu0 0.0
    %1410 = vmatpush1.msra.mxu0 %v1007
    %1411 = vmatprep.subr.mxu0 0.0
    %1412 = vmatpush1.msra.mxu0 %v1006
    %1413 = vmatprep.subr.mxu0 0.0
    %1414 = vmatpush2.msra.mxu0 0.0
    %1415 = vmatprep.subr.mxu0 0.0
    %1416 = vmatpush2.msra.mxu0 0.0
    %1417 = vmatprep.subr.mxu0 0.0
    %1418 = vmatpush2.msra.mxu0 0.0
    %1419 = vmatprep.subr.mxu0 0.0
    %1420 = vmatpush2.msra.mxu0 0.0
    %1421 = vmatprep.subr.mxu0 0.0
    %1422 = vmatpush2.msra.mxu0 0.0
    %1423 = vmatprep.subr.mxu0 0.0
    %1424 = vmatpush2.msra.mxu0 0.0
    %1425 = vmatprep.subr.mxu0 0.0
    %1426 = vmatpush2.msra.mxu0 0.0
    %1427 = vmatprep.subr.mxu0 0.0
    %1428 = vmatpush2.msra.mxu0 0.0
    %1429 = vmatprep.subr.mxu0 0.0
    %1430 = vmatpush2.msra.mxu0 0.0
    %1431 = vmatprep.subr.mxu0 0.0
    %1432 = vmatpush2.msra.mxu0 0.0
    %1433 = vmatprep.subr.mxu0 0.0
    %1434 = vmatpush2.msra.mxu0 0.0
    %1435 = vmatprep.subr.mxu0 0.0
    %1436 = vmatpush2.msra.mxu0 0.0
    %1437 = vmatprep.subr.mxu0 0.0
    %1438 = vmatpush2.msra.mxu0 0.0
    %1439 = vmatprep.subr.mxu0 0.0
    %1440 = vmatpush2.msra.mxu0 0.0
    %1441 = vmatprep.subr.mxu0 0.0
    %1442 = vmatpush2.msra.mxu0 0.0
    %1443 = vmatprep.subr.mxu0 0.0
    %1444 = vmatpush2.msra.mxu0 0.0
    %1445 = vmatprep.mubr.f32.mxu0 0.0
    %1446 = vmatmul.mubr.f32.gmra.mxu0 %v1295
    %v1447 = vpop.f32.mrf.mxu0
    %v1448 = vadd.f32 %v1379, %v1447
    %v1449 = vpop.f32.mrf.mxu0
    %1450 = vmatprep.mubr.f32.mxu0 0.0
    %1451 = vmatmul.mubr.f32.gmra.mxu0 %v1298
    %v1452 = vpop.f32.mrf.mxu0
    %v1453 = vadd.f32 %v1379, %v1452
    %v1454 = vpop.f32.mrf.mxu0
    %1455 = vdwg.mxu0
    %v1457 = vlaneseq
    %v1458 = vshrl.u32 %v1457, 7
    %v1459 = vsub.s32 0, %v1458
    %v1460 = vrot.slane %v1013, %v1459
    %v1462 = vadd.f32 %v1460, %v1285
    %v1463 = vadd.f32 %v1460, %v1286
    %vm1464 = vcmask 64512
    %v1466 = vsel %vm1464, %v1367, 0
    %v1469 = vsel %vm1464, %v1372, 0
    %v1472 = vsel %vm1464, %v1448, 0
    %v1475 = vsel %vm1464, %v1453, 0
    %1477 = vmatprep.subr.mxu0 0.0
    %1478 = vmatpush1.xpose.msra.mxu0 0.0
    %1479 = vmatprep.subr.mxu0 0.0
    %1480 = vmatpush1.xpose.msra.mxu0 0.0
    %1481 = vmatprep.subr.mxu0 0.0
    %1482 = vmatpush1.xpose.msra.mxu0 0.0
    %1483 = vmatprep.subr.mxu0 0.0
    %1484 = vmatpush1.xpose.msra.mxu0 0.0
    %1485 = vmatprep.subr.mxu0 0.0
    %1486 = vmatpush1.xpose.msra.mxu0 0.0
    %1487 = vmatprep.subr.mxu0 0.0
    %1488 = vmatpush1.xpose.msra.mxu0 0.0
    %1489 = vmatprep.subr.mxu0 0.0
    %1490 = vmatpush1.xpose.msra.mxu0 0.0
    %1491 = vmatprep.subr.mxu0 0.0
    %1492 = vmatpush1.xpose.msra.mxu0 0.0
    %1493 = vmatprep.subr.mxu0 0.0
    %1494 = vmatpush1.xpose.msra.mxu0 0.0
    %1495 = vmatprep.subr.mxu0 0.0
    %1496 = vmatpush1.xpose.msra.mxu0 0.0
    %1497 = vmatprep.subr.mxu0 0.0
    %1498 = vmatpush1.xpose.msra.mxu0 0.0
    %1499 = vmatprep.subr.mxu0 0.0
    %1500 = vmatpush1.xpose.msra.mxu0 0.0
    %1501 = vmatprep.subr.mxu0 0.0
    %1502 = vmatpush1.xpose.msra.mxu0 0.0
    %1503 = vmatprep.subr.mxu0 0.0
    %1504 = vmatpush1.xpose.msra.mxu0 0.0
    %1505 = vmatprep.subr.mxu0 0.0
    %1506 = vmatpush1.xpose.msra.mxu0 %v1475
    %1507 = vmatprep.subr.mxu0 0.0
    %1508 = vmatpush1.xpose.msra.mxu0 %v1472
    %1509 = vmatprep.subr.mxu0 0.0
    %1510 = vmatpush2.xpose.msra.mxu0 0.0
    %1511 = vmatprep.subr.mxu0 0.0
    %1512 = vmatpush2.xpose.msra.mxu0 0.0
    %1513 = vmatprep.subr.mxu0 0.0
    %1514 = vmatpush2.xpose.msra.mxu0 0.0
    %1515 = vmatprep.subr.mxu0 0.0
    %1516 = vmatpush2.xpose.msra.mxu0 0.0
    %1517 = vmatprep.subr.mxu0 0.0
    %1518 = vmatpush2.xpose.msra.mxu0 0.0
    %1519 = vmatprep.subr.mxu0 0.0
    %1520 = vmatpush2.xpose.msra.mxu0 0.0
    %1521 = vmatprep.subr.mxu0 0.0
    %1522 = vmatpush2.xpose.msra.mxu0 0.0
    %1523 = vmatprep.subr.mxu0 0.0
    %1524 = vmatpush2.xpose.msra.mxu0 0.0
    %1525 = vmatprep.subr.mxu0 0.0
    %1526 = vmatpush2.xpose.msra.mxu0 0.0
    %1527 = vmatprep.subr.mxu0 0.0
    %1528 = vmatpush2.xpose.msra.mxu0 0.0
    %1529 = vmatprep.subr.mxu0 0.0
    %1530 = vmatpush2.xpose.msra.mxu0 0.0
    %1531 = vmatprep.subr.mxu0 0.0
    %1532 = vmatpush2.xpose.msra.mxu0 0.0
    %1533 = vmatprep.subr.mxu0 0.0
    %1534 = vmatpush2.xpose.msra.mxu0 0.0
    %1535 = vmatprep.subr.mxu0 0.0
    %1536 = vmatpush2.xpose.msra.mxu0 0.0
    %1537 = vmatprep.subr.mxu0 0.0
    %1538 = vmatpush2.xpose.msra.mxu0 0.0
    %1539 = vmatprep.subr.mxu0 0.0
    %1540 = vmatpush2.xpose.msra.mxu0 0.0
    %1541 = vmatprep.mubr.f32.mxu0 0.0
    %1542 = vmatmul.mubr.f32.gmra.mxu0 %v1466
    %v1543 = vpop.f32.mrf.mxu0
    %v1544 = vadd.f32 %v991, %v1543
    %v1545 = vpop.f32.mrf.mxu0
    %1546 = vmatprep.mubr.f32.mxu0 0.0
    %1547 = vmatmul.mubr.f32.gmra.mxu0 %v1469
    %v1548 = vpop.f32.mrf.mxu0
    %v1549 = vadd.f32 %v992, %v1548
    %v1550 = vpop.f32.mrf.mxu0
    %1551 = vdwg.mxu0
    %vm1552 = vcmask 130048
    %v1553 = vsel %vm1552, %v1544, -inf
    %1554 = vmax.xlane.f32.xlu0 %v1553
    %v1555 = vpop.xlane.xlu0 %1554
    %v1556 = vsel %vm1552, %v1549, -inf
    %1557 = vmax.xlane.f32.xlu0 %v1556
    %v1558 = vpop.xlane.xlu0 %1557
    %v1559 = vsub.f32 %v1544, %v1555
    %v1560 = vsub.f32 %v1549, %v1558
    %v1561 = vmul.f32 %v1559, 1.442695
    %v1562 = vpow.pop %v1561
    %v1563 = vmul.f32 %v1560, 1.442695
    %v1564 = vpow.pop %v1563
    %v1565 = vsel %vm1552, %v1562, 0.0
    %1566 = vadd.xlane.f32.xlu0 %v1565
    %v1567 = vpop.xlane.xlu0 %1566
    %v1568 = vsel %vm1552, %v1564, 0.0
    %1569 = vadd.xlane.f32.xlu0 %v1568
    %v1570 = vpop.xlane.xlu0 %1569
    %v1571 = vrcp.pop %v1567
    %v1572 = vrcp.pop %v1570
    %v1573 = vmul.f32 %v1562, %v1571
    %v1574 = vmul.f32 %v1564, %v1572
    %1575 = vrot.lane.b32.xlu0 %v1448, 112
    %v1576 = vpop.permute.xlu0 %1575
    %1577 = vrot.lane.b32.xlu0 %v1453, 112
    %v1578 = vpop.permute.xlu0 %1577
    %v1582 = vsel %vm1552, %v1573, 0
    %v1585 = vsel %vm1552, %v1574, 0
    %1587 = vmatprep.subr.mxu0 0.0
    %1588 = vmatpush1.msra.mxu0 0.0
    %1589 = vmatprep.subr.mxu0 0.0
    %1590 = vmatpush1.msra.mxu0 0.0
    %1591 = vmatprep.subr.mxu0 0.0
    %1592 = vmatpush1.msra.mxu0 0.0
    %1593 = vmatprep.subr.mxu0 0.0
    %1594 = vmatpush1.msra.mxu0 0.0
    %1595 = vmatprep.subr.mxu0 0.0
    %1596 = vmatpush1.msra.mxu0 0.0
    %1597 = vmatprep.subr.mxu0 0.0
    %1598 = vmatpush1.msra.mxu0 0.0
    %1599 = vmatprep.subr.mxu0 0.0
    %1600 = vmatpush1.msra.mxu0 0.0
    %1601 = vmatprep.subr.mxu0 0.0
    %1602 = vmatpush1.msra.mxu0 0.0
    %1603 = vmatprep.subr.mxu0 0.0
    %1604 = vmatpush1.msra.mxu0 0.0
    %1605 = vmatprep.subr.mxu0 0.0
    %1606 = vmatpush1.msra.mxu0 0.0
    %1607 = vmatprep.subr.mxu0 0.0
    %1608 = vmatpush1.msra.mxu0 0.0
    %1609 = vmatprep.subr.mxu0 0.0
    %1610 = vmatpush1.msra.mxu0 0.0
    %1611 = vmatprep.subr.mxu0 0.0
    %1612 = vmatpush1.msra.mxu0 0.0
    %1613 = vmatprep.subr.mxu0 0.0
    %1614 = vmatpush1.msra.mxu0 0.0
    %1615 = vmatprep.subr.mxu0 0.0
    %1616 = vmatpush1.msra.mxu0 %v1578
    %1617 = vmatprep.subr.mxu0 0.0
    %1618 = vmatpush1.msra.mxu0 %v1576
    %1619 = vmatprep.subr.mxu0 0.0
    %1620 = vmatpush2.msra.mxu0 0.0
    %1621 = vmatprep.subr.mxu0 0.0
    %1622 = vmatpush2.msra.mxu0 0.0
    %1623 = vmatprep.subr.mxu0 0.0
    %1624 = vmatpush2.msra.mxu0 0.0
    %1625 = vmatprep.subr.mxu0 0.0
    %1626 = vmatpush2.msra.mxu0 0.0
    %1627 = vmatprep.subr.mxu0 0.0
    %1628 = vmatpush2.msra.mxu0 0.0
    %1629 = vmatprep.subr.mxu0 0.0
    %1630 = vmatpush2.msra.mxu0 0.0
    %1631 = vmatprep.subr.mxu0 0.0
    %1632 = vmatpush2.msra.mxu0 0.0
    %1633 = vmatprep.subr.mxu0 0.0
    %1634 = vmatpush2.msra.mxu0 0.0
    %1635 = vmatprep.subr.mxu0 0.0
    %1636 = vmatpush2.msra.mxu0 0.0
    %1637 = vmatprep.subr.mxu0 0.0
    %1638 = vmatpush2.msra.mxu0 0.0
    %1639 = vmatprep.subr.mxu0 0.0
    %1640 = vmatpush2.msra.mxu0 0.0
    %1641 = vmatprep.subr.mxu0 0.0
    %1642 = vmatpush2.msra.mxu0 0.0
    %1643 = vmatprep.subr.mxu0 0.0
    %1644 = vmatpush2.msra.mxu0 0.0
    %1645 = vmatprep.subr.mxu0 0.0
    %1646 = vmatpush2.msra.mxu0 0.0
    %1647 = vmatprep.subr.mxu0 0.0
    %1648 = vmatpush2.msra.mxu0 0.0
    %1649 = vmatprep.subr.mxu0 0.0
    %1650 = vmatpush2.msra.mxu0 0.0
    %1651 = vmatprep.mubr.f32.mxu0 0.0
    %1652 = vmatmul.mubr.f32.gmra.mxu0 %v1582
    %v1653 = vpop.f32.mrf.mxu0
    %v1654 = vadd.f32 0.0, %v1653
    %v1655 = vpop.f32.mrf.mxu0
    %1656 = vmatprep.mubr.f32.mxu0 0.0
    %1657 = vmatmul.mubr.f32.gmra.mxu0 %v1585
    %v1658 = vpop.f32.mrf.mxu0
    %v1659 = vadd.f32 0.0, %v1658
    %v1660 = vpop.f32.mrf.mxu0
    %1661 = vdwg.mxu0
    %v1663 = vsel %vm1464, %v1654, 0
    %v1666 = vsel %vm1464, %v1659, 0
    %1668 = vmatprep.subr.mxu0 0.0
    %1669 = vmatpush1.msra.mxu0 0.0
    %1670 = vmatprep.subr.mxu0 0.0
    %1671 = vmatpush1.msra.mxu0 0.0
    %1672 = vmatprep.subr.mxu0 0.0
    %1673 = vmatpush1.msra.mxu0 0.0
    %1674 = vmatprep.subr.mxu0 0.0
    %1675 = vmatpush1.msra.mxu0 0.0
    %1676 = vmatprep.subr.mxu0 0.0
    %1677 = vmatpush1.msra.mxu0 0.0
    %1678 = vmatprep.subr.mxu0 0.0
    %1679 = vmatpush1.msra.mxu0 0.0
    %1680 = vmatprep.subr.mxu0 0.0
    %1681 = vmatpush1.msra.mxu0 0.0
    %1682 = vmatprep.subr.mxu0 0.0
    %1683 = vmatpush1.msra.mxu0 0.0
    %1684 = vmatprep.subr.mxu0 0.0
    %1685 = vmatpush1.msra.mxu0 0.0
    %1686 = vmatprep.subr.mxu0 0.0
    %1687 = vmatpush1.msra.mxu0 0.0
    %1688 = vmatprep.subr.mxu0 0.0
    %1689 = vmatpush1.msra.mxu0 0.0
    %1690 = vmatprep.subr.mxu0 0.0
    %1691 = vmatpush1.msra.mxu0 0.0
    %1692 = vmatprep.subr.mxu0 0.0
    %1693 = vmatpush1.msra.mxu0 0.0
    %1694 = vmatprep.subr.mxu0 0.0
    %1695 = vmatpush1.msra.mxu0 0.0
    %1696 = vmatprep.subr.mxu0 0.0
    %1697 = vmatpush1.msra.mxu0 0.0
    %1698 = vmatprep.subr.mxu0 0.0
    %1699 = vmatpush1.msra.mxu0 %v1011
    %1700 = vmatprep.subr.mxu0 0.0
    %1701 = vmatpush2.msra.mxu0 0.0
    %1702 = vmatprep.subr.mxu0 0.0
    %1703 = vmatpush2.msra.mxu0 0.0
    %1704 = vmatprep.subr.mxu0 0.0
    %1705 = vmatpush2.msra.mxu0 0.0
    %1706 = vmatprep.subr.mxu0 0.0
    %1707 = vmatpush2.msra.mxu0 0.0
    %1708 = vmatprep.subr.mxu0 0.0
    %1709 = vmatpush2.msra.mxu0 0.0
    %1710 = vmatprep.subr.mxu0 0.0
    %1711 = vmatpush2.msra.mxu0 0.0
    %1712 = vmatprep.subr.mxu0 0.0
    %1713 = vmatpush2.msra.mxu0 0.0
    %1714 = vmatprep.subr.mxu0 0.0
    %1715 = vmatpush2.msra.mxu0 0.0
    %1716 = vmatprep.subr.mxu0 0.0
    %1717 = vmatpush2.msra.mxu0 0.0
    %1718 = vmatprep.subr.mxu0 0.0
    %1719 = vmatpush2.msra.mxu0 0.0
    %1720 = vmatprep.subr.mxu0 0.0
    %1721 = vmatpush2.msra.mxu0 0.0
    %1722 = vmatprep.subr.mxu0 0.0
    %1723 = vmatpush2.msra.mxu0 0.0
    %1724 = vmatprep.subr.mxu0 0.0
    %1725 = vmatpush2.msra.mxu0 0.0
    %1726 = vmatprep.subr.mxu0 0.0
    %1727 = vmatpush2.msra.mxu0 0.0
    %1728 = vmatprep.subr.mxu0 0.0
    %1729 = vmatpush2.msra.mxu0 0.0
    %1730 = vmatprep.subr.mxu0 0.0
    %1731 = vmatpush2.msra.mxu0 0.0
    %1732 = vmatprep.mubr.f32.mxu0 0.0
    %1733 = vmatmul.mubr.f32.gmra.mxu0 %v1663
    %v1734 = vpop.f32.mrf.mxu0
    %v1735 = vadd.f32 0.0, %v1734
    %v1736 = vpop.f32.mrf.mxu0
    %1737 = vmatprep.mubr.f32.mxu0 0.0
    %1738 = vmatmul.mubr.f32.gmra.mxu0 %v1666
    %v1739 = vpop.f32.mrf.mxu0
    %v1740 = vadd.f32 0.0, %v1739
    %v1741 = vpop.f32.mrf.mxu0
    %1742 = vdwg.mxu0
    %v1743 = vadd.f32 %v1462, %v1735
    %v1744 = vadd.f32 %v1463, %v1740
    %1745 = vrot.lane.b32.xlu0 %v1367, 120
    %v1746 = vpop.permute.xlu0 %1745
    %1747 = vrot.lane.b32.xlu0 %v1372, 120
    %v1748 = vpop.permute.xlu0 %1747
    %1749 = vrot.lane.b32.xlu0 %v1448, 120
    %v1750 = vpop.permute.xlu0 %1749
    %1751 = vrot.lane.b32.xlu0 %v1453, 120
    %v1752 = vpop.permute.xlu0 %1751
    %v1753 = vsel %vm1464, %v1746, 0
    %v1755 = vsel %vm1464, %v1748, 0
    %v1757 = vsel %vm1464, %v1750, 0
    %v1759 = vsel %vm1464, %v1752, 0
    %1761 = vmatprep.subr.mxu0 0.0
    %1762 = vmatpush1.xpose.msra.mxu0 0.0
    %1763 = vmatprep.subr.mxu0 0.0
    %1764 = vmatpush1.xpose.msra.mxu0 0.0
    %1765 = vmatprep.subr.mxu0 0.0
    %1766 = vmatpush1.xpose.msra.mxu0 0.0
    %1767 = vmatprep.subr.mxu0 0.0
    %1768 = vmatpush1.xpose.msra.mxu0 0.0
    %1769 = vmatprep.subr.mxu0 0.0
    %1770 = vmatpush1.xpose.msra.mxu0 0.0
    %1771 = vmatprep.subr.mxu0 0.0
    %1772 = vmatpush1.xpose.msra.mxu0 0.0
    %1773 = vmatprep.subr.mxu0 0.0
    %1774 = vmatpush1.xpose.msra.mxu0 0.0
    %1775 = vmatprep.subr.mxu0 0.0
    %1776 = vmatpush1.xpose.msra.mxu0 0.0
    %1777 = vmatprep.subr.mxu0 0.0
    %1778 = vmatpush1.xpose.msra.mxu0 0.0
    %1779 = vmatprep.subr.mxu0 0.0
    %1780 = vmatpush1.xpose.msra.mxu0 0.0
    %1781 = vmatprep.subr.mxu0 0.0
    %1782 = vmatpush1.xpose.msra.mxu0 0.0
    %1783 = vmatprep.subr.mxu0 0.0
    %1784 = vmatpush1.xpose.msra.mxu0 0.0
    %1785 = vmatprep.subr.mxu0 0.0
    %1786 = vmatpush1.xpose.msra.mxu0 0.0
    %1787 = vmatprep.subr.mxu0 0.0
    %1788 = vmatpush1.xpose.msra.mxu0 0.0
    %1789 = vmatprep.subr.mxu0 0.0
    %1790 = vmatpush1.xpose.msra.mxu0 %v1759
    %1791 = vmatprep.subr.mxu0 0.0
    %1792 = vmatpush1.xpose.msra.mxu0 %v1757
    %1793 = vmatprep.subr.mxu0 0.0
    %1794 = vmatpush2.xpose.msra.mxu0 0.0
    %1795 = vmatprep.subr.mxu0 0.0
    %1796 = vmatpush2.xpose.msra.mxu0 0.0
    %1797 = vmatprep.subr.mxu0 0.0
    %1798 = vmatpush2.xpose.msra.mxu0 0.0
    %1799 = vmatprep.subr.mxu0 0.0
    %1800 = vmatpush2.xpose.msra.mxu0 0.0
    %1801 = vmatprep.subr.mxu0 0.0
    %1802 = vmatpush2.xpose.msra.mxu0 0.0
    %1803 = vmatprep.subr.mxu0 0.0
    %1804 = vmatpush2.xpose.msra.mxu0 0.0
    %1805 = vmatprep.subr.mxu0 0.0
    %1806 = vmatpush2.xpose.msra.mxu0 0.0
    %1807 = vmatprep.subr.mxu0 0.0
    %1808 = vmatpush2.xpose.msra.mxu0 0.0
    %1809 = vmatprep.subr.mxu0 0.0
    %1810 = vmatpush2.xpose.msra.mxu0 0.0
    %1811 = vmatprep.subr.mxu0 0.0
    %1812 = vmatpush2.xpose.msra.mxu0 0.0
    %1813 = vmatprep.subr.mxu0 0.0
    %1814 = vmatpush2.xpose.msra.mxu0 0.0
    %1815 = vmatprep.subr.mxu0 0.0
    %1816 = vmatpush2.xpose.msra.mxu0 0.0
    %1817 = vmatprep.subr.mxu0 0.0
    %1818 = vmatpush2.xpose.msra.mxu0 0.0
    %1819 = vmatprep.subr.mxu0 0.0
    %1820 = vmatpush2.xpose.msra.mxu0 0.0
    %1821 = vmatprep.subr.mxu0 0.0
    %1822 = vmatpush2.xpose.msra.mxu0 0.0
    %1823 = vmatprep.subr.mxu0 0.0
    %1824 = vmatpush2.xpose.msra.mxu0 0.0
    %1825 = vmatprep.mubr.f32.mxu0 0.0
    %1826 = vmatmul.mubr.f32.gmra.mxu0 %v1753
    %v1827 = vpop.f32.mrf.mxu0
    %v1828 = vadd.f32 %v991, %v1827
    %v1829 = vpop.f32.mrf.mxu0
    %1830 = vmatprep.mubr.f32.mxu0 0.0
    %1831 = vmatmul.mubr.f32.gmra.mxu0 %v1755
    %v1832 = vpop.f32.mrf.mxu0
    %v1833 = vadd.f32 %v992, %v1832
    %v1834 = vpop.f32.mrf.mxu0
    %1835 = vdwg.mxu0
    %v1836 = vsel %vm1552, %v1828, -inf
    %1837 = vmax.xlane.f32.xlu0 %v1836
    %v1838 = vpop.xlane.xlu0 %1837
    %v1839 = vsel %vm1552, %v1833, -inf
    %1840 = vmax.xlane.f32.xlu0 %v1839
    %v1841 = vpop.xlane.xlu0 %1840
    %v1842 = vsub.f32 %v1828, %v1838
    %v1843 = vsub.f32 %v1833, %v1841
    %v1844 = vmul.f32 %v1842, 1.442695
    %v1845 = vpow.pop %v1844
    %v1846 = vmul.f32 %v1843, 1.442695
    %v1847 = vpow.pop %v1846
    %v1848 = vsel %vm1552, %v1845, 0.0
    %1849 = vadd.xlane.f32.xlu0 %v1848
    %v1850 = vpop.xlane.xlu0 %1849
    %v1851 = vsel %vm1552, %v1847, 0.0
    %1852 = vadd.xlane.f32.xlu0 %v1851
    %v1853 = vpop.xlane.xlu0 %1852
    %v1854 = vrcp.pop %v1850
    %v1855 = vrcp.pop %v1853
    %v1856 = vmul.f32 %v1845, %v1854
    %v1857 = vmul.f32 %v1847, %v1855
    %1858 = vrot.lane.b32.xlu0 %v1448, 104
    %v1859 = vpop.permute.xlu0 %1858
    %1860 = vrot.lane.b32.xlu0 %v1453, 104
    %v1861 = vpop.permute.xlu0 %1860
    %v1865 = vsel %vm1552, %v1856, 0
    %v1868 = vsel %vm1552, %v1857, 0
    %1870 = vmatprep.subr.mxu0 0.0
    %1871 = vmatpush1.msra.mxu0 0.0
    %1872 = vmatprep.subr.mxu0 0.0
    %1873 = vmatpush1.msra.mxu0 0.0
    %1874 = vmatprep.subr.mxu0 0.0
    %1875 = vmatpush1.msra.mxu0 0.0
    %1876 = vmatprep.subr.mxu0 0.0
    %1877 = vmatpush1.msra.mxu0 0.0
    %1878 = vmatprep.subr.mxu0 0.0
    %1879 = vmatpush1.msra.mxu0 0.0
    %1880 = vmatprep.subr.mxu0 0.0
    %1881 = vmatpush1.msra.mxu0 0.0
    %1882 = vmatprep.subr.mxu0 0.0
    %1883 = vmatpush1.msra.mxu0 0.0
    %1884 = vmatprep.subr.mxu0 0.0
    %1885 = vmatpush1.msra.mxu0 0.0
    %1886 = vmatprep.subr.mxu0 0.0
    %1887 = vmatpush1.msra.mxu0 0.0
    %1888 = vmatprep.subr.mxu0 0.0
    %1889 = vmatpush1.msra.mxu0 0.0
    %1890 = vmatprep.subr.mxu0 0.0
    %1891 = vmatpush1.msra.mxu0 0.0
    %1892 = vmatprep.subr.mxu0 0.0
    %1893 = vmatpush1.msra.mxu0 0.0
    %1894 = vmatprep.subr.mxu0 0.0
    %1895 = vmatpush1.msra.mxu0 0.0
    %1896 = vmatprep.subr.mxu0 0.0
    %1897 = vmatpush1.msra.mxu0 0.0
    %1898 = vmatprep.subr.mxu0 0.0
    %1899 = vmatpush1.msra.mxu0 %v1861
    %1900 = vmatprep.subr.mxu0 0.0
    %1901 = vmatpush1.msra.mxu0 %v1859
    %1902 = vmatprep.subr.mxu0 0.0
    %1903 = vmatpush2.msra.mxu0 0.0
    %1904 = vmatprep.subr.mxu0 0.0
    %1905 = vmatpush2.msra.mxu0 0.0
    %1906 = vmatprep.subr.mxu0 0.0
    %1907 = vmatpush2.msra.mxu0 0.0
    %1908 = vmatprep.subr.mxu0 0.0
    %1909 = vmatpush2.msra.mxu0 0.0
    %1910 = vmatprep.subr.mxu0 0.0
    %1911 = vmatpush2.msra.mxu0 0.0
    %1912 = vmatprep.subr.mxu0 0.0
    %1913 = vmatpush2.msra.mxu0 0.0
    %1914 = vmatprep.subr.mxu0 0.0
    %1915 = vmatpush2.msra.mxu0 0.0
    %1916 = vmatprep.subr.mxu0 0.0
    %1917 = vmatpush2.msra.mxu0 0.0
    %1918 = vmatprep.subr.mxu0 0.0
    %1919 = vmatpush2.msra.mxu0 0.0
    %1920 = vmatprep.subr.mxu0 0.0
    %1921 = vmatpush2.msra.mxu0 0.0
    %1922 = vmatprep.subr.mxu0 0.0
    %1923 = vmatpush2.msra.mxu0 0.0
    %1924 = vmatprep.subr.mxu0 0.0
    %1925 = vmatpush2.msra.mxu0 0.0
    %1926 = vmatprep.subr.mxu0 0.0
    %1927 = vmatpush2.msra.mxu0 0.0
    %1928 = vmatprep.subr.mxu0 0.0
    %1929 = vmatpush2.msra.mxu0 0.0
    %1930 = vmatprep.subr.mxu0 0.0
    %1931 = vmatpush2.msra.mxu0 0.0
    %1932 = vmatprep.subr.mxu0 0.0
    %1933 = vmatpush2.msra.mxu0 0.0
    %1934 = vmatprep.mubr.f32.mxu0 0.0
    %1935 = vmatmul.mubr.f32.gmra.mxu0 %v1865
    %v1936 = vpop.f32.mrf.mxu0
    %v1937 = vadd.f32 0.0, %v1936
    %v1938 = vpop.f32.mrf.mxu0
    %1939 = vmatprep.mubr.f32.mxu0 0.0
    %1940 = vmatmul.mubr.f32.gmra.mxu0 %v1868
    %v1941 = vpop.f32.mrf.mxu0
    %v1942 = vadd.f32 0.0, %v1941
    %v1943 = vpop.f32.mrf.mxu0
    %1944 = vdwg.mxu0
    %v1946 = vsel %vm1464, %v1937, 0
    %v1949 = vsel %vm1464, %v1942, 0
    %1951 = vmatprep.subr.mxu0 0.0
    %1952 = vmatpush1.msra.mxu0 0.0
    %1953 = vmatprep.subr.mxu0 0.0
    %1954 = vmatpush1.msra.mxu0 0.0
    %1955 = vmatprep.subr.mxu0 0.0
    %1956 = vmatpush1.msra.mxu0 0.0
    %1957 = vmatprep.subr.mxu0 0.0
    %1958 = vmatpush1.msra.mxu0 0.0
    %1959 = vmatprep.subr.mxu0 0.0
    %1960 = vmatpush1.msra.mxu0 0.0
    %1961 = vmatprep.subr.mxu0 0.0
    %1962 = vmatpush1.msra.mxu0 0.0
    %1963 = vmatprep.subr.mxu0 0.0
    %1964 = vmatpush1.msra.mxu0 0.0
    %1965 = vmatprep.subr.mxu0 0.0
    %1966 = vmatpush1.msra.mxu0 0.0
    %1967 = vmatprep.subr.mxu0 0.0
    %1968 = vmatpush1.msra.mxu0 0.0
    %1969 = vmatprep.subr.mxu0 0.0
    %1970 = vmatpush1.msra.mxu0 0.0
    %1971 = vmatprep.subr.mxu0 0.0
    %1972 = vmatpush1.msra.mxu0 0.0
    %1973 = vmatprep.subr.mxu0 0.0
    %1974 = vmatpush1.msra.mxu0 0.0
    %1975 = vmatprep.subr.mxu0 0.0
    %1976 = vmatpush1.msra.mxu0 0.0
    %1977 = vmatprep.subr.mxu0 0.0
    %1978 = vmatpush1.msra.mxu0 0.0
    %1979 = vmatprep.subr.mxu0 0.0
    %1980 = vmatpush1.msra.mxu0 0.0
    %1981 = vmatprep.subr.mxu0 0.0
    %1982 = vmatpush1.msra.mxu0 %v1012
    %1983 = vmatprep.subr.mxu0 0.0
    %1984 = vmatpush2.msra.mxu0 0.0
    %1985 = vmatprep.subr.mxu0 0.0
    %1986 = vmatpush2.msra.mxu0 0.0
    %1987 = vmatprep.subr.mxu0 0.0
    %1988 = vmatpush2.msra.mxu0 0.0
    %1989 = vmatprep.subr.mxu0 0.0
    %1990 = vmatpush2.msra.mxu0 0.0
    %1991 = vmatprep.subr.mxu0 0.0
    %1992 = vmatpush2.msra.mxu0 0.0
    %1993 = vmatprep.subr.mxu0 0.0
    %1994 = vmatpush2.msra.mxu0 0.0
    %1995 = vmatprep.subr.mxu0 0.0
    %1996 = vmatpush2.msra.mxu0 0.0
    %1997 = vmatprep.subr.mxu0 0.0
    %1998 = vmatpush2.msra.mxu0 0.0
    %1999 = vmatprep.subr.mxu0 0.0
    %2000 = vmatpush2.msra.mxu0 0.0
    %2001 = vmatprep.subr.mxu0 0.0
    %2002 = vmatpush2.msra.mxu0 0.0
    %2003 = vmatprep.subr.mxu0 0.0
    %2004 = vmatpush2.msra.mxu0 0.0
    %2005 = vmatprep.subr.mxu0 0.0
    %2006 = vmatpush2.msra.mxu0 0.0
    %2007 = vmatprep.subr.mxu0 0.0
    %2008 = vmatpush2.msra.mxu0 0.0
    %2009 = vmatprep.subr.mxu0 0.0
    %2010 = vmatpush2.msra.mxu0 0.0
    %2011 = vmatprep.subr.mxu0 0.0
    %2012 = vmatpush2.msra.mxu0 0.0
    %2013 = vmatprep.subr.mxu0 0.0
    %2014 = vmatpush2.msra.mxu0 0.0
    %2015 = vmatprep.mubr.f32.mxu0 0.0
    %2016 = vmatmul.mubr.f32.gmra.mxu0 %v1946
    %v2017 = vpop.f32.mrf.mxu0
    %v2018 = vadd.f32 0.0, %v2017
    %v2019 = vpop.f32.mrf.mxu0
    %2020 = vmatprep.mubr.f32.mxu0 0.0
    %2021 = vmatmul.mubr.f32.gmra.mxu0 %v1949
    %v2022 = vpop.f32.mrf.mxu0
    %v2023 = vadd.f32 0.0, %v2022
    %v2024 = vpop.f32.mrf.mxu0
    %2025 = vdwg.mxu0
    %v2026 = vadd.f32 %v1743, %v2018
    %v2027 = vadd.f32 %v1744, %v2023
    %v2028 = vsel %vm1293, %v2026, 0.0
    %2029 = vadd.xlane.f32.xlu0 %v2028
    %v2030 = vpop.xlane.xlu0 %2029
    %v2031 = vsel %vm1293, %v2027, 0.0
    %2032 = vadd.xlane.f32.xlu0 %v2031
    %v2033 = vpop.xlane.xlu0 %2032
    %v2034 = vrcp.pop 32.0
    %v2035 = vmul.f32 %v2030, %v2034
    %v2036 = vmul.f32 %v2033, %v2034
    %v2037 = vsub.f32 %v2026, %v2035
    %v2038 = vsub.f32 %v2027, %v2036
    %v2039 = vmul.f32 %v2037, %v2037
    %v2040 = vmul.f32 %v2038, %v2038
    %v2041 = vsel %vm1293, %v2039, 0.0
    %2042 = vadd.xlane.f32.xlu0 %v2041
    %v2043 = vpop.xlane.xlu0 %2042
    %v2044 = vsel %vm1293, %v2040, 0.0
    %2045 = vadd.xlane.f32.xlu0 %v2044
    %v2046 = vpop.xlane.xlu0 %2045
    %v2047 = vmul.f32 %v2043, %v2034
    %v2048 = vmul.f32 %v2046, %v2034
    %v2049 = vadd.f32 %v2047, 1e-05
    %v2050 = vadd.f32 %v2048, 1e-05
    %v2051 = vrsqrt.pop %v2049
    %v2052 = vrsqrt.pop %v2050
    %v2053 = vmul.f32 %v2037, %v2051
    %v2054 = vmul.f32 %v2038, %v2052
    %v2056 = vlaneseq
    %v2057 = vshrl.u32 %v2056, 7
    %v2058 = vsub.s32 0, %v2057
    %v2059 = vrot.slane %v1014, %v2058
    %v2061 = vmul.f32 %v2053, %v2059
    %v2062 = vmul.f32 %v2054, %v2059
    %v2064 = vlaneseq
    %v2065 = vshrl.u32 %v2064, 7
    %v2066 = vsub.s32 0, %v2065
    %v2067 = vrot.slane %v1015, %v2066
    %v2069 = vadd.f32 %v2061, %v2067
    %v2070 = vadd.f32 %v2062, %v2067
    %v2072 = vlaneseq
    %v2073 = vshrl.u32 %v2072, 7
    %v2074 = vsub.s32 0, %v2073
    %v2075 = vrot.slane %v1020, %v2074
    %v2078 = vsel %vm1293, %v2069, 0
    %v2081 = vsel %vm1293, %v2070, 0
    %2083 = vmatprep.subr.mxu0 0.0
    %2084 = vmatpush1.msra.mxu0 0.0
    %2085 = vmatprep.subr.mxu0 0.0
    %2086 = vmatpush1.msra.mxu0 0.0
    %2087 = vmatprep.subr.mxu0 0.0
    %2088 = vmatpush1.msra.mxu0 0.0
    %2089 = vmatprep.subr.mxu0 0.0
    %2090 = vmatpush1.msra.mxu0 0.0
    %2091 = vmatprep.subr.mxu0 0.0
    %2092 = vmatpush1.msra.mxu0 0.0
    %2093 = vmatprep.subr.mxu0 0.0
    %2094 = vmatpush1.msra.mxu0 0.0
    %2095 = vmatprep.subr.mxu0 0.0
    %2096 = vmatpush1.msra.mxu0 0.0
    %2097 = vmatprep.subr.mxu0 0.0
    %2098 = vmatpush1.msra.mxu0 0.0
    %2099 = vmatprep.subr.mxu0 0.0
    %2100 = vmatpush1.msra.mxu0 0.0
    %2101 = vmatprep.subr.mxu0 0.0
    %2102 = vmatpush1.msra.mxu0 0.0
    %2103 = vmatprep.subr.mxu0 0.0
    %2104 = vmatpush1.msra.mxu0 0.0
    %2105 = vmatprep.subr.mxu0 0.0
    %2106 = vmatpush1.msra.mxu0 0.0
    %2107 = vmatprep.subr.mxu0 0.0
    %2108 = vmatpush1.msra.mxu0 %v1019
    %2109 = vmatprep.subr.mxu0 0.0
    %2110 = vmatpush1.msra.mxu0 %v1018
    %2111 = vmatprep.subr.mxu0 0.0
    %2112 = vmatpush1.msra.mxu0 %v1017
    %2113 = vmatprep.subr.mxu0 0.0
    %2114 = vmatpush1.msra.mxu0 %v1016
    %2115 = vmatprep.subr.mxu0 0.0
    %2116 = vmatpush2.msra.mxu0 0.0
    %2117 = vmatprep.subr.mxu0 0.0
    %2118 = vmatpush2.msra.mxu0 0.0
    %2119 = vmatprep.subr.mxu0 0.0
    %2120 = vmatpush2.msra.mxu0 0.0
    %2121 = vmatprep.subr.mxu0 0.0
    %2122 = vmatpush2.msra.mxu0 0.0
    %2123 = vmatprep.subr.mxu0 0.0
    %2124 = vmatpush2.msra.mxu0 0.0
    %2125 = vmatprep.subr.mxu0 0.0
    %2126 = vmatpush2.msra.mxu0 0.0
    %2127 = vmatprep.subr.mxu0 0.0
    %2128 = vmatpush2.msra.mxu0 0.0
    %2129 = vmatprep.subr.mxu0 0.0
    %2130 = vmatpush2.msra.mxu0 0.0
    %2131 = vmatprep.subr.mxu0 0.0
    %2132 = vmatpush2.msra.mxu0 0.0
    %2133 = vmatprep.subr.mxu0 0.0
    %2134 = vmatpush2.msra.mxu0 0.0
    %2135 = vmatprep.subr.mxu0 0.0
    %2136 = vmatpush2.msra.mxu0 0.0
    %2137 = vmatprep.subr.mxu0 0.0
    %2138 = vmatpush2.msra.mxu0 0.0
    %2139 = vmatprep.subr.mxu0 0.0
    %2140 = vmatpush2.msra.mxu0 0.0
    %2141 = vmatprep.subr.mxu0 0.0
    %2142 = vmatpush2.msra.mxu0 0.0
    %2143 = vmatprep.subr.mxu0 0.0
    %2144 = vmatpush2.msra.mxu0 0.0
    %2145 = vmatprep.subr.mxu0 0.0
    %2146 = vmatpush2.msra.mxu0 0.0
    %2147 = vmatprep.mubr.f32.mxu0 0.0
    %2148 = vmatmul.mubr.f32.gmra.mxu0 %v2078
    %v2149 = vpop.f32.mrf.mxu0
    %v2150 = vadd.f32 %v2075, %v2149
    %v2151 = vpop.f32.mrf.mxu0
    %2152 = vmatprep.mubr.f32.mxu0 0.0
    %2153 = vmatmul.mubr.f32.gmra.mxu0 %v2081
    %v2154 = vpop.f32.mrf.mxu0
    %v2155 = vadd.f32 %v2075, %v2154
    %v2156 = vpop.f32.mrf.mxu0
    %2157 = vdwg.mxu0
    %v2158 = vmax.f32 %v2150, 0.0
    %v2159 = vmax.f32 %v2155, 0.0
    %v2161 = vlaneseq
    %v2162 = vshrl.u32 %v2161, 7
    %v2163 = vsub.s32 0, %v2162
    %v2164 = vrot.slane %v1029, %v2163
    %vm2166 = vcmask 523264
    %v2168 = vsel %vm2166, %v2158, 0
    %v2171 = vsel %vm2166, %v2159, 0
    %2173 = vmatprep.subr.mxu0 0.0
    %2174 = vmatpush1.msra.mxu0 0.0
    %2175 = vmatprep.subr.mxu0 0.0
    %2176 = vmatpush1.msra.mxu0 0.0
    %2177 = vmatprep.subr.mxu0 0.0
    %2178 = vmatpush1.msra.mxu0 0.0
    %2179 = vmatprep.subr.mxu0 0.0
    %2180 = vmatpush1.msra.mxu0 0.0
    %2181 = vmatprep.subr.mxu0 0.0
    %2182 = vmatpush1.msra.mxu0 0.0
    %2183 = vmatprep.subr.mxu0 0.0
    %2184 = vmatpush1.msra.mxu0 0.0
    %2185 = vmatprep.subr.mxu0 0.0
    %2186 = vmatpush1.msra.mxu0 0.0
    %2187 = vmatprep.subr.mxu0 0.0
    %2188 = vmatpush1.msra.mxu0 0.0
    %2189 = vmatprep.subr.mxu0 0.0
    %2190 = vmatpush1.msra.mxu0 %v1028
    %2191 = vmatprep.subr.mxu0 0.0
    %2192 = vmatpush1.msra.mxu0 %v1027
    %2193 = vmatprep.subr.mxu0 0.0
    %2194 = vmatpush1.msra.mxu0 %v1026
    %2195 = vmatprep.subr.mxu0 0.0
    %2196 = vmatpush1.msra.mxu0 %v1025
    %2197 = vmatprep.subr.mxu0 0.0
    %2198 = vmatpush1.msra.mxu0 %v1024
    %2199 = vmatprep.subr.mxu0 0.0
    %2200 = vmatpush1.msra.mxu0 %v1023
    %2201 = vmatprep.subr.mxu0 0.0
    %2202 = vmatpush1.msra.mxu0 %v1022
    %2203 = vmatprep.subr.mxu0 0.0
    %2204 = vmatpush1.msra.mxu0 %v1021
    %2205 = vmatprep.subr.mxu0 0.0
    %2206 = vmatpush2.msra.mxu0 0.0
    %2207 = vmatprep.subr.mxu0 0.0
    %2208 = vmatpush2.msra.mxu0 0.0
    %2209 = vmatprep.subr.mxu0 0.0
    %2210 = vmatpush2.msra.mxu0 0.0
    %2211 = vmatprep.subr.mxu0 0.0
    %2212 = vmatpush2.msra.mxu0 0.0
    %2213 = vmatprep.subr.mxu0 0.0
    %2214 = vmatpush2.msra.mxu0 0.0
    %2215 = vmatprep.subr.mxu0 0.0
    %2216 = vmatpush2.msra.mxu0 0.0
    %2217 = vmatprep.subr.mxu0 0.0
    %2218 = vmatpush2.msra.mxu0 0.0
    %2219 = vmatprep.subr.mxu0 0.0
    %2220 = vmatpush2.msra.mxu0 0.0
    %2221 = vmatprep.subr.mxu0 0.0
    %2222 = vmatpush2.msra.mxu0 0.0
    %2223 = vmatprep.subr.mxu0 0.0
    %2224 = vmatpush2.msra.mxu0 0.0
    %2225 = vmatprep.subr.mxu0 0.0
    %2226 = vmatpush2.msra.mxu0 0.0
    %2227 = vmatprep.subr.mxu0 0.0
    %2228 = vmatpush2.msra.mxu0 0.0
    %2229 = vmatprep.subr.mxu0 0.0
    %2230 = vmatpush2.msra.mxu0 0.0
    %2231 = vmatprep.subr.mxu0 0.0
    %2232 = vmatpush2.msra.mxu0 0.0
    %2233 = vmatprep.subr.mxu0 0.0
    %2234 = vmatpush2.msra.mxu0 0.0
    %2235 = vmatprep.subr.mxu0 0.0
    %2236 = vmatpush2.msra.mxu0 0.0
    %2237 = vmatprep.mubr.f32.mxu0 0.0
    %2238 = vmatmul.mubr.f32.gmra.mxu0 %v2168
    %v2239 = vpop.f32.mrf.mxu0
    %v2240 = vadd.f32 %v2164, %v2239
    %v2241 = vpop.f32.mrf.mxu0
    %2242 = vmatprep.mubr.f32.mxu0 0.0
    %2243 = vmatmul.mubr.f32.gmra.mxu0 %v2171
    %v2244 = vpop.f32.mrf.mxu0
    %v2245 = vadd.f32 %v2164, %v2244
    %v2246 = vpop.f32.mrf.mxu0
    %2247 = vdwg.mxu0
    %v2248 = vadd.f32 %v2240, %v2069
    %v2249 = vadd.f32 %v2245, %v2070
    %v2250 = vsel %vm1293, %v2248, 0.0
    %2251 = vadd.xlane.f32.xlu0 %v2250
    %v2252 = vpop.xlane.xlu0 %2251
    %v2253 = vsel %vm1293, %v2249, 0.0
    %2254 = vadd.xlane.f32.xlu0 %v2253
    %v2255 = vpop.xlane.xlu0 %2254
    %v2256 = vmul.f32 %v2252, %v2034
    %v2257 = vmul.f32 %v2255, %v2034
    %v2258 = vsub.f32 %v2248, %v2256
    %v2259 = vsub.f32 %v2249, %v2257
    %v2260 = vmul.f32 %v2258, %v2258
    %v2261 = vmul.f32 %v2259, %v2259
    %v2262 = vsel %vm1293, %v2260, 0.0
    %2263 = vadd.xlane.f32.xlu0 %v2262
    %v2264 = vpop.xlane.xlu0 %2263
    %v2265 = vsel %vm1293, %v2261, 0.0
    %2266 = vadd.xlane.f32.xlu0 %v2265
    %v2267 = vpop.xlane.xlu0 %2266
    %v2268 = vmul.f32 %v2264, %v2034
    %v2269 = vmul.f32 %v2267, %v2034
    %v2270 = vadd.f32 %v2268, 1e-05
    %v2271 = vadd.f32 %v2269, 1e-05
    %v2272 = vrsqrt.pop %v2270
    %v2273 = vrsqrt.pop %v2271
    %v2274 = vmul.f32 %v2258, %v2272
    %v2275 = vmul.f32 %v2259, %v2273
    %v2277 = vlaneseq
    %v2278 = vshrl.u32 %v2277, 7
    %v2279 = vsub.s32 0, %v2278
    %v2280 = vrot.slane %v1030, %v2279
    %v2282 = vmul.f32 %v2274, %v2280
    %v2283 = vmul.f32 %v2275, %v2280
    %v2285 = vlaneseq
    %v2286 = vshrl.u32 %v2285, 7
    %v2287 = vsub.s32 0, %v2286
    %v2288 = vrot.slane %v1031, %v2287
    %v2290 = vadd.f32 %v2282, %v2288
    %v2291 = vadd.f32 %v2283, %v2288
    %v2293 = vlaneseq
    %v2294 = vshrl.u32 %v2293, 7
    %v2295 = vsub.s32 0, %v2294
    %v2296 = vrot.slane %v1036, %v2295
    %v2299 = vsel %vm1293, %v2290, 0
    %v2302 = vsel %vm1293, %v2291, 0
    %2304 = vmatprep.subr.mxu0 0.0
    %2305 = vmatpush1.msra.mxu0 0.0
    %2306 = vmatprep.subr.mxu0 0.0
    %2307 = vmatpush1.msra.mxu0 0.0
    %2308 = vmatprep.subr.mxu0 0.0
    %2309 = vmatpush1.msra.mxu0 0.0
    %2310 = vmatprep.subr.mxu0 0.0
    %2311 = vmatpush1.msra.mxu0 0.0
    %2312 = vmatprep.subr.mxu0 0.0
    %2313 = vmatpush1.msra.mxu0 0.0
    %2314 = vmatprep.subr.mxu0 0.0
    %2315 = vmatpush1.msra.mxu0 0.0
    %2316 = vmatprep.subr.mxu0 0.0
    %2317 = vmatpush1.msra.mxu0 0.0
    %2318 = vmatprep.subr.mxu0 0.0
    %2319 = vmatpush1.msra.mxu0 0.0
    %2320 = vmatprep.subr.mxu0 0.0
    %2321 = vmatpush1.msra.mxu0 0.0
    %2322 = vmatprep.subr.mxu0 0.0
    %2323 = vmatpush1.msra.mxu0 0.0
    %2324 = vmatprep.subr.mxu0 0.0
    %2325 = vmatpush1.msra.mxu0 0.0
    %2326 = vmatprep.subr.mxu0 0.0
    %2327 = vmatpush1.msra.mxu0 0.0
    %2328 = vmatprep.subr.mxu0 0.0
    %2329 = vmatpush1.msra.mxu0 %v1035
    %2330 = vmatprep.subr.mxu0 0.0
    %2331 = vmatpush1.msra.mxu0 %v1034
    %2332 = vmatprep.subr.mxu0 0.0
    %2333 = vmatpush1.msra.mxu0 %v1033
    %2334 = vmatprep.subr.mxu0 0.0
    %2335 = vmatpush1.msra.mxu0 %v1032
    %2336 = vmatprep.subr.mxu0 0.0
    %2337 = vmatpush2.msra.mxu0 0.0
    %2338 = vmatprep.subr.mxu0 0.0
    %2339 = vmatpush2.msra.mxu0 0.0
    %2340 = vmatprep.subr.mxu0 0.0
    %2341 = vmatpush2.msra.mxu0 0.0
    %2342 = vmatprep.subr.mxu0 0.0
    %2343 = vmatpush2.msra.mxu0 0.0
    %2344 = vmatprep.subr.mxu0 0.0
    %2345 = vmatpush2.msra.mxu0 0.0
    %2346 = vmatprep.subr.mxu0 0.0
    %2347 = vmatpush2.msra.mxu0 0.0
    %2348 = vmatprep.subr.mxu0 0.0
    %2349 = vmatpush2.msra.mxu0 0.0
    %2350 = vmatprep.subr.mxu0 0.0
    %2351 = vmatpush2.msra.mxu0 0.0
    %2352 = vmatprep.subr.mxu0 0.0
    %2353 = vmatpush2.msra.mxu0 0.0
    %2354 = vmatprep.subr.mxu0 0.0
    %2355 = vmatpush2.msra.mxu0 0.0
    %2356 = vmatprep.subr.mxu0 0.0
    %2357 = vmatpush2.msra.mxu0 0.0
    %2358 = vmatprep.subr.mxu0 0.0
    %2359 = vmatpush2.msra.mxu0 0.0
    %2360 = vmatprep.subr.mxu0 0.0
    %2361 = vmatpush2.msra.mxu0 0.0
    %2362 = vmatprep.subr.mxu0 0.0
    %2363 = vmatpush2.msra.mxu0 0.0
    %2364 = vmatprep.subr.mxu0 0.0
    %2365 = vmatpush2.msra.mxu0 0.0
    %2366 = vmatprep.subr.mxu0 0.0
    %2367 = vmatpush2.msra.mxu0 0.0
    %2368 = vmatprep.mubr.f32.mxu0 0.0
    %2369 = vmatmul.mubr.f32.gmra.mxu0 %v2299
    %v2370 = vpop.f32.mrf.mxu0
    %v2371 = vadd.f32 %v2296, %v2370
    %v2372 = vpop.f32.mrf.mxu0
    %2373 = vmatprep.mubr.f32.mxu0 0.0
    %2374 = vmatmul.mubr.f32.gmra.mxu0 %v2302
    %v2375 = vpop.f32.mrf.mxu0
    %v2376 = vadd.f32 %v2296, %v2375
    %v2377 = vpop.f32.mrf.mxu0
    %2378 = vdwg.mxu0
    %v2380 = vlaneseq
    %v2381 = vshrl.u32 %v2380, 7
    %v2382 = vsub.s32 0, %v2381
    %v2383 = vrot.slane %v1041, %v2382
    %2385 = vmatprep.subr.mxu0 0.0
    %2386 = vmatpush1.msra.mxu0 0.0
    %2387 = vmatprep.subr.mxu0 0.0
    %2388 = vmatpush1.msra.mxu0 0.0
    %2389 = vmatprep.subr.mxu0 0.0
    %2390 = vmatpush1.msra.mxu0 0.0
    %2391 = vmatprep.subr.mxu0 0.0
    %2392 = vmatpush1.msra.mxu0 0.0
    %2393 = vmatprep.subr.mxu0 0.0
    %2394 = vmatpush1.msra.mxu0 0.0
    %2395 = vmatprep.subr.mxu0 0.0
    %2396 = vmatpush1.msra.mxu0 0.0
    %2397 = vmatprep.subr.mxu0 0.0
    %2398 = vmatpush1.msra.mxu0 0.0
    %2399 = vmatprep.subr.mxu0 0.0
    %2400 = vmatpush1.msra.mxu0 0.0
    %2401 = vmatprep.subr.mxu0 0.0
    %2402 = vmatpush1.msra.mxu0 0.0
    %2403 = vmatprep.subr.mxu0 0.0
    %2404 = vmatpush1.msra.mxu0 0.0
    %2405 = vmatprep.subr.mxu0 0.0
    %2406 = vmatpush1.msra.mxu0 0.0
    %2407 = vmatprep.subr.mxu0 0.0
    %2408 = vmatpush1.msra.mxu0 0.0
    %2409 = vmatprep.subr.mxu0 0.0
    %2410 = vmatpush1.msra.mxu0 %v1040
    %2411 = vmatprep.subr.mxu0 0.0
    %2412 = vmatpush1.msra.mxu0 %v1039
    %2413 = vmatprep.subr.mxu0 0.0
    %2414 = vmatpush1.msra.mxu0 %v1038
    %2415 = vmatprep.subr.mxu0 0.0
    %2416 = vmatpush1.msra.mxu0 %v1037
    %2417 = vmatprep.subr.mxu0 0.0
    %2418 = vmatpush2.msra.mxu0 0.0
    %2419 = vmatprep.subr.mxu0 0.0
    %2420 = vmatpush2.msra.mxu0 0.0
    %2421 = vmatprep.subr.mxu0 0.0
    %2422 = vmatpush2.msra.mxu0 0.0
    %2423 = vmatprep.subr.mxu0 0.0
    %2424 = vmatpush2.msra.mxu0 0.0
    %2425 = vmatprep.subr.mxu0 0.0
    %2426 = vmatpush2.msra.mxu0 0.0
    %2427 = vmatprep.subr.mxu0 0.0
    %2428 = vmatpush2.msra.mxu0 0.0
    %2429 = vmatprep.subr.mxu0 0.0
    %2430 = vmatpush2.msra.mxu0 0.0
    %2431 = vmatprep.subr.mxu0 0.0
    %2432 = vmatpush2.msra.mxu0 0.0
    %2433 = vmatprep.subr.mxu0 0.0
    %2434 = vmatpush2.msra.mxu0 0.0
    %2435 = vmatprep.subr.mxu0 0.0
    %2436 = vmatpush2.msra.mxu0 0.0
    %2437 = vmatprep.subr.mxu0 0.0
    %2438 = vmatpush2.msra.mxu0 0.0
    %2439 = vmatprep.subr.mxu0 0.0
    %2440 = vmatpush2.msra.mxu0 0.0
    %2441 = vmatprep.subr.mxu0 0.0
    %2442 = vmatpush2.msra.mxu0 0.0
    %2443 = vmatprep.subr.mxu0 0.0
    %2444 = vmatpush2.msra.mxu0 0.0
    %2445 = vmatprep.subr.mxu0 0.0
    %2446 = vmatpush2.msra.mxu0 0.0
    %2447 = vmatprep.subr.mxu0 0.0
    %2448 = vmatpush2.msra.mxu0 0.0
    %2449 = vmatprep.mubr.f32.mxu0 0.0
    %2450 = vmatmul.mubr.f32.gmra.mxu0 %v2299
    %v2451 = vpop.f32.mrf.mxu0
    %v2452 = vadd.f32 %v2383, %v2451
    %v2453 = vpop.f32.mrf.mxu0
    %2454 = vmatprep.mubr.f32.mxu0 0.0
    %2455 = vmatmul.mubr.f32.gmra.mxu0 %v2302
    %v2456 = vpop.f32.mrf.mxu0
    %v2457 = vadd.f32 %v2383, %v2456
    %v2458 = vpop.f32.mrf.mxu0
    %2459 = vdwg.mxu0
    %v2461 = vlaneseq
    %v2462 = vshrl.u32 %v2461, 7
    %v2463 = vsub.s32 0, %v2462
    %v2464 = vrot.slane %v1044, %v2463
    %v2466 = vadd.f32 %v2464, %v2290
    %v2467 = vadd.f32 %v2464, %v2291
    %v2469 = vsel %vm1464, %v2371, 0
    %v2472 = vsel %vm1464, %v2376, 0
    %v2475 = vsel %vm1464, %v2452, 0
    %v2478 = vsel %vm1464, %v2457, 0
    %2480 = vmatprep.subr.mxu0 0.0
    %2481 = vmatpush1.xpose.msra.mxu0 0.0
    %2482 = vmatprep.subr.mxu0 0.0
    %2483 = vmatpush1.xpose.msra.mxu0 0.0
    %2484 = vmatprep.subr.mxu0 0.0
    %2485 = vmatpush1.xpose.msra.mxu0 0.0
    %2486 = vmatprep.subr.mxu0 0.0
    %2487 = vmatpush1.xpose.msra.mxu0 0.0
    %2488 = vmatprep.subr.mxu0 0.0
    %2489 = vmatpush1.xpose.msra.mxu0 0.0
    %2490 = vmatprep.subr.mxu0 0.0
    %2491 = vmatpush1.xpose.msra.mxu0 0.0
    %2492 = vmatprep.subr.mxu0 0.0
    %2493 = vmatpush1.xpose.msra.mxu0 0.0
    %2494 = vmatprep.subr.mxu0 0.0
    %2495 = vmatpush1.xpose.msra.mxu0 0.0
    %2496 = vmatprep.subr.mxu0 0.0
    %2497 = vmatpush1.xpose.msra.mxu0 0.0
    %2498 = vmatprep.subr.mxu0 0.0
    %2499 = vmatpush1.xpose.msra.mxu0 0.0
    %2500 = vmatprep.subr.mxu0 0.0
    %2501 = vmatpush1.xpose.msra.mxu0 0.0
    %2502 = vmatprep.subr.mxu0 0.0
    %2503 = vmatpush1.xpose.msra.mxu0 0.0
    %2504 = vmatprep.subr.mxu0 0.0
    %2505 = vmatpush1.xpose.msra.mxu0 0.0
    %2506 = vmatprep.subr.mxu0 0.0
    %2507 = vmatpush1.xpose.msra.mxu0 0.0
    %2508 = vmatprep.subr.mxu0 0.0
    %2509 = vmatpush1.xpose.msra.mxu0 %v2478
    %2510 = vmatprep.subr.mxu0 0.0
    %2511 = vmatpush1.xpose.msra.mxu0 %v2475
    %2512 = vmatprep.subr.mxu0 0.0
    %2513 = vmatpush2.xpose.msra.mxu0 0.0
    %2514 = vmatprep.subr.mxu0 0.0
    %2515 = vmatpush2.xpose.msra.mxu0 0.0
    %2516 = vmatprep.subr.mxu0 0.0
    %2517 = vmatpush2.xpose.msra.mxu0 0.0
    %2518 = vmatprep.subr.mxu0 0.0
    %2519 = vmatpush2.xpose.msra.mxu0 0.0
    %2520 = vmatprep.subr.mxu0 0.0
    %2521 = vmatpush2.xpose.msra.mxu0 0.0
    %2522 = vmatprep.subr.mxu0 0.0
    %2523 = vmatpush2.xpose.msra.mxu0 0.0
    %2524 = vmatprep.subr.mxu0 0.0
    %2525 = vmatpush2.xpose.msra.mxu0 0.0
    %2526 = vmatprep.subr.mxu0 0.0
    %2527 = vmatpush2.xpose.msra.mxu0 0.0
    %2528 = vmatprep.subr.mxu0 0.0
    %2529 = vmatpush2.xpose.msra.mxu0 0.0
    %2530 = vmatprep.subr.mxu0 0.0
    %2531 = vmatpush2.xpose.msra.mxu0 0.0
    %2532 = vmatprep.subr.mxu0 0.0
    %2533 = vmatpush2.xpose.msra.mxu0 0.0
    %2534 = vmatprep.subr.mxu0 0.0
    %2535 = vmatpush2.xpose.msra.mxu0 0.0
    %2536 = vmatprep.subr.mxu0 0.0
    %2537 = vmatpush2.xpose.msra.mxu0 0.0
    %2538 = vmatprep.subr.mxu0 0.0
    %2539 = vmatpush2.xpose.msra.mxu0 0.0
    %2540 = vmatprep.subr.mxu0 0.0
    %2541 = vmatpush2.xpose.msra.mxu0 0.0
    %2542 = vmatprep.subr.mxu0 0.0
    %2543 = vmatpush2.xpose.msra.mxu0 0.0
    %2544 = vmatprep.mubr.f32.mxu0 0.0
    %2545 = vmatmul.mubr.f32.gmra.mxu0 %v2469
    %v2546 = vpop.f32.mrf.mxu0
    %v2547 = vadd.f32 %v991, %v2546
    %v2548 = vpop.f32.mrf.mxu0
    %2549 = vmatprep.mubr.f32.mxu0 0.0
    %2550 = vmatmul.mubr.f32.gmra.mxu0 %v2472
    %v2551 = vpop.f32.mrf.mxu0
    %v2552 = vadd.f32 %v992, %v2551
    %v2553 = vpop.f32.mrf.mxu0
    %2554 = vdwg.mxu0
    %v2555 = vsel %vm1552, %v2547, -inf
    %2556 = vmax.xlane.f32.xlu0 %v2555
    %v2557 = vpop.xlane.xlu0 %2556
    %v2558 = vsel %vm1552, %v2552, -inf
    %2559 = vmax.xlane.f32.xlu0 %v2558
    %v2560 = vpop.xlane.xlu0 %2559
    %v2561 = vsub.f32 %v2547, %v2557
    %v2562 = vsub.f32 %v2552, %v2560
    %v2563 = vmul.f32 %v2561, 1.442695
    %v2564 = vpow.pop %v2563
    %v2565 = vmul.f32 %v2562, 1.442695
    %v2566 = vpow.pop %v2565
    %v2567 = vsel %vm1552, %v2564, 0.0
    %2568 = vadd.xlane.f32.xlu0 %v2567
    %v2569 = vpop.xlane.xlu0 %2568
    %v2570 = vsel %vm1552, %v2566, 0.0
    %2571 = vadd.xlane.f32.xlu0 %v2570
    %v2572 = vpop.xlane.xlu0 %2571
    %v2573 = vrcp.pop %v2569
    %v2574 = vrcp.pop %v2572
    %v2575 = vmul.f32 %v2564, %v2573
    %v2576 = vmul.f32 %v2566, %v2574
    %2577 = vrot.lane.b32.xlu0 %v2452, 112
    %v2578 = vpop.permute.xlu0 %2577
    %2579 = vrot.lane.b32.xlu0 %v2457, 112
    %v2580 = vpop.permute.xlu0 %2579
    %v2584 = vsel %vm1552, %v2575, 0
    %v2587 = vsel %vm1552, %v2576, 0
    %2589 = vmatprep.subr.mxu0 0.0
    %2590 = vmatpush1.msra.mxu0 0.0
    %2591 = vmatprep.subr.mxu0 0.0
    %2592 = vmatpush1.msra.mxu0 0.0
    %2593 = vmatprep.subr.mxu0 0.0
    %2594 = vmatpush1.msra.mxu0 0.0
    %2595 = vmatprep.subr.mxu0 0.0
    %2596 = vmatpush1.msra.mxu0 0.0
    %2597 = vmatprep.subr.mxu0 0.0
    %2598 = vmatpush1.msra.mxu0 0.0
    %2599 = vmatprep.subr.mxu0 0.0
    %2600 = vmatpush1.msra.mxu0 0.0
    %2601 = vmatprep.subr.mxu0 0.0
    %2602 = vmatpush1.msra.mxu0 0.0
    %2603 = vmatprep.subr.mxu0 0.0
    %2604 = vmatpush1.msra.mxu0 0.0
    %2605 = vmatprep.subr.mxu0 0.0
    %2606 = vmatpush1.msra.mxu0 0.0
    %2607 = vmatprep.subr.mxu0 0.0
    %2608 = vmatpush1.msra.mxu0 0.0
    %2609 = vmatprep.subr.mxu0 0.0
    %2610 = vmatpush1.msra.mxu0 0.0
    %2611 = vmatprep.subr.mxu0 0.0
    %2612 = vmatpush1.msra.mxu0 0.0
    %2613 = vmatprep.subr.mxu0 0.0
    %2614 = vmatpush1.msra.mxu0 0.0
    %2615 = vmatprep.subr.mxu0 0.0
    %2616 = vmatpush1.msra.mxu0 0.0
    %2617 = vmatprep.subr.mxu0 0.0
    %2618 = vmatpush1.msra.mxu0 %v2580
    %2619 = vmatprep.subr.mxu0 0.0
    %2620 = vmatpush1.msra.mxu0 %v2578
    %2621 = vmatprep.subr.mxu0 0.0
    %2622 = vmatpush2.msra.mxu0 0.0
    %2623 = vmatprep.subr.mxu0 0.0
    %2624 = vmatpush2.msra.mxu0 0.0
    %2625 = vmatprep.subr.mxu0 0.0
    %2626 = vmatpush2.msra.mxu0 0.0
    %2627 = vmatprep.subr.mxu0 0.0
    %2628 = vmatpush2.msra.mxu0 0.0
    %2629 = vmatprep.subr.mxu0 0.0
    %2630 = vmatpush2.msra.mxu0 0.0
    %2631 = vmatprep.subr.mxu0 0.0
    %2632 = vmatpush2.msra.mxu0 0.0
    %2633 = vmatprep.subr.mxu0 0.0
    %2634 = vmatpush2.msra.mxu0 0.0
    %2635 = vmatprep.subr.mxu0 0.0
    %2636 = vmatpush2.msra.mxu0 0.0
    %2637 = vmatprep.subr.mxu0 0.0
    %2638 = vmatpush2.msra.mxu0 0.0
    %2639 = vmatprep.subr.mxu0 0.0
    %2640 = vmatpush2.msra.mxu0 0.0
    %2641 = vmatprep.subr.mxu0 0.0
    %2642 = vmatpush2.msra.mxu0 0.0
    %2643 = vmatprep.subr.mxu0 0.0
    %2644 = vmatpush2.msra.mxu0 0.0
    %2645 = vmatprep.subr.mxu0 0.0
    %2646 = vmatpush2.msra.mxu0 0.0
    %2647 = vmatprep.subr.mxu0 0.0
    %2648 = vmatpush2.msra.mxu0 0.0
    %2649 = vmatprep.subr.mxu0 0.0
    %2650 = vmatpush2.msra.mxu0 0.0
    %2651 = vmatprep.subr.mxu0 0.0
    %2652 = vmatpush2.msra.mxu0 0.0
    %2653 = vmatprep.mubr.f32.mxu0 0.0
    %2654 = vmatmul.mubr.f32.gmra.mxu0 %v2584
    %v2655 = vpop.f32.mrf.mxu0
    %v2656 = vadd.f32 0.0, %v2655
    %v2657 = vpop.f32.mrf.mxu0
    %2658 = vmatprep.mubr.f32.mxu0 0.0
    %2659 = vmatmul.mubr.f32.gmra.mxu0 %v2587
    %v2660 = vpop.f32.mrf.mxu0
    %v2661 = vadd.f32 0.0, %v2660
    %v2662 = vpop.f32.mrf.mxu0
    %2663 = vdwg.mxu0
    %v2665 = vsel %vm1464, %v2656, 0
    %v2668 = vsel %vm1464, %v2661, 0
    %2670 = vmatprep.subr.mxu0 0.0
    %2671 = vmatpush1.msra.mxu0 0.0
    %2672 = vmatprep.subr.mxu0 0.0
    %2673 = vmatpush1.msra.mxu0 0.0
    %2674 = vmatprep.subr.mxu0 0.0
    %2675 = vmatpush1.msra.mxu0 0.0
    %2676 = vmatprep.subr.mxu0 0.0
    %2677 = vmatpush1.msra.mxu0 0.0
    %2678 = vmatprep.subr.mxu0 0.0
    %2679 = vmatpush1.msra.mxu0 0.0
    %2680 = vmatprep.subr.mxu0 0.0
    %2681 = vmatpush1.msra.mxu0 0.0
    %2682 = vmatprep.subr.mxu0 0.0
    %2683 = vmatpush1.msra.mxu0 0.0
    %2684 = vmatprep.subr.mxu0 0.0
    %2685 = vmatpush1.msra.mxu0 0.0
    %2686 = vmatprep.subr.mxu0 0.0
    %2687 = vmatpush1.msra.mxu0 0.0
    %2688 = vmatprep.subr.mxu0 0.0
    %2689 = vmatpush1.msra.mxu0 0.0
    %2690 = vmatprep.subr.mxu0 0.0
    %2691 = vmatpush1.msra.mxu0 0.0
    %2692 = vmatprep.subr.mxu0 0.0
    %2693 = vmatpush1.msra.mxu0 0.0
    %2694 = vmatprep.subr.mxu0 0.0
    %2695 = vmatpush1.msra.mxu0 0.0
    %2696 = vmatprep.subr.mxu0 0.0
    %2697 = vmatpush1.msra.mxu0 0.0
    %2698 = vmatprep.subr.mxu0 0.0
    %2699 = vmatpush1.msra.mxu0 0.0
    %2700 = vmatprep.subr.mxu0 0.0
    %2701 = vmatpush1.msra.mxu0 %v1042
    %2702 = vmatprep.subr.mxu0 0.0
    %2703 = vmatpush2.msra.mxu0 0.0
    %2704 = vmatprep.subr.mxu0 0.0
    %2705 = vmatpush2.msra.mxu0 0.0
    %2706 = vmatprep.subr.mxu0 0.0
    %2707 = vmatpush2.msra.mxu0 0.0
    %2708 = vmatprep.subr.mxu0 0.0
    %2709 = vmatpush2.msra.mxu0 0.0
    %2710 = vmatprep.subr.mxu0 0.0
    %2711 = vmatpush2.msra.mxu0 0.0
    %2712 = vmatprep.subr.mxu0 0.0
    %2713 = vmatpush2.msra.mxu0 0.0
    %2714 = vmatprep.subr.mxu0 0.0
    %2715 = vmatpush2.msra.mxu0 0.0
    %2716 = vmatprep.subr.mxu0 0.0
    %2717 = vmatpush2.msra.mxu0 0.0
    %2718 = vmatprep.subr.mxu0 0.0
    %2719 = vmatpush2.msra.mxu0 0.0
    %2720 = vmatprep.subr.mxu0 0.0
    %2721 = vmatpush2.msra.mxu0 0.0
    %2722 = vmatprep.subr.mxu0 0.0
    %2723 = vmatpush2.msra.mxu0 0.0
    %2724 = vmatprep.subr.mxu0 0.0
    %2725 = vmatpush2.msra.mxu0 0.0
    %2726 = vmatprep.subr.mxu0 0.0
    %2727 = vmatpush2.msra.mxu0 0.0
    %2728 = vmatprep.subr.mxu0 0.0
    %2729 = vmatpush2.msra.mxu0 0.0
    %2730 = vmatprep.subr.mxu0 0.0
    %2731 = vmatpush2.msra.mxu0 0.0
    %2732 = vmatprep.subr.mxu0 0.0
    %2733 = vmatpush2.msra.mxu0 0.0
    %2734 = vmatprep.mubr.f32.mxu0 0.0
    %2735 = vmatmul.mubr.f32.gmra.mxu0 %v2665
    %v2736 = vpop.f32.mrf.mxu0
    %v2737 = vadd.f32 0.0, %v2736
    %v2738 = vpop.f32.mrf.mxu0
    %2739 = vmatprep.mubr.f32.mxu0 0.0
    %2740 = vmatmul.mubr.f32.gmra.mxu0 %v2668
    %v2741 = vpop.f32.mrf.mxu0
    %v2742 = vadd.f32 0.0, %v2741
    %v2743 = vpop.f32.mrf.mxu0
    %2744 = vdwg.mxu0
    %v2745 = vadd.f32 %v2466, %v2737
    %v2746 = vadd.f32 %v2467, %v2742
    %2747 = vrot.lane.b32.xlu0 %v2371, 120
    %v2748 = vpop.permute.xlu0 %2747
    %2749 = vrot.lane.b32.xlu0 %v2376, 120
    %v2750 = vpop.permute.xlu0 %2749
    %2751 = vrot.lane.b32.xlu0 %v2452, 120
    %v2752 = vpop.permute.xlu0 %2751
    %2753 = vrot.lane.b32.xlu0 %v2457, 120
    %v2754 = vpop.permute.xlu0 %2753
    %v2755 = vsel %vm1464, %v2748, 0
    %v2757 = vsel %vm1464, %v2750, 0
    %v2759 = vsel %vm1464, %v2752, 0
    %v2761 = vsel %vm1464, %v2754, 0
    %2763 = vmatprep.subr.mxu0 0.0
    %2764 = vmatpush1.xpose.msra.mxu0 0.0
    %2765 = vmatprep.subr.mxu0 0.0
    %2766 = vmatpush1.xpose.msra.mxu0 0.0
    %2767 = vmatprep.subr.mxu0 0.0
    %2768 = vmatpush1.xpose.msra.mxu0 0.0
    %2769 = vmatprep.subr.mxu0 0.0
    %2770 = vmatpush1.xpose.msra.mxu0 0.0
    %2771 = vmatprep.subr.mxu0 0.0
    %2772 = vmatpush1.xpose.msra.mxu0 0.0
    %2773 = vmatprep.subr.mxu0 0.0
    %2774 = vmatpush1.xpose.msra.mxu0 0.0
    %2775 = vmatprep.subr.mxu0 0.0
    %2776 = vmatpush1.xpose.msra.mxu0 0.0
    %2777 = vmatprep.subr.mxu0 0.0
    %2778 = vmatpush1.xpose.msra.mxu0 0.0
    %2779 = vmatprep.subr.mxu0 0.0
    %2780 = vmatpush1.xpose.msra.mxu0 0.0
    %2781 = vmatprep.subr.mxu0 0.0
    %2782 = vmatpush1.xpose.msra.mxu0 0.0
    %2783 = vmatprep.subr.mxu0 0.0
    %2784 = vmatpush1.xpose.msra.mxu0 0.0
    %2785 = vmatprep.subr.mxu0 0.0
    %2786 = vmatpush1.xpose.msra.mxu0 0.0
    %2787 = vmatprep.subr.mxu0 0.0
    %2788 = vmatpush1.xpose.msra.mxu0 0.0
    %2789 = vmatprep.subr.mxu0 0.0
    %2790 = vmatpush1.xpose.msra.mxu0 0.0
    %2791 = vmatprep.subr.mxu0 0.0
    %2792 = vmatpush1.xpose.msra.mxu0 %v2761
    %2793 = vmatprep.subr.mxu0 0.0
    %2794 = vmatpush1.xpose.msra.mxu0 %v2759
    %2795 = vmatprep.subr.mxu0 0.0
    %2796 = vmatpush2.xpose.msra.mxu0 0.0
    %2797 = vmatprep.subr.mxu0 0.0
    %2798 = vmatpush2.xpose.msra.mxu0 0.0
    %2799 = vmatprep.subr.mxu0 0.0
    %2800 = vmatpush2.xpose.msra.mxu0 0.0
    %2801 = vmatprep.subr.mxu0 0.0
    %2802 = vmatpush2.xpose.msra.mxu0 0.0
    %2803 = vmatprep.subr.mxu0 0.0
    %2804 = vmatpush2.xpose.msra.mxu0 0.0
    %2805 = vmatprep.subr.mxu0 0.0
    %2806 = vmatpush2.xpose.msra.mxu0 0.0
    %2807 = vmatprep.subr.mxu0 0.0
    %2808 = vmatpush2.xpose.msra.mxu0 0.0
    %2809 = vmatprep.subr.mxu0 0.0
    %2810 = vmatpush2.xpose.msra.mxu0 0.0
    %2811 = vmatprep.subr.mxu0 0.0
    %2812 = vmatpush2.xpose.msra.mxu0 0.0
    %2813 = vmatprep.subr.mxu0 0.0
    %2814 = vmatpush2.xpose.msra.mxu0 0.0
    %2815 = vmatprep.subr.mxu0 0.0
    %2816 = vmatpush2.xpose.msra.mxu0 0.0
    %2817 = vmatprep.subr.mxu0 0.0
    %2818 = vmatpush2.xpose.msra.mxu0 0.0
    %2819 = vmatprep.subr.mxu0 0.0
    %2820 = vmatpush2.xpose.msra.mxu0 0.0
    %2821 = vmatprep.subr.mxu0 0.0
    %2822 = vmatpush2.xpose.msra.mxu0 0.0
    %2823 = vmatprep.subr.mxu0 0.0
    %2824 = vmatpush2.xpose.msra.mxu0 0.0
    %2825 = vmatprep.subr.mxu0 0.0
    %2826 = vmatpush2.xpose.msra.mxu0 0.0
    %2827 = vmatprep.mubr.f32.mxu0 0.0
    %2828 = vmatmul.mubr.f32.gmra.mxu0 %v2755
    %v2829 = vpop.f32.mrf.mxu0
    %v2830 = vadd.f32 %v991, %v2829
    %v2831 = vpop.f32.mrf.mxu0
    %2832 = vmatprep.mubr.f32.mxu0 0.0
    %2833 = vmatmul.mubr.f32.gmra.mxu0 %v2757
    %v2834 = vpop.f32.mrf.mxu0
    %v2835 = vadd.f32 %v992, %v2834
    %v2836 = vpop.f32.mrf.mxu0
    %2837 = vdwg.mxu0
    %v2838 = vsel %vm1552, %v2830, -inf
    %2839 = vmax.xlane.f32.xlu0 %v2838
    %v2840 = vpop.xlane.xlu0 %2839
    %v2841 = vsel %vm1552, %v2835, -inf
    %2842 = vmax.xlane.f32.xlu0 %v2841
    %v2843 = vpop.xlane.xlu0 %2842
    %v2844 = vsub.f32 %v2830, %v2840
    %v2845 = vsub.f32 %v2835, %v2843
    %v2846 = vmul.f32 %v2844, 1.442695
    %v2847 = vpow.pop %v2846
    %v2848 = vmul.f32 %v2845, 1.442695
    %v2849 = vpow.pop %v2848
    %v2850 = vsel %vm1552, %v2847, 0.0
    %2851 = vadd.xlane.f32.xlu0 %v2850
    %v2852 = vpop.xlane.xlu0 %2851
    %v2853 = vsel %vm1552, %v2849, 0.0
    %2854 = vadd.xlane.f32.xlu0 %v2853
    %v2855 = vpop.xlane.xlu0 %2854
    %v2856 = vrcp.pop %v2852
    %v2857 = vrcp.pop %v2855
    %v2858 = vmul.f32 %v2847, %v2856
    %v2859 = vmul.f32 %v2849, %v2857
    %2860 = vrot.lane.b32.xlu0 %v2452, 104
    %v2861 = vpop.permute.xlu0 %2860
    %2862 = vrot.lane.b32.xlu0 %v2457, 104
    %v2863 = vpop.permute.xlu0 %2862
    %v2867 = vsel %vm1552, %v2858, 0
    %v2870 = vsel %vm1552, %v2859, 0
    %2872 = vmatprep.subr.mxu0 0.0
    %2873 = vmatpush1.msra.mxu0 0.0
    %2874 = vmatprep.subr.mxu0 0.0
    %2875 = vmatpush1.msra.mxu0 0.0
    %2876 = vmatprep.subr.mxu0 0.0
    %2877 = vmatpush1.msra.mxu0 0.0
    %2878 = vmatprep.subr.mxu0 0.0
    %2879 = vmatpush1.msra.mxu0 0.0
    %2880 = vmatprep.subr.mxu0 0.0
    %2881 = vmatpush1.msra.mxu0 0.0
    %2882 = vmatprep.subr.mxu0 0.0
    %2883 = vmatpush1.msra.mxu0 0.0
    %2884 = vmatprep.subr.mxu0 0.0
    %2885 = vmatpush1.msra.mxu0 0.0
    %2886 = vmatprep.subr.mxu0 0.0
    %2887 = vmatpush1.msra.mxu0 0.0
    %2888 = vmatprep.subr.mxu0 0.0
    %2889 = vmatpush1.msra.mxu0 0.0
    %2890 = vmatprep.subr.mxu0 0.0
    %2891 = vmatpush1.msra.mxu0 0.0
    %2892 = vmatprep.subr.mxu0 0.0
    %2893 = vmatpush1.msra.mxu0 0.0
    %2894 = vmatprep.subr.mxu0 0.0
    %2895 = vmatpush1.msra.mxu0 0.0
    %2896 = vmatprep.subr.mxu0 0.0
    %2897 = vmatpush1.msra.mxu0 0.0
    %2898 = vmatprep.subr.mxu0 0.0
    %2899 = vmatpush1.msra.mxu0 0.0
    %2900 = vmatprep.subr.mxu0 0.0
    %2901 = vmatpush1.msra.mxu0 %v2863
    %2902 = vmatprep.subr.mxu0 0.0
    %2903 = vmatpush1.msra.mxu0 %v2861
    %2904 = vmatprep.subr.mxu0 0.0
    %2905 = vmatpush2.msra.mxu0 0.0
    %2906 = vmatprep.subr.mxu0 0.0
    %2907 = vmatpush2.msra.mxu0 0.0
    %2908 = vmatprep.subr.mxu0 0.0
    %2909 = vmatpush2.msra.mxu0 0.0
    %2910 = vmatprep.subr.mxu0 0.0
    %2911 = vmatpush2.msra.mxu0 0.0
    %2912 = vmatprep.subr.mxu0 0.0
    %2913 = vmatpush2.msra.mxu0 0.0
    %2914 = vmatprep.subr.mxu0 0.0
    %2915 = vmatpush2.msra.mxu0 0.0
    %2916 = vmatprep.subr.mxu0 0.0
    %2917 = vmatpush2.msra.mxu0 0.0
    %2918 = vmatprep.subr.mxu0 0.0
    %2919 = vmatpush2.msra.mxu0 0.0
    %2920 = vmatprep.subr.mxu0 0.0
    %2921 = vmatpush2.msra.mxu0 0.0
    %2922 = vmatprep.subr.mxu0 0.0
    %2923 = vmatpush2.msra.mxu0 0.0
    %2924 = vmatprep.subr.mxu0 0.0
    %2925 = vmatpush2.msra.mxu0 0.0
    %2926 = vmatprep.subr.mxu0 0.0
    %2927 = vmatpush2.msra.mxu0 0.0
    %2928 = vmatprep.subr.mxu0 0.0
    %2929 = vmatpush2.msra.mxu0 0.0
    %2930 = vmatprep.subr.mxu0 0.0
    %2931 = vmatpush2.msra.mxu0 0.0
    %2932 = vmatprep.subr.mxu0 0.0
    %2933 = vmatpush2.msra.mxu0 0.0
    %2934 = vmatprep.subr.mxu0 0.0
    %2935 = vmatpush2.msra.mxu0 0.0
    %2936 = vmatprep.mubr.f32.mxu0 0.0
    %2937 = vmatmul.mubr.f32.gmra.mxu0 %v2867
    %v2938 = vpop.f32.mrf.mxu0
    %v2939 = vadd.f32 0.0, %v2938
    %v2940 = vpop.f32.mrf.mxu0
    %2941 = vmatprep.mubr.f32.mxu0 0.0
    %2942 = vmatmul.mubr.f32.gmra.mxu0 %v2870
    %v2943 = vpop.f32.mrf.mxu0
    %v2944 = vadd.f32 0.0, %v2943
    %v2945 = vpop.f32.mrf.mxu0
    %2946 = vdwg.mxu0
    %v2948 = vsel %vm1464, %v2939, 0
    %v2951 = vsel %vm1464, %v2944, 0
    %2953 = vmatprep.subr.mxu0 0.0
    %2954 = vmatpush1.msra.mxu0 0.0
    %2955 = vmatprep.subr.mxu0 0.0
    %2956 = vmatpush1.msra.mxu0 0.0
    %2957 = vmatprep.subr.mxu0 0.0
    %2958 = vmatpush1.msra.mxu0 0.0
    %2959 = vmatprep.subr.mxu0 0.0
    %2960 = vmatpush1.msra.mxu0 0.0
    %2961 = vmatprep.subr.mxu0 0.0
    %2962 = vmatpush1.msra.mxu0 0.0
    %2963 = vmatprep.subr.mxu0 0.0
    %2964 = vmatpush1.msra.mxu0 0.0
    %2965 = vmatprep.subr.mxu0 0.0
    %2966 = vmatpush1.msra.mxu0 0.0
    %2967 = vmatprep.subr.mxu0 0.0
    %2968 = vmatpush1.msra.mxu0 0.0
    %2969 = vmatprep.subr.mxu0 0.0
    %2970 = vmatpush1.msra.mxu0 0.0
    %2971 = vmatprep.subr.mxu0 0.0
    %2972 = vmatpush1.msra.mxu0 0.0
    %2973 = vmatprep.subr.mxu0 0.0
    %2974 = vmatpush1.msra.mxu0 0.0
    %2975 = vmatprep.subr.mxu0 0.0
    %2976 = vmatpush1.msra.mxu0 0.0
    %2977 = vmatprep.subr.mxu0 0.0
    %2978 = vmatpush1.msra.mxu0 0.0
    %2979 = vmatprep.subr.mxu0 0.0
    %2980 = vmatpush1.msra.mxu0 0.0
    %2981 = vmatprep.subr.mxu0 0.0
    %2982 = vmatpush1.msra.mxu0 0.0
    %2983 = vmatprep.subr.mxu0 0.0
    %2984 = vmatpush1.msra.mxu0 %v1043
    %2985 = vmatprep.subr.mxu0 0.0
    %2986 = vmatpush2.msra.mxu0 0.0
    %2987 = vmatprep.subr.mxu0 0.0
    %2988 = vmatpush2.msra.mxu0 0.0
    %2989 = vmatprep.subr.mxu0 0.0
    %2990 = vmatpush2.msra.mxu0 0.0
    %2991 = vmatprep.subr.mxu0 0.0
    %2992 = vmatpush2.msra.mxu0 0.0
    %2993 = vmatprep.subr.mxu0 0.0
    %2994 = vmatpush2.msra.mxu0 0.0
    %2995 = vmatprep.subr.mxu0 0.0
    %2996 = vmatpush2.msra.mxu0 0.0
    %2997 = vmatprep.subr.mxu0 0.0
    %2998 = vmatpush2.msra.mxu0 0.0
    %2999 = vmatprep.subr.mxu0 0.0
    %3000 = vmatpush2.msra.mxu0 0.0
    %3001 = vmatprep.subr.mxu0 0.0
    %3002 = vmatpush2.msra.mxu0 0.0
    %3003 = vmatprep.subr.mxu0 0.0
    %3004 = vmatpush2.msra.mxu0 0.0
    %3005 = vmatprep.subr.mxu0 0.0
    %3006 = vmatpush2.msra.mxu0 0.0
    %3007 = vmatprep.subr.mxu0 0.0
    %3008 = vmatpush2.msra.mxu0 0.0
    %3009 = vmatprep.subr.mxu0 0.0
    %3010 = vmatpush2.msra.mxu0 0.0
    %3011 = vmatprep.subr.mxu0 0.0
    %3012 = vmatpush2.msra.mxu0 0.0
    %3013 = vmatprep.subr.mxu0 0.0
    %3014 = vmatpush2.msra.mxu0 0.0
    %3015 = vmatprep.subr.mxu0 0.0
    %3016 = vmatpush2.msra.mxu0 0.0
    %3017 = vmatprep.mubr.f32.mxu0 0.0
    %3018 = vmatmul.mubr.f32.gmra.mxu0 %v2948
    %v3019 = vpop.f32.mrf.mxu0
    %v3020 = vadd.f32 0.0, %v3019
    %v3021 = vpop.f32.mrf.mxu0
    %3022 = vmatprep.mubr.f32.mxu0 0.0
    %3023 = vmatmul.mubr.f32.gmra.mxu0 %v2951
    %v3024 = vpop.f32.mrf.mxu0
    %v3025 = vadd.f32 0.0, %v3024
    %v3026 = vpop.f32.mrf.mxu0
    %3027 = vdwg.mxu0
    %v3028 = vadd.f32 %v2745, %v3020
    %v3029 = vadd.f32 %v2746, %v3025
    %v3030 = vsel %vm1293, %v3028, 0.0
    %3031 = vadd.xlane.f32.xlu0 %v3030
    %v3032 = vpop.xlane.xlu0 %3031
    %v3033 = vsel %vm1293, %v3029, 0.0
    %3034 = vadd.xlane.f32.xlu0 %v3033
    %v3035 = vpop.xlane.xlu0 %3034
    %v3036 = vmul.f32 %v3032, %v2034
    %v3037 = vmul.f32 %v3035, %v2034
    %v3038 = vsub.f32 %v3028, %v3036
    %v3039 = vsub.f32 %v3029, %v3037
    %v3040 = vmul.f32 %v3038, %v3038
    %v3041 = vmul.f32 %v3039, %v3039
    %v3042 = vsel %vm1293, %v3040, 0.0
    %3043 = vadd.xlane.f32.xlu0 %v3042
    %v3044 = vpop.xlane.xlu0 %3043
    %v3045 = vsel %vm1293, %v3041, 0.0
    %3046 = vadd.xlane.f32.xlu0 %v3045
    %v3047 = vpop.xlane.xlu0 %3046
    %v3048 = vmul.f32 %v3044, %v2034
    %v3049 = vmul.f32 %v3047, %v2034
    %v3050 = vadd.f32 %v3048, 1e-05
    %v3051 = vadd.f32 %v3049, 1e-05
    %v3052 = vrsqrt.pop %v3050
    %v3053 = vrsqrt.pop %v3051
    %v3054 = vmul.f32 %v3038, %v3052
    %v3055 = vmul.f32 %v3039, %v3053
    %v3057 = vlaneseq
    %v3058 = vshrl.u32 %v3057, 7
    %v3059 = vsub.s32 0, %v3058
    %v3060 = vrot.slane %v1045, %v3059
    %v3062 = vmul.f32 %v3054, %v3060
    %v3063 = vmul.f32 %v3055, %v3060
    %v3065 = vlaneseq
    %v3066 = vshrl.u32 %v3065, 7
    %v3067 = vsub.s32 0, %v3066
    %v3068 = vrot.slane %v1046, %v3067
    %v3070 = vadd.f32 %v3062, %v3068
    %v3071 = vadd.f32 %v3063, %v3068
    %v3073 = vlaneseq
    %v3074 = vshrl.u32 %v3073, 7
    %v3075 = vsub.s32 0, %v3074
    %v3076 = vrot.slane %v1051, %v3075
    %v3079 = vsel %vm1293, %v3070, 0
    %v3082 = vsel %vm1293, %v3071, 0
    %3084 = vmatprep.subr.mxu0 0.0
    %3085 = vmatpush1.msra.mxu0 0.0
    %3086 = vmatprep.subr.mxu0 0.0
    %3087 = vmatpush1.msra.mxu0 0.0
    %3088 = vmatprep.subr.mxu0 0.0
    %3089 = vmatpush1.msra.mxu0 0.0
    %3090 = vmatprep.subr.mxu0 0.0
    %3091 = vmatpush1.msra.mxu0 0.0
    %3092 = vmatprep.subr.mxu0 0.0
    %3093 = vmatpush1.msra.mxu0 0.0
    %3094 = vmatprep.subr.mxu0 0.0
    %3095 = vmatpush1.msra.mxu0 0.0
    %3096 = vmatprep.subr.mxu0 0.0
    %3097 = vmatpush1.msra.mxu0 0.0
    %3098 = vmatprep.subr.mxu0 0.0
    %3099 = vmatpush1.msra.mxu0 0.0
    %3100 = vmatprep.subr.mxu0 0.0
    %3101 = vmatpush1.msra.mxu0 0.0
    %3102 = vmatprep.subr.mxu0 0.0
    %3103 = vmatpush1.msra.mxu0 0.0
    %3104 = vmatprep.subr.mxu0 0.0
    %3105 = vmatpush1.msra.mxu0 0.0
    %3106 = vmatprep.subr.mxu0 0.0
    %3107 = vmatpush1.msra.mxu0 0.0
    %3108 = vmatprep.subr.mxu0 0.0
    %3109 = vmatpush1.msra.mxu0 %v1050
    %3110 = vmatprep.subr.mxu0 0.0
    %3111 = vmatpush1.msra.mxu0 %v1049
    %3112 = vmatprep.subr.mxu0 0.0
    %3113 = vmatpush1.msra.mxu0 %v1048
    %3114 = vmatprep.subr.mxu0 0.0
    %3115 = vmatpush1.msra.mxu0 %v1047
    %3116 = vmatprep.subr.mxu0 0.0
    %3117 = vmatpush2.msra.mxu0 0.0
    %3118 = vmatprep.subr.mxu0 0.0
    %3119 = vmatpush2.msra.mxu0 0.0
    %3120 = vmatprep.subr.mxu0 0.0
    %3121 = vmatpush2.msra.mxu0 0.0
    %3122 = vmatprep.subr.mxu0 0.0
    %3123 = vmatpush2.msra.mxu0 0.0
    %3124 = vmatprep.subr.mxu0 0.0
    %3125 = vmatpush2.msra.mxu0 0.0
    %3126 = vmatprep.subr.mxu0 0.0
    %3127 = vmatpush2.msra.mxu0 0.0
    %3128 = vmatprep.subr.mxu0 0.0
    %3129 = vmatpush2.msra.mxu0 0.0
    %3130 = vmatprep.subr.mxu0 0.0
    %3131 = vmatpush2.msra.mxu0 0.0
    %3132 = vmatprep.subr.mxu0 0.0
    %3133 = vmatpush2.msra.mxu0 0.0
    %3134 = vmatprep.subr.mxu0 0.0
    %3135 = vmatpush2.msra.mxu0 0.0
    %3136 = vmatprep.subr.mxu0 0.0
    %3137 = vmatpush2.msra.mxu0 0.0
    %3138 = vmatprep.subr.mxu0 0.0
    %3139 = vmatpush2.msra.mxu0 0.0
    %3140 = vmatprep.subr.mxu0 0.0
    %3141 = vmatpush2.msra.mxu0 0.0
    %3142 = vmatprep.subr.mxu0 0.0
    %3143 = vmatpush2.msra.mxu0 0.0
    %3144 = vmatprep.subr.mxu0 0.0
    %3145 = vmatpush2.msra.mxu0 0.0
    %3146 = vmatprep.subr.mxu0 0.0
    %3147 = vmatpush2.msra.mxu0 0.0
    %3148 = vmatprep.mubr.f32.mxu0 0.0
    %3149 = vmatmul.mubr.f32.gmra.mxu0 %v3079
    %v3150 = vpop.f32.mrf.mxu0
    %v3151 = vadd.f32 %v3076, %v3150
    %v3152 = vpop.f32.mrf.mxu0
    %3153 = vmatprep.mubr.f32.mxu0 0.0
    %3154 = vmatmul.mubr.f32.gmra.mxu0 %v3082
    %v3155 = vpop.f32.mrf.mxu0
    %v3156 = vadd.f32 %v3076, %v3155
    %v3157 = vpop.f32.mrf.mxu0
    %3158 = vdwg.mxu0
    %v3159 = vmax.f32 %v3151, 0.0
    %v3160 = vmax.f32 %v3156, 0.0
    %v3162 = vlaneseq
    %v3163 = vshrl.u32 %v3162, 7
    %v3164 = vsub.s32 0, %v3163
    %v3165 = vrot.slane %v1060, %v3164
    %v3168 = vsel %vm2166, %v3159, 0
    %v3171 = vsel %vm2166, %v3160, 0
    %3173 = vmatprep.subr.mxu0 0.0
    %3174 = vmatpush1.msra.mxu0 0.0
    %3175 = vmatprep.subr.mxu0 0.0
    %3176 = vmatpush1.msra.mxu0 0.0
    %3177 = vmatprep.subr.mxu0 0.0
    %3178 = vmatpush1.msra.mxu0 0.0
    %3179 = vmatprep.subr.mxu0 0.0
    %3180 = vmatpush1.msra.mxu0 0.0
    %3181 = vmatprep.subr.mxu0 0.0
    %3182 = vmatpush1.msra.mxu0 0.0
    %3183 = vmatprep.subr.mxu0 0.0
    %3184 = vmatpush1.msra.mxu0 0.0
    %3185 = vmatprep.subr.mxu0 0.0
    %3186 = vmatpush1.msra.mxu0 0.0
    %3187 = vmatprep.subr.mxu0 0.0
    %3188 = vmatpush1.msra.mxu0 0.0
    %3189 = vmatprep.subr.mxu0 0.0
    %3190 = vmatpush1.msra.mxu0 %v1059
    %3191 = vmatprep.subr.mxu0 0.0
    %3192 = vmatpush1.msra.mxu0 %v1058
    %3193 = vmatprep.subr.mxu0 0.0
    %3194 = vmatpush1.msra.mxu0 %v1057
    %3195 = vmatprep.subr.mxu0 0.0
    %3196 = vmatpush1.msra.mxu0 %v1056
    %3197 = vmatprep.subr.mxu0 0.0
    %3198 = vmatpush1.msra.mxu0 %v1055
    %3199 = vmatprep.subr.mxu0 0.0
    %3200 = vmatpush1.msra.mxu0 %v1054
    %3201 = vmatprep.subr.mxu0 0.0
    %3202 = vmatpush1.msra.mxu0 %v1053
    %3203 = vmatprep.subr.mxu0 0.0
    %3204 = vmatpush1.msra.mxu0 %v1052
    %3205 = vmatprep.subr.mxu0 0.0
    %3206 = vmatpush2.msra.mxu0 0.0
    %3207 = vmatprep.subr.mxu0 0.0
    %3208 = vmatpush2.msra.mxu0 0.0
    %3209 = vmatprep.subr.mxu0 0.0
    %3210 = vmatpush2.msra.mxu0 0.0
    %3211 = vmatprep.subr.mxu0 0.0
    %3212 = vmatpush2.msra.mxu0 0.0
    %3213 = vmatprep.subr.mxu0 0.0
    %3214 = vmatpush2.msra.mxu0 0.0
    %3215 = vmatprep.subr.mxu0 0.0
    %3216 = vmatpush2.msra.mxu0 0.0
    %3217 = vmatprep.subr.mxu0 0.0
    %3218 = vmatpush2.msra.mxu0 0.0
    %3219 = vmatprep.subr.mxu0 0.0
    %3220 = vmatpush2.msra.mxu0 0.0
    %3221 = vmatprep.subr.mxu0 0.0
    %3222 = vmatpush2.msra.mxu0 0.0
    %3223 = vmatprep.subr.mxu0 0.0
    %3224 = vmatpush2.msra.mxu0 0.0
    %3225 = vmatprep.subr.mxu0 0.0
    %3226 = vmatpush2.msra.mxu0 0.0
    %3227 = vmatprep.subr.mxu0 0.0
    %3228 = vmatpush2.msra.mxu0 0.0
    %3229 = vmatprep.subr.mxu0 0.0
    %3230 = vmatpush2.msra.mxu0 0.0
    %3231 = vmatprep.subr.mxu0 0.0
    %3232 = vmatpush2.msra.mxu0 0.0
    %3233 = vmatprep.subr.mxu0 0.0
    %3234 = vmatpush2.msra.mxu0 0.0
    %3235 = vmatprep.subr.mxu0 0.0
    %3236 = vmatpush2.msra.mxu0 0.0
    %3237 = vmatprep.mubr.f32.mxu0 0.0
    %3238 = vmatmul.mubr.f32.gmra.mxu0 %v3168
    %v3239 = vpop.f32.mrf.mxu0
    %v3240 = vadd.f32 %v3165, %v3239
    %v3241 = vpop.f32.mrf.mxu0
    %3242 = vmatprep.mubr.f32.mxu0 0.0
    %3243 = vmatmul.mubr.f32.gmra.mxu0 %v3171
    %v3244 = vpop.f32.mrf.mxu0
    %v3245 = vadd.f32 %v3165, %v3244
    %v3246 = vpop.f32.mrf.mxu0
    %3247 = vdwg.mxu0
    %v3248 = vadd.f32 %v3240, %v3070
    %v3249 = vadd.f32 %v3245, %v3071
    %v3250 = vsel %vm1293, %v3248, 0.0
    %3251 = vadd.xlane.f32.xlu0 %v3250
    %v3252 = vpop.xlane.xlu0 %3251
    %v3253 = vsel %vm1293, %v3249, 0.0
    %3254 = vadd.xlane.f32.xlu0 %v3253
    %v3255 = vpop.xlane.xlu0 %3254
    %v3256 = vmul.f32 %v3252, %v2034
    %v3257 = vmul.f32 %v3255, %v2034
    %v3258 = vsub.f32 %v3248, %v3256
    %v3259 = vsub.f32 %v3249, %v3257
    %v3260 = vmul.f32 %v3258, %v3258
    %v3261 = vmul.f32 %v3259, %v3259
    %v3262 = vsel %vm1293, %v3260, 0.0
    %3263 = vadd.xlane.f32.xlu0 %v3262
    %v3264 = vpop.xlane.xlu0 %3263
    %v3265 = vsel %vm1293, %v3261, 0.0
    %3266 = vadd.xlane.f32.xlu0 %v3265
    %v3267 = vpop.xlane.xlu0 %3266
    %v3268 = vmul.f32 %v3264, %v2034
    %v3269 = vmul.f32 %v3267, %v2034
    %v3270 = vadd.f32 %v3268, 1e-05
    %v3271 = vadd.f32 %v3269, 1e-05
    %v3272 = vrsqrt.pop %v3270
    %v3273 = vrsqrt.pop %v3271
    %v3274 = vmul.f32 %v3258, %v3272
    %v3275 = vmul.f32 %v3259, %v3273
    %v3277 = vlaneseq
    %v3278 = vshrl.u32 %v3277, 7
    %v3279 = vsub.s32 0, %v3278
    %v3280 = vrot.slane %v1061, %v3279
    %v3282 = vmul.f32 %v3274, %v3280
    %v3283 = vmul.f32 %v3275, %v3280
    %v3285 = vlaneseq
    %v3286 = vshrl.u32 %v3285, 7
    %v3287 = vsub.s32 0, %v3286
    %v3288 = vrot.slane %v1062, %v3287
    %v3290 = vadd.f32 %v3282, %v3288
    %v3291 = vadd.f32 %v3283, %v3288
    %3292 = vst.msk [vmem:[#allocation84] sm:$0xff] %vm1293, %v3290
    %3293 = vst.msk [vmem:[#allocation84 + $0x8] sm:$0xff] %vm1293, %v3291
    %v3295 = vlaneseq
    %v3296 = vshrl.u32 %v3295, 7
    %v3297 = vsub.s32 0, %v3296
    %v3298 = vrot.slane %v1000, %v3297
    %vm3300 = vcmask 23552
    %v3302 = vsel %vm3300, %v985, 0
    %v3305 = vsel %vm3300, %v986, 0
    %vm3307 = vcmask 1042432
    %v3309 = vsel %vm3307, %v999, 0
    %3311 = vmatprep.subr.mxu0 0.0
    %3312 = vmatpush1.msra.mxu0 0.0
    %3313 = vmatprep.subr.mxu0 0.0
    %3314 = vmatpush1.msra.mxu0 0.0
    %3315 = vmatprep.subr.mxu0 0.0
    %3316 = vmatpush1.msra.mxu0 0.0
    %3317 = vmatprep.subr.mxu0 0.0
    %3318 = vmatpush1.msra.mxu0 0.0
    %3319 = vmatprep.subr.mxu0 0.0
    %3320 = vmatpush1.msra.mxu0 0.0
    %3321 = vmatprep.subr.mxu0 0.0
    %3322 = vmatpush1.msra.mxu0 0.0
    %3323 = vmatprep.subr.mxu0 0.0
    %3324 = vmatpush1.msra.mxu0 0.0
    %3325 = vmatprep.subr.mxu0 0.0
    %3326 = vmatpush1.msra.mxu0 0.0
    %3327 = vmatprep.subr.mxu0 0.0
    %3328 = vmatpush1.msra.mxu0 0.0
    %3329 = vmatprep.subr.mxu0 0.0
    %3330 = vmatpush1.msra.mxu0 0.0
    %3331 = vmatprep.subr.mxu0 0.0
    %3332 = vmatpush1.msra.mxu0 0.0
    %3333 = vmatprep.subr.mxu0 0.0
    %3334 = vmatpush1.msra.mxu0 0.0
    %3335 = vmatprep.subr.mxu0 0.0
    %3336 = vmatpush1.msra.mxu0 0.0
    %3337 = vmatprep.subr.mxu0 0.0
    %3338 = vmatpush1.msra.mxu0 0.0
    %3339 = vmatprep.subr.mxu0 0.0
    %3340 = vmatpush1.msra.mxu0 0.0
    %3341 = vmatprep.subr.mxu0 0.0
    %3342 = vmatpush1.msra.mxu0 %v3309
    %3343 = vmatprep.subr.mxu0 0.0
    %3344 = vmatpush2.msra.mxu0 0.0
    %3345 = vmatprep.subr.mxu0 0.0
    %3346 = vmatpush2.msra.mxu0 0.0
    %3347 = vmatprep.subr.mxu0 0.0
    %3348 = vmatpush2.msra.mxu0 0.0
    %3349 = vmatprep.subr.mxu0 0.0
    %3350 = vmatpush2.msra.mxu0 0.0
    %3351 = vmatprep.subr.mxu0 0.0
    %3352 = vmatpush2.msra.mxu0 0.0
    %3353 = vmatprep.subr.mxu0 0.0
    %3354 = vmatpush2.msra.mxu0 0.0
    %3355 = vmatprep.subr.mxu0 0.0
    %3356 = vmatpush2.msra.mxu0 0.0
    %3357 = vmatprep.subr.mxu0 0.0
    %3358 = vmatpush2.msra.mxu0 0.0
    %3359 = vmatprep.subr.mxu0 0.0
    %3360 = vmatpush2.msra.mxu0 0.0
    %3361 = vmatprep.subr.mxu0 0.0
    %3362 = vmatpush2.msra.mxu0 0.0
    %3363 = vmatprep.subr.mxu0 0.0
    %3364 = vmatpush2.msra.mxu0 0.0
    %3365 = vmatprep.subr.mxu0 0.0
    %3366 = vmatpush2.msra.mxu0 0.0
    %3367 = vmatprep.subr.mxu0 0.0
    %3368 = vmatpush2.msra.mxu0 0.0
    %3369 = vmatprep.subr.mxu0 0.0
    %3370 = vmatpush2.msra.mxu0 0.0
    %3371 = vmatprep.subr.mxu0 0.0
    %3372 = vmatpush2.msra.mxu0 0.0
    %3373 = vmatprep.subr.mxu0 0.0
    %3374 = vmatpush2.msra.mxu0 0.0
    %3375 = vmatprep.mubr.f32.mxu0 0.0
    %3376 = vmatmul.mubr.f32.gmra.mxu0 %v3302
    %v3377 = vpop.f32.mrf.mxu0
    %v3378 = vadd.f32 %v3298, %v3377
    %v3379 = vpop.f32.mrf.mxu0
    %3380 = vmatprep.mubr.f32.mxu0 0.0
    %3381 = vmatmul.mubr.f32.gmra.mxu0 %v3305
    %v3382 = vpop.f32.mrf.mxu0
    %v3383 = vadd.f32 %v3298, %v3382
    %v3384 = vpop.f32.mrf.mxu0
    %3385 = vdwg.mxu0
    %v3386 = vadd.f32 %v3378, %v989
    %v3387 = vadd.f32 %v3383, %v990
    %v3389 = vlaneseq
    %v3390 = vshrl.u32 %v3389, 7
    %v3391 = vsub.s32 0, %v3390
    %v3392 = vrot.slane %v1067, %v3391
    %v3395 = vsel %vm1293, %v3386, 0
    %v3398 = vsel %vm1293, %v3387, 0
    %3400 = vmatprep.subr.mxu0 0.0
    %3401 = vmatpush1.msra.mxu0 0.0
    %3402 = vmatprep.subr.mxu0 0.0
    %3403 = vmatpush1.msra.mxu0 0.0
    %3404 = vmatprep.subr.mxu0 0.0
    %3405 = vmatpush1.msra.mxu0 0.0
    %3406 = vmatprep.subr.mxu0 0.0
    %3407 = vmatpush1.msra.mxu0 0.0
    %3408 = vmatprep.subr.mxu0 0.0
    %3409 = vmatpush1.msra.mxu0 0.0
    %3410 = vmatprep.subr.mxu0 0.0
    %3411 = vmatpush1.msra.mxu0 0.0
    %3412 = vmatprep.subr.mxu0 0.0
    %3413 = vmatpush1.msra.mxu0 0.0
    %3414 = vmatprep.subr.mxu0 0.0
    %3415 = vmatpush1.msra.mxu0 0.0
    %3416 = vmatprep.subr.mxu0 0.0
    %3417 = vmatpush1.msra.mxu0 0.0
    %3418 = vmatprep.subr.mxu0 0.0
    %3419 = vmatpush1.msra.mxu0 0.0
    %3420 = vmatprep.subr.mxu0 0.0
    %3421 = vmatpush1.msra.mxu0 0.0
    %3422 = vmatprep.subr.mxu0 0.0
    %3423 = vmatpush1.msra.mxu0 0.0
    %3424 = vmatprep.subr.mxu0 0.0
    %3425 = vmatpush1.msra.mxu0 %v1066
    %3426 = vmatprep.subr.mxu0 0.0
    %3427 = vmatpush1.msra.mxu0 %v1065
    %3428 = vmatprep.subr.mxu0 0.0
    %3429 = vmatpush1.msra.mxu0 %v1064
    %3430 = vmatprep.subr.mxu0 0.0
    %3431 = vmatpush1.msra.mxu0 %v1063
    %3432 = vmatprep.subr.mxu0 0.0
    %3433 = vmatpush2.msra.mxu0 0.0
    %3434 = vmatprep.subr.mxu0 0.0
    %3435 = vmatpush2.msra.mxu0 0.0
    %3436 = vmatprep.subr.mxu0 0.0
    %3437 = vmatpush2.msra.mxu0 0.0
    %3438 = vmatprep.subr.mxu0 0.0
    %3439 = vmatpush2.msra.mxu0 0.0
    %3440 = vmatprep.subr.mxu0 0.0
    %3441 = vmatpush2.msra.mxu0 0.0
    %3442 = vmatprep.subr.mxu0 0.0
    %3443 = vmatpush2.msra.mxu0 0.0
    %3444 = vmatprep.subr.mxu0 0.0
    %3445 = vmatpush2.msra.mxu0 0.0
    %3446 = vmatprep.subr.mxu0 0.0
    %3447 = vmatpush2.msra.mxu0 0.0
    %3448 = vmatprep.subr.mxu0 0.0
    %3449 = vmatpush2.msra.mxu0 0.0
    %3450 = vmatprep.subr.mxu0 0.0
    %3451 = vmatpush2.msra.mxu0 0.0
    %3452 = vmatprep.subr.mxu0 0.0
    %3453 = vmatpush2.msra.mxu0 0.0
    %3454 = vmatprep.subr.mxu0 0.0
    %3455 = vmatpush2.msra.mxu0 0.0
    %3456 = vmatprep.subr.mxu0 0.0
    %3457 = vmatpush2.msra.mxu0 0.0
    %3458 = vmatprep.subr.mxu0 0.0
    %3459 = vmatpush2.msra.mxu0 0.0
    %3460 = vmatprep.subr.mxu0 0.0
    %3461 = vmatpush2.msra.mxu0 0.0
    %3462 = vmatprep.subr.mxu0 0.0
    %3463 = vmatpush2.msra.mxu0 0.0
    %3464 = vmatprep.mubr.f32.mxu0 0.0
    %3465 = vmatmul.mubr.f32.gmra.mxu0 %v3395
    %v3466 = vpop.f32.mrf.mxu0
    %v3467 = vadd.f32 %v3392, %v3466
    %v3468 = vpop.f32.mrf.mxu0
    %3469 = vmatprep.mubr.f32.mxu0 0.0
    %3470 = vmatmul.mubr.f32.gmra.mxu0 %v3398
    %v3471 = vpop.f32.mrf.mxu0
    %v3472 = vadd.f32 %v3392, %v3471
    %v3473 = vpop.f32.mrf.mxu0
    %3474 = vdwg.mxu0
    %v3476 = vlaneseq
    %v3477 = vshrl.u32 %v3476, 7
    %v3478 = vsub.s32 0, %v3477
    %v3479 = vrot.slane %v1072, %v3478
    %3481 = vmatprep.subr.mxu0 0.0
    %3482 = vmatpush1.msra.mxu0 0.0
    %3483 = vmatprep.subr.mxu0 0.0
    %3484 = vmatpush1.msra.mxu0 0.0
    %3485 = vmatprep.subr.mxu0 0.0
    %3486 = vmatpush1.msra.mxu0 0.0
    %3487 = vmatprep.subr.mxu0 0.0
    %3488 = vmatpush1.msra.mxu0 0.0
    %3489 = vmatprep.subr.mxu0 0.0
    %3490 = vmatpush1.msra.mxu0 0.0
    %3491 = vmatprep.subr.mxu0 0.0
    %3492 = vmatpush1.msra.mxu0 0.0
    %3493 = vmatprep.subr.mxu0 0.0
    %3494 = vmatpush1.msra.mxu0 0.0
    %3495 = vmatprep.subr.mxu0 0.0
    %3496 = vmatpush1.msra.mxu0 0.0
    %3497 = vmatprep.subr.mxu0 0.0
    %3498 = vmatpush1.msra.mxu0 0.0
    %3499 = vmatprep.subr.mxu0 0.0
    %3500 = vmatpush1.msra.mxu0 0.0
    %3501 = vmatprep.subr.mxu0 0.0
    %3502 = vmatpush1.msra.mxu0 0.0
    %3503 = vmatprep.subr.mxu0 0.0
    %3504 = vmatpush1.msra.mxu0 0.0
    %3505 = vmatprep.subr.mxu0 0.0
    %3506 = vmatpush1.msra.mxu0 %v1071
    %3507 = vmatprep.subr.mxu0 0.0
    %3508 = vmatpush1.msra.mxu0 %v1070
    %3509 = vmatprep.subr.mxu0 0.0
    %3510 = vmatpush1.msra.mxu0 %v1069
    %3511 = vmatprep.subr.mxu0 0.0
    %3512 = vmatpush1.msra.mxu0 %v1068
    %3513 = vmatprep.subr.mxu0 0.0
    %3514 = vmatpush2.msra.mxu0 0.0
    %3515 = vmatprep.subr.mxu0 0.0
    %3516 = vmatpush2.msra.mxu0 0.0
    %3517 = vmatprep.subr.mxu0 0.0
    %3518 = vmatpush2.msra.mxu0 0.0
    %3519 = vmatprep.subr.mxu0 0.0
    %3520 = vmatpush2.msra.mxu0 0.0
    %3521 = vmatprep.subr.mxu0 0.0
    %3522 = vmatpush2.msra.mxu0 0.0
    %3523 = vmatprep.subr.mxu0 0.0
    %3524 = vmatpush2.msra.mxu0 0.0
    %3525 = vmatprep.subr.mxu0 0.0
    %3526 = vmatpush2.msra.mxu0 0.0
    %3527 = vmatprep.subr.mxu0 0.0
    %3528 = vmatpush2.msra.mxu0 0.0
    %3529 = vmatprep.subr.mxu0 0.0
    %3530 = vmatpush2.msra.mxu0 0.0
    %3531 = vmatprep.subr.mxu0 0.0
    %3532 = vmatpush2.msra.mxu0 0.0
    %3533 = vmatprep.subr.mxu0 0.0
    %3534 = vmatpush2.msra.mxu0 0.0
    %3535 = vmatprep.subr.mxu0 0.0
    %3536 = vmatpush2.msra.mxu0 0.0
    %3537 = vmatprep.subr.mxu0 0.0
    %3538 = vmatpush2.msra.mxu0 0.0
    %3539 = vmatprep.subr.mxu0 0.0
    %3540 = vmatpush2.msra.mxu0 0.0
    %3541 = vmatprep.subr.mxu0 0.0
    %3542 = vmatpush2.msra.mxu0 0.0
    %3543 = vmatprep.subr.mxu0 0.0
    %3544 = vmatpush2.msra.mxu0 0.0
    %3545 = vmatprep.mubr.f32.mxu0 0.0
    %3546 = vmatmul.mubr.f32.gmra.mxu0 %v3395
    %v3547 = vpop.f32.mrf.mxu0
    %v3548 = vadd.f32 %v3479, %v3547
    %v3549 = vpop.f32.mrf.mxu0
    %3550 = vmatprep.mubr.f32.mxu0 0.0
    %3551 = vmatmul.mubr.f32.gmra.mxu0 %v3398
    %v3552 = vpop.f32.mrf.mxu0
    %v3553 = vadd.f32 %v3479, %v3552
    %v3554 = vpop.f32.mrf.mxu0
    %3555 = vdwg.mxu0
    %v3557 = vlaneseq
    %v3558 = vshrl.u32 %v3557, 7
    %v3559 = vsub.s32 0, %v3558
    %v3560 = vrot.slane %v1075, %v3559
    %v3562 = vadd.f32 %v3560, %v3386
    %v3563 = vadd.f32 %v3560, %v3387
    %v3565 = vsel %vm1464, %v3467, 0
    %v3568 = vsel %vm1464, %v3472, 0
    %v3571 = vsel %vm1464, %v3548, 0
    %v3574 = vsel %vm1464, %v3553, 0
    %3576 = vmatprep.subr.mxu0 0.0
    %3577 = vmatpush1.xpose.msra.mxu0 0.0
    %3578 = vmatprep.subr.mxu0 0.0
    %3579 = vmatpush1.xpose.msra.mxu0 0.0
    %3580 = vmatprep.subr.mxu0 0.0
    %3581 = vmatpush1.xpose.msra.mxu0 0.0
    %3582 = vmatprep.subr.mxu0 0.0
    %3583 = vmatpush1.xpose.msra.mxu0 0.0
    %3584 = vmatprep.subr.mxu0 0.0
    %3585 = vmatpush1.xpose.msra.mxu0 0.0
    %3586 = vmatprep.subr.mxu0 0.0
    %3587 = vmatpush1.xpose.msra.mxu0 0.0
    %3588 = vmatprep.subr.mxu0 0.0
    %3589 = vmatpush1.xpose.msra.mxu0 0.0
    %3590 = vmatprep.subr.mxu0 0.0
    %3591 = vmatpush1.xpose.msra.mxu0 0.0
    %3592 = vmatprep.subr.mxu0 0.0
    %3593 = vmatpush1.xpose.msra.mxu0 0.0
    %3594 = vmatprep.subr.mxu0 0.0
    %3595 = vmatpush1.xpose.msra.mxu0 0.0
    %3596 = vmatprep.subr.mxu0 0.0
    %3597 = vmatpush1.xpose.msra.mxu0 0.0
    %3598 = vmatprep.subr.mxu0 0.0
    %3599 = vmatpush1.xpose.msra.mxu0 0.0
    %3600 = vmatprep.subr.mxu0 0.0
    %3601 = vmatpush1.xpose.msra.mxu0 0.0
    %3602 = vmatprep.subr.mxu0 0.0
    %3603 = vmatpush1.xpose.msra.mxu0 0.0
    %3604 = vmatprep.subr.mxu0 0.0
    %3605 = vmatpush1.xpose.msra.mxu0 %v3574
    %3606 = vmatprep.subr.mxu0 0.0
    %3607 = vmatpush1.xpose.msra.mxu0 %v3571
    %3608 = vmatprep.subr.mxu0 0.0
    %3609 = vmatpush2.xpose.msra.mxu0 0.0
    %3610 = vmatprep.subr.mxu0 0.0
    %3611 = vmatpush2.xpose.msra.mxu0 0.0
    %3612 = vmatprep.subr.mxu0 0.0
    %3613 = vmatpush2.xpose.msra.mxu0 0.0
    %3614 = vmatprep.subr.mxu0 0.0
    %3615 = vmatpush2.xpose.msra.mxu0 0.0
    %3616 = vmatprep.subr.mxu0 0.0
    %3617 = vmatpush2.xpose.msra.mxu0 0.0
    %3618 = vmatprep.subr.mxu0 0.0
    %3619 = vmatpush2.xpose.msra.mxu0 0.0
    %3620 = vmatprep.subr.mxu0 0.0
    %3621 = vmatpush2.xpose.msra.mxu0 0.0
    %3622 = vmatprep.subr.mxu0 0.0
    %3623 = vmatpush2.xpose.msra.mxu0 0.0
    %3624 = vmatprep.subr.mxu0 0.0
    %3625 = vmatpush2.xpose.msra.mxu0 0.0
    %3626 = vmatprep.subr.mxu0 0.0
    %3627 = vmatpush2.xpose.msra.mxu0 0.0
    %3628 = vmatprep.subr.mxu0 0.0
    %3629 = vmatpush2.xpose.msra.mxu0 0.0
    %3630 = vmatprep.subr.mxu0 0.0
    %3631 = vmatpush2.xpose.msra.mxu0 0.0
    %3632 = vmatprep.subr.mxu0 0.0
    %3633 = vmatpush2.xpose.msra.mxu0 0.0
    %3634 = vmatprep.subr.mxu0 0.0
    %3635 = vmatpush2.xpose.msra.mxu0 0.0
    %3636 = vmatprep.subr.mxu0 0.0
    %3637 = vmatpush2.xpose.msra.mxu0 0.0
    %3638 = vmatprep.subr.mxu0 0.0
    %3639 = vmatpush2.xpose.msra.mxu0 0.0
    %3640 = vmatprep.mubr.f32.mxu0 0.0
    %3641 = vmatmul.mubr.f32.gmra.mxu0 %v3565
    %v3642 = vpop.f32.mrf.mxu0
    %v3643 = vadd.f32 %v993, %v3642
    %v3644 = vpop.f32.mrf.mxu0
    %3645 = vmatprep.mubr.f32.mxu0 0.0
    %3646 = vmatmul.mubr.f32.gmra.mxu0 %v3568
    %v3647 = vpop.f32.mrf.mxu0
    %v3648 = vadd.f32 %v994, %v3647
    %v3649 = vpop.f32.mrf.mxu0
    %3650 = vdwg.mxu0
    %v3651 = vsel %vm1552, %v3643, -inf
    %3652 = vmax.xlane.f32.xlu0 %v3651
    %v3653 = vpop.xlane.xlu0 %3652
    %v3654 = vsel %vm1552, %v3648, -inf
    %3655 = vmax.xlane.f32.xlu0 %v3654
    %v3656 = vpop.xlane.xlu0 %3655
    %v3657 = vsub.f32 %v3643, %v3653
    %v3658 = vsub.f32 %v3648, %v3656
    %v3659 = vmul.f32 %v3657, 1.442695
    %v3660 = vpow.pop %v3659
    %v3661 = vmul.f32 %v3658, 1.442695
    %v3662 = vpow.pop %v3661
    %v3663 = vsel %vm1552, %v3660, 0.0
    %3664 = vadd.xlane.f32.xlu0 %v3663
    %v3665 = vpop.xlane.xlu0 %3664
    %v3666 = vsel %vm1552, %v3662, 0.0
    %3667 = vadd.xlane.f32.xlu0 %v3666
    %v3668 = vpop.xlane.xlu0 %3667
    %v3669 = vrcp.pop %v3665
    %v3670 = vrcp.pop %v3668
    %v3671 = vmul.f32 %v3660, %v3669
    %v3672 = vmul.f32 %v3662, %v3670
    %3673 = vrot.lane.b32.xlu0 %v3548, 112
    %v3674 = vpop.permute.xlu0 %3673
    %3675 = vrot.lane.b32.xlu0 %v3553, 112
    %v3676 = vpop.permute.xlu0 %3675
    %v3680 = vsel %vm1552, %v3671, 0
    %v3683 = vsel %vm1552, %v3672, 0
    %3685 = vmatprep.subr.mxu0 0.0
    %3686 = vmatpush1.msra.mxu0 0.0
    %3687 = vmatprep.subr.mxu0 0.0
    %3688 = vmatpush1.msra.mxu0 0.0
    %3689 = vmatprep.subr.mxu0 0.0
    %3690 = vmatpush1.msra.mxu0 0.0
    %3691 = vmatprep.subr.mxu0 0.0
    %3692 = vmatpush1.msra.mxu0 0.0
    %3693 = vmatprep.subr.mxu0 0.0
    %3694 = vmatpush1.msra.mxu0 0.0
    %3695 = vmatprep.subr.mxu0 0.0
    %3696 = vmatpush1.msra.mxu0 0.0
    %3697 = vmatprep.subr.mxu0 0.0
    %3698 = vmatpush1.msra.mxu0 0.0
    %3699 = vmatprep.subr.mxu0 0.0
    %3700 = vmatpush1.msra.mxu0 0.0
    %3701 = vmatprep.subr.mxu0 0.0
    %3702 = vmatpush1.msra.mxu0 0.0
    %3703 = vmatprep.subr.mxu0 0.0
    %3704 = vmatpush1.msra.mxu0 0.0
    %3705 = vmatprep.subr.mxu0 0.0
    %3706 = vmatpush1.msra.mxu0 0.0
    %3707 = vmatprep.subr.mxu0 0.0
    %3708 = vmatpush1.msra.mxu0 0.0
    %3709 = vmatprep.subr.mxu0 0.0
    %3710 = vmatpush1.msra.mxu0 0.0
    %3711 = vmatprep.subr.mxu0 0.0
    %3712 = vmatpush1.msra.mxu0 0.0
    %3713 = vmatprep.subr.mxu0 0.0
    %3714 = vmatpush1.msra.mxu0 %v3676
    %3715 = vmatprep.subr.mxu0 0.0
    %3716 = vmatpush1.msra.mxu0 %v3674
    %3717 = vmatprep.subr.mxu0 0.0
    %3718 = vmatpush2.msra.mxu0 0.0
    %3719 = vmatprep.subr.mxu0 0.0
    %3720 = vmatpush2.msra.mxu0 0.0
    %3721 = vmatprep.subr.mxu0 0.0
    %3722 = vmatpush2.msra.mxu0 0.0
    %3723 = vmatprep.subr.mxu0 0.0
    %3724 = vmatpush2.msra.mxu0 0.0
    %3725 = vmatprep.subr.mxu0 0.0
    %3726 = vmatpush2.msra.mxu0 0.0
    %3727 = vmatprep.subr.mxu0 0.0
    %3728 = vmatpush2.msra.mxu0 0.0
    %3729 = vmatprep.subr.mxu0 0.0
    %3730 = vmatpush2.msra.mxu0 0.0
    %3731 = vmatprep.subr.mxu0 0.0
    %3732 = vmatpush2.msra.mxu0 0.0
    %3733 = vmatprep.subr.mxu0 0.0
    %3734 = vmatpush2.msra.mxu0 0.0
    %3735 = vmatprep.subr.mxu0 0.0
    %3736 = vmatpush2.msra.mxu0 0.0
    %3737 = vmatprep.subr.mxu0 0.0
    %3738 = vmatpush2.msra.mxu0 0.0
    %3739 = vmatprep.subr.mxu0 0.0
    %3740 = vmatpush2.msra.mxu0 0.0
    %3741 = vmatprep.subr.mxu0 0.0
    %3742 = vmatpush2.msra.mxu0 0.0
    %3743 = vmatprep.subr.mxu0 0.0
    %3744 = vmatpush2.msra.mxu0 0.0
    %3745 = vmatprep.subr.mxu0 0.0
    %3746 = vmatpush2.msra.mxu0 0.0
    %3747 = vmatprep.subr.mxu0 0.0
    %3748 = vmatpush2.msra.mxu0 0.0
    %3749 = vmatprep.mubr.f32.mxu0 0.0
    %3750 = vmatmul.mubr.f32.gmra.mxu0 %v3680
    %v3751 = vpop.f32.mrf.mxu0
    %v3752 = vadd.f32 0.0, %v3751
    %v3753 = vpop.f32.mrf.mxu0
    %3754 = vmatprep.mubr.f32.mxu0 0.0
    %3755 = vmatmul.mubr.f32.gmra.mxu0 %v3683
    %v3756 = vpop.f32.mrf.mxu0
    %v3757 = vadd.f32 0.0, %v3756
    %v3758 = vpop.f32.mrf.mxu0
    %3759 = vdwg.mxu0
    %v3761 = vsel %vm1464, %v3752, 0
    %v3764 = vsel %vm1464, %v3757, 0
    %3766 = vmatprep.subr.mxu0 0.0
    %3767 = vmatpush1.msra.mxu0 0.0
    %3768 = vmatprep.subr.mxu0 0.0
    %3769 = vmatpush1.msra.mxu0 0.0
    %3770 = vmatprep.subr.mxu0 0.0
    %3771 = vmatpush1.msra.mxu0 0.0
    %3772 = vmatprep.subr.mxu0 0.0
    %3773 = vmatpush1.msra.mxu0 0.0
    %3774 = vmatprep.subr.mxu0 0.0
    %3775 = vmatpush1.msra.mxu0 0.0
    %3776 = vmatprep.subr.mxu0 0.0
    %3777 = vmatpush1.msra.mxu0 0.0
    %3778 = vmatprep.subr.mxu0 0.0
    %3779 = vmatpush1.msra.mxu0 0.0
    %3780 = vmatprep.subr.mxu0 0.0
    %3781 = vmatpush1.msra.mxu0 0.0
    %3782 = vmatprep.subr.mxu0 0.0
    %3783 = vmatpush1.msra.mxu0 0.0
    %3784 = vmatprep.subr.mxu0 0.0
    %3785 = vmatpush1.msra.mxu0 0.0
    %3786 = vmatprep.subr.mxu0 0.0
    %3787 = vmatpush1.msra.mxu0 0.0
    %3788 = vmatprep.subr.mxu0 0.0
    %3789 = vmatpush1.msra.mxu0 0.0
    %3790 = vmatprep.subr.mxu0 0.0
    %3791 = vmatpush1.msra.mxu0 0.0
    %3792 = vmatprep.subr.mxu0 0.0
    %3793 = vmatpush1.msra.mxu0 0.0
    %3794 = vmatprep.subr.mxu0 0.0
    %3795 = vmatpush1.msra.mxu0 0.0
    %3796 = vmatprep.subr.mxu0 0.0
    %3797 = vmatpush1.msra.mxu0 %v1073
    %3798 = vmatprep.subr.mxu0 0.0
    %3799 = vmatpush2.msra.mxu0 0.0
    %3800 = vmatprep.subr.mxu0 0.0
    %3801 = vmatpush2.msra.mxu0 0.0
    %3802 = vmatprep.subr.mxu0 0.0
    %3803 = vmatpush2.msra.mxu0 0.0
    %3804 = vmatprep.subr.mxu0 0.0
    %3805 = vmatpush2.msra.mxu0 0.0
    %3806 = vmatprep.subr.mxu0 0.0
    %3807 = vmatpush2.msra.mxu0 0.0
    %3808 = vmatprep.subr.mxu0 0.0
    %3809 = vmatpush2.msra.mxu0 0.0
    %3810 = vmatprep.subr.mxu0 0.0
    %3811 = vmatpush2.msra.mxu0 0.0
    %3812 = vmatprep.subr.mxu0 0.0
    %3813 = vmatpush2.msra.mxu0 0.0
    %3814 = vmatprep.subr.mxu0 0.0
    %3815 = vmatpush2.msra.mxu0 0.0
    %3816 = vmatprep.subr.mxu0 0.0
    %3817 = vmatpush2.msra.mxu0 0.0
    %3818 = vmatprep.subr.mxu0 0.0
    %3819 = vmatpush2.msra.mxu0 0.0
    %3820 = vmatprep.subr.mxu0 0.0
    %3821 = vmatpush2.msra.mxu0 0.0
    %3822 = vmatprep.subr.mxu0 0.0
    %3823 = vmatpush2.msra.mxu0 0.0
    %3824 = vmatprep.subr.mxu0 0.0
    %3825 = vmatpush2.msra.mxu0 0.0
    %3826 = vmatprep.subr.mxu0 0.0
    %3827 = vmatpush2.msra.mxu0 0.0
    %3828 = vmatprep.subr.mxu0 0.0
    %3829 = vmatpush2.msra.mxu0 0.0
    %3830 = vmatprep.mubr.f32.mxu0 0.0
    %3831 = vmatmul.mubr.f32.gmra.mxu0 %v3761
    %v3832 = vpop.f32.mrf.mxu0
    %v3833 = vadd.f32 0.0, %v3832
    %v3834 = vpop.f32.mrf.mxu0
    %3835 = vmatprep.mubr.f32.mxu0 0.0
    %3836 = vmatmul.mubr.f32.gmra.mxu0 %v3764
    %v3837 = vpop.f32.mrf.mxu0
    %v3838 = vadd.f32 0.0, %v3837
    %v3839 = vpop.f32.mrf.mxu0
    %3840 = vdwg.mxu0
    %v3841 = vadd.f32 %v3562, %v3833
    %v3842 = vadd.f32 %v3563, %v3838
    %3843 = vrot.lane.b32.xlu0 %v3467, 120
    %v3844 = vpop.permute.xlu0 %3843
    %3845 = vrot.lane.b32.xlu0 %v3472, 120
    %v3846 = vpop.permute.xlu0 %3845
    %3847 = vrot.lane.b32.xlu0 %v3548, 120
    %v3848 = vpop.permute.xlu0 %3847
    %3849 = vrot.lane.b32.xlu0 %v3553, 120
    %v3850 = vpop.permute.xlu0 %3849
    %v3851 = vsel %vm1464, %v3844, 0
    %v3853 = vsel %vm1464, %v3846, 0
    %v3855 = vsel %vm1464, %v3848, 0
    %v3857 = vsel %vm1464, %v3850, 0
    %3859 = vmatprep.subr.mxu0 0.0
    %3860 = vmatpush1.xpose.msra.mxu0 0.0
    %3861 = vmatprep.subr.mxu0 0.0
    %3862 = vmatpush1.xpose.msra.mxu0 0.0
    %3863 = vmatprep.subr.mxu0 0.0
    %3864 = vmatpush1.xpose.msra.mxu0 0.0
    %3865 = vmatprep.subr.mxu0 0.0
    %3866 = vmatpush1.xpose.msra.mxu0 0.0
    %3867 = vmatprep.subr.mxu0 0.0
    %3868 = vmatpush1.xpose.msra.mxu0 0.0
    %3869 = vmatprep.subr.mxu0 0.0
    %3870 = vmatpush1.xpose.msra.mxu0 0.0
    %3871 = vmatprep.subr.mxu0 0.0
    %3872 = vmatpush1.xpose.msra.mxu0 0.0
    %3873 = vmatprep.subr.mxu0 0.0
    %3874 = vmatpush1.xpose.msra.mxu0 0.0
    %3875 = vmatprep.subr.mxu0 0.0
    %3876 = vmatpush1.xpose.msra.mxu0 0.0
    %3877 = vmatprep.subr.mxu0 0.0
    %3878 = vmatpush1.xpose.msra.mxu0 0.0
    %3879 = vmatprep.subr.mxu0 0.0
    %3880 = vmatpush1.xpose.msra.mxu0 0.0
    %3881 = vmatprep.subr.mxu0 0.0
    %3882 = vmatpush1.xpose.msra.mxu0 0.0
    %3883 = vmatprep.subr.mxu0 0.0
    %3884 = vmatpush1.xpose.msra.mxu0 0.0
    %3885 = vmatprep.subr.mxu0 0.0
    %3886 = vmatpush1.xpose.msra.mxu0 0.0
    %3887 = vmatprep.subr.mxu0 0.0
    %3888 = vmatpush1.xpose.msra.mxu0 %v3857
    %3889 = vmatprep.subr.mxu0 0.0
    %3890 = vmatpush1.xpose.msra.mxu0 %v3855
    %3891 = vmatprep.subr.mxu0 0.0
    %3892 = vmatpush2.xpose.msra.mxu0 0.0
    %3893 = vmatprep.subr.mxu0 0.0
    %3894 = vmatpush2.xpose.msra.mxu0 0.0
    %3895 = vmatprep.subr.mxu0 0.0
    %3896 = vmatpush2.xpose.msra.mxu0 0.0
    %3897 = vmatprep.subr.mxu0 0.0
    %3898 = vmatpush2.xpose.msra.mxu0 0.0
    %3899 = vmatprep.subr.mxu0 0.0
    %3900 = vmatpush2.xpose.msra.mxu0 0.0
    %3901 = vmatprep.subr.mxu0 0.0
    %3902 = vmatpush2.xpose.msra.mxu0 0.0
    %3903 = vmatprep.subr.mxu0 0.0
    %3904 = vmatpush2.xpose.msra.mxu0 0.0
    %3905 = vmatprep.subr.mxu0 0.0
    %3906 = vmatpush2.xpose.msra.mxu0 0.0
    %3907 = vmatprep.subr.mxu0 0.0
    %3908 = vmatpush2.xpose.msra.mxu0 0.0
    %3909 = vmatprep.subr.mxu0 0.0
    %3910 = vmatpush2.xpose.msra.mxu0 0.0
    %3911 = vmatprep.subr.mxu0 0.0
    %3912 = vmatpush2.xpose.msra.mxu0 0.0
    %3913 = vmatprep.subr.mxu0 0.0
    %3914 = vmatpush2.xpose.msra.mxu0 0.0
    %3915 = vmatprep.subr.mxu0 0.0
    %3916 = vmatpush2.xpose.msra.mxu0 0.0
    %3917 = vmatprep.subr.mxu0 0.0
    %3918 = vmatpush2.xpose.msra.mxu0 0.0
    %3919 = vmatprep.subr.mxu0 0.0
    %3920 = vmatpush2.xpose.msra.mxu0 0.0
    %3921 = vmatprep.subr.mxu0 0.0
    %3922 = vmatpush2.xpose.msra.mxu0 0.0
    %3923 = vmatprep.mubr.f32.mxu0 0.0
    %3924 = vmatmul.mubr.f32.gmra.mxu0 %v3851
    %v3925 = vpop.f32.mrf.mxu0
    %v3926 = vadd.f32 %v993, %v3925
    %v3927 = vpop.f32.mrf.mxu0
    %3928 = vmatprep.mubr.f32.mxu0 0.0
    %3929 = vmatmul.mubr.f32.gmra.mxu0 %v3853
    %v3930 = vpop.f32.mrf.mxu0
    %v3931 = vadd.f32 %v994, %v3930
    %v3932 = vpop.f32.mrf.mxu0
    %3933 = vdwg.mxu0
    %v3934 = vsel %vm1552, %v3926, -inf
    %3935 = vmax.xlane.f32.xlu0 %v3934
    %v3936 = vpop.xlane.xlu0 %3935
    %v3937 = vsel %vm1552, %v3931, -inf
    %3938 = vmax.xlane.f32.xlu0 %v3937
    %v3939 = vpop.xlane.xlu0 %3938
    %v3940 = vsub.f32 %v3926, %v3936
    %v3941 = vsub.f32 %v3931, %v3939
    %v3942 = vmul.f32 %v3940, 1.442695
    %v3943 = vpow.pop %v3942
    %v3944 = vmul.f32 %v3941, 1.442695
    %v3945 = vpow.pop %v3944
    %v3946 = vsel %vm1552, %v3943, 0.0
    %3947 = vadd.xlane.f32.xlu0 %v3946
    %v3948 = vpop.xlane.xlu0 %3947
    %v3949 = vsel %vm1552, %v3945, 0.0
    %3950 = vadd.xlane.f32.xlu0 %v3949
    %v3951 = vpop.xlane.xlu0 %3950
    %v3952 = vrcp.pop %v3948
    %v3953 = vrcp.pop %v3951
    %v3954 = vmul.f32 %v3943, %v3952
    %v3955 = vmul.f32 %v3945, %v3953
    %3956 = vrot.lane.b32.xlu0 %v3548, 104
    %v3957 = vpop.permute.xlu0 %3956
    %3958 = vrot.lane.b32.xlu0 %v3553, 104
    %v3959 = vpop.permute.xlu0 %3958
    %v3963 = vsel %vm1552, %v3954, 0
    %v3966 = vsel %vm1552, %v3955, 0
    %3968 = vmatprep.subr.mxu0 0.0
    %3969 = vmatpush1.msra.mxu0 0.0
    %3970 = vmatprep.subr.mxu0 0.0
    %3971 = vmatpush1.msra.mxu0 0.0
    %3972 = vmatprep.subr.mxu0 0.0
    %3973 = vmatpush1.msra.mxu0 0.0
    %3974 = vmatprep.subr.mxu0 0.0
    %3975 = vmatpush1.msra.mxu0 0.0
    %3976 = vmatprep.subr.mxu0 0.0
    %3977 = vmatpush1.msra.mxu0 0.0
    %3978 = vmatprep.subr.mxu0 0.0
    %3979 = vmatpush1.msra.mxu0 0.0
    %3980 = vmatprep.subr.mxu0 0.0
    %3981 = vmatpush1.msra.mxu0 0.0
    %3982 = vmatprep.subr.mxu0 0.0
    %3983 = vmatpush1.msra.mxu0 0.0
    %3984 = vmatprep.subr.mxu0 0.0
    %3985 = vmatpush1.msra.mxu0 0.0
    %3986 = vmatprep.subr.mxu0 0.0
    %3987 = vmatpush1.msra.mxu0 0.0
    %3988 = vmatprep.subr.mxu0 0.0
    %3989 = vmatpush1.msra.mxu0 0.0
    %3990 = vmatprep.subr.mxu0 0.0
    %3991 = vmatpush1.msra.mxu0 0.0
    %3992 = vmatprep.subr.mxu0 0.0
    %3993 = vmatpush1.msra.mxu0 0.0
    %3994 = vmatprep.subr.mxu0 0.0
    %3995 = vmatpush1.msra.mxu0 0.0
    %3996 = vmatprep.subr.mxu0 0.0
    %3997 = vmatpush1.msra.mxu0 %v3959
    %3998 = vmatprep.subr.mxu0 0.0
    %3999 = vmatpush1.msra.mxu0 %v3957
    %4000 = vmatprep.subr.mxu0 0.0
    %4001 = vmatpush2.msra.mxu0 0.0
    %4002 = vmatprep.subr.mxu0 0.0
    %4003 = vmatpush2.msra.mxu0 0.0
    %4004 = vmatprep.subr.mxu0 0.0
    %4005 = vmatpush2.msra.mxu0 0.0
    %4006 = vmatprep.subr.mxu0 0.0
    %4007 = vmatpush2.msra.mxu0 0.0
    %4008 = vmatprep.subr.mxu0 0.0
    %4009 = vmatpush2.msra.mxu0 0.0
    %4010 = vmatprep.subr.mxu0 0.0
    %4011 = vmatpush2.msra.mxu0 0.0
    %4012 = vmatprep.subr.mxu0 0.0
    %4013 = vmatpush2.msra.mxu0 0.0
    %4014 = vmatprep.subr.mxu0 0.0
    %4015 = vmatpush2.msra.mxu0 0.0
    %4016 = vmatprep.subr.mxu0 0.0
    %4017 = vmatpush2.msra.mxu0 0.0
    %4018 = vmatprep.subr.mxu0 0.0
    %4019 = vmatpush2.msra.mxu0 0.0
    %4020 = vmatprep.subr.mxu0 0.0
    %4021 = vmatpush2.msra.mxu0 0.0
    %4022 = vmatprep.subr.mxu0 0.0
    %4023 = vmatpush2.msra.mxu0 0.0
    %4024 = vmatprep.subr.mxu0 0.0
    %4025 = vmatpush2.msra.mxu0 0.0
    %4026 = vmatprep.subr.mxu0 0.0
    %4027 = vmatpush2.msra.mxu0 0.0
    %4028 = vmatprep.subr.mxu0 0.0
    %4029 = vmatpush2.msra.mxu0 0.0
    %4030 = vmatprep.subr.mxu0 0.0
    %4031 = vmatpush2.msra.mxu0 0.0
    %4032 = vmatprep.mubr.f32.mxu0 0.0
    %4033 = vmatmul.mubr.f32.gmra.mxu0 %v3963
    %v4034 = vpop.f32.mrf.mxu0
    %v4035 = vadd.f32 0.0, %v4034
    %v4036 = vpop.f32.mrf.mxu0
    %4037 = vmatprep.mubr.f32.mxu0 0.0
    %4038 = vmatmul.mubr.f32.gmra.mxu0 %v3966
    %v4039 = vpop.f32.mrf.mxu0
    %v4040 = vadd.f32 0.0, %v4039
    %v4041 = vpop.f32.mrf.mxu0
    %4042 = vdwg.mxu0
    %v4044 = vsel %vm1464, %v4035, 0
    %v4047 = vsel %vm1464, %v4040, 0
    %4049 = vmatprep.subr.mxu0 0.0
    %4050 = vmatpush1.msra.mxu0 0.0
    %4051 = vmatprep.subr.mxu0 0.0
    %4052 = vmatpush1.msra.mxu0 0.0
    %4053 = vmatprep.subr.mxu0 0.0
    %4054 = vmatpush1.msra.mxu0 0.0
    %4055 = vmatprep.subr.mxu0 0.0
    %4056 = vmatpush1.msra.mxu0 0.0
    %4057 = vmatprep.subr.mxu0 0.0
    %4058 = vmatpush1.msra.mxu0 0.0
    %4059 = vmatprep.subr.mxu0 0.0
    %4060 = vmatpush1.msra.mxu0 0.0
    %4061 = vmatprep.subr.mxu0 0.0
    %4062 = vmatpush1.msra.mxu0 0.0
    %4063 = vmatprep.subr.mxu0 0.0
    %4064 = vmatpush1.msra.mxu0 0.0
    %4065 = vmatprep.subr.mxu0 0.0
    %4066 = vmatpush1.msra.mxu0 0.0
    %4067 = vmatprep.subr.mxu0 0.0
    %4068 = vmatpush1.msra.mxu0 0.0
    %4069 = vmatprep.subr.mxu0 0.0
    %4070 = vmatpush1.msra.mxu0 0.0
    %4071 = vmatprep.subr.mxu0 0.0
    %4072 = vmatpush1.msra.mxu0 0.0
    %4073 = vmatprep.subr.mxu0 0.0
    %4074 = vmatpush1.msra.mxu0 0.0
    %4075 = vmatprep.subr.mxu0 0.0
    %4076 = vmatpush1.msra.mxu0 0.0
    %4077 = vmatprep.subr.mxu0 0.0
    %4078 = vmatpush1.msra.mxu0 0.0
    %4079 = vmatprep.subr.mxu0 0.0
    %4080 = vmatpush1.msra.mxu0 %v1074
    %4081 = vmatprep.subr.mxu0 0.0
    %4082 = vmatpush2.msra.mxu0 0.0
    %4083 = vmatprep.subr.mxu0 0.0
    %4084 = vmatpush2.msra.mxu0 0.0
    %4085 = vmatprep.subr.mxu0 0.0
    %4086 = vmatpush2.msra.mxu0 0.0
    %4087 = vmatprep.subr.mxu0 0.0
    %4088 = vmatpush2.msra.mxu0 0.0
    %4089 = vmatprep.subr.mxu0 0.0
    %4090 = vmatpush2.msra.mxu0 0.0
    %4091 = vmatprep.subr.mxu0 0.0
    %4092 = vmatpush2.msra.mxu0 0.0
    %4093 = vmatprep.subr.mxu0 0.0
    %4094 = vmatpush2.msra.mxu0 0.0
    %4095 = vmatprep.subr.mxu0 0.0
    %4096 = vmatpush2.msra.mxu0 0.0
    %4097 = vmatprep.subr.mxu0 0.0
    %4098 = vmatpush2.msra.mxu0 0.0
    %4099 = vmatprep.subr.mxu0 0.0
    %4100 = vmatpush2.msra.mxu0 0.0
    %4101 = vmatprep.subr.mxu0 0.0
    %4102 = vmatpush2.msra.mxu0 0.0
    %4103 = vmatprep.subr.mxu0 0.0
    %4104 = vmatpush2.msra.mxu0 0.0
    %4105 = vmatprep.subr.mxu0 0.0
    %4106 = vmatpush2.msra.mxu0 0.0
    %4107 = vmatprep.subr.mxu0 0.0
    %4108 = vmatpush2.msra.mxu0 0.0
    %4109 = vmatprep.subr.mxu0 0.0
    %4110 = vmatpush2.msra.mxu0 0.0
    %4111 = vmatprep.subr.mxu0 0.0
    %4112 = vmatpush2.msra.mxu0 0.0
    %4113 = vmatprep.mubr.f32.mxu0 0.0
    %4114 = vmatmul.mubr.f32.gmra.mxu0 %v4044
    %v4115 = vpop.f32.mrf.mxu0
    %v4116 = vadd.f32 0.0, %v4115
    %v4117 = vpop.f32.mrf.mxu0
    %4118 = vmatprep.mubr.f32.mxu0 0.0
    %4119 = vmatmul.mubr.f32.gmra.mxu0 %v4047
    %v4120 = vpop.f32.mrf.mxu0
    %v4121 = vadd.f32 0.0, %v4120
    %v4122 = vpop.f32.mrf.mxu0
    %4123 = vdwg.mxu0
    %v4124 = vadd.f32 %v3841, %v4116
    %v4125 = vadd.f32 %v3842, %v4121
    %v4126 = vsel %vm1293, %v4124, 0.0
    %4127 = vadd.xlane.f32.xlu0 %v4126
    %v4128 = vpop.xlane.xlu0 %4127
    %v4129 = vsel %vm1293, %v4125, 0.0
    %4130 = vadd.xlane.f32.xlu0 %v4129
    %v4131 = vpop.xlane.xlu0 %4130
    %v4132 = vmul.f32 %v4128, %v2034
    %v4133 = vmul.f32 %v4131, %v2034
    %v4134 = vsub.f32 %v4124, %v4132
    %v4135 = vsub.f32 %v4125, %v4133
    %v4136 = vmul.f32 %v4134, %v4134
    %v4137 = vmul.f32 %v4135, %v4135
    %v4138 = vsel %vm1293, %v4136, 0.0
    %4139 = vadd.xlane.f32.xlu0 %v4138
    %v4140 = vpop.xlane.xlu0 %4139
    %v4141 = vsel %vm1293, %v4137, 0.0
    %4142 = vadd.xlane.f32.xlu0 %v4141
    %v4143 = vpop.xlane.xlu0 %4142
    %v4144 = vmul.f32 %v4140, %v2034
    %v4145 = vmul.f32 %v4143, %v2034
    %v4146 = vadd.f32 %v4144, 1e-05
    %v4147 = vadd.f32 %v4145, 1e-05
    %v4148 = vrsqrt.pop %v4146
    %v4149 = vrsqrt.pop %v4147
    %v4150 = vmul.f32 %v4134, %v4148
    %v4151 = vmul.f32 %v4135, %v4149
    %v4153 = vlaneseq
    %v4154 = vshrl.u32 %v4153, 7
    %v4155 = vsub.s32 0, %v4154
    %v4156 = vrot.slane %v1076, %v4155
    %v4158 = vmul.f32 %v4150, %v4156
    %v4159 = vmul.f32 %v4151, %v4156
    %v4161 = vlaneseq
    %v4162 = vshrl.u32 %v4161, 7
    %v4163 = vsub.s32 0, %v4162
    %v4164 = vrot.slane %v1077, %v4163
    %v4166 = vadd.f32 %v4158, %v4164
    %v4167 = vadd.f32 %v4159, %v4164
    %v4169 = vlaneseq
    %v4170 = vshrl.u32 %v4169, 7
    %v4171 = vsub.s32 0, %v4170
    %v4172 = vrot.slane %v1082, %v4171
    %v4175 = vsel %vm1293, %v4166, 0
    %v4178 = vsel %vm1293, %v4167, 0
    %4180 = vmatprep.subr.mxu0 0.0
    %4181 = vmatpush1.msra.mxu0 0.0
    %4182 = vmatprep.subr.mxu0 0.0
    %4183 = vmatpush1.msra.mxu0 0.0
    %4184 = vmatprep.subr.mxu0 0.0
    %4185 = vmatpush1.msra.mxu0 0.0
    %4186 = vmatprep.subr.mxu0 0.0
    %4187 = vmatpush1.msra.mxu0 0.0
    %4188 = vmatprep.subr.mxu0 0.0
    %4189 = vmatpush1.msra.mxu0 0.0
    %4190 = vmatprep.subr.mxu0 0.0
    %4191 = vmatpush1.msra.mxu0 0.0
    %4192 = vmatprep.subr.mxu0 0.0
    %4193 = vmatpush1.msra.mxu0 0.0
    %4194 = vmatprep.subr.mxu0 0.0
    %4195 = vmatpush1.msra.mxu0 0.0
    %4196 = vmatprep.subr.mxu0 0.0
    %4197 = vmatpush1.msra.mxu0 0.0
    %4198 = vmatprep.subr.mxu0 0.0
    %4199 = vmatpush1.msra.mxu0 0.0
    %4200 = vmatprep.subr.mxu0 0.0
    %4201 = vmatpush1.msra.mxu0 0.0
    %4202 = vmatprep.subr.mxu0 0.0
    %4203 = vmatpush1.msra.mxu0 0.0
    %4204 = vmatprep.subr.mxu0 0.0
    %4205 = vmatpush1.msra.mxu0 %v1081
    %4206 = vmatprep.subr.mxu0 0.0
    %4207 = vmatpush1.msra.mxu0 %v1080
    %4208 = vmatprep.subr.mxu0 0.0
    %4209 = vmatpush1.msra.mxu0 %v1079
    %4210 = vmatprep.subr.mxu0 0.0
    %4211 = vmatpush1.msra.mxu0 %v1078
    %4212 = vmatprep.subr.mxu0 0.0
    %4213 = vmatpush2.msra.mxu0 0.0
    %4214 = vmatprep.subr.mxu0 0.0
    %4215 = vmatpush2.msra.mxu0 0.0
    %4216 = vmatprep.subr.mxu0 0.0
    %4217 = vmatpush2.msra.mxu0 0.0
    %4218 = vmatprep.subr.mxu0 0.0
    %4219 = vmatpush2.msra.mxu0 0.0
    %4220 = vmatprep.subr.mxu0 0.0
    %4221 = vmatpush2.msra.mxu0 0.0
    %4222 = vmatprep.subr.mxu0 0.0
    %4223 = vmatpush2.msra.mxu0 0.0
    %4224 = vmatprep.subr.mxu0 0.0
    %4225 = vmatpush2.msra.mxu0 0.0
    %4226 = vmatprep.subr.mxu0 0.0
    %4227 = vmatpush2.msra.mxu0 0.0
    %4228 = vmatprep.subr.mxu0 0.0
    %4229 = vmatpush2.msra.mxu0 0.0
    %4230 = vmatprep.subr.mxu0 0.0
    %4231 = vmatpush2.msra.mxu0 0.0
    %4232 = vmatprep.subr.mxu0 0.0
    %4233 = vmatpush2.msra.mxu0 0.0
    %4234 = vmatprep.subr.mxu0 0.0
    %4235 = vmatpush2.msra.mxu0 0.0
    %4236 = vmatprep.subr.mxu0 0.0
    %4237 = vmatpush2.msra.mxu0 0.0
    %4238 = vmatprep.subr.mxu0 0.0
    %4239 = vmatpush2.msra.mxu0 0.0
    %4240 = vmatprep.subr.mxu0 0.0
    %4241 = vmatpush2.msra.mxu0 0.0
    %4242 = vmatprep.subr.mxu0 0.0
    %4243 = vmatpush2.msra.mxu0 0.0
    %4244 = vmatprep.mubr.f32.mxu0 0.0
    %4245 = vmatmul.mubr.f32.gmra.mxu0 %v4175
    %v4246 = vpop.f32.mrf.mxu0
    %v4247 = vadd.f32 %v4172, %v4246
    %v4248 = vpop.f32.mrf.mxu0
    %4249 = vmatprep.mubr.f32.mxu0 0.0
    %4250 = vmatmul.mubr.f32.gmra.mxu0 %v4178
    %v4251 = vpop.f32.mrf.mxu0
    %v4252 = vadd.f32 %v4172, %v4251
    %v4253 = vpop.f32.mrf.mxu0
    %4254 = vdwg.mxu0
    %v4256 = vlaneseq
    %v4257 = vshrl.u32 %v4256, 7
    %v4258 = vsub.s32 0, %v4257
    %v4259 = vrot.slane %v1087, %v4258
    %v4262 = vsel %vm1293, %v3290, 0
    %v4265 = vsel %vm1293, %v3291, 0
    %4267 = vmatprep.subr.mxu0 0.0
    %4268 = vmatpush1.msra.mxu0 0.0
    %4269 = vmatprep.subr.mxu0 0.0
    %4270 = vmatpush1.msra.mxu0 0.0
    %4271 = vmatprep.subr.mxu0 0.0
    %4272 = vmatpush1.msra.mxu0 0.0
    %4273 = vmatprep.subr.mxu0 0.0
    %4274 = vmatpush1.msra.mxu0 0.0
    %4275 = vmatprep.subr.mxu0 0.0
    %4276 = vmatpush1.msra.mxu0 0.0
    %4277 = vmatprep.subr.mxu0 0.0
    %4278 = vmatpush1.msra.mxu0 0.0
    %4279 = vmatprep.subr.mxu0 0.0
    %4280 = vmatpush1.msra.mxu0 0.0
    %4281 = vmatprep.subr.mxu0 0.0
    %4282 = vmatpush1.msra.mxu0 0.0
    %4283 = vmatprep.subr.mxu0 0.0
    %4284 = vmatpush1.msra.mxu0 0.0
    %4285 = vmatprep.subr.mxu0 0.0
    %4286 = vmatpush1.msra.mxu0 0.0
    %4287 = vmatprep.subr.mxu0 0.0
    %4288 = vmatpush1.msra.mxu0 0.0
    %4289 = vmatprep.subr.mxu0 0.0
    %4290 = vmatpush1.msra.mxu0 0.0
    %4291 = vmatprep.subr.mxu0 0.0
    %4292 = vmatpush1.msra.mxu0 %v1086
    %4293 = vmatprep.subr.mxu0 0.0
    %4294 = vmatpush1.msra.mxu0 %v1085
    %4295 = vmatprep.subr.mxu0 0.0
    %4296 = vmatpush1.msra.mxu0 %v1084
    %4297 = vmatprep.subr.mxu0 0.0
    %4298 = vmatpush1.msra.mxu0 %v1083
    %4299 = vmatprep.subr.mxu0 0.0
    %4300 = vmatpush2.msra.mxu0 0.0
    %4301 = vmatprep.subr.mxu0 0.0
    %4302 = vmatpush2.msra.mxu0 0.0
    %4303 = vmatprep.subr.mxu0 0.0
    %4304 = vmatpush2.msra.mxu0 0.0
    %4305 = vmatprep.subr.mxu0 0.0
    %4306 = vmatpush2.msra.mxu0 0.0
    %4307 = vmatprep.subr.mxu0 0.0
    %4308 = vmatpush2.msra.mxu0 0.0
    %4309 = vmatprep.subr.mxu0 0.0
    %4310 = vmatpush2.msra.mxu0 0.0
    %4311 = vmatprep.subr.mxu0 0.0
    %4312 = vmatpush2.msra.mxu0 0.0
    %4313 = vmatprep.subr.mxu0 0.0
    %4314 = vmatpush2.msra.mxu0 0.0
    %4315 = vmatprep.subr.mxu0 0.0
    %4316 = vmatpush2.msra.mxu0 0.0
    %4317 = vmatprep.subr.mxu0 0.0
    %4318 = vmatpush2.msra.mxu0 0.0
    %4319 = vmatprep.subr.mxu0 0.0
    %4320 = vmatpush2.msra.mxu0 0.0
    %4321 = vmatprep.subr.mxu0 0.0
    %4322 = vmatpush2.msra.mxu0 0.0
    %4323 = vmatprep.subr.mxu0 0.0
    %4324 = vmatpush2.msra.mxu0 0.0
    %4325 = vmatprep.subr.mxu0 0.0
    %4326 = vmatpush2.msra.mxu0 0.0
    %4327 = vmatprep.subr.mxu0 0.0
    %4328 = vmatpush2.msra.mxu0 0.0
    %4329 = vmatprep.subr.mxu0 0.0
    %4330 = vmatpush2.msra.mxu0 0.0
    %4331 = vmatprep.mubr.f32.mxu0 0.0
    %4332 = vmatmul.mubr.f32.gmra.mxu0 %v4262
    %v4333 = vpop.f32.mrf.mxu0
    %v4334 = vadd.f32 %v4259, %v4333
    %v4335 = vpop.f32.mrf.mxu0
    %4336 = vmatprep.mubr.f32.mxu0 0.0
    %4337 = vmatmul.mubr.f32.gmra.mxu0 %v4265
    %v4338 = vpop.f32.mrf.mxu0
    %v4339 = vadd.f32 %v4259, %v4338
    %v4340 = vpop.f32.mrf.mxu0
    %4341 = vdwg.mxu0
    %v4343 = vlaneseq
    %v4344 = vshrl.u32 %v4343, 7
    %v4345 = vsub.s32 0, %v4344
    %v4346 = vrot.slane %v1090, %v4345
    %v4348 = vadd.f32 %v4346, %v4166
    %v4349 = vadd.f32 %v4346, %v4167
    %v4351 = vsel %vm1464, %v4247, 0
    %v4354 = vsel %vm1464, %v4252, 0
    %v4357 = vsel %vm1464, %v4334, 0
    %v4360 = vsel %vm1464, %v4339, 0
    %4362 = vmatprep.subr.mxu0 0.0
    %4363 = vmatpush1.xpose.msra.mxu0 0.0
    %4364 = vmatprep.subr.mxu0 0.0
    %4365 = vmatpush1.xpose.msra.mxu0 0.0
    %4366 = vmatprep.subr.mxu0 0.0
    %4367 = vmatpush1.xpose.msra.mxu0 0.0
    %4368 = vmatprep.subr.mxu0 0.0
    %4369 = vmatpush1.xpose.msra.mxu0 0.0
    %4370 = vmatprep.subr.mxu0 0.0
    %4371 = vmatpush1.xpose.msra.mxu0 0.0
    %4372 = vmatprep.subr.mxu0 0.0
    %4373 = vmatpush1.xpose.msra.mxu0 0.0
    %4374 = vmatprep.subr.mxu0 0.0
    %4375 = vmatpush1.xpose.msra.mxu0 0.0
    %4376 = vmatprep.subr.mxu0 0.0
    %4377 = vmatpush1.xpose.msra.mxu0 0.0
    %4378 = vmatprep.subr.mxu0 0.0
    %4379 = vmatpush1.xpose.msra.mxu0 0.0
    %4380 = vmatprep.subr.mxu0 0.0
    %4381 = vmatpush1.xpose.msra.mxu0 0.0
    %4382 = vmatprep.subr.mxu0 0.0
    %4383 = vmatpush1.xpose.msra.mxu0 0.0
    %4384 = vmatprep.subr.mxu0 0.0
    %4385 = vmatpush1.xpose.msra.mxu0 0.0
    %4386 = vmatprep.subr.mxu0 0.0
    %4387 = vmatpush1.xpose.msra.mxu0 0.0
    %4388 = vmatprep.subr.mxu0 0.0
    %4389 = vmatpush1.xpose.msra.mxu0 0.0
    %4390 = vmatprep.subr.mxu0 0.0
    %4391 = vmatpush1.xpose.msra.mxu0 %v4360
    %4392 = vmatprep.subr.mxu0 0.0
    %4393 = vmatpush1.xpose.msra.mxu0 %v4357
    %4394 = vmatprep.subr.mxu0 0.0
    %4395 = vmatpush2.xpose.msra.mxu0 0.0
    %4396 = vmatprep.subr.mxu0 0.0
    %4397 = vmatpush2.xpose.msra.mxu0 0.0
    %4398 = vmatprep.subr.mxu0 0.0
    %4399 = vmatpush2.xpose.msra.mxu0 0.0
    %4400 = vmatprep.subr.mxu0 0.0
    %4401 = vmatpush2.xpose.msra.mxu0 0.0
    %4402 = vmatprep.subr.mxu0 0.0
    %4403 = vmatpush2.xpose.msra.mxu0 0.0
    %4404 = vmatprep.subr.mxu0 0.0
    %4405 = vmatpush2.xpose.msra.mxu0 0.0
    %4406 = vmatprep.subr.mxu0 0.0
    %4407 = vmatpush2.xpose.msra.mxu0 0.0
    %4408 = vmatprep.subr.mxu0 0.0
    %4409 = vmatpush2.xpose.msra.mxu0 0.0
    %4410 = vmatprep.subr.mxu0 0.0
    %4411 = vmatpush2.xpose.msra.mxu0 0.0
    %4412 = vmatprep.subr.mxu0 0.0
    %4413 = vmatpush2.xpose.msra.mxu0 0.0
    %4414 = vmatprep.subr.mxu0 0.0
    %4415 = vmatpush2.xpose.msra.mxu0 0.0
    %4416 = vmatprep.subr.mxu0 0.0
    %4417 = vmatpush2.xpose.msra.mxu0 0.0
    %4418 = vmatprep.subr.mxu0 0.0
    %4419 = vmatpush2.xpose.msra.mxu0 0.0
    %4420 = vmatprep.subr.mxu0 0.0
    %4421 = vmatpush2.xpose.msra.mxu0 0.0
    %4422 = vmatprep.subr.mxu0 0.0
    %4423 = vmatpush2.xpose.msra.mxu0 0.0
    %4424 = vmatprep.subr.mxu0 0.0
    %4425 = vmatpush2.xpose.msra.mxu0 0.0
    %4426 = vmatprep.mubr.f32.mxu0 0.0
    %4427 = vmatmul.mubr.f32.gmra.mxu0 %v4351
    %v4428 = vpop.f32.mrf.mxu0
    %v4429 = vadd.f32 %v995, %v4428
    %v4430 = vpop.f32.mrf.mxu0
    %4431 = vmatprep.mubr.f32.mxu0 0.0
    %4432 = vmatmul.mubr.f32.gmra.mxu0 %v4354
    %v4433 = vpop.f32.mrf.mxu0
    %v4434 = vadd.f32 %v996, %v4433
    %v4435 = vpop.f32.mrf.mxu0
    %4436 = vdwg.mxu0
    %v4437 = vsel %vm1552, %v4429, -inf
    %4438 = vmax.xlane.f32.xlu0 %v4437
    %v4439 = vpop.xlane.xlu0 %4438
    %v4440 = vsel %vm1552, %v4434, -inf
    %4441 = vmax.xlane.f32.xlu0 %v4440
    %v4442 = vpop.xlane.xlu0 %4441
    %v4443 = vsub.f32 %v4429, %v4439
    %v4444 = vsub.f32 %v4434, %v4442
    %v4445 = vmul.f32 %v4443, 1.442695
    %v4446 = vpow.pop %v4445
    %v4447 = vmul.f32 %v4444, 1.442695
    %v4448 = vpow.pop %v4447
    %v4449 = vsel %vm1552, %v4446, 0.0
    %4450 = vadd.xlane.f32.xlu0 %v4449
    %v4451 = vpop.xlane.xlu0 %4450
    %v4452 = vsel %vm1552, %v4448, 0.0
    %4453 = vadd.xlane.f32.xlu0 %v4452
    %v4454 = vpop.xlane.xlu0 %4453
    %v4455 = vrcp.pop %v4451
    %v4456 = vrcp.pop %v4454
    %v4457 = vmul.f32 %v4446, %v4455
    %v4458 = vmul.f32 %v4448, %v4456
    %4459 = vrot.lane.b32.xlu0 %v4334, 112
    %v4460 = vpop.permute.xlu0 %4459
    %4461 = vrot.lane.b32.xlu0 %v4339, 112
    %v4462 = vpop.permute.xlu0 %4461
    %v4466 = vsel %vm1552, %v4457, 0
    %v4469 = vsel %vm1552, %v4458, 0
    %4471 = vmatprep.subr.mxu0 0.0
    %4472 = vmatpush1.msra.mxu0 0.0
    %4473 = vmatprep.subr.mxu0 0.0
    %4474 = vmatpush1.msra.mxu0 0.0
    %4475 = vmatprep.subr.mxu0 0.0
    %4476 = vmatpush1.msra.mxu0 0.0
    %4477 = vmatprep.subr.mxu0 0.0
    %4478 = vmatpush1.msra.mxu0 0.0
    %4479 = vmatprep.subr.mxu0 0.0
    %4480 = vmatpush1.msra.mxu0 0.0
    %4481 = vmatprep.subr.mxu0 0.0
    %4482 = vmatpush1.msra.mxu0 0.0
    %4483 = vmatprep.subr.mxu0 0.0
    %4484 = vmatpush1.msra.mxu0 0.0
    %4485 = vmatprep.subr.mxu0 0.0
    %4486 = vmatpush1.msra.mxu0 0.0
    %4487 = vmatprep.subr.mxu0 0.0
    %4488 = vmatpush1.msra.mxu0 0.0
    %4489 = vmatprep.subr.mxu0 0.0
    %4490 = vmatpush1.msra.mxu0 0.0
    %4491 = vmatprep.subr.mxu0 0.0
    %4492 = vmatpush1.msra.mxu0 0.0
    %4493 = vmatprep.subr.mxu0 0.0
    %4494 = vmatpush1.msra.mxu0 0.0
    %4495 = vmatprep.subr.mxu0 0.0
    %4496 = vmatpush1.msra.mxu0 0.0
    %4497 = vmatprep.subr.mxu0 0.0
    %4498 = vmatpush1.msra.mxu0 0.0
    %4499 = vmatprep.subr.mxu0 0.0
    %4500 = vmatpush1.msra.mxu0 %v4462
    %4501 = vmatprep.subr.mxu0 0.0
    %4502 = vmatpush1.msra.mxu0 %v4460
    %4503 = vmatprep.subr.mxu0 0.0
    %4504 = vmatpush2.msra.mxu0 0.0
    %4505 = vmatprep.subr.mxu0 0.0
    %4506 = vmatpush2.msra.mxu0 0.0
    %4507 = vmatprep.subr.mxu0 0.0
    %4508 = vmatpush2.msra.mxu0 0.0
    %4509 = vmatprep.subr.mxu0 0.0
    %4510 = vmatpush2.msra.mxu0 0.0
    %4511 = vmatprep.subr.mxu0 0.0
    %4512 = vmatpush2.msra.mxu0 0.0
    %4513 = vmatprep.subr.mxu0 0.0
    %4514 = vmatpush2.msra.mxu0 0.0
    %4515 = vmatprep.subr.mxu0 0.0
    %4516 = vmatpush2.msra.mxu0 0.0
    %4517 = vmatprep.subr.mxu0 0.0
    %4518 = vmatpush2.msra.mxu0 0.0
    %4519 = vmatprep.subr.mxu0 0.0
    %4520 = vmatpush2.msra.mxu0 0.0
    %4521 = vmatprep.subr.mxu0 0.0
    %4522 = vmatpush2.msra.mxu0 0.0
    %4523 = vmatprep.subr.mxu0 0.0
    %4524 = vmatpush2.msra.mxu0 0.0
    %4525 = vmatprep.subr.mxu0 0.0
    %4526 = vmatpush2.msra.mxu0 0.0
    %4527 = vmatprep.subr.mxu0 0.0
    %4528 = vmatpush2.msra.mxu0 0.0
    %4529 = vmatprep.subr.mxu0 0.0
    %4530 = vmatpush2.msra.mxu0 0.0
    %4531 = vmatprep.subr.mxu0 0.0
    %4532 = vmatpush2.msra.mxu0 0.0
    %4533 = vmatprep.subr.mxu0 0.0
    %4534 = vmatpush2.msra.mxu0 0.0
    %4535 = vmatprep.mubr.f32.mxu0 0.0
    %4536 = vmatmul.mubr.f32.gmra.mxu0 %v4466
    %v4537 = vpop.f32.mrf.mxu0
    %v4538 = vadd.f32 0.0, %v4537
    %v4539 = vpop.f32.mrf.mxu0
    %4540 = vmatprep.mubr.f32.mxu0 0.0
    %4541 = vmatmul.mubr.f32.gmra.mxu0 %v4469
    %v4542 = vpop.f32.mrf.mxu0
    %v4543 = vadd.f32 0.0, %v4542
    %v4544 = vpop.f32.mrf.mxu0
    %4545 = vdwg.mxu0
    %v4547 = vsel %vm1464, %v4538, 0
    %v4550 = vsel %vm1464, %v4543, 0
    %4552 = vmatprep.subr.mxu0 0.0
    %4553 = vmatpush1.msra.mxu0 0.0
    %4554 = vmatprep.subr.mxu0 0.0
    %4555 = vmatpush1.msra.mxu0 0.0
    %4556 = vmatprep.subr.mxu0 0.0
    %4557 = vmatpush1.msra.mxu0 0.0
    %4558 = vmatprep.subr.mxu0 0.0
    %4559 = vmatpush1.msra.mxu0 0.0
    %4560 = vmatprep.subr.mxu0 0.0
    %4561 = vmatpush1.msra.mxu0 0.0
    %4562 = vmatprep.subr.mxu0 0.0
    %4563 = vmatpush1.msra.mxu0 0.0
    %4564 = vmatprep.subr.mxu0 0.0
    %4565 = vmatpush1.msra.mxu0 0.0
    %4566 = vmatprep.subr.mxu0 0.0
    %4567 = vmatpush1.msra.mxu0 0.0
    %4568 = vmatprep.subr.mxu0 0.0
    %4569 = vmatpush1.msra.mxu0 0.0
    %4570 = vmatprep.subr.mxu0 0.0
    %4571 = vmatpush1.msra.mxu0 0.0
    %4572 = vmatprep.subr.mxu0 0.0
    %4573 = vmatpush1.msra.mxu0 0.0
    %4574 = vmatprep.subr.mxu0 0.0
    %4575 = vmatpush1.msra.mxu0 0.0
    %4576 = vmatprep.subr.mxu0 0.0
    %4577 = vmatpush1.msra.mxu0 0.0
    %4578 = vmatprep.subr.mxu0 0.0
    %4579 = vmatpush1.msra.mxu0 0.0
    %4580 = vmatprep.subr.mxu0 0.0
    %4581 = vmatpush1.msra.mxu0 0.0
    %4582 = vmatprep.subr.mxu0 0.0
    %4583 = vmatpush1.msra.mxu0 %v1088
    %4584 = vmatprep.subr.mxu0 0.0
    %4585 = vmatpush2.msra.mxu0 0.0
    %4586 = vmatprep.subr.mxu0 0.0
    %4587 = vmatpush2.msra.mxu0 0.0
    %4588 = vmatprep.subr.mxu0 0.0
    %4589 = vmatpush2.msra.mxu0 0.0
    %4590 = vmatprep.subr.mxu0 0.0
    %4591 = vmatpush2.msra.mxu0 0.0
    %4592 = vmatprep.subr.mxu0 0.0
    %4593 = vmatpush2.msra.mxu0 0.0
    %4594 = vmatprep.subr.mxu0 0.0
    %4595 = vmatpush2.msra.mxu0 0.0
    %4596 = vmatprep.subr.mxu0 0.0
    %4597 = vmatpush2.msra.mxu0 0.0
    %4598 = vmatprep.subr.mxu0 0.0
    %4599 = vmatpush2.msra.mxu0 0.0
    %4600 = vmatprep.subr.mxu0 0.0
    %4601 = vmatpush2.msra.mxu0 0.0
    %4602 = vmatprep.subr.mxu0 0.0
    %4603 = vmatpush2.msra.mxu0 0.0
    %4604 = vmatprep.subr.mxu0 0.0
    %4605 = vmatpush2.msra.mxu0 0.0
    %4606 = vmatprep.subr.mxu0 0.0
    %4607 = vmatpush2.msra.mxu0 0.0
    %4608 = vmatprep.subr.mxu0 0.0
    %4609 = vmatpush2.msra.mxu0 0.0
    %4610 = vmatprep.subr.mxu0 0.0
    %4611 = vmatpush2.msra.mxu0 0.0
    %4612 = vmatprep.subr.mxu0 0.0
    %4613 = vmatpush2.msra.mxu0 0.0
    %4614 = vmatprep.subr.mxu0 0.0
    %4615 = vmatpush2.msra.mxu0 0.0
    %4616 = vmatprep.mubr.f32.mxu0 0.0
    %4617 = vmatmul.mubr.f32.gmra.mxu0 %v4547
    %v4618 = vpop.f32.mrf.mxu0
    %v4619 = vadd.f32 0.0, %v4618
    %v4620 = vpop.f32.mrf.mxu0
    %4621 = vmatprep.mubr.f32.mxu0 0.0
    %4622 = vmatmul.mubr.f32.gmra.mxu0 %v4550
    %v4623 = vpop.f32.mrf.mxu0
    %v4624 = vadd.f32 0.0, %v4623
    %v4625 = vpop.f32.mrf.mxu0
    %4626 = vdwg.mxu0
    %v4627 = vadd.f32 %v4348, %v4619
    %v4628 = vadd.f32 %v4349, %v4624
    %4629 = vrot.lane.b32.xlu0 %v4247, 120
    %v4630 = vpop.permute.xlu0 %4629
    %4631 = vrot.lane.b32.xlu0 %v4252, 120
    %v4632 = vpop.permute.xlu0 %4631
    %4633 = vrot.lane.b32.xlu0 %v4334, 120
    %v4634 = vpop.permute.xlu0 %4633
    %4635 = vrot.lane.b32.xlu0 %v4339, 120
    %v4636 = vpop.permute.xlu0 %4635
    %v4637 = vsel %vm1464, %v4630, 0
    %v4639 = vsel %vm1464, %v4632, 0
    %v4641 = vsel %vm1464, %v4634, 0
    %v4643 = vsel %vm1464, %v4636, 0
    %4645 = vmatprep.subr.mxu0 0.0
    %4646 = vmatpush1.xpose.msra.mxu0 0.0
    %4647 = vmatprep.subr.mxu0 0.0
    %4648 = vmatpush1.xpose.msra.mxu0 0.0
    %4649 = vmatprep.subr.mxu0 0.0
    %4650 = vmatpush1.xpose.msra.mxu0 0.0
    %4651 = vmatprep.subr.mxu0 0.0
    %4652 = vmatpush1.xpose.msra.mxu0 0.0
    %4653 = vmatprep.subr.mxu0 0.0
    %4654 = vmatpush1.xpose.msra.mxu0 0.0
    %4655 = vmatprep.subr.mxu0 0.0
    %4656 = vmatpush1.xpose.msra.mxu0 0.0
    %4657 = vmatprep.subr.mxu0 0.0
    %4658 = vmatpush1.xpose.msra.mxu0 0.0
    %4659 = vmatprep.subr.mxu0 0.0
    %4660 = vmatpush1.xpose.msra.mxu0 0.0
    %4661 = vmatprep.subr.mxu0 0.0
    %4662 = vmatpush1.xpose.msra.mxu0 0.0
    %4663 = vmatprep.subr.mxu0 0.0
    %4664 = vmatpush1.xpose.msra.mxu0 0.0
    %4665 = vmatprep.subr.mxu0 0.0
    %4666 = vmatpush1.xpose.msra.mxu0 0.0
    %4667 = vmatprep.subr.mxu0 0.0
    %4668 = vmatpush1.xpose.msra.mxu0 0.0
    %4669 = vmatprep.subr.mxu0 0.0
    %4670 = vmatpush1.xpose.msra.mxu0 0.0
    %4671 = vmatprep.subr.mxu0 0.0
    %4672 = vmatpush1.xpose.msra.mxu0 0.0
    %4673 = vmatprep.subr.mxu0 0.0
    %4674 = vmatpush1.xpose.msra.mxu0 %v4643
    %4675 = vmatprep.subr.mxu0 0.0
    %4676 = vmatpush1.xpose.msra.mxu0 %v4641
    %4677 = vmatprep.subr.mxu0 0.0
    %4678 = vmatpush2.xpose.msra.mxu0 0.0
    %4679 = vmatprep.subr.mxu0 0.0
    %4680 = vmatpush2.xpose.msra.mxu0 0.0
    %4681 = vmatprep.subr.mxu0 0.0
    %4682 = vmatpush2.xpose.msra.mxu0 0.0
    %4683 = vmatprep.subr.mxu0 0.0
    %4684 = vmatpush2.xpose.msra.mxu0 0.0
    %4685 = vmatprep.subr.mxu0 0.0
    %4686 = vmatpush2.xpose.msra.mxu0 0.0
    %4687 = vmatprep.subr.mxu0 0.0
    %4688 = vmatpush2.xpose.msra.mxu0 0.0
    %4689 = vmatprep.subr.mxu0 0.0
    %4690 = vmatpush2.xpose.msra.mxu0 0.0
    %4691 = vmatprep.subr.mxu0 0.0
    %4692 = vmatpush2.xpose.msra.mxu0 0.0
    %4693 = vmatprep.subr.mxu0 0.0
    %4694 = vmatpush2.xpose.msra.mxu0 0.0
    %4695 = vmatprep.subr.mxu0 0.0
    %4696 = vmatpush2.xpose.msra.mxu0 0.0
    %4697 = vmatprep.subr.mxu0 0.0
    %4698 = vmatpush2.xpose.msra.mxu0 0.0
    %4699 = vmatprep.subr.mxu0 0.0
    %4700 = vmatpush2.xpose.msra.mxu0 0.0
    %4701 = vmatprep.subr.mxu0 0.0
    %4702 = vmatpush2.xpose.msra.mxu0 0.0
    %4703 = vmatprep.subr.mxu0 0.0
    %4704 = vmatpush2.xpose.msra.mxu0 0.0
    %4705 = vmatprep.subr.mxu0 0.0
    %4706 = vmatpush2.xpose.msra.mxu0 0.0
    %4707 = vmatprep.subr.mxu0 0.0
    %4708 = vmatpush2.xpose.msra.mxu0 0.0
    %4709 = vmatprep.mubr.f32.mxu0 0.0
    %4710 = vmatmul.mubr.f32.gmra.mxu0 %v4637
    %v4711 = vpop.f32.mrf.mxu0
    %v4712 = vadd.f32 %v995, %v4711
    %v4713 = vpop.f32.mrf.mxu0
    %4714 = vmatprep.mubr.f32.mxu0 0.0
    %4715 = vmatmul.mubr.f32.gmra.mxu0 %v4639
    %v4716 = vpop.f32.mrf.mxu0
    %v4717 = vadd.f32 %v996, %v4716
    %v4718 = vpop.f32.mrf.mxu0
    %4719 = vdwg.mxu0
    %v4720 = vsel %vm1552, %v4712, -inf
    %4721 = vmax.xlane.f32.xlu0 %v4720
    %v4722 = vpop.xlane.xlu0 %4721
    %v4723 = vsel %vm1552, %v4717, -inf
    %4724 = vmax.xlane.f32.xlu0 %v4723
    %v4725 = vpop.xlane.xlu0 %4724
    %v4726 = vsub.f32 %v4712, %v4722
    %v4727 = vsub.f32 %v4717, %v4725
    %v4728 = vmul.f32 %v4726, 1.442695
    %v4729 = vpow.pop %v4728
    %v4730 = vmul.f32 %v4727, 1.442695
    %v4731 = vpow.pop %v4730
    %v4732 = vsel %vm1552, %v4729, 0.0
    %4733 = vadd.xlane.f32.xlu0 %v4732
    %v4734 = vpop.xlane.xlu0 %4733
    %v4735 = vsel %vm1552, %v4731, 0.0
    %4736 = vadd.xlane.f32.xlu0 %v4735
    %v4737 = vpop.xlane.xlu0 %4736
    %v4738 = vrcp.pop %v4734
    %v4739 = vrcp.pop %v4737
    %v4740 = vmul.f32 %v4729, %v4738
    %v4741 = vmul.f32 %v4731, %v4739
    %4742 = vrot.lane.b32.xlu0 %v4334, 104
    %v4743 = vpop.permute.xlu0 %4742
    %4744 = vrot.lane.b32.xlu0 %v4339, 104
    %v4745 = vpop.permute.xlu0 %4744
    %v4749 = vsel %vm1552, %v4740, 0
    %v4752 = vsel %vm1552, %v4741, 0
    %4754 = vmatprep.subr.mxu0 0.0
    %4755 = vmatpush1.msra.mxu0 0.0
    %4756 = vmatprep.subr.mxu0 0.0
    %4757 = vmatpush1.msra.mxu0 0.0
    %4758 = vmatprep.subr.mxu0 0.0
    %4759 = vmatpush1.msra.mxu0 0.0
    %4760 = vmatprep.subr.mxu0 0.0
    %4761 = vmatpush1.msra.mxu0 0.0
    %4762 = vmatprep.subr.mxu0 0.0
    %4763 = vmatpush1.msra.mxu0 0.0
    %4764 = vmatprep.subr.mxu0 0.0
    %4765 = vmatpush1.msra.mxu0 0.0
    %4766 = vmatprep.subr.mxu0 0.0
    %4767 = vmatpush1.msra.mxu0 0.0
    %4768 = vmatprep.subr.mxu0 0.0
    %4769 = vmatpush1.msra.mxu0 0.0
    %4770 = vmatprep.subr.mxu0 0.0
    %4771 = vmatpush1.msra.mxu0 0.0
    %4772 = vmatprep.subr.mxu0 0.0
    %4773 = vmatpush1.msra.mxu0 0.0
    %4774 = vmatprep.subr.mxu0 0.0
    %4775 = vmatpush1.msra.mxu0 0.0
    %4776 = vmatprep.subr.mxu0 0.0
    %4777 = vmatpush1.msra.mxu0 0.0
    %4778 = vmatprep.subr.mxu0 0.0
    %4779 = vmatpush1.msra.mxu0 0.0
    %4780 = vmatprep.subr.mxu0 0.0
    %4781 = vmatpush1.msra.mxu0 0.0
    %4782 = vmatprep.subr.mxu0 0.0
    %4783 = vmatpush1.msra.mxu0 %v4745
    %4784 = vmatprep.subr.mxu0 0.0
    %4785 = vmatpush1.msra.mxu0 %v4743
    %4786 = vmatprep.subr.mxu0 0.0
    %4787 = vmatpush2.msra.mxu0 0.0
    %4788 = vmatprep.subr.mxu0 0.0
    %4789 = vmatpush2.msra.mxu0 0.0
    %4790 = vmatprep.subr.mxu0 0.0
    %4791 = vmatpush2.msra.mxu0 0.0
    %4792 = vmatprep.subr.mxu0 0.0
    %4793 = vmatpush2.msra.mxu0 0.0
    %4794 = vmatprep.subr.mxu0 0.0
    %4795 = vmatpush2.msra.mxu0 0.0
    %4796 = vmatprep.subr.mxu0 0.0
    %4797 = vmatpush2.msra.mxu0 0.0
    %4798 = vmatprep.subr.mxu0 0.0
    %4799 = vmatpush2.msra.mxu0 0.0
    %4800 = vmatprep.subr.mxu0 0.0
    %4801 = vmatpush2.msra.mxu0 0.0
    %4802 = vmatprep.subr.mxu0 0.0
    %4803 = vmatpush2.msra.mxu0 0.0
    %4804 = vmatprep.subr.mxu0 0.0
    %4805 = vmatpush2.msra.mxu0 0.0
    %4806 = vmatprep.subr.mxu0 0.0
    %4807 = vmatpush2.msra.mxu0 0.0
    %4808 = vmatprep.subr.mxu0 0.0
    %4809 = vmatpush2.msra.mxu0 0.0
    %4810 = vmatprep.subr.mxu0 0.0
    %4811 = vmatpush2.msra.mxu0 0.0
    %4812 = vmatprep.subr.mxu0 0.0
    %4813 = vmatpush2.msra.mxu0 0.0
    %4814 = vmatprep.subr.mxu0 0.0
    %4815 = vmatpush2.msra.mxu0 0.0
    %4816 = vmatprep.subr.mxu0 0.0
    %4817 = vmatpush2.msra.mxu0 0.0
    %4818 = vmatprep.mubr.f32.mxu0 0.0
    %4819 = vmatmul.mubr.f32.gmra.mxu0 %v4749
    %v4820 = vpop.f32.mrf.mxu0
    %v4821 = vadd.f32 0.0, %v4820
    %v4822 = vpop.f32.mrf.mxu0
    %4823 = vmatprep.mubr.f32.mxu0 0.0
    %4824 = vmatmul.mubr.f32.gmra.mxu0 %v4752
    %v4825 = vpop.f32.mrf.mxu0
    %v4826 = vadd.f32 0.0, %v4825
    %v4827 = vpop.f32.mrf.mxu0
    %4828 = vdwg.mxu0
    %v4830 = vsel %vm1464, %v4821, 0
    %v4833 = vsel %vm1464, %v4826, 0
    %4835 = vmatprep.subr.mxu0 0.0
    %4836 = vmatpush1.msra.mxu0 0.0
    %4837 = vmatprep.subr.mxu0 0.0
    %4838 = vmatpush1.msra.mxu0 0.0
    %4839 = vmatprep.subr.mxu0 0.0
    %4840 = vmatpush1.msra.mxu0 0.0
    %4841 = vmatprep.subr.mxu0 0.0
    %4842 = vmatpush1.msra.mxu0 0.0
    %4843 = vmatprep.subr.mxu0 0.0
    %4844 = vmatpush1.msra.mxu0 0.0
    %4845 = vmatprep.subr.mxu0 0.0
    %4846 = vmatpush1.msra.mxu0 0.0
    %4847 = vmatprep.subr.mxu0 0.0
    %4848 = vmatpush1.msra.mxu0 0.0
    %4849 = vmatprep.subr.mxu0 0.0
    %4850 = vmatpush1.msra.mxu0 0.0
    %4851 = vmatprep.subr.mxu0 0.0
    %4852 = vmatpush1.msra.mxu0 0.0
    %4853 = vmatprep.subr.mxu0 0.0
    %4854 = vmatpush1.msra.mxu0 0.0
    %4855 = vmatprep.subr.mxu0 0.0
    %4856 = vmatpush1.msra.mxu0 0.0
    %4857 = vmatprep.subr.mxu0 0.0
    %4858 = vmatpush1.msra.mxu0 0.0
    %4859 = vmatprep.subr.mxu0 0.0
    %4860 = vmatpush1.msra.mxu0 0.0
    %4861 = vmatprep.subr.mxu0 0.0
    %4862 = vmatpush1.msra.mxu0 0.0
    %4863 = vmatprep.subr.mxu0 0.0
    %4864 = vmatpush1.msra.mxu0 0.0
    %4865 = vmatprep.subr.mxu0 0.0
    %4866 = vmatpush1.msra.mxu0 %v1089
    %4867 = vmatprep.subr.mxu0 0.0
    %4868 = vmatpush2.msra.mxu0 0.0
    %4869 = vmatprep.subr.mxu0 0.0
    %4870 = vmatpush2.msra.mxu0 0.0
    %4871 = vmatprep.subr.mxu0 0.0
    %4872 = vmatpush2.msra.mxu0 0.0
    %4873 = vmatprep.subr.mxu0 0.0
    %4874 = vmatpush2.msra.mxu0 0.0
    %4875 = vmatprep.subr.mxu0 0.0
    %4876 = vmatpush2.msra.mxu0 0.0
    %4877 = vmatprep.subr.mxu0 0.0
    %4878 = vmatpush2.msra.mxu0 0.0
    %4879 = vmatprep.subr.mxu0 0.0
    %4880 = vmatpush2.msra.mxu0 0.0
    %4881 = vmatprep.subr.mxu0 0.0
    %4882 = vmatpush2.msra.mxu0 0.0
    %4883 = vmatprep.subr.mxu0 0.0
    %4884 = vmatpush2.msra.mxu0 0.0
    %4885 = vmatprep.subr.mxu0 0.0
    %4886 = vmatpush2.msra.mxu0 0.0
    %4887 = vmatprep.subr.mxu0 0.0
    %4888 = vmatpush2.msra.mxu0 0.0
    %4889 = vmatprep.subr.mxu0 0.0
    %4890 = vmatpush2.msra.mxu0 0.0
    %4891 = vmatprep.subr.mxu0 0.0
    %4892 = vmatpush2.msra.mxu0 0.0
    %4893 = vmatprep.subr.mxu0 0.0
    %4894 = vmatpush2.msra.mxu0 0.0
    %4895 = vmatprep.subr.mxu0 0.0
    %4896 = vmatpush2.msra.mxu0 0.0
    %4897 = vmatprep.subr.mxu0 0.0
    %4898 = vmatpush2.msra.mxu0 0.0
    %4899 = vmatprep.mubr.f32.mxu0 0.0
    %4900 = vmatmul.mubr.f32.gmra.mxu0 %v4830
    %v4901 = vpop.f32.mrf.mxu0
    %v4902 = vadd.f32 0.0, %v4901
    %v4903 = vpop.f32.mrf.mxu0
    %4904 = vmatprep.mubr.f32.mxu0 0.0
    %4905 = vmatmul.mubr.f32.gmra.mxu0 %v4833
    %v4906 = vpop.f32.mrf.mxu0
    %v4907 = vadd.f32 0.0, %v4906
    %v4908 = vpop.f32.mrf.mxu0
    %4909 = vdwg.mxu0
    %v4910 = vadd.f32 %v4627, %v4902
    %v4911 = vadd.f32 %v4628, %v4907
    %v4912 = vsel %vm1293, %v4910, 0.0
    %4913 = vadd.xlane.f32.xlu0 %v4912
    %v4914 = vpop.xlane.xlu0 %4913
    %v4915 = vsel %vm1293, %v4911, 0.0
    %4916 = vadd.xlane.f32.xlu0 %v4915
    %v4917 = vpop.xlane.xlu0 %4916
    %v4918 = vmul.f32 %v4914, %v2034
    %v4919 = vmul.f32 %v4917, %v2034
    %v4920 = vsub.f32 %v4910, %v4918
    %v4921 = vsub.f32 %v4911, %v4919
    %v4922 = vmul.f32 %v4920, %v4920
    %v4923 = vmul.f32 %v4921, %v4921
    %v4924 = vsel %vm1293, %v4922, 0.0
    %4925 = vadd.xlane.f32.xlu0 %v4924
    %v4926 = vpop.xlane.xlu0 %4925
    %v4927 = vsel %vm1293, %v4923, 0.0
    %4928 = vadd.xlane.f32.xlu0 %v4927
    %v4929 = vpop.xlane.xlu0 %4928
    %v4930 = vmul.f32 %v4926, %v2034
    %v4931 = vmul.f32 %v4929, %v2034
    %v4932 = vadd.f32 %v4930, 1e-05
    %v4933 = vadd.f32 %v4931, 1e-05
    %v4934 = vrsqrt.pop %v4932
    %v4935 = vrsqrt.pop %v4933
    %v4936 = vmul.f32 %v4920, %v4934
    %v4937 = vmul.f32 %v4921, %v4935
    %v4939 = vlaneseq
    %v4940 = vshrl.u32 %v4939, 7
    %v4941 = vsub.s32 0, %v4940
    %v4942 = vrot.slane %v1091, %v4941
    %v4944 = vmul.f32 %v4936, %v4942
    %v4945 = vmul.f32 %v4937, %v4942
    %v4947 = vlaneseq
    %v4948 = vshrl.u32 %v4947, 7
    %v4949 = vsub.s32 0, %v4948
    %v4950 = vrot.slane %v1092, %v4949
    %v4952 = vadd.f32 %v4944, %v4950
    %v4953 = vadd.f32 %v4945, %v4950
    %v4955 = vlaneseq
    %v4956 = vshrl.u32 %v4955, 7
    %v4957 = vsub.s32 0, %v4956
    %v4958 = vrot.slane %v1097, %v4957
    %v4961 = vsel %vm1293, %v4952, 0
    %v4964 = vsel %vm1293, %v4953, 0
    %4966 = vmatprep.subr.mxu0 0.0
    %4967 = vmatpush1.msra.mxu0 0.0
    %4968 = vmatprep.subr.mxu0 0.0
    %4969 = vmatpush1.msra.mxu0 0.0
    %4970 = vmatprep.subr.mxu0 0.0
    %4971 = vmatpush1.msra.mxu0 0.0
    %4972 = vmatprep.subr.mxu0 0.0
    %4973 = vmatpush1.msra.mxu0 0.0
    %4974 = vmatprep.subr.mxu0 0.0
    %4975 = vmatpush1.msra.mxu0 0.0
    %4976 = vmatprep.subr.mxu0 0.0
    %4977 = vmatpush1.msra.mxu0 0.0
    %4978 = vmatprep.subr.mxu0 0.0
    %4979 = vmatpush1.msra.mxu0 0.0
    %4980 = vmatprep.subr.mxu0 0.0
    %4981 = vmatpush1.msra.mxu0 0.0
    %4982 = vmatprep.subr.mxu0 0.0
    %4983 = vmatpush1.msra.mxu0 0.0
    %4984 = vmatprep.subr.mxu0 0.0
    %4985 = vmatpush1.msra.mxu0 0.0
    %4986 = vmatprep.subr.mxu0 0.0
    %4987 = vmatpush1.msra.mxu0 0.0
    %4988 = vmatprep.subr.mxu0 0.0
    %4989 = vmatpush1.msra.mxu0 0.0
    %4990 = vmatprep.subr.mxu0 0.0
    %4991 = vmatpush1.msra.mxu0 %v1096
    %4992 = vmatprep.subr.mxu0 0.0
    %4993 = vmatpush1.msra.mxu0 %v1095
    %4994 = vmatprep.subr.mxu0 0.0
    %4995 = vmatpush1.msra.mxu0 %v1094
    %4996 = vmatprep.subr.mxu0 0.0
    %4997 = vmatpush1.msra.mxu0 %v1093
    %4998 = vmatprep.subr.mxu0 0.0
    %4999 = vmatpush2.msra.mxu0 0.0
    %5000 = vmatprep.subr.mxu0 0.0
    %5001 = vmatpush2.msra.mxu0 0.0
    %5002 = vmatprep.subr.mxu0 0.0
    %5003 = vmatpush2.msra.mxu0 0.0
    %5004 = vmatprep.subr.mxu0 0.0
    %5005 = vmatpush2.msra.mxu0 0.0
    %5006 = vmatprep.subr.mxu0 0.0
    %5007 = vmatpush2.msra.mxu0 0.0
    %5008 = vmatprep.subr.mxu0 0.0
    %5009 = vmatpush2.msra.mxu0 0.0
    %5010 = vmatprep.subr.mxu0 0.0
    %5011 = vmatpush2.msra.mxu0 0.0
    %5012 = vmatprep.subr.mxu0 0.0
    %5013 = vmatpush2.msra.mxu0 0.0
    %5014 = vmatprep.subr.mxu0 0.0
    %5015 = vmatpush2.msra.mxu0 0.0
    %5016 = vmatprep.subr.mxu0 0.0
    %5017 = vmatpush2.msra.mxu0 0.0
    %5018 = vmatprep.subr.mxu0 0.0
    %5019 = vmatpush2.msra.mxu0 0.0
    %5020 = vmatprep.subr.mxu0 0.0
    %5021 = vmatpush2.msra.mxu0 0.0
    %5022 = vmatprep.subr.mxu0 0.0
    %5023 = vmatpush2.msra.mxu0 0.0
    %5024 = vmatprep.subr.mxu0 0.0
    %5025 = vmatpush2.msra.mxu0 0.0
    %5026 = vmatprep.subr.mxu0 0.0
    %5027 = vmatpush2.msra.mxu0 0.0
    %5028 = vmatprep.subr.mxu0 0.0
    %5029 = vmatpush2.msra.mxu0 0.0
    %5030 = vmatprep.mubr.f32.mxu0 0.0
    %5031 = vmatmul.mubr.f32.gmra.mxu0 %v4961
    %v5032 = vpop.f32.mrf.mxu0
    %v5033 = vadd.f32 %v4958, %v5032
    %v5034 = vpop.f32.mrf.mxu0
    %5035 = vmatprep.mubr.f32.mxu0 0.0
    %5036 = vmatmul.mubr.f32.gmra.mxu0 %v4964
    %v5037 = vpop.f32.mrf.mxu0
    %v5038 = vadd.f32 %v4958, %v5037
    %v5039 = vpop.f32.mrf.mxu0
    %5040 = vdwg.mxu0
    %v5041 = vmax.f32 %v5033, 0.0
    %v5042 = vmax.f32 %v5038, 0.0
    %v5044 = vlaneseq
    %v5045 = vshrl.u32 %v5044, 7
    %v5046 = vsub.s32 0, %v5045
    %v5047 = vrot.slane %v1106, %v5046
    %v5050 = vsel %vm2166, %v5041, 0
    %v5053 = vsel %vm2166, %v5042, 0
    %5055 = vmatprep.subr.mxu0 0.0
    %5056 = vmatpush1.msra.mxu0 0.0
    %5057 = vmatprep.subr.mxu0 0.0
    %5058 = vmatpush1.msra.mxu0 0.0
    %5059 = vmatprep.subr.mxu0 0.0
    %5060 = vmatpush1.msra.mxu0 0.0
    %5061 = vmatprep.subr.mxu0 0.0
    %5062 = vmatpush1.msra.mxu0 0.0
    %5063 = vmatprep.subr.mxu0 0.0
    %5064 = vmatpush1.msra.mxu0 0.0
    %5065 = vmatprep.subr.mxu0 0.0
    %5066 = vmatpush1.msra.mxu0 0.0
    %5067 = vmatprep.subr.mxu0 0.0
    %5068 = vmatpush1.msra.mxu0 0.0
    %5069 = vmatprep.subr.mxu0 0.0
    %5070 = vmatpush1.msra.mxu0 0.0
    %5071 = vmatprep.subr.mxu0 0.0
    %5072 = vmatpush1.msra.mxu0 %v1105
    %5073 = vmatprep.subr.mxu0 0.0
    %5074 = vmatpush1.msra.mxu0 %v1104
    %5075 = vmatprep.subr.mxu0 0.0
    %5076 = vmatpush1.msra.mxu0 %v1103
    %5077 = vmatprep.subr.mxu0 0.0
    %5078 = vmatpush1.msra.mxu0 %v1102
    %5079 = vmatprep.subr.mxu0 0.0
    %5080 = vmatpush1.msra.mxu0 %v1101
    %5081 = vmatprep.subr.mxu0 0.0
    %5082 = vmatpush1.msra.mxu0 %v1100
    %5083 = vmatprep.subr.mxu0 0.0
    %5084 = vmatpush1.msra.mxu0 %v1099
    %5085 = vmatprep.subr.mxu0 0.0
    %5086 = vmatpush1.msra.mxu0 %v1098
    %5087 = vmatprep.subr.mxu0 0.0
    %5088 = vmatpush2.msra.mxu0 0.0
    %5089 = vmatprep.subr.mxu0 0.0
    %5090 = vmatpush2.msra.mxu0 0.0
    %5091 = vmatprep.subr.mxu0 0.0
    %5092 = vmatpush2.msra.mxu0 0.0
    %5093 = vmatprep.subr.mxu0 0.0
    %5094 = vmatpush2.msra.mxu0 0.0
    %5095 = vmatprep.subr.mxu0 0.0
    %5096 = vmatpush2.msra.mxu0 0.0
    %5097 = vmatprep.subr.mxu0 0.0
    %5098 = vmatpush2.msra.mxu0 0.0
    %5099 = vmatprep.subr.mxu0 0.0
    %5100 = vmatpush2.msra.mxu0 0.0
    %5101 = vmatprep.subr.mxu0 0.0
    %5102 = vmatpush2.msra.mxu0 0.0
    %5103 = vmatprep.subr.mxu0 0.0
    %5104 = vmatpush2.msra.mxu0 0.0
    %5105 = vmatprep.subr.mxu0 0.0
    %5106 = vmatpush2.msra.mxu0 0.0
    %5107 = vmatprep.subr.mxu0 0.0
    %5108 = vmatpush2.msra.mxu0 0.0
    %5109 = vmatprep.subr.mxu0 0.0
    %5110 = vmatpush2.msra.mxu0 0.0
    %5111 = vmatprep.subr.mxu0 0.0
    %5112 = vmatpush2.msra.mxu0 0.0
    %5113 = vmatprep.subr.mxu0 0.0
    %5114 = vmatpush2.msra.mxu0 0.0
    %5115 = vmatprep.subr.mxu0 0.0
    %5116 = vmatpush2.msra.mxu0 0.0
    %5117 = vmatprep.subr.mxu0 0.0
    %5118 = vmatpush2.msra.mxu0 0.0
    %5119 = vmatprep.mubr.f32.mxu0 0.0
    %5120 = vmatmul.mubr.f32.gmra.mxu0 %v5050
    %v5121 = vpop.f32.mrf.mxu0
    %v5122 = vadd.f32 %v5047, %v5121
    %v5123 = vpop.f32.mrf.mxu0
    %5124 = vmatprep.mubr.f32.mxu0 0.0
    %5125 = vmatmul.mubr.f32.gmra.mxu0 %v5053
    %v5126 = vpop.f32.mrf.mxu0
    %v5127 = vadd.f32 %v5047, %v5126
    %v5128 = vpop.f32.mrf.mxu0
    %5129 = vdwg.mxu0
    %v5130 = vadd.f32 %v5122, %v4952
    %v5131 = vadd.f32 %v5127, %v4953
    %v5132 = vsel %vm1293, %v5130, 0.0
    %5133 = vadd.xlane.f32.xlu0 %v5132
    %v5134 = vpop.xlane.xlu0 %5133
    %v5135 = vsel %vm1293, %v5131, 0.0
    %5136 = vadd.xlane.f32.xlu0 %v5135
    %v5137 = vpop.xlane.xlu0 %5136
    %v5138 = vmul.f32 %v5134, %v2034
    %v5139 = vmul.f32 %v5137, %v2034
    %v5140 = vsub.f32 %v5130, %v5138
    %v5141 = vsub.f32 %v5131, %v5139
    %v5142 = vmul.f32 %v5140, %v5140
    %v5143 = vmul.f32 %v5141, %v5141
    %v5144 = vsel %vm1293, %v5142, 0.0
    %5145 = vadd.xlane.f32.xlu0 %v5144
    %v5146 = vpop.xlane.xlu0 %5145
    %v5147 = vsel %vm1293, %v5143, 0.0
    %5148 = vadd.xlane.f32.xlu0 %v5147
    %v5149 = vpop.xlane.xlu0 %5148
    %v5150 = vmul.f32 %v5146, %v2034
    %v5151 = vmul.f32 %v5149, %v2034
    %v5152 = vadd.f32 %v5150, 1e-05
    %v5153 = vadd.f32 %v5151, 1e-05
    %v5154 = vrsqrt.pop %v5152
    %v5155 = vrsqrt.pop %v5153
    %v5156 = vmul.f32 %v5140, %v5154
    %v5157 = vmul.f32 %v5141, %v5155
    %v5159 = vlaneseq
    %v5160 = vshrl.u32 %v5159, 7
    %v5161 = vsub.s32 0, %v5160
    %v5162 = vrot.slane %v1107, %v5161
    %v5164 = vmul.f32 %v5156, %v5162
    %v5165 = vmul.f32 %v5157, %v5162
    %v5167 = vlaneseq
    %v5168 = vshrl.u32 %v5167, 7
    %v5169 = vsub.s32 0, %v5168
    %v5170 = vrot.slane %v1108, %v5169
    %v5172 = vadd.f32 %v5164, %v5170
    %v5173 = vadd.f32 %v5165, %v5170
    %v5175 = vlaneseq
    %v5176 = vshrl.u32 %v5175, 7
    %v5177 = vsub.s32 0, %v5176
    %v5178 = vrot.slane %v1113, %v5177
    %v5181 = vsel %vm1293, %v5172, 0
    %v5184 = vsel %vm1293, %v5173, 0
    %5186 = vmatprep.subr.mxu0 0.0
    %5187 = vmatpush1.msra.mxu0 0.0
    %5188 = vmatprep.subr.mxu0 0.0
    %5189 = vmatpush1.msra.mxu0 0.0
    %5190 = vmatprep.subr.mxu0 0.0
    %5191 = vmatpush1.msra.mxu0 0.0
    %5192 = vmatprep.subr.mxu0 0.0
    %5193 = vmatpush1.msra.mxu0 0.0
    %5194 = vmatprep.subr.mxu0 0.0
    %5195 = vmatpush1.msra.mxu0 0.0
    %5196 = vmatprep.subr.mxu0 0.0
    %5197 = vmatpush1.msra.mxu0 0.0
    %5198 = vmatprep.subr.mxu0 0.0
    %5199 = vmatpush1.msra.mxu0 0.0
    %5200 = vmatprep.subr.mxu0 0.0
    %5201 = vmatpush1.msra.mxu0 0.0
    %5202 = vmatprep.subr.mxu0 0.0
    %5203 = vmatpush1.msra.mxu0 0.0
    %5204 = vmatprep.subr.mxu0 0.0
    %5205 = vmatpush1.msra.mxu0 0.0
    %5206 = vmatprep.subr.mxu0 0.0
    %5207 = vmatpush1.msra.mxu0 0.0
    %5208 = vmatprep.subr.mxu0 0.0
    %5209 = vmatpush1.msra.mxu0 0.0
    %5210 = vmatprep.subr.mxu0 0.0
    %5211 = vmatpush1.msra.mxu0 %v1112
    %5212 = vmatprep.subr.mxu0 0.0
    %5213 = vmatpush1.msra.mxu0 %v1111
    %5214 = vmatprep.subr.mxu0 0.0
    %5215 = vmatpush1.msra.mxu0 %v1110
    %5216 = vmatprep.subr.mxu0 0.0
    %5217 = vmatpush1.msra.mxu0 %v1109
    %5218 = vmatprep.subr.mxu0 0.0
    %5219 = vmatpush2.msra.mxu0 0.0
    %5220 = vmatprep.subr.mxu0 0.0
    %5221 = vmatpush2.msra.mxu0 0.0
    %5222 = vmatprep.subr.mxu0 0.0
    %5223 = vmatpush2.msra.mxu0 0.0
    %5224 = vmatprep.subr.mxu0 0.0
    %5225 = vmatpush2.msra.mxu0 0.0
    %5226 = vmatprep.subr.mxu0 0.0
    %5227 = vmatpush2.msra.mxu0 0.0
    %5228 = vmatprep.subr.mxu0 0.0
    %5229 = vmatpush2.msra.mxu0 0.0
    %5230 = vmatprep.subr.mxu0 0.0
    %5231 = vmatpush2.msra.mxu0 0.0
    %5232 = vmatprep.subr.mxu0 0.0
    %5233 = vmatpush2.msra.mxu0 0.0
    %5234 = vmatprep.subr.mxu0 0.0
    %5235 = vmatpush2.msra.mxu0 0.0
    %5236 = vmatprep.subr.mxu0 0.0
    %5237 = vmatpush2.msra.mxu0 0.0
    %5238 = vmatprep.subr.mxu0 0.0
    %5239 = vmatpush2.msra.mxu0 0.0
    %5240 = vmatprep.subr.mxu0 0.0
    %5241 = vmatpush2.msra.mxu0 0.0
    %5242 = vmatprep.subr.mxu0 0.0
    %5243 = vmatpush2.msra.mxu0 0.0
    %5244 = vmatprep.subr.mxu0 0.0
    %5245 = vmatpush2.msra.mxu0 0.0
    %5246 = vmatprep.subr.mxu0 0.0
    %5247 = vmatpush2.msra.mxu0 0.0
    %5248 = vmatprep.subr.mxu0 0.0
    %5249 = vmatpush2.msra.mxu0 0.0
    %5250 = vmatprep.mubr.f32.mxu0 0.0
    %5251 = vmatmul.mubr.f32.gmra.mxu0 %v5181
    %v5252 = vpop.f32.mrf.mxu0
    %v5253 = vadd.f32 %v5178, %v5252
    %v5254 = vpop.f32.mrf.mxu0
    %5255 = vmatprep.mubr.f32.mxu0 0.0
    %5256 = vmatmul.mubr.f32.gmra.mxu0 %v5184
    %v5257 = vpop.f32.mrf.mxu0
    %v5258 = vadd.f32 %v5178, %v5257
    %v5259 = vpop.f32.mrf.mxu0
    %5260 = vdwg.mxu0
    %v5262 = vlaneseq
    %v5263 = vshrl.u32 %v5262, 7
    %v5264 = vsub.s32 0, %v5263
    %v5265 = vrot.slane %v1118, %v5264
    %5267 = vmatprep.subr.mxu0 0.0
    %5268 = vmatpush1.msra.mxu0 0.0
    %5269 = vmatprep.subr.mxu0 0.0
    %5270 = vmatpush1.msra.mxu0 0.0
    %5271 = vmatprep.subr.mxu0 0.0
    %5272 = vmatpush1.msra.mxu0 0.0
    %5273 = vmatprep.subr.mxu0 0.0
    %5274 = vmatpush1.msra.mxu0 0.0
    %5275 = vmatprep.subr.mxu0 0.0
    %5276 = vmatpush1.msra.mxu0 0.0
    %5277 = vmatprep.subr.mxu0 0.0
    %5278 = vmatpush1.msra.mxu0 0.0
    %5279 = vmatprep.subr.mxu0 0.0
    %5280 = vmatpush1.msra.mxu0 0.0
    %5281 = vmatprep.subr.mxu0 0.0
    %5282 = vmatpush1.msra.mxu0 0.0
    %5283 = vmatprep.subr.mxu0 0.0
    %5284 = vmatpush1.msra.mxu0 0.0
    %5285 = vmatprep.subr.mxu0 0.0
    %5286 = vmatpush1.msra.mxu0 0.0
    %5287 = vmatprep.subr.mxu0 0.0
    %5288 = vmatpush1.msra.mxu0 0.0
    %5289 = vmatprep.subr.mxu0 0.0
    %5290 = vmatpush1.msra.mxu0 0.0
    %5291 = vmatprep.subr.mxu0 0.0
    %5292 = vmatpush1.msra.mxu0 %v1117
    %5293 = vmatprep.subr.mxu0 0.0
    %5294 = vmatpush1.msra.mxu0 %v1116
    %5295 = vmatprep.subr.mxu0 0.0
    %5296 = vmatpush1.msra.mxu0 %v1115
    %5297 = vmatprep.subr.mxu0 0.0
    %5298 = vmatpush1.msra.mxu0 %v1114
    %5299 = vmatprep.subr.mxu0 0.0
    %5300 = vmatpush2.msra.mxu0 0.0
    %5301 = vmatprep.subr.mxu0 0.0
    %5302 = vmatpush2.msra.mxu0 0.0
    %5303 = vmatprep.subr.mxu0 0.0
    %5304 = vmatpush2.msra.mxu0 0.0
    %5305 = vmatprep.subr.mxu0 0.0
    %5306 = vmatpush2.msra.mxu0 0.0
    %5307 = vmatprep.subr.mxu0 0.0
    %5308 = vmatpush2.msra.mxu0 0.0
    %5309 = vmatprep.subr.mxu0 0.0
    %5310 = vmatpush2.msra.mxu0 0.0
    %5311 = vmatprep.subr.mxu0 0.0
    %5312 = vmatpush2.msra.mxu0 0.0
    %5313 = vmatprep.subr.mxu0 0.0
    %5314 = vmatpush2.msra.mxu0 0.0
    %5315 = vmatprep.subr.mxu0 0.0
    %5316 = vmatpush2.msra.mxu0 0.0
    %5317 = vmatprep.subr.mxu0 0.0
    %5318 = vmatpush2.msra.mxu0 0.0
    %5319 = vmatprep.subr.mxu0 0.0
    %5320 = vmatpush2.msra.mxu0 0.0
    %5321 = vmatprep.subr.mxu0 0.0
    %5322 = vmatpush2.msra.mxu0 0.0
    %5323 = vmatprep.subr.mxu0 0.0
    %5324 = vmatpush2.msra.mxu0 0.0
    %5325 = vmatprep.subr.mxu0 0.0
    %5326 = vmatpush2.msra.mxu0 0.0
    %5327 = vmatprep.subr.mxu0 0.0
    %5328 = vmatpush2.msra.mxu0 0.0
    %5329 = vmatprep.subr.mxu0 0.0
    %5330 = vmatpush2.msra.mxu0 0.0
    %5331 = vmatprep.mubr.f32.mxu0 0.0
    %5332 = vmatmul.mubr.f32.gmra.mxu0 %v5181
    %v5333 = vpop.f32.mrf.mxu0
    %v5334 = vadd.f32 %v5265, %v5333
    %v5335 = vpop.f32.mrf.mxu0
    %5336 = vmatprep.mubr.f32.mxu0 0.0
    %5337 = vmatmul.mubr.f32.gmra.mxu0 %v5184
    %v5338 = vpop.f32.mrf.mxu0
    %v5339 = vadd.f32 %v5265, %v5338
    %v5340 = vpop.f32.mrf.mxu0
    %5341 = vdwg.mxu0
    %v5343 = vlaneseq
    %v5344 = vshrl.u32 %v5343, 7
    %v5345 = vsub.s32 0, %v5344
    %v5346 = vrot.slane %v1121, %v5345
    %v5348 = vadd.f32 %v5346, %v5172
    %v5349 = vadd.f32 %v5346, %v5173
    %v5351 = vsel %vm1464, %v5253, 0
    %v5354 = vsel %vm1464, %v5258, 0
    %v5357 = vsel %vm1464, %v5334, 0
    %v5360 = vsel %vm1464, %v5339, 0
    %5362 = vmatprep.subr.mxu0 0.0
    %5363 = vmatpush1.xpose.msra.mxu0 0.0
    %5364 = vmatprep.subr.mxu0 0.0
    %5365 = vmatpush1.xpose.msra.mxu0 0.0
    %5366 = vmatprep.subr.mxu0 0.0
    %5367 = vmatpush1.xpose.msra.mxu0 0.0
    %5368 = vmatprep.subr.mxu0 0.0
    %5369 = vmatpush1.xpose.msra.mxu0 0.0
    %5370 = vmatprep.subr.mxu0 0.0
    %5371 = vmatpush1.xpose.msra.mxu0 0.0
    %5372 = vmatprep.subr.mxu0 0.0
    %5373 = vmatpush1.xpose.msra.mxu0 0.0
    %5374 = vmatprep.subr.mxu0 0.0
    %5375 = vmatpush1.xpose.msra.mxu0 0.0
    %5376 = vmatprep.subr.mxu0 0.0
    %5377 = vmatpush1.xpose.msra.mxu0 0.0
    %5378 = vmatprep.subr.mxu0 0.0
    %5379 = vmatpush1.xpose.msra.mxu0 0.0
    %5380 = vmatprep.subr.mxu0 0.0
    %5381 = vmatpush1.xpose.msra.mxu0 0.0
    %5382 = vmatprep.subr.mxu0 0.0
    %5383 = vmatpush1.xpose.msra.mxu0 0.0
    %5384 = vmatprep.subr.mxu0 0.0
    %5385 = vmatpush1.xpose.msra.mxu0 0.0
    %5386 = vmatprep.subr.mxu0 0.0
    %5387 = vmatpush1.xpose.msra.mxu0 0.0
    %5388 = vmatprep.subr.mxu0 0.0
    %5389 = vmatpush1.xpose.msra.mxu0 0.0
    %5390 = vmatprep.subr.mxu0 0.0
    %5391 = vmatpush1.xpose.msra.mxu0 %v5360
    %5392 = vmatprep.subr.mxu0 0.0
    %5393 = vmatpush1.xpose.msra.mxu0 %v5357
    %5394 = vmatprep.subr.mxu0 0.0
    %5395 = vmatpush2.xpose.msra.mxu0 0.0
    %5396 = vmatprep.subr.mxu0 0.0
    %5397 = vmatpush2.xpose.msra.mxu0 0.0
    %5398 = vmatprep.subr.mxu0 0.0
    %5399 = vmatpush2.xpose.msra.mxu0 0.0
    %5400 = vmatprep.subr.mxu0 0.0
    %5401 = vmatpush2.xpose.msra.mxu0 0.0
    %5402 = vmatprep.subr.mxu0 0.0
    %5403 = vmatpush2.xpose.msra.mxu0 0.0
    %5404 = vmatprep.subr.mxu0 0.0
    %5405 = vmatpush2.xpose.msra.mxu0 0.0
    %5406 = vmatprep.subr.mxu0 0.0
    %5407 = vmatpush2.xpose.msra.mxu0 0.0
    %5408 = vmatprep.subr.mxu0 0.0
    %5409 = vmatpush2.xpose.msra.mxu0 0.0
    %5410 = vmatprep.subr.mxu0 0.0
    %5411 = vmatpush2.xpose.msra.mxu0 0.0
    %5412 = vmatprep.subr.mxu0 0.0
    %5413 = vmatpush2.xpose.msra.mxu0 0.0
    %5414 = vmatprep.subr.mxu0 0.0
    %5415 = vmatpush2.xpose.msra.mxu0 0.0
    %5416 = vmatprep.subr.mxu0 0.0
    %5417 = vmatpush2.xpose.msra.mxu0 0.0
    %5418 = vmatprep.subr.mxu0 0.0
    %5419 = vmatpush2.xpose.msra.mxu0 0.0
    %5420 = vmatprep.subr.mxu0 0.0
    %5421 = vmatpush2.xpose.msra.mxu0 0.0
    %5422 = vmatprep.subr.mxu0 0.0
    %5423 = vmatpush2.xpose.msra.mxu0 0.0
    %5424 = vmatprep.subr.mxu0 0.0
    %5425 = vmatpush2.xpose.msra.mxu0 0.0
    %5426 = vmatprep.mubr.f32.mxu0 0.0
    %5427 = vmatmul.mubr.f32.gmra.mxu0 %v5351
    %v5428 = vpop.f32.mrf.mxu0
    %v5429 = vadd.f32 %v993, %v5428
    %v5430 = vpop.f32.mrf.mxu0
    %5431 = vmatprep.mubr.f32.mxu0 0.0
    %5432 = vmatmul.mubr.f32.gmra.mxu0 %v5354
    %v5433 = vpop.f32.mrf.mxu0
    %v5434 = vadd.f32 %v994, %v5433
    %v5435 = vpop.f32.mrf.mxu0
    %5436 = vdwg.mxu0
    %v5437 = vsel %vm1552, %v5429, -inf
    %5438 = vmax.xlane.f32.xlu0 %v5437
    %v5439 = vpop.xlane.xlu0 %5438
    %v5440 = vsel %vm1552, %v5434, -inf
    %5441 = vmax.xlane.f32.xlu0 %v5440
    %v5442 = vpop.xlane.xlu0 %5441
    %v5443 = vsub.f32 %v5429, %v5439
    %v5444 = vsub.f32 %v5434, %v5442
    %v5445 = vmul.f32 %v5443, 1.442695
    %v5446 = vpow.pop %v5445
    %v5447 = vmul.f32 %v5444, 1.442695
    %v5448 = vpow.pop %v5447
    %v5449 = vsel %vm1552, %v5446, 0.0
    %5450 = vadd.xlane.f32.xlu0 %v5449
    %v5451 = vpop.xlane.xlu0 %5450
    %v5452 = vsel %vm1552, %v5448, 0.0
    %5453 = vadd.xlane.f32.xlu0 %v5452
    %v5454 = vpop.xlane.xlu0 %5453
    %v5455 = vrcp.pop %v5451
    %v5456 = vrcp.pop %v5454
    %v5457 = vmul.f32 %v5446, %v5455
    %v5458 = vmul.f32 %v5448, %v5456
    %5459 = vrot.lane.b32.xlu0 %v5334, 112
    %v5460 = vpop.permute.xlu0 %5459
    %5461 = vrot.lane.b32.xlu0 %v5339, 112
    %v5462 = vpop.permute.xlu0 %5461
    %v5466 = vsel %vm1552, %v5457, 0
    %v5469 = vsel %vm1552, %v5458, 0
    %5471 = vmatprep.subr.mxu0 0.0
    %5472 = vmatpush1.msra.mxu0 0.0
    %5473 = vmatprep.subr.mxu0 0.0
    %5474 = vmatpush1.msra.mxu0 0.0
    %5475 = vmatprep.subr.mxu0 0.0
    %5476 = vmatpush1.msra.mxu0 0.0
    %5477 = vmatprep.subr.mxu0 0.0
    %5478 = vmatpush1.msra.mxu0 0.0
    %5479 = vmatprep.subr.mxu0 0.0
    %5480 = vmatpush1.msra.mxu0 0.0
    %5481 = vmatprep.subr.mxu0 0.0
    %5482 = vmatpush1.msra.mxu0 0.0
    %5483 = vmatprep.subr.mxu0 0.0
    %5484 = vmatpush1.msra.mxu0 0.0
    %5485 = vmatprep.subr.mxu0 0.0
    %5486 = vmatpush1.msra.mxu0 0.0
    %5487 = vmatprep.subr.mxu0 0.0
    %5488 = vmatpush1.msra.mxu0 0.0
    %5489 = vmatprep.subr.mxu0 0.0
    %5490 = vmatpush1.msra.mxu0 0.0
    %5491 = vmatprep.subr.mxu0 0.0
    %5492 = vmatpush1.msra.mxu0 0.0
    %5493 = vmatprep.subr.mxu0 0.0
    %5494 = vmatpush1.msra.mxu0 0.0
    %5495 = vmatprep.subr.mxu0 0.0
    %5496 = vmatpush1.msra.mxu0 0.0
    %5497 = vmatprep.subr.mxu0 0.0
    %5498 = vmatpush1.msra.mxu0 0.0
    %5499 = vmatprep.subr.mxu0 0.0
    %5500 = vmatpush1.msra.mxu0 %v5462
    %5501 = vmatprep.subr.mxu0 0.0
    %5502 = vmatpush1.msra.mxu0 %v5460
    %5503 = vmatprep.subr.mxu0 0.0
    %5504 = vmatpush2.msra.mxu0 0.0
    %5505 = vmatprep.subr.mxu0 0.0
    %5506 = vmatpush2.msra.mxu0 0.0
    %5507 = vmatprep.subr.mxu0 0.0
    %5508 = vmatpush2.msra.mxu0 0.0
    %5509 = vmatprep.subr.mxu0 0.0
    %5510 = vmatpush2.msra.mxu0 0.0
    %5511 = vmatprep.subr.mxu0 0.0
    %5512 = vmatpush2.msra.mxu0 0.0
    %5513 = vmatprep.subr.mxu0 0.0
    %5514 = vmatpush2.msra.mxu0 0.0
    %5515 = vmatprep.subr.mxu0 0.0
    %5516 = vmatpush2.msra.mxu0 0.0
    %5517 = vmatprep.subr.mxu0 0.0
    %5518 = vmatpush2.msra.mxu0 0.0
    %5519 = vmatprep.subr.mxu0 0.0
    %5520 = vmatpush2.msra.mxu0 0.0
    %5521 = vmatprep.subr.mxu0 0.0
    %5522 = vmatpush2.msra.mxu0 0.0
    %5523 = vmatprep.subr.mxu0 0.0
    %5524 = vmatpush2.msra.mxu0 0.0
    %5525 = vmatprep.subr.mxu0 0.0
    %5526 = vmatpush2.msra.mxu0 0.0
    %5527 = vmatprep.subr.mxu0 0.0
    %5528 = vmatpush2.msra.mxu0 0.0
    %5529 = vmatprep.subr.mxu0 0.0
    %5530 = vmatpush2.msra.mxu0 0.0
    %5531 = vmatprep.subr.mxu0 0.0
    %5532 = vmatpush2.msra.mxu0 0.0
    %5533 = vmatprep.subr.mxu0 0.0
    %5534 = vmatpush2.msra.mxu0 0.0
    %5535 = vmatprep.mubr.f32.mxu0 0.0
    %5536 = vmatmul.mubr.f32.gmra.mxu0 %v5466
    %v5537 = vpop.f32.mrf.mxu0
    %v5538 = vadd.f32 0.0, %v5537
    %v5539 = vpop.f32.mrf.mxu0
    %5540 = vmatprep.mubr.f32.mxu0 0.0
    %5541 = vmatmul.mubr.f32.gmra.mxu0 %v5469
    %v5542 = vpop.f32.mrf.mxu0
    %v5543 = vadd.f32 0.0, %v5542
    %v5544 = vpop.f32.mrf.mxu0
    %5545 = vdwg.mxu0
    %v5547 = vsel %vm1464, %v5538, 0
    %v5550 = vsel %vm1464, %v5543, 0
    %5552 = vmatprep.subr.mxu0 0.0
    %5553 = vmatpush1.msra.mxu0 0.0
    %5554 = vmatprep.subr.mxu0 0.0
    %5555 = vmatpush1.msra.mxu0 0.0
    %5556 = vmatprep.subr.mxu0 0.0
    %5557 = vmatpush1.msra.mxu0 0.0
    %5558 = vmatprep.subr.mxu0 0.0
    %5559 = vmatpush1.msra.mxu0 0.0
    %5560 = vmatprep.subr.mxu0 0.0
    %5561 = vmatpush1.msra.mxu0 0.0
    %5562 = vmatprep.subr.mxu0 0.0
    %5563 = vmatpush1.msra.mxu0 0.0
    %5564 = vmatprep.subr.mxu0 0.0
    %5565 = vmatpush1.msra.mxu0 0.0
    %5566 = vmatprep.subr.mxu0 0.0
    %5567 = vmatpush1.msra.mxu0 0.0
    %5568 = vmatprep.subr.mxu0 0.0
    %5569 = vmatpush1.msra.mxu0 0.0
    %5570 = vmatprep.subr.mxu0 0.0
    %5571 = vmatpush1.msra.mxu0 0.0
    %5572 = vmatprep.subr.mxu0 0.0
    %5573 = vmatpush1.msra.mxu0 0.0
    %5574 = vmatprep.subr.mxu0 0.0
    %5575 = vmatpush1.msra.mxu0 0.0
    %5576 = vmatprep.subr.mxu0 0.0
    %5577 = vmatpush1.msra.mxu0 0.0
    %5578 = vmatprep.subr.mxu0 0.0
    %5579 = vmatpush1.msra.mxu0 0.0
    %5580 = vmatprep.subr.mxu0 0.0
    %5581 = vmatpush1.msra.mxu0 0.0
    %5582 = vmatprep.subr.mxu0 0.0
    %5583 = vmatpush1.msra.mxu0 %v1119
    %5584 = vmatprep.subr.mxu0 0.0
    %5585 = vmatpush2.msra.mxu0 0.0
    %5586 = vmatprep.subr.mxu0 0.0
    %5587 = vmatpush2.msra.mxu0 0.0
    %5588 = vmatprep.subr.mxu0 0.0
    %5589 = vmatpush2.msra.mxu0 0.0
    %5590 = vmatprep.subr.mxu0 0.0
    %5591 = vmatpush2.msra.mxu0 0.0
    %5592 = vmatprep.subr.mxu0 0.0
    %5593 = vmatpush2.msra.mxu0 0.0
    %5594 = vmatprep.subr.mxu0 0.0
    %5595 = vmatpush2.msra.mxu0 0.0
    %5596 = vmatprep.subr.mxu0 0.0
    %5597 = vmatpush2.msra.mxu0 0.0
    %5598 = vmatprep.subr.mxu0 0.0
    %5599 = vmatpush2.msra.mxu0 0.0
    %5600 = vmatprep.subr.mxu0 0.0
    %5601 = vmatpush2.msra.mxu0 0.0
    %5602 = vmatprep.subr.mxu0 0.0
    %5603 = vmatpush2.msra.mxu0 0.0
    %5604 = vmatprep.subr.mxu0 0.0
    %5605 = vmatpush2.msra.mxu0 0.0
    %5606 = vmatprep.subr.mxu0 0.0
    %5607 = vmatpush2.msra.mxu0 0.0
    %5608 = vmatprep.subr.mxu0 0.0
    %5609 = vmatpush2.msra.mxu0 0.0
    %5610 = vmatprep.subr.mxu0 0.0
    %5611 = vmatpush2.msra.mxu0 0.0
    %5612 = vmatprep.subr.mxu0 0.0
    %5613 = vmatpush2.msra.mxu0 0.0
    %5614 = vmatprep.subr.mxu0 0.0
    %5615 = vmatpush2.msra.mxu0 0.0
    %5616 = vmatprep.mubr.f32.mxu0 0.0
    %5617 = vmatmul.mubr.f32.gmra.mxu0 %v5547
    %v5618 = vpop.f32.mrf.mxu0
    %v5619 = vadd.f32 0.0, %v5618
    %v5620 = vpop.f32.mrf.mxu0
    %5621 = vmatprep.mubr.f32.mxu0 0.0
    %5622 = vmatmul.mubr.f32.gmra.mxu0 %v5550
    %v5623 = vpop.f32.mrf.mxu0
    %v5624 = vadd.f32 0.0, %v5623
    %v5625 = vpop.f32.mrf.mxu0
    %5626 = vdwg.mxu0
    %v5627 = vadd.f32 %v5348, %v5619
    %v5628 = vadd.f32 %v5349, %v5624
    %5629 = vrot.lane.b32.xlu0 %v5253, 120
    %v5630 = vpop.permute.xlu0 %5629
    %5631 = vrot.lane.b32.xlu0 %v5258, 120
    %v5632 = vpop.permute.xlu0 %5631
    %5633 = vrot.lane.b32.xlu0 %v5334, 120
    %v5634 = vpop.permute.xlu0 %5633
    %5635 = vrot.lane.b32.xlu0 %v5339, 120
    %v5636 = vpop.permute.xlu0 %5635
    %v5637 = vsel %vm1464, %v5630, 0
    %v5639 = vsel %vm1464, %v5632, 0
    %v5641 = vsel %vm1464, %v5634, 0
    %v5643 = vsel %vm1464, %v5636, 0
    %5645 = vmatprep.subr.mxu0 0.0
    %5646 = vmatpush1.xpose.msra.mxu0 0.0
    %5647 = vmatprep.subr.mxu0 0.0
    %5648 = vmatpush1.xpose.msra.mxu0 0.0
    %5649 = vmatprep.subr.mxu0 0.0
    %5650 = vmatpush1.xpose.msra.mxu0 0.0
    %5651 = vmatprep.subr.mxu0 0.0
    %5652 = vmatpush1.xpose.msra.mxu0 0.0
    %5653 = vmatprep.subr.mxu0 0.0
    %5654 = vmatpush1.xpose.msra.mxu0 0.0
    %5655 = vmatprep.subr.mxu0 0.0
    %5656 = vmatpush1.xpose.msra.mxu0 0.0
    %5657 = vmatprep.subr.mxu0 0.0
    %5658 = vmatpush1.xpose.msra.mxu0 0.0
    %5659 = vmatprep.subr.mxu0 0.0
    %5660 = vmatpush1.xpose.msra.mxu0 0.0
    %5661 = vmatprep.subr.mxu0 0.0
    %5662 = vmatpush1.xpose.msra.mxu0 0.0
    %5663 = vmatprep.subr.mxu0 0.0
    %5664 = vmatpush1.xpose.msra.mxu0 0.0
    %5665 = vmatprep.subr.mxu0 0.0
    %5666 = vmatpush1.xpose.msra.mxu0 0.0
    %5667 = vmatprep.subr.mxu0 0.0
    %5668 = vmatpush1.xpose.msra.mxu0 0.0
    %5669 = vmatprep.subr.mxu0 0.0
    %5670 = vmatpush1.xpose.msra.mxu0 0.0
    %5671 = vmatprep.subr.mxu0 0.0
    %5672 = vmatpush1.xpose.msra.mxu0 0.0
    %5673 = vmatprep.subr.mxu0 0.0
    %5674 = vmatpush1.xpose.msra.mxu0 %v5643
    %5675 = vmatprep.subr.mxu0 0.0
    %5676 = vmatpush1.xpose.msra.mxu0 %v5641
    %5677 = vmatprep.subr.mxu0 0.0
    %5678 = vmatpush2.xpose.msra.mxu0 0.0
    %5679 = vmatprep.subr.mxu0 0.0
    %5680 = vmatpush2.xpose.msra.mxu0 0.0
    %5681 = vmatprep.subr.mxu0 0.0
    %5682 = vmatpush2.xpose.msra.mxu0 0.0
    %5683 = vmatprep.subr.mxu0 0.0
    %5684 = vmatpush2.xpose.msra.mxu0 0.0
    %5685 = vmatprep.subr.mxu0 0.0
    %5686 = vmatpush2.xpose.msra.mxu0 0.0
    %5687 = vmatprep.subr.mxu0 0.0
    %5688 = vmatpush2.xpose.msra.mxu0 0.0
    %5689 = vmatprep.subr.mxu0 0.0
    %5690 = vmatpush2.xpose.msra.mxu0 0.0
    %5691 = vmatprep.subr.mxu0 0.0
    %5692 = vmatpush2.xpose.msra.mxu0 0.0
    %5693 = vmatprep.subr.mxu0 0.0
    %5694 = vmatpush2.xpose.msra.mxu0 0.0
    %5695 = vmatprep.subr.mxu0 0.0
    %5696 = vmatpush2.xpose.msra.mxu0 0.0
    %5697 = vmatprep.subr.mxu0 0.0
    %5698 = vmatpush2.xpose.msra.mxu0 0.0
    %5699 = vmatprep.subr.mxu0 0.0
    %5700 = vmatpush2.xpose.msra.mxu0 0.0
    %5701 = vmatprep.subr.mxu0 0.0
    %5702 = vmatpush2.xpose.msra.mxu0 0.0
    %5703 = vmatprep.subr.mxu0 0.0
    %5704 = vmatpush2.xpose.msra.mxu0 0.0
    %5705 = vmatprep.subr.mxu0 0.0
    %5706 = vmatpush2.xpose.msra.mxu0 0.0
    %5707 = vmatprep.subr.mxu0 0.0
    %5708 = vmatpush2.xpose.msra.mxu0 0.0
    %5709 = vmatprep.mubr.f32.mxu0 0.0
    %5710 = vmatmul.mubr.f32.gmra.mxu0 %v5637
    %v5711 = vpop.f32.mrf.mxu0
    %v5712 = vadd.f32 %v993, %v5711
    %v5713 = vpop.f32.mrf.mxu0
    %5714 = vmatprep.mubr.f32.mxu0 0.0
    %5715 = vmatmul.mubr.f32.gmra.mxu0 %v5639
    %v5716 = vpop.f32.mrf.mxu0
    %v5717 = vadd.f32 %v994, %v5716
    %v5718 = vpop.f32.mrf.mxu0
    %5719 = vdwg.mxu0
    %v5720 = vsel %vm1552, %v5712, -inf
    %5721 = vmax.xlane.f32.xlu0 %v5720
    %v5722 = vpop.xlane.xlu0 %5721
    %v5723 = vsel %vm1552, %v5717, -inf
    %5724 = vmax.xlane.f32.xlu0 %v5723
    %v5725 = vpop.xlane.xlu0 %5724
    %v5726 = vsub.f32 %v5712, %v5722
    %v5727 = vsub.f32 %v5717, %v5725
    %v5728 = vmul.f32 %v5726, 1.442695
    %v5729 = vpow.pop %v5728
    %v5730 = vmul.f32 %v5727, 1.442695
    %v5731 = vpow.pop %v5730
    %v5732 = vsel %vm1552, %v5729, 0.0
    %5733 = vadd.xlane.f32.xlu0 %v5732
    %v5734 = vpop.xlane.xlu0 %5733
    %v5735 = vsel %vm1552, %v5731, 0.0
    %5736 = vadd.xlane.f32.xlu0 %v5735
    %v5737 = vpop.xlane.xlu0 %5736
    %v5738 = vrcp.pop %v5734
    %v5739 = vrcp.pop %v5737
    %v5740 = vmul.f32 %v5729, %v5738
    %v5741 = vmul.f32 %v5731, %v5739
    %5742 = vrot.lane.b32.xlu0 %v5334, 104
    %v5743 = vpop.permute.xlu0 %5742
    %5744 = vrot.lane.b32.xlu0 %v5339, 104
    %v5745 = vpop.permute.xlu0 %5744
    %v5749 = vsel %vm1552, %v5740, 0
    %v5752 = vsel %vm1552, %v5741, 0
    %5754 = vmatprep.subr.mxu0 0.0
    %5755 = vmatpush1.msra.mxu0 0.0
    %5756 = vmatprep.subr.mxu0 0.0
    %5757 = vmatpush1.msra.mxu0 0.0
    %5758 = vmatprep.subr.mxu0 0.0
    %5759 = vmatpush1.msra.mxu0 0.0
    %5760 = vmatprep.subr.mxu0 0.0
    %5761 = vmatpush1.msra.mxu0 0.0
    %5762 = vmatprep.subr.mxu0 0.0
    %5763 = vmatpush1.msra.mxu0 0.0
    %5764 = vmatprep.subr.mxu0 0.0
    %5765 = vmatpush1.msra.mxu0 0.0
    %5766 = vmatprep.subr.mxu0 0.0
    %5767 = vmatpush1.msra.mxu0 0.0
    %5768 = vmatprep.subr.mxu0 0.0
    %5769 = vmatpush1.msra.mxu0 0.0
    %5770 = vmatprep.subr.mxu0 0.0
    %5771 = vmatpush1.msra.mxu0 0.0
    %5772 = vmatprep.subr.mxu0 0.0
    %5773 = vmatpush1.msra.mxu0 0.0
    %5774 = vmatprep.subr.mxu0 0.0
    %5775 = vmatpush1.msra.mxu0 0.0
    %5776 = vmatprep.subr.mxu0 0.0
    %5777 = vmatpush1.msra.mxu0 0.0
    %5778 = vmatprep.subr.mxu0 0.0
    %5779 = vmatpush1.msra.mxu0 0.0
    %5780 = vmatprep.subr.mxu0 0.0
    %5781 = vmatpush1.msra.mxu0 0.0
    %5782 = vmatprep.subr.mxu0 0.0
    %5783 = vmatpush1.msra.mxu0 %v5745
    %5784 = vmatprep.subr.mxu0 0.0
    %5785 = vmatpush1.msra.mxu0 %v5743
    %5786 = vmatprep.subr.mxu0 0.0
    %5787 = vmatpush2.msra.mxu0 0.0
    %5788 = vmatprep.subr.mxu0 0.0
    %5789 = vmatpush2.msra.mxu0 0.0
    %5790 = vmatprep.subr.mxu0 0.0
    %5791 = vmatpush2.msra.mxu0 0.0
    %5792 = vmatprep.subr.mxu0 0.0
    %5793 = vmatpush2.msra.mxu0 0.0
    %5794 = vmatprep.subr.mxu0 0.0
    %5795 = vmatpush2.msra.mxu0 0.0
    %5796 = vmatprep.subr.mxu0 0.0
    %5797 = vmatpush2.msra.mxu0 0.0
    %5798 = vmatprep.subr.mxu0 0.0
    %5799 = vmatpush2.msra.mxu0 0.0
    %5800 = vmatprep.subr.mxu0 0.0
    %5801 = vmatpush2.msra.mxu0 0.0
    %5802 = vmatprep.subr.mxu0 0.0
    %5803 = vmatpush2.msra.mxu0 0.0
    %5804 = vmatprep.subr.mxu0 0.0
    %5805 = vmatpush2.msra.mxu0 0.0
    %5806 = vmatprep.subr.mxu0 0.0
    %5807 = vmatpush2.msra.mxu0 0.0
    %5808 = vmatprep.subr.mxu0 0.0
    %5809 = vmatpush2.msra.mxu0 0.0
    %5810 = vmatprep.subr.mxu0 0.0
    %5811 = vmatpush2.msra.mxu0 0.0
    %5812 = vmatprep.subr.mxu0 0.0
    %5813 = vmatpush2.msra.mxu0 0.0
    %5814 = vmatprep.subr.mxu0 0.0
    %5815 = vmatpush2.msra.mxu0 0.0
    %5816 = vmatprep.subr.mxu0 0.0
    %5817 = vmatpush2.msra.mxu0 0.0
    %5818 = vmatprep.mubr.f32.mxu0 0.0
    %5819 = vmatmul.mubr.f32.gmra.mxu0 %v5749
    %v5820 = vpop.f32.mrf.mxu0
    %v5821 = vadd.f32 0.0, %v5820
    %v5822 = vpop.f32.mrf.mxu0
    %5823 = vmatprep.mubr.f32.mxu0 0.0
    %5824 = vmatmul.mubr.f32.gmra.mxu0 %v5752
    %v5825 = vpop.f32.mrf.mxu0
    %v5826 = vadd.f32 0.0, %v5825
    %v5827 = vpop.f32.mrf.mxu0
    %5828 = vdwg.mxu0
    %v5830 = vsel %vm1464, %v5821, 0
    %v5833 = vsel %vm1464, %v5826, 0
    %5835 = vmatprep.subr.mxu0 0.0
    %5836 = vmatpush1.msra.mxu0 0.0
    %5837 = vmatprep.subr.mxu0 0.0
    %5838 = vmatpush1.msra.mxu0 0.0
    %5839 = vmatprep.subr.mxu0 0.0
    %5840 = vmatpush1.msra.mxu0 0.0
    %5841 = vmatprep.subr.mxu0 0.0
    %5842 = vmatpush1.msra.mxu0 0.0
    %5843 = vmatprep.subr.mxu0 0.0
    %5844 = vmatpush1.msra.mxu0 0.0
    %5845 = vmatprep.subr.mxu0 0.0
    %5846 = vmatpush1.msra.mxu0 0.0
    %5847 = vmatprep.subr.mxu0 0.0
    %5848 = vmatpush1.msra.mxu0 0.0
    %5849 = vmatprep.subr.mxu0 0.0
    %5850 = vmatpush1.msra.mxu0 0.0
    %5851 = vmatprep.subr.mxu0 0.0
    %5852 = vmatpush1.msra.mxu0 0.0
    %5853 = vmatprep.subr.mxu0 0.0
    %5854 = vmatpush1.msra.mxu0 0.0
    %5855 = vmatprep.subr.mxu0 0.0
    %5856 = vmatpush1.msra.mxu0 0.0
    %5857 = vmatprep.subr.mxu0 0.0
    %5858 = vmatpush1.msra.mxu0 0.0
    %5859 = vmatprep.subr.mxu0 0.0
    %5860 = vmatpush1.msra.mxu0 0.0
    %5861 = vmatprep.subr.mxu0 0.0
    %5862 = vmatpush1.msra.mxu0 0.0
    %5863 = vmatprep.subr.mxu0 0.0
    %5864 = vmatpush1.msra.mxu0 0.0
    %5865 = vmatprep.subr.mxu0 0.0
    %5866 = vmatpush1.msra.mxu0 %v1120
    %5867 = vmatprep.subr.mxu0 0.0
    %5868 = vmatpush2.msra.mxu0 0.0
    %5869 = vmatprep.subr.mxu0 0.0
    %5870 = vmatpush2.msra.mxu0 0.0
    %5871 = vmatprep.subr.mxu0 0.0
    %5872 = vmatpush2.msra.mxu0 0.0
    %5873 = vmatprep.subr.mxu0 0.0
    %5874 = vmatpush2.msra.mxu0 0.0
    %5875 = vmatprep.subr.mxu0 0.0
    %5876 = vmatpush2.msra.mxu0 0.0
    %5877 = vmatprep.subr.mxu0 0.0
    %5878 = vmatpush2.msra.mxu0 0.0
    %5879 = vmatprep.subr.mxu0 0.0
    %5880 = vmatpush2.msra.mxu0 0.0
    %5881 = vmatprep.subr.mxu0 0.0
    %5882 = vmatpush2.msra.mxu0 0.0
    %5883 = vmatprep.subr.mxu0 0.0
    %5884 = vmatpush2.msra.mxu0 0.0
    %5885 = vmatprep.subr.mxu0 0.0
    %5886 = vmatpush2.msra.mxu0 0.0
    %5887 = vmatprep.subr.mxu0 0.0
    %5888 = vmatpush2.msra.mxu0 0.0
    %5889 = vmatprep.subr.mxu0 0.0
    %5890 = vmatpush2.msra.mxu0 0.0
    %5891 = vmatprep.subr.mxu0 0.0
    %5892 = vmatpush2.msra.mxu0 0.0
    %5893 = vmatprep.subr.mxu0 0.0
    %5894 = vmatpush2.msra.mxu0 0.0
    %5895 = vmatprep.subr.mxu0 0.0
    %5896 = vmatpush2.msra.mxu0 0.0
    %5897 = vmatprep.subr.mxu0 0.0
    %5898 = vmatpush2.msra.mxu0 0.0
    %5899 = vmatprep.mubr.f32.mxu0 0.0
    %5900 = vmatmul.mubr.f32.gmra.mxu0 %v5830
    %v5901 = vpop.f32.mrf.mxu0
    %v5902 = vadd.f32 0.0, %v5901
    %v5903 = vpop.f32.mrf.mxu0
    %5904 = vmatprep.mubr.f32.mxu0 0.0
    %5905 = vmatmul.mubr.f32.gmra.mxu0 %v5833
    %v5906 = vpop.f32.mrf.mxu0
    %v5907 = vadd.f32 0.0, %v5906
    %v5908 = vpop.f32.mrf.mxu0
    %5909 = vdwg.mxu0
    %v5910 = vadd.f32 %v5627, %v5902
    %v5911 = vadd.f32 %v5628, %v5907
    %v5912 = vsel %vm1293, %v5910, 0.0
    %5913 = vadd.xlane.f32.xlu0 %v5912
    %v5914 = vpop.xlane.xlu0 %5913
    %v5915 = vsel %vm1293, %v5911, 0.0
    %5916 = vadd.xlane.f32.xlu0 %v5915
    %v5917 = vpop.xlane.xlu0 %5916
    %v5918 = vmul.f32 %v5914, %v2034
    %v5919 = vmul.f32 %v5917, %v2034
    %v5920 = vsub.f32 %v5910, %v5918
    %v5921 = vsub.f32 %v5911, %v5919
    %v5922 = vmul.f32 %v5920, %v5920
    %v5923 = vmul.f32 %v5921, %v5921
    %v5924 = vsel %vm1293, %v5922, 0.0
    %5925 = vadd.xlane.f32.xlu0 %v5924
    %v5926 = vpop.xlane.xlu0 %5925
    %v5927 = vsel %vm1293, %v5923, 0.0
    %5928 = vadd.xlane.f32.xlu0 %v5927
    %v5929 = vpop.xlane.xlu0 %5928
    %v5930 = vmul.f32 %v5926, %v2034
    %v5931 = vmul.f32 %v5929, %v2034
    %v5932 = vadd.f32 %v5930, 1e-05
    %v5933 = vadd.f32 %v5931, 1e-05
    %v5934 = vrsqrt.pop %v5932
    %v5935 = vrsqrt.pop %v5933
    %v5936 = vmul.f32 %v5920, %v5934
    %v5937 = vmul.f32 %v5921, %v5935
    %v5939 = vlaneseq
    %v5940 = vshrl.u32 %v5939, 7
    %v5941 = vsub.s32 0, %v5940
    %v5942 = vrot.slane %v1122, %v5941
    %v5944 = vmul.f32 %v5936, %v5942
    %v5945 = vmul.f32 %v5937, %v5942
    %v5947 = vlaneseq
    %v5948 = vshrl.u32 %v5947, 7
    %v5949 = vsub.s32 0, %v5948
    %v5950 = vrot.slane %v1123, %v5949
    %v5952 = vadd.f32 %v5944, %v5950
    %v5953 = vadd.f32 %v5945, %v5950
    %v5955 = vlaneseq
    %v5956 = vshrl.u32 %v5955, 7
    %v5957 = vsub.s32 0, %v5956
    %v5958 = vrot.slane %v1128, %v5957
    %v5961 = vsel %vm1293, %v5952, 0
    %v5964 = vsel %vm1293, %v5953, 0
    %5966 = vmatprep.subr.mxu0 0.0
    %5967 = vmatpush1.msra.mxu0 0.0
    %5968 = vmatprep.subr.mxu0 0.0
    %5969 = vmatpush1.msra.mxu0 0.0
    %5970 = vmatprep.subr.mxu0 0.0
    %5971 = vmatpush1.msra.mxu0 0.0
    %5972 = vmatprep.subr.mxu0 0.0
    %5973 = vmatpush1.msra.mxu0 0.0
    %5974 = vmatprep.subr.mxu0 0.0
    %5975 = vmatpush1.msra.mxu0 0.0
    %5976 = vmatprep.subr.mxu0 0.0
    %5977 = vmatpush1.msra.mxu0 0.0
    %5978 = vmatprep.subr.mxu0 0.0
    %5979 = vmatpush1.msra.mxu0 0.0
    %5980 = vmatprep.subr.mxu0 0.0
    %5981 = vmatpush1.msra.mxu0 0.0
    %5982 = vmatprep.subr.mxu0 0.0
    %5983 = vmatpush1.msra.mxu0 0.0
    %5984 = vmatprep.subr.mxu0 0.0
    %5985 = vmatpush1.msra.mxu0 0.0
    %5986 = vmatprep.subr.mxu0 0.0
    %5987 = vmatpush1.msra.mxu0 0.0
    %5988 = vmatprep.subr.mxu0 0.0
    %5989 = vmatpush1.msra.mxu0 0.0
    %5990 = vmatprep.subr.mxu0 0.0
    %5991 = vmatpush1.msra.mxu0 %v1127
    %5992 = vmatprep.subr.mxu0 0.0
    %5993 = vmatpush1.msra.mxu0 %v1126
    %5994 = vmatprep.subr.mxu0 0.0
    %5995 = vmatpush1.msra.mxu0 %v1125
    %5996 = vmatprep.subr.mxu0 0.0
    %5997 = vmatpush1.msra.mxu0 %v1124
    %5998 = vmatprep.subr.mxu0 0.0
    %5999 = vmatpush2.msra.mxu0 0.0
    %6000 = vmatprep.subr.mxu0 0.0
    %6001 = vmatpush2.msra.mxu0 0.0
    %6002 = vmatprep.subr.mxu0 0.0
    %6003 = vmatpush2.msra.mxu0 0.0
    %6004 = vmatprep.subr.mxu0 0.0
    %6005 = vmatpush2.msra.mxu0 0.0
    %6006 = vmatprep.subr.mxu0 0.0
    %6007 = vmatpush2.msra.mxu0 0.0
    %6008 = vmatprep.subr.mxu0 0.0
    %6009 = vmatpush2.msra.mxu0 0.0
    %6010 = vmatprep.subr.mxu0 0.0
    %6011 = vmatpush2.msra.mxu0 0.0
    %6012 = vmatprep.subr.mxu0 0.0
    %6013 = vmatpush2.msra.mxu0 0.0
    %6014 = vmatprep.subr.mxu0 0.0
    %6015 = vmatpush2.msra.mxu0 0.0
    %6016 = vmatprep.subr.mxu0 0.0
    %6017 = vmatpush2.msra.mxu0 0.0
    %6018 = vmatprep.subr.mxu0 0.0
    %6019 = vmatpush2.msra.mxu0 0.0
    %6020 = vmatprep.subr.mxu0 0.0
    %6021 = vmatpush2.msra.mxu0 0.0
    %6022 = vmatprep.subr.mxu0 0.0
    %6023 = vmatpush2.msra.mxu0 0.0
    %6024 = vmatprep.subr.mxu0 0.0
    %6025 = vmatpush2.msra.mxu0 0.0
    %6026 = vmatprep.subr.mxu0 0.0
    %6027 = vmatpush2.msra.mxu0 0.0
    %6028 = vmatprep.subr.mxu0 0.0
    %6029 = vmatpush2.msra.mxu0 0.0
    %6030 = vmatprep.mubr.f32.mxu0 0.0
    %6031 = vmatmul.mubr.f32.gmra.mxu0 %v5961
    %v6032 = vpop.f32.mrf.mxu0
    %v6033 = vadd.f32 %v5958, %v6032
    %v6034 = vpop.f32.mrf.mxu0
    %6035 = vmatprep.mubr.f32.mxu0 0.0
    %6036 = vmatmul.mubr.f32.gmra.mxu0 %v5964
    %v6037 = vpop.f32.mrf.mxu0
    %v6038 = vadd.f32 %v5958, %v6037
    %v6039 = vpop.f32.mrf.mxu0
    %6040 = vdwg.mxu0
    %v6042 = vlaneseq
    %v6043 = vshrl.u32 %v6042, 7
    %v6044 = vsub.s32 0, %v6043
    %v6045 = vrot.slane %v1133, %v6044
    %6047 = vmatprep.subr.mxu0 0.0
    %6048 = vmatpush1.msra.mxu0 0.0
    %6049 = vmatprep.subr.mxu0 0.0
    %6050 = vmatpush1.msra.mxu0 0.0
    %6051 = vmatprep.subr.mxu0 0.0
    %6052 = vmatpush1.msra.mxu0 0.0
    %6053 = vmatprep.subr.mxu0 0.0
    %6054 = vmatpush1.msra.mxu0 0.0
    %6055 = vmatprep.subr.mxu0 0.0
    %6056 = vmatpush1.msra.mxu0 0.0
    %6057 = vmatprep.subr.mxu0 0.0
    %6058 = vmatpush1.msra.mxu0 0.0
    %6059 = vmatprep.subr.mxu0 0.0
    %6060 = vmatpush1.msra.mxu0 0.0
    %6061 = vmatprep.subr.mxu0 0.0
    %6062 = vmatpush1.msra.mxu0 0.0
    %6063 = vmatprep.subr.mxu0 0.0
    %6064 = vmatpush1.msra.mxu0 0.0
    %6065 = vmatprep.subr.mxu0 0.0
    %6066 = vmatpush1.msra.mxu0 0.0
    %6067 = vmatprep.subr.mxu0 0.0
    %6068 = vmatpush1.msra.mxu0 0.0
    %6069 = vmatprep.subr.mxu0 0.0
    %6070 = vmatpush1.msra.mxu0 0.0
    %6071 = vmatprep.subr.mxu0 0.0
    %6072 = vmatpush1.msra.mxu0 %v1132
    %6073 = vmatprep.subr.mxu0 0.0
    %6074 = vmatpush1.msra.mxu0 %v1131
    %6075 = vmatprep.subr.mxu0 0.0
    %6076 = vmatpush1.msra.mxu0 %v1130
    %6077 = vmatprep.subr.mxu0 0.0
    %6078 = vmatpush1.msra.mxu0 %v1129
    %6079 = vmatprep.subr.mxu0 0.0
    %6080 = vmatpush2.msra.mxu0 0.0
    %6081 = vmatprep.subr.mxu0 0.0
    %6082 = vmatpush2.msra.mxu0 0.0
    %6083 = vmatprep.subr.mxu0 0.0
    %6084 = vmatpush2.msra.mxu0 0.0
    %6085 = vmatprep.subr.mxu0 0.0
    %6086 = vmatpush2.msra.mxu0 0.0
    %6087 = vmatprep.subr.mxu0 0.0
    %6088 = vmatpush2.msra.mxu0 0.0
    %6089 = vmatprep.subr.mxu0 0.0
    %6090 = vmatpush2.msra.mxu0 0.0
    %6091 = vmatprep.subr.mxu0 0.0
    %6092 = vmatpush2.msra.mxu0 0.0
    %6093 = vmatprep.subr.mxu0 0.0
    %6094 = vmatpush2.msra.mxu0 0.0
    %6095 = vmatprep.subr.mxu0 0.0
    %6096 = vmatpush2.msra.mxu0 0.0
    %6097 = vmatprep.subr.mxu0 0.0
    %6098 = vmatpush2.msra.mxu0 0.0
    %6099 = vmatprep.subr.mxu0 0.0
    %6100 = vmatpush2.msra.mxu0 0.0
    %6101 = vmatprep.subr.mxu0 0.0
    %6102 = vmatpush2.msra.mxu0 0.0
    %6103 = vmatprep.subr.mxu0 0.0
    %6104 = vmatpush2.msra.mxu0 0.0
    %6105 = vmatprep.subr.mxu0 0.0
    %6106 = vmatpush2.msra.mxu0 0.0
    %6107 = vmatprep.subr.mxu0 0.0
    %6108 = vmatpush2.msra.mxu0 0.0
    %6109 = vmatprep.subr.mxu0 0.0
    %6110 = vmatpush2.msra.mxu0 0.0
    %6111 = vmatprep.mubr.f32.mxu0 0.0
    %6112 = vmatmul.mubr.f32.gmra.mxu0 %v4262
    %v6113 = vpop.f32.mrf.mxu0
    %v6114 = vadd.f32 %v6045, %v6113
    %v6115 = vpop.f32.mrf.mxu0
    %6116 = vmatprep.mubr.f32.mxu0 0.0
    %6117 = vmatmul.mubr.f32.gmra.mxu0 %v4265
    %v6118 = vpop.f32.mrf.mxu0
    %v6119 = vadd.f32 %v6045, %v6118
    %v6120 = vpop.f32.mrf.mxu0
    %6121 = vdwg.mxu0
    %v6123 = vlaneseq
    %v6124 = vshrl.u32 %v6123, 7
    %v6125 = vsub.s32 0, %v6124
    %v6126 = vrot.slane %v1136, %v6125
    %v6128 = vadd.f32 %v6126, %v5952
    %v6129 = vadd.f32 %v6126, %v5953
    %v6131 = vsel %vm1464, %v6033, 0
    %v6134 = vsel %vm1464, %v6038, 0
    %v6137 = vsel %vm1464, %v6114, 0
    %v6140 = vsel %vm1464, %v6119, 0
    %6142 = vmatprep.subr.mxu0 0.0
    %6143 = vmatpush1.xpose.msra.mxu0 0.0
    %6144 = vmatprep.subr.mxu0 0.0
    %6145 = vmatpush1.xpose.msra.mxu0 0.0
    %6146 = vmatprep.subr.mxu0 0.0
    %6147 = vmatpush1.xpose.msra.mxu0 0.0
    %6148 = vmatprep.subr.mxu0 0.0
    %6149 = vmatpush1.xpose.msra.mxu0 0.0
    %6150 = vmatprep.subr.mxu0 0.0
    %6151 = vmatpush1.xpose.msra.mxu0 0.0
    %6152 = vmatprep.subr.mxu0 0.0
    %6153 = vmatpush1.xpose.msra.mxu0 0.0
    %6154 = vmatprep.subr.mxu0 0.0
    %6155 = vmatpush1.xpose.msra.mxu0 0.0
    %6156 = vmatprep.subr.mxu0 0.0
    %6157 = vmatpush1.xpose.msra.mxu0 0.0
    %6158 = vmatprep.subr.mxu0 0.0
    %6159 = vmatpush1.xpose.msra.mxu0 0.0
    %6160 = vmatprep.subr.mxu0 0.0
    %6161 = vmatpush1.xpose.msra.mxu0 0.0
    %6162 = vmatprep.subr.mxu0 0.0
    %6163 = vmatpush1.xpose.msra.mxu0 0.0
    %6164 = vmatprep.subr.mxu0 0.0
    %6165 = vmatpush1.xpose.msra.mxu0 0.0
    %6166 = vmatprep.subr.mxu0 0.0
    %6167 = vmatpush1.xpose.msra.mxu0 0.0
    %6168 = vmatprep.subr.mxu0 0.0
    %6169 = vmatpush1.xpose.msra.mxu0 0.0
    %6170 = vmatprep.subr.mxu0 0.0
    %6171 = vmatpush1.xpose.msra.mxu0 %v6140
    %6172 = vmatprep.subr.mxu0 0.0
    %6173 = vmatpush1.xpose.msra.mxu0 %v6137
    %6174 = vmatprep.subr.mxu0 0.0
    %6175 = vmatpush2.xpose.msra.mxu0 0.0
    %6176 = vmatprep.subr.mxu0 0.0
    %6177 = vmatpush2.xpose.msra.mxu0 0.0
    %6178 = vmatprep.subr.mxu0 0.0
    %6179 = vmatpush2.xpose.msra.mxu0 0.0
    %6180 = vmatprep.subr.mxu0 0.0
    %6181 = vmatpush2.xpose.msra.mxu0 0.0
    %6182 = vmatprep.subr.mxu0 0.0
    %6183 = vmatpush2.xpose.msra.mxu0 0.0
    %6184 = vmatprep.subr.mxu0 0.0
    %6185 = vmatpush2.xpose.msra.mxu0 0.0
    %6186 = vmatprep.subr.mxu0 0.0
    %6187 = vmatpush2.xpose.msra.mxu0 0.0
    %6188 = vmatprep.subr.mxu0 0.0
    %6189 = vmatpush2.xpose.msra.mxu0 0.0
    %6190 = vmatprep.subr.mxu0 0.0
    %6191 = vmatpush2.xpose.msra.mxu0 0.0
    %6192 = vmatprep.subr.mxu0 0.0
    %6193 = vmatpush2.xpose.msra.mxu0 0.0
    %6194 = vmatprep.subr.mxu0 0.0
    %6195 = vmatpush2.xpose.msra.mxu0 0.0
    %6196 = vmatprep.subr.mxu0 0.0
    %6197 = vmatpush2.xpose.msra.mxu0 0.0
    %6198 = vmatprep.subr.mxu0 0.0
    %6199 = vmatpush2.xpose.msra.mxu0 0.0
    %6200 = vmatprep.subr.mxu0 0.0
    %6201 = vmatpush2.xpose.msra.mxu0 0.0
    %6202 = vmatprep.subr.mxu0 0.0
    %6203 = vmatpush2.xpose.msra.mxu0 0.0
    %6204 = vmatprep.subr.mxu0 0.0
    %6205 = vmatpush2.xpose.msra.mxu0 0.0
    %6206 = vmatprep.mubr.f32.mxu0 0.0
    %6207 = vmatmul.mubr.f32.gmra.mxu0 %v6131
    %v6208 = vpop.f32.mrf.mxu0
    %v6209 = vadd.f32 %v995, %v6208
    %v6210 = vpop.f32.mrf.mxu0
    %6211 = vmatprep.mubr.f32.mxu0 0.0
    %6212 = vmatmul.mubr.f32.gmra.mxu0 %v6134
    %v6213 = vpop.f32.mrf.mxu0
    %v6214 = vadd.f32 %v996, %v6213
    %v6215 = vpop.f32.mrf.mxu0
    %6216 = vdwg.mxu0
    %v6217 = vsel %vm1552, %v6209, -inf
    %6218 = vmax.xlane.f32.xlu0 %v6217
    %v6219 = vpop.xlane.xlu0 %6218
    %v6220 = vsel %vm1552, %v6214, -inf
    %6221 = vmax.xlane.f32.xlu0 %v6220
    %v6222 = vpop.xlane.xlu0 %6221
    %v6223 = vsub.f32 %v6209, %v6219
    %v6224 = vsub.f32 %v6214, %v6222
    %v6225 = vmul.f32 %v6223, 1.442695
    %v6226 = vpow.pop %v6225
    %v6227 = vmul.f32 %v6224, 1.442695
    %v6228 = vpow.pop %v6227
    %v6229 = vsel %vm1552, %v6226, 0.0
    %6230 = vadd.xlane.f32.xlu0 %v6229
    %v6231 = vpop.xlane.xlu0 %6230
    %v6232 = vsel %vm1552, %v6228, 0.0
    %6233 = vadd.xlane.f32.xlu0 %v6232
    %v6234 = vpop.xlane.xlu0 %6233
    %v6235 = vrcp.pop %v6231
    %v6236 = vrcp.pop %v6234
    %v6237 = vmul.f32 %v6226, %v6235
    %v6238 = vmul.f32 %v6228, %v6236
    %6239 = vrot.lane.b32.xlu0 %v6114, 112
    %v6240 = vpop.permute.xlu0 %6239
    %6241 = vrot.lane.b32.xlu0 %v6119, 112
    %v6242 = vpop.permute.xlu0 %6241
    %v6246 = vsel %vm1552, %v6237, 0
    %v6249 = vsel %vm1552, %v6238, 0
    %6251 = vmatprep.subr.mxu0 0.0
    %6252 = vmatpush1.msra.mxu0 0.0
    %6253 = vmatprep.subr.mxu0 0.0
    %6254 = vmatpush1.msra.mxu0 0.0
    %6255 = vmatprep.subr.mxu0 0.0
    %6256 = vmatpush1.msra.mxu0 0.0
    %6257 = vmatprep.subr.mxu0 0.0
    %6258 = vmatpush1.msra.mxu0 0.0
    %6259 = vmatprep.subr.mxu0 0.0
    %6260 = vmatpush1.msra.mxu0 0.0
    %6261 = vmatprep.subr.mxu0 0.0
    %6262 = vmatpush1.msra.mxu0 0.0
    %6263 = vmatprep.subr.mxu0 0.0
    %6264 = vmatpush1.msra.mxu0 0.0
    %6265 = vmatprep.subr.mxu0 0.0
    %6266 = vmatpush1.msra.mxu0 0.0
    %6267 = vmatprep.subr.mxu0 0.0
    %6268 = vmatpush1.msra.mxu0 0.0
    %6269 = vmatprep.subr.mxu0 0.0
    %6270 = vmatpush1.msra.mxu0 0.0
    %6271 = vmatprep.subr.mxu0 0.0
    %6272 = vmatpush1.msra.mxu0 0.0
    %6273 = vmatprep.subr.mxu0 0.0
    %6274 = vmatpush1.msra.mxu0 0.0
    %6275 = vmatprep.subr.mxu0 0.0
    %6276 = vmatpush1.msra.mxu0 0.0
    %6277 = vmatprep.subr.mxu0 0.0
    %6278 = vmatpush1.msra.mxu0 0.0
    %6279 = vmatprep.subr.mxu0 0.0
    %6280 = vmatpush1.msra.mxu0 %v6242
    %6281 = vmatprep.subr.mxu0 0.0
    %6282 = vmatpush1.msra.mxu0 %v6240
    %6283 = vmatprep.subr.mxu0 0.0
    %6284 = vmatpush2.msra.mxu0 0.0
    %6285 = vmatprep.subr.mxu0 0.0
    %6286 = vmatpush2.msra.mxu0 0.0
    %6287 = vmatprep.subr.mxu0 0.0
    %6288 = vmatpush2.msra.mxu0 0.0
    %6289 = vmatprep.subr.mxu0 0.0
    %6290 = vmatpush2.msra.mxu0 0.0
    %6291 = vmatprep.subr.mxu0 0.0
    %6292 = vmatpush2.msra.mxu0 0.0
    %6293 = vmatprep.subr.mxu0 0.0
    %6294 = vmatpush2.msra.mxu0 0.0
    %6295 = vmatprep.subr.mxu0 0.0
    %6296 = vmatpush2.msra.mxu0 0.0
    %6297 = vmatprep.subr.mxu0 0.0
    %6298 = vmatpush2.msra.mxu0 0.0
    %6299 = vmatprep.subr.mxu0 0.0
    %6300 = vmatpush2.msra.mxu0 0.0
    %6301 = vmatprep.subr.mxu0 0.0
    %6302 = vmatpush2.msra.mxu0 0.0
    %6303 = vmatprep.subr.mxu0 0.0
    %6304 = vmatpush2.msra.mxu0 0.0
    %6305 = vmatprep.subr.mxu0 0.0
    %6306 = vmatpush2.msra.mxu0 0.0
    %6307 = vmatprep.subr.mxu0 0.0
    %6308 = vmatpush2.msra.mxu0 0.0
    %6309 = vmatprep.subr.mxu0 0.0
    %6310 = vmatpush2.msra.mxu0 0.0
    %6311 = vmatprep.subr.mxu0 0.0
    %6312 = vmatpush2.msra.mxu0 0.0
    %6313 = vmatprep.subr.mxu0 0.0
    %6314 = vmatpush2.msra.mxu0 0.0
    %6315 = vmatprep.mubr.f32.mxu0 0.0
    %6316 = vmatmul.mubr.f32.gmra.mxu0 %v6246
    %v6317 = vpop.f32.mrf.mxu0
    %v6318 = vadd.f32 0.0, %v6317
    %v6319 = vpop.f32.mrf.mxu0
    %6320 = vmatprep.mubr.f32.mxu0 0.0
    %6321 = vmatmul.mubr.f32.gmra.mxu0 %v6249
    %v6322 = vpop.f32.mrf.mxu0
    %v6323 = vadd.f32 0.0, %v6322
    %v6324 = vpop.f32.mrf.mxu0
    %6325 = vdwg.mxu0
    %v6327 = vsel %vm1464, %v6318, 0
    %v6330 = vsel %vm1464, %v6323, 0
    %6332 = vmatprep.subr.mxu0 0.0
    %6333 = vmatpush1.msra.mxu0 0.0
    %6334 = vmatprep.subr.mxu0 0.0
    %6335 = vmatpush1.msra.mxu0 0.0
    %6336 = vmatprep.subr.mxu0 0.0
    %6337 = vmatpush1.msra.mxu0 0.0
    %6338 = vmatprep.subr.mxu0 0.0
    %6339 = vmatpush1.msra.mxu0 0.0
    %6340 = vmatprep.subr.mxu0 0.0
    %6341 = vmatpush1.msra.mxu0 0.0
    %6342 = vmatprep.subr.mxu0 0.0
    %6343 = vmatpush1.msra.mxu0 0.0
    %6344 = vmatprep.subr.mxu0 0.0
    %6345 = vmatpush1.msra.mxu0 0.0
    %6346 = vmatprep.subr.mxu0 0.0
    %6347 = vmatpush1.msra.mxu0 0.0
    %6348 = vmatprep.subr.mxu0 0.0
    %6349 = vmatpush1.msra.mxu0 0.0
    %6350 = vmatprep.subr.mxu0 0.0
    %6351 = vmatpush1.msra.mxu0 0.0
    %6352 = vmatprep.subr.mxu0 0.0
    %6353 = vmatpush1.msra.mxu0 0.0
    %6354 = vmatprep.subr.mxu0 0.0
    %6355 = vmatpush1.msra.mxu0 0.0
    %6356 = vmatprep.subr.mxu0 0.0
    %6357 = vmatpush1.msra.mxu0 0.0
    %6358 = vmatprep.subr.mxu0 0.0
    %6359 = vmatpush1.msra.mxu0 0.0
    %6360 = vmatprep.subr.mxu0 0.0
    %6361 = vmatpush1.msra.mxu0 0.0
    %6362 = vmatprep.subr.mxu0 0.0
    %6363 = vmatpush1.msra.mxu0 %v1134
    %6364 = vmatprep.subr.mxu0 0.0
    %6365 = vmatpush2.msra.mxu0 0.0
    %6366 = vmatprep.subr.mxu0 0.0
    %6367 = vmatpush2.msra.mxu0 0.0
    %6368 = vmatprep.subr.mxu0 0.0
    %6369 = vmatpush2.msra.mxu0 0.0
    %6370 = vmatprep.subr.mxu0 0.0
    %6371 = vmatpush2.msra.mxu0 0.0
    %6372 = vmatprep.subr.mxu0 0.0
    %6373 = vmatpush2.msra.mxu0 0.0
    %6374 = vmatprep.subr.mxu0 0.0
    %6375 = vmatpush2.msra.mxu0 0.0
    %6376 = vmatprep.subr.mxu0 0.0
    %6377 = vmatpush2.msra.mxu0 0.0
    %6378 = vmatprep.subr.mxu0 0.0
    %6379 = vmatpush2.msra.mxu0 0.0
    %6380 = vmatprep.subr.mxu0 0.0
    %6381 = vmatpush2.msra.mxu0 0.0
    %6382 = vmatprep.subr.mxu0 0.0
    %6383 = vmatpush2.msra.mxu0 0.0
    %6384 = vmatprep.subr.mxu0 0.0
    %6385 = vmatpush2.msra.mxu0 0.0
    %6386 = vmatprep.subr.mxu0 0.0
    %6387 = vmatpush2.msra.mxu0 0.0
    %6388 = vmatprep.subr.mxu0 0.0
    %6389 = vmatpush2.msra.mxu0 0.0
    %6390 = vmatprep.subr.mxu0 0.0
    %6391 = vmatpush2.msra.mxu0 0.0
    %6392 = vmatprep.subr.mxu0 0.0
    %6393 = vmatpush2.msra.mxu0 0.0
    %6394 = vmatprep.subr.mxu0 0.0
    %6395 = vmatpush2.msra.mxu0 0.0
    %6396 = vmatprep.mubr.f32.mxu0 0.0
    %6397 = vmatmul.mubr.f32.gmra.mxu0 %v6327
    %v6398 = vpop.f32.mrf.mxu0
    %v6399 = vadd.f32 0.0, %v6398
    %v6400 = vpop.f32.mrf.mxu0
    %6401 = vmatprep.mubr.f32.mxu0 0.0
    %6402 = vmatmul.mubr.f32.gmra.mxu0 %v6330
    %v6403 = vpop.f32.mrf.mxu0
    %v6404 = vadd.f32 0.0, %v6403
    %v6405 = vpop.f32.mrf.mxu0
    %6406 = vdwg.mxu0
    %v6407 = vadd.f32 %v6128, %v6399
    %v6408 = vadd.f32 %v6129, %v6404
    %6409 = vrot.lane.b32.xlu0 %v6033, 120
    %v6410 = vpop.permute.xlu0 %6409
    %6411 = vrot.lane.b32.xlu0 %v6038, 120
    %v6412 = vpop.permute.xlu0 %6411
    %6413 = vrot.lane.b32.xlu0 %v6114, 120
    %v6414 = vpop.permute.xlu0 %6413
    %6415 = vrot.lane.b32.xlu0 %v6119, 120
    %v6416 = vpop.permute.xlu0 %6415
    %v6417 = vsel %vm1464, %v6410, 0
    %v6419 = vsel %vm1464, %v6412, 0
    %v6421 = vsel %vm1464, %v6414, 0
    %v6423 = vsel %vm1464, %v6416, 0
    %6425 = vmatprep.subr.mxu0 0.0
    %6426 = vmatpush1.xpose.msra.mxu0 0.0
    %6427 = vmatprep.subr.mxu0 0.0
    %6428 = vmatpush1.xpose.msra.mxu0 0.0
    %6429 = vmatprep.subr.mxu0 0.0
    %6430 = vmatpush1.xpose.msra.mxu0 0.0
    %6431 = vmatprep.subr.mxu0 0.0
    %6432 = vmatpush1.xpose.msra.mxu0 0.0
    %6433 = vmatprep.subr.mxu0 0.0
    %6434 = vmatpush1.xpose.msra.mxu0 0.0
    %6435 = vmatprep.subr.mxu0 0.0
    %6436 = vmatpush1.xpose.msra.mxu0 0.0
    %6437 = vmatprep.subr.mxu0 0.0
    %6438 = vmatpush1.xpose.msra.mxu0 0.0
    %6439 = vmatprep.subr.mxu0 0.0
    %6440 = vmatpush1.xpose.msra.mxu0 0.0
    %6441 = vmatprep.subr.mxu0 0.0
    %6442 = vmatpush1.xpose.msra.mxu0 0.0
    %6443 = vmatprep.subr.mxu0 0.0
    %6444 = vmatpush1.xpose.msra.mxu0 0.0
    %6445 = vmatprep.subr.mxu0 0.0
    %6446 = vmatpush1.xpose.msra.mxu0 0.0
    %6447 = vmatprep.subr.mxu0 0.0
    %6448 = vmatpush1.xpose.msra.mxu0 0.0
    %6449 = vmatprep.subr.mxu0 0.0
    %6450 = vmatpush1.xpose.msra.mxu0 0.0
    %6451 = vmatprep.subr.mxu0 0.0
    %6452 = vmatpush1.xpose.msra.mxu0 0.0
    %6453 = vmatprep.subr.mxu0 0.0
    %6454 = vmatpush1.xpose.msra.mxu0 %v6423
    %6455 = vmatprep.subr.mxu0 0.0
    %6456 = vmatpush1.xpose.msra.mxu0 %v6421
    %6457 = vmatprep.subr.mxu0 0.0
    %6458 = vmatpush2.xpose.msra.mxu0 0.0
    %6459 = vmatprep.subr.mxu0 0.0
    %6460 = vmatpush2.xpose.msra.mxu0 0.0
    %6461 = vmatprep.subr.mxu0 0.0
    %6462 = vmatpush2.xpose.msra.mxu0 0.0
    %6463 = vmatprep.subr.mxu0 0.0
    %6464 = vmatpush2.xpose.msra.mxu0 0.0
    %6465 = vmatprep.subr.mxu0 0.0
    %6466 = vmatpush2.xpose.msra.mxu0 0.0
    %6467 = vmatprep.subr.mxu0 0.0
    %6468 = vmatpush2.xpose.msra.mxu0 0.0
    %6469 = vmatprep.subr.mxu0 0.0
    %6470 = vmatpush2.xpose.msra.mxu0 0.0
    %6471 = vmatprep.subr.mxu0 0.0
    %6472 = vmatpush2.xpose.msra.mxu0 0.0
    %6473 = vmatprep.subr.mxu0 0.0
    %6474 = vmatpush2.xpose.msra.mxu0 0.0
    %6475 = vmatprep.subr.mxu0 0.0
    %6476 = vmatpush2.xpose.msra.mxu0 0.0
    %6477 = vmatprep.subr.mxu0 0.0
    %6478 = vmatpush2.xpose.msra.mxu0 0.0
    %6479 = vmatprep.subr.mxu0 0.0
    %6480 = vmatpush2.xpose.msra.mxu0 0.0
    %6481 = vmatprep.subr.mxu0 0.0
    %6482 = vmatpush2.xpose.msra.mxu0 0.0
    %6483 = vmatprep.subr.mxu0 0.0
    %6484 = vmatpush2.xpose.msra.mxu0 0.0
    %6485 = vmatprep.subr.mxu0 0.0
    %6486 = vmatpush2.xpose.msra.mxu0 0.0
    %6487 = vmatprep.subr.mxu0 0.0
    %6488 = vmatpush2.xpose.msra.mxu0 0.0
    %6489 = vmatprep.mubr.f32.mxu0 0.0
    %6490 = vmatmul.mubr.f32.gmra.mxu0 %v6417
    %v6491 = vpop.f32.mrf.mxu0
    %v6492 = vadd.f32 %v995, %v6491
    %v6493 = vpop.f32.mrf.mxu0
    %6494 = vmatprep.mubr.f32.mxu0 0.0
    %6495 = vmatmul.mubr.f32.gmra.mxu0 %v6419
    %v6496 = vpop.f32.mrf.mxu0
    %v6497 = vadd.f32 %v996, %v6496
    %v6498 = vpop.f32.mrf.mxu0
    %6499 = vdwg.mxu0
    %v6500 = vsel %vm1552, %v6492, -inf
    %6501 = vmax.xlane.f32.xlu0 %v6500
    %v6502 = vpop.xlane.xlu0 %6501
    %v6503 = vsel %vm1552, %v6497, -inf
    %6504 = vmax.xlane.f32.xlu0 %v6503
    %v6505 = vpop.xlane.xlu0 %6504
    %v6506 = vsub.f32 %v6492, %v6502
    %v6507 = vsub.f32 %v6497, %v6505
    %v6508 = vmul.f32 %v6506, 1.442695
    %v6509 = vpow.pop %v6508
    %v6510 = vmul.f32 %v6507, 1.442695
    %v6511 = vpow.pop %v6510
    %v6512 = vsel %vm1552, %v6509, 0.0
    %6513 = vadd.xlane.f32.xlu0 %v6512
    %v6514 = vpop.xlane.xlu0 %6513
    %v6515 = vsel %vm1552, %v6511, 0.0
    %6516 = vadd.xlane.f32.xlu0 %v6515
    %v6517 = vpop.xlane.xlu0 %6516
    %v6518 = vrcp.pop %v6514
    %v6519 = vrcp.pop %v6517
    %v6520 = vmul.f32 %v6509, %v6518
    %v6521 = vmul.f32 %v6511, %v6519
    %6522 = vrot.lane.b32.xlu0 %v6114, 104
    %v6523 = vpop.permute.xlu0 %6522
    %6524 = vrot.lane.b32.xlu0 %v6119, 104
    %v6525 = vpop.permute.xlu0 %6524
    %v6529 = vsel %vm1552, %v6520, 0
    %v6532 = vsel %vm1552, %v6521, 0
    %6534 = vmatprep.subr.mxu0 0.0
    %6535 = vmatpush1.msra.mxu0 0.0
    %6536 = vmatprep.subr.mxu0 0.0
    %6537 = vmatpush1.msra.mxu0 0.0
    %6538 = vmatprep.subr.mxu0 0.0
    %6539 = vmatpush1.msra.mxu0 0.0
    %6540 = vmatprep.subr.mxu0 0.0
    %6541 = vmatpush1.msra.mxu0 0.0
    %6542 = vmatprep.subr.mxu0 0.0
    %6543 = vmatpush1.msra.mxu0 0.0
    %6544 = vmatprep.subr.mxu0 0.0
    %6545 = vmatpush1.msra.mxu0 0.0
    %6546 = vmatprep.subr.mxu0 0.0
    %6547 = vmatpush1.msra.mxu0 0.0
    %6548 = vmatprep.subr.mxu0 0.0
    %6549 = vmatpush1.msra.mxu0 0.0
    %6550 = vmatprep.subr.mxu0 0.0
    %6551 = vmatpush1.msra.mxu0 0.0
    %6552 = vmatprep.subr.mxu0 0.0
    %6553 = vmatpush1.msra.mxu0 0.0
    %6554 = vmatprep.subr.mxu0 0.0
    %6555 = vmatpush1.msra.mxu0 0.0
    %6556 = vmatprep.subr.mxu0 0.0
    %6557 = vmatpush1.msra.mxu0 0.0
    %6558 = vmatprep.subr.mxu0 0.0
    %6559 = vmatpush1.msra.mxu0 0.0
    %6560 = vmatprep.subr.mxu0 0.0
    %6561 = vmatpush1.msra.mxu0 0.0
    %6562 = vmatprep.subr.mxu0 0.0
    %6563 = vmatpush1.msra.mxu0 %v6525
    %6564 = vmatprep.subr.mxu0 0.0
    %6565 = vmatpush1.msra.mxu0 %v6523
    %6566 = vmatprep.subr.mxu0 0.0
    %6567 = vmatpush2.msra.mxu0 0.0
    %6568 = vmatprep.subr.mxu0 0.0
    %6569 = vmatpush2.msra.mxu0 0.0
    %6570 = vmatprep.subr.mxu0 0.0
    %6571 = vmatpush2.msra.mxu0 0.0
    %6572 = vmatprep.subr.mxu0 0.0
    %6573 = vmatpush2.msra.mxu0 0.0
    %6574 = vmatprep.subr.mxu0 0.0
    %6575 = vmatpush2.msra.mxu0 0.0
    %6576 = vmatprep.subr.mxu0 0.0
    %6577 = vmatpush2.msra.mxu0 0.0
    %6578 = vmatprep.subr.mxu0 0.0
    %6579 = vmatpush2.msra.mxu0 0.0
    %6580 = vmatprep.subr.mxu0 0.0
    %6581 = vmatpush2.msra.mxu0 0.0
    %6582 = vmatprep.subr.mxu0 0.0
    %6583 = vmatpush2.msra.mxu0 0.0
    %6584 = vmatprep.subr.mxu0 0.0
    %6585 = vmatpush2.msra.mxu0 0.0
    %6586 = vmatprep.subr.mxu0 0.0
    %6587 = vmatpush2.msra.mxu0 0.0
    %6588 = vmatprep.subr.mxu0 0.0
    %6589 = vmatpush2.msra.mxu0 0.0
    %6590 = vmatprep.subr.mxu0 0.0
    %6591 = vmatpush2.msra.mxu0 0.0
    %6592 = vmatprep.subr.mxu0 0.0
    %6593 = vmatpush2.msra.mxu0 0.0
    %6594 = vmatprep.subr.mxu0 0.0
    %6595 = vmatpush2.msra.mxu0 0.0
    %6596 = vmatprep.subr.mxu0 0.0
    %6597 = vmatpush2.msra.mxu0 0.0
    %6598 = vmatprep.mubr.f32.mxu0 0.0
    %6599 = vmatmul.mubr.f32.gmra.mxu0 %v6529
    %v6600 = vpop.f32.mrf.mxu0
    %v6601 = vadd.f32 0.0, %v6600
    %v6602 = vpop.f32.mrf.mxu0
    %6603 = vmatprep.mubr.f32.mxu0 0.0
    %6604 = vmatmul.mubr.f32.gmra.mxu0 %v6532
    %v6605 = vpop.f32.mrf.mxu0
    %v6606 = vadd.f32 0.0, %v6605
    %v6607 = vpop.f32.mrf.mxu0
    %6608 = vdwg.mxu0
    %v6610 = vsel %vm1464, %v6601, 0
    %v6613 = vsel %vm1464, %v6606, 0
    %6615 = vmatprep.subr.mxu0 0.0
    %6616 = vmatpush1.msra.mxu0 0.0
    %6617 = vmatprep.subr.mxu0 0.0
    %6618 = vmatpush1.msra.mxu0 0.0
    %6619 = vmatprep.subr.mxu0 0.0
    %6620 = vmatpush1.msra.mxu0 0.0
    %6621 = vmatprep.subr.mxu0 0.0
    %6622 = vmatpush1.msra.mxu0 0.0
    %6623 = vmatprep.subr.mxu0 0.0
    %6624 = vmatpush1.msra.mxu0 0.0
    %6625 = vmatprep.subr.mxu0 0.0
    %6626 = vmatpush1.msra.mxu0 0.0
    %6627 = vmatprep.subr.mxu0 0.0
    %6628 = vmatpush1.msra.mxu0 0.0
    %6629 = vmatprep.subr.mxu0 0.0
    %6630 = vmatpush1.msra.mxu0 0.0
    %6631 = vmatprep.subr.mxu0 0.0
    %6632 = vmatpush1.msra.mxu0 0.0
    %6633 = vmatprep.subr.mxu0 0.0
    %6634 = vmatpush1.msra.mxu0 0.0
    %6635 = vmatprep.subr.mxu0 0.0
    %6636 = vmatpush1.msra.mxu0 0.0
    %6637 = vmatprep.subr.mxu0 0.0
    %6638 = vmatpush1.msra.mxu0 0.0
    %6639 = vmatprep.subr.mxu0 0.0
    %6640 = vmatpush1.msra.mxu0 0.0
    %6641 = vmatprep.subr.mxu0 0.0
    %6642 = vmatpush1.msra.mxu0 0.0
    %6643 = vmatprep.subr.mxu0 0.0
    %6644 = vmatpush1.msra.mxu0 0.0
    %6645 = vmatprep.subr.mxu0 0.0
    %6646 = vmatpush1.msra.mxu0 %v1135
    %6647 = vmatprep.subr.mxu0 0.0
    %6648 = vmatpush2.msra.mxu0 0.0
    %6649 = vmatprep.subr.mxu0 0.0
    %6650 = vmatpush2.msra.mxu0 0.0
    %6651 = vmatprep.subr.mxu0 0.0
    %6652 = vmatpush2.msra.mxu0 0.0
    %6653 = vmatprep.subr.mxu0 0.0
    %6654 = vmatpush2.msra.mxu0 0.0
    %6655 = vmatprep.subr.mxu0 0.0
    %6656 = vmatpush2.msra.mxu0 0.0
    %6657 = vmatprep.subr.mxu0 0.0
    %6658 = vmatpush2.msra.mxu0 0.0
    %6659 = vmatprep.subr.mxu0 0.0
    %6660 = vmatpush2.msra.mxu0 0.0
    %6661 = vmatprep.subr.mxu0 0.0
    %6662 = vmatpush2.msra.mxu0 0.0
    %6663 = vmatprep.subr.mxu0 0.0
    %6664 = vmatpush2.msra.mxu0 0.0
    %6665 = vmatprep.subr.mxu0 0.0
    %6666 = vmatpush2.msra.mxu0 0.0
    %6667 = vmatprep.subr.mxu0 0.0
    %6668 = vmatpush2.msra.mxu0 0.0
    %6669 = vmatprep.subr.mxu0 0.0
    %6670 = vmatpush2.msra.mxu0 0.0
    %6671 = vmatprep.subr.mxu0 0.0
    %6672 = vmatpush2.msra.mxu0 0.0
    %6673 = vmatprep.subr.mxu0 0.0
    %6674 = vmatpush2.msra.mxu0 0.0
    %6675 = vmatprep.subr.mxu0 0.0
    %6676 = vmatpush2.msra.mxu0 0.0
    %6677 = vmatprep.subr.mxu0 0.0
    %6678 = vmatpush2.msra.mxu0 0.0
    %6679 = vmatprep.mubr.f32.mxu0 0.0
    %6680 = vmatmul.mubr.f32.gmra.mxu0 %v6610
    %v6681 = vpop.f32.mrf.mxu0
    %v6682 = vadd.f32 0.0, %v6681
    %v6683 = vpop.f32.mrf.mxu0
    %6684 = vmatprep.mubr.f32.mxu0 0.0
    %6685 = vmatmul.mubr.f32.gmra.mxu0 %v6613
    %v6686 = vpop.f32.mrf.mxu0
    %v6687 = vadd.f32 0.0, %v6686
    %v6688 = vpop.f32.mrf.mxu0
    %6689 = vdwg.mxu0
    %v6690 = vadd.f32 %v6407, %v6682
    %v6691 = vadd.f32 %v6408, %v6687
    %v6692 = vsel %vm1293, %v6690, 0.0
    %6693 = vadd.xlane.f32.xlu0 %v6692
    %v6694 = vpop.xlane.xlu0 %6693
    %v6695 = vsel %vm1293, %v6691, 0.0
    %6696 = vadd.xlane.f32.xlu0 %v6695
    %v6697 = vpop.xlane.xlu0 %6696
    %v6698 = vmul.f32 %v6694, %v2034
    %v6699 = vmul.f32 %v6697, %v2034
    %v6700 = vsub.f32 %v6690, %v6698
    %v6701 = vsub.f32 %v6691, %v6699
    %v6702 = vmul.f32 %v6700, %v6700
    %v6703 = vmul.f32 %v6701, %v6701
    %v6704 = vsel %vm1293, %v6702, 0.0
    %6705 = vadd.xlane.f32.xlu0 %v6704
    %v6706 = vpop.xlane.xlu0 %6705
    %v6707 = vsel %vm1293, %v6703, 0.0
    %6708 = vadd.xlane.f32.xlu0 %v6707
    %v6709 = vpop.xlane.xlu0 %6708
    %v6710 = vmul.f32 %v6706, %v2034
    %v6711 = vmul.f32 %v6709, %v2034
    %v6712 = vadd.f32 %v6710, 1e-05
    %v6713 = vadd.f32 %v6711, 1e-05
    %v6714 = vrsqrt.pop %v6712
    %v6715 = vrsqrt.pop %v6713
    %v6716 = vmul.f32 %v6700, %v6714
    %v6717 = vmul.f32 %v6701, %v6715
    %v6719 = vlaneseq
    %v6720 = vshrl.u32 %v6719, 7
    %v6721 = vsub.s32 0, %v6720
    %v6722 = vrot.slane %v1137, %v6721
    %v6724 = vmul.f32 %v6716, %v6722
    %v6725 = vmul.f32 %v6717, %v6722
    %v6727 = vlaneseq
    %v6728 = vshrl.u32 %v6727, 7
    %v6729 = vsub.s32 0, %v6728
    %v6730 = vrot.slane %v1138, %v6729
    %v6732 = vadd.f32 %v6724, %v6730
    %v6733 = vadd.f32 %v6725, %v6730
    %v6735 = vlaneseq
    %v6736 = vshrl.u32 %v6735, 7
    %v6737 = vsub.s32 0, %v6736
    %v6738 = vrot.slane %v1143, %v6737
    %v6741 = vsel %vm1293, %v6732, 0
    %v6744 = vsel %vm1293, %v6733, 0
    %6746 = vmatprep.subr.mxu0 0.0
    %6747 = vmatpush1.msra.mxu0 0.0
    %6748 = vmatprep.subr.mxu0 0.0
    %6749 = vmatpush1.msra.mxu0 0.0
    %6750 = vmatprep.subr.mxu0 0.0
    %6751 = vmatpush1.msra.mxu0 0.0
    %6752 = vmatprep.subr.mxu0 0.0
    %6753 = vmatpush1.msra.mxu0 0.0
    %6754 = vmatprep.subr.mxu0 0.0
    %6755 = vmatpush1.msra.mxu0 0.0
    %6756 = vmatprep.subr.mxu0 0.0
    %6757 = vmatpush1.msra.mxu0 0.0
    %6758 = vmatprep.subr.mxu0 0.0
    %6759 = vmatpush1.msra.mxu0 0.0
    %6760 = vmatprep.subr.mxu0 0.0
    %6761 = vmatpush1.msra.mxu0 0.0
    %6762 = vmatprep.subr.mxu0 0.0
    %6763 = vmatpush1.msra.mxu0 0.0
    %6764 = vmatprep.subr.mxu0 0.0
    %6765 = vmatpush1.msra.mxu0 0.0
    %6766 = vmatprep.subr.mxu0 0.0
    %6767 = vmatpush1.msra.mxu0 0.0
    %6768 = vmatprep.subr.mxu0 0.0
    %6769 = vmatpush1.msra.mxu0 0.0
    %6770 = vmatprep.subr.mxu0 0.0
    %6771 = vmatpush1.msra.mxu0 %v1142
    %6772 = vmatprep.subr.mxu0 0.0
    %6773 = vmatpush1.msra.mxu0 %v1141
    %6774 = vmatprep.subr.mxu0 0.0
    %6775 = vmatpush1.msra.mxu0 %v1140
    %6776 = vmatprep.subr.mxu0 0.0
    %6777 = vmatpush1.msra.mxu0 %v1139
    %6778 = vmatprep.subr.mxu0 0.0
    %6779 = vmatpush2.msra.mxu0 0.0
    %6780 = vmatprep.subr.mxu0 0.0
    %6781 = vmatpush2.msra.mxu0 0.0
    %6782 = vmatprep.subr.mxu0 0.0
    %6783 = vmatpush2.msra.mxu0 0.0
    %6784 = vmatprep.subr.mxu0 0.0
    %6785 = vmatpush2.msra.mxu0 0.0
    %6786 = vmatprep.subr.mxu0 0.0
    %6787 = vmatpush2.msra.mxu0 0.0
    %6788 = vmatprep.subr.mxu0 0.0
    %6789 = vmatpush2.msra.mxu0 0.0
    %6790 = vmatprep.subr.mxu0 0.0
    %6791 = vmatpush2.msra.mxu0 0.0
    %6792 = vmatprep.subr.mxu0 0.0
    %6793 = vmatpush2.msra.mxu0 0.0
    %6794 = vmatprep.subr.mxu0 0.0
    %6795 = vmatpush2.msra.mxu0 0.0
    %6796 = vmatprep.subr.mxu0 0.0
    %6797 = vmatpush2.msra.mxu0 0.0
    %6798 = vmatprep.subr.mxu0 0.0
    %6799 = vmatpush2.msra.mxu0 0.0
    %6800 = vmatprep.subr.mxu0 0.0
    %6801 = vmatpush2.msra.mxu0 0.0
    %6802 = vmatprep.subr.mxu0 0.0
    %6803 = vmatpush2.msra.mxu0 0.0
    %6804 = vmatprep.subr.mxu0 0.0
    %6805 = vmatpush2.msra.mxu0 0.0
    %6806 = vmatprep.subr.mxu0 0.0
    %6807 = vmatpush2.msra.mxu0 0.0
    %6808 = vmatprep.subr.mxu0 0.0
    %6809 = vmatpush2.msra.mxu0 0.0
    %6810 = vmatprep.mubr.f32.mxu0 0.0
    %6811 = vmatmul.mubr.f32.gmra.mxu0 %v6741
    %v6812 = vpop.f32.mrf.mxu0
    %v6813 = vadd.f32 %v6738, %v6812
    %v6814 = vpop.f32.mrf.mxu0
    %6815 = vmatprep.mubr.f32.mxu0 0.0
    %6816 = vmatmul.mubr.f32.gmra.mxu0 %v6744
    %v6817 = vpop.f32.mrf.mxu0
    %v6818 = vadd.f32 %v6738, %v6817
    %v6819 = vpop.f32.mrf.mxu0
    %6820 = vdwg.mxu0
    %v6821 = vmax.f32 %v6813, 0.0
    %v6822 = vmax.f32 %v6818, 0.0
    %v6824 = vlaneseq
    %v6825 = vshrl.u32 %v6824, 7
    %v6826 = vsub.s32 0, %v6825
    %v6827 = vrot.slane %v1152, %v6826
    %v6830 = vsel %vm2166, %v6821, 0
    %v6833 = vsel %vm2166, %v6822, 0
    %6835 = vmatprep.subr.mxu0 0.0
    %6836 = vmatpush1.msra.mxu0 0.0
    %6837 = vmatprep.subr.mxu0 0.0
    %6838 = vmatpush1.msra.mxu0 0.0
    %6839 = vmatprep.subr.mxu0 0.0
    %6840 = vmatpush1.msra.mxu0 0.0
    %6841 = vmatprep.subr.mxu0 0.0
    %6842 = vmatpush1.msra.mxu0 0.0
    %6843 = vmatprep.subr.mxu0 0.0
    %6844 = vmatpush1.msra.mxu0 0.0
    %6845 = vmatprep.subr.mxu0 0.0
    %6846 = vmatpush1.msra.mxu0 0.0
    %6847 = vmatprep.subr.mxu0 0.0
    %6848 = vmatpush1.msra.mxu0 0.0
    %6849 = vmatprep.subr.mxu0 0.0
    %6850 = vmatpush1.msra.mxu0 0.0
    %6851 = vmatprep.subr.mxu0 0.0
    %6852 = vmatpush1.msra.mxu0 %v1151
    %6853 = vmatprep.subr.mxu0 0.0
    %6854 = vmatpush1.msra.mxu0 %v1150
    %6855 = vmatprep.subr.mxu0 0.0
    %6856 = vmatpush1.msra.mxu0 %v1149
    %6857 = vmatprep.subr.mxu0 0.0
    %6858 = vmatpush1.msra.mxu0 %v1148
    %6859 = vmatprep.subr.mxu0 0.0
    %6860 = vmatpush1.msra.mxu0 %v1147
    %6861 = vmatprep.subr.mxu0 0.0
    %6862 = vmatpush1.msra.mxu0 %v1146
    %6863 = vmatprep.subr.mxu0 0.0
    %6864 = vmatpush1.msra.mxu0 %v1145
    %6865 = vmatprep.subr.mxu0 0.0
    %6866 = vmatpush1.msra.mxu0 %v1144
    %6867 = vmatprep.subr.mxu0 0.0
    %6868 = vmatpush2.msra.mxu0 0.0
    %6869 = vmatprep.subr.mxu0 0.0
    %6870 = vmatpush2.msra.mxu0 0.0
    %6871 = vmatprep.subr.mxu0 0.0
    %6872 = vmatpush2.msra.mxu0 0.0
    %6873 = vmatprep.subr.mxu0 0.0
    %6874 = vmatpush2.msra.mxu0 0.0
    %6875 = vmatprep.subr.mxu0 0.0
    %6876 = vmatpush2.msra.mxu0 0.0
    %6877 = vmatprep.subr.mxu0 0.0
    %6878 = vmatpush2.msra.mxu0 0.0
    %6879 = vmatprep.subr.mxu0 0.0
    %6880 = vmatpush2.msra.mxu0 0.0
    %6881 = vmatprep.subr.mxu0 0.0
    %6882 = vmatpush2.msra.mxu0 0.0
    %6883 = vmatprep.subr.mxu0 0.0
    %6884 = vmatpush2.msra.mxu0 0.0
    %6885 = vmatprep.subr.mxu0 0.0
    %6886 = vmatpush2.msra.mxu0 0.0
    %6887 = vmatprep.subr.mxu0 0.0
    %6888 = vmatpush2.msra.mxu0 0.0
    %6889 = vmatprep.subr.mxu0 0.0
    %6890 = vmatpush2.msra.mxu0 0.0
    %6891 = vmatprep.subr.mxu0 0.0
    %6892 = vmatpush2.msra.mxu0 0.0
    %6893 = vmatprep.subr.mxu0 0.0
    %6894 = vmatpush2.msra.mxu0 0.0
    %6895 = vmatprep.subr.mxu0 0.0
    %6896 = vmatpush2.msra.mxu0 0.0
    %6897 = vmatprep.subr.mxu0 0.0
    %6898 = vmatpush2.msra.mxu0 0.0
    %6899 = vmatprep.mubr.f32.mxu0 0.0
    %6900 = vmatmul.mubr.f32.gmra.mxu0 %v6830
    %v6901 = vpop.f32.mrf.mxu0
    %v6902 = vadd.f32 %v6827, %v6901
    %v6903 = vpop.f32.mrf.mxu0
    %6904 = vmatprep.mubr.f32.mxu0 0.0
    %6905 = vmatmul.mubr.f32.gmra.mxu0 %v6833
    %v6906 = vpop.f32.mrf.mxu0
    %v6907 = vadd.f32 %v6827, %v6906
    %v6908 = vpop.f32.mrf.mxu0
    %6909 = vdwg.mxu0
    %v6910 = vadd.f32 %v6902, %v6732
    %v6911 = vadd.f32 %v6907, %v6733
    %v6912 = vsel %vm1293, %v6910, 0.0
    %6913 = vadd.xlane.f32.xlu0 %v6912
    %v6914 = vpop.xlane.xlu0 %6913
    %v6915 = vsel %vm1293, %v6911, 0.0
    %6916 = vadd.xlane.f32.xlu0 %v6915
    %v6917 = vpop.xlane.xlu0 %6916
    %v6918 = vmul.f32 %v6914, %v2034
    %v6919 = vmul.f32 %v6917, %v2034
    %v6920 = vsub.f32 %v6910, %v6918
    %v6921 = vsub.f32 %v6911, %v6919
    %v6922 = vmul.f32 %v6920, %v6920
    %v6923 = vmul.f32 %v6921, %v6921
    %v6924 = vsel %vm1293, %v6922, 0.0
    %6925 = vadd.xlane.f32.xlu0 %v6924
    %v6926 = vpop.xlane.xlu0 %6925
    %v6927 = vsel %vm1293, %v6923, 0.0
    %6928 = vadd.xlane.f32.xlu0 %v6927
    %v6929 = vpop.xlane.xlu0 %6928
    %v6930 = vmul.f32 %v6926, %v2034
    %v6931 = vmul.f32 %v6929, %v2034
    %v6932 = vadd.f32 %v6930, 1e-05
    %v6933 = vadd.f32 %v6931, 1e-05
    %v6934 = vrsqrt.pop %v6932
    %v6935 = vrsqrt.pop %v6933
    %v6936 = vmul.f32 %v6920, %v6934
    %v6937 = vmul.f32 %v6921, %v6935
    %v6939 = vlaneseq
    %v6940 = vshrl.u32 %v6939, 7
    %v6941 = vsub.s32 0, %v6940
    %v6942 = vrot.slane %v1153, %v6941
    %v6944 = vmul.f32 %v6936, %v6942
    %v6945 = vmul.f32 %v6937, %v6942
    %v6947 = vlaneseq
    %v6948 = vshrl.u32 %v6947, 7
    %v6949 = vsub.s32 0, %v6948
    %v6950 = vrot.slane %v1154, %v6949
    %v6952 = vadd.f32 %v6944, %v6950
    %v6953 = vadd.f32 %v6945, %v6950
    %v6955 = vlaneseq
    %v6956 = vshrl.u32 %v6955, 7
    %v6957 = vsub.s32 0, %v6956
    %v6958 = vrot.slane %v1159, %v6957
    %v6961 = vsel %vm1293, %v6952, 0
    %v6964 = vsel %vm1293, %v6953, 0
    %6966 = vmatprep.subr.mxu0 0.0
    %6967 = vmatpush1.msra.mxu0 0.0
    %6968 = vmatprep.subr.mxu0 0.0
    %6969 = vmatpush1.msra.mxu0 0.0
    %6970 = vmatprep.subr.mxu0 0.0
    %6971 = vmatpush1.msra.mxu0 0.0
    %6972 = vmatprep.subr.mxu0 0.0
    %6973 = vmatpush1.msra.mxu0 0.0
    %6974 = vmatprep.subr.mxu0 0.0
    %6975 = vmatpush1.msra.mxu0 0.0
    %6976 = vmatprep.subr.mxu0 0.0
    %6977 = vmatpush1.msra.mxu0 0.0
    %6978 = vmatprep.subr.mxu0 0.0
    %6979 = vmatpush1.msra.mxu0 0.0
    %6980 = vmatprep.subr.mxu0 0.0
    %6981 = vmatpush1.msra.mxu0 0.0
    %6982 = vmatprep.subr.mxu0 0.0
    %6983 = vmatpush1.msra.mxu0 0.0
    %6984 = vmatprep.subr.mxu0 0.0
    %6985 = vmatpush1.msra.mxu0 0.0
    %6986 = vmatprep.subr.mxu0 0.0
    %6987 = vmatpush1.msra.mxu0 0.0
    %6988 = vmatprep.subr.mxu0 0.0
    %6989 = vmatpush1.msra.mxu0 0.0
    %6990 = vmatprep.subr.mxu0 0.0
    %6991 = vmatpush1.msra.mxu0 %v1158
    %6992 = vmatprep.subr.mxu0 0.0
    %6993 = vmatpush1.msra.mxu0 %v1157
    %6994 = vmatprep.subr.mxu0 0.0
    %6995 = vmatpush1.msra.mxu0 %v1156
    %6996 = vmatprep.subr.mxu0 0.0
    %6997 = vmatpush1.msra.mxu0 %v1155
    %6998 = vmatprep.subr.mxu0 0.0
    %6999 = vmatpush2.msra.mxu0 0.0
    %7000 = vmatprep.subr.mxu0 0.0
    %7001 = vmatpush2.msra.mxu0 0.0
    %7002 = vmatprep.subr.mxu0 0.0
    %7003 = vmatpush2.msra.mxu0 0.0
    %7004 = vmatprep.subr.mxu0 0.0
    %7005 = vmatpush2.msra.mxu0 0.0
    %7006 = vmatprep.subr.mxu0 0.0
    %7007 = vmatpush2.msra.mxu0 0.0
    %7008 = vmatprep.subr.mxu0 0.0
    %7009 = vmatpush2.msra.mxu0 0.0
    %7010 = vmatprep.subr.mxu0 0.0
    %7011 = vmatpush2.msra.mxu0 0.0
    %7012 = vmatprep.subr.mxu0 0.0
    %7013 = vmatpush2.msra.mxu0 0.0
    %7014 = vmatprep.subr.mxu0 0.0
    %7015 = vmatpush2.msra.mxu0 0.0
    %7016 = vmatprep.subr.mxu0 0.0
    %7017 = vmatpush2.msra.mxu0 0.0
    %7018 = vmatprep.subr.mxu0 0.0
    %7019 = vmatpush2.msra.mxu0 0.0
    %7020 = vmatprep.subr.mxu0 0.0
    %7021 = vmatpush2.msra.mxu0 0.0
    %7022 = vmatprep.subr.mxu0 0.0
    %7023 = vmatpush2.msra.mxu0 0.0
    %7024 = vmatprep.subr.mxu0 0.0
    %7025 = vmatpush2.msra.mxu0 0.0
    %7026 = vmatprep.subr.mxu0 0.0
    %7027 = vmatpush2.msra.mxu0 0.0
    %7028 = vmatprep.subr.mxu0 0.0
    %7029 = vmatpush2.msra.mxu0 0.0
    %7030 = vmatprep.mubr.f32.mxu0 0.0
    %7031 = vmatmul.mubr.f32.gmra.mxu0 %v6961
    %v7032 = vpop.f32.mrf.mxu0
    %v7033 = vadd.f32 %v6958, %v7032
    %v7034 = vpop.f32.mrf.mxu0
    %7035 = vmatprep.mubr.f32.mxu0 0.0
    %7036 = vmatmul.mubr.f32.gmra.mxu0 %v6964
    %v7037 = vpop.f32.mrf.mxu0
    %v7038 = vadd.f32 %v6958, %v7037
    %v7039 = vpop.f32.mrf.mxu0
    %7040 = vdwg.mxu0
    %7041 = vst [vmem:[%s175] sm:$0xff] %v7033
    %7042 = vst [vmem:[%s175 + $0x8] sm:$0xff] %v7038
    %7043 = vmatprep.subr.mxu0 0.0
    %7044 = vmatpush1.msra.mxu0 0.0
    %7045 = vmatprep.subr.mxu0 0.0
    %7046 = vmatpush1.msra.mxu0 0.0
    %7047 = vmatprep.subr.mxu0 0.0
    %7048 = vmatpush1.msra.mxu0 0.0
    %7049 = vmatprep.subr.mxu0 0.0
    %7050 = vmatpush1.msra.mxu0 0.0
    %7051 = vmatprep.subr.mxu0 0.0
    %7052 = vmatpush1.msra.mxu0 0.0
    %7053 = vmatprep.subr.mxu0 0.0
    %7054 = vmatpush1.msra.mxu0 0.0
    %7055 = vmatprep.subr.mxu0 0.0
    %7056 = vmatpush1.msra.mxu0 0.0
    %7057 = vmatprep.subr.mxu0 0.0
    %7058 = vmatpush1.msra.mxu0 0.0
    %7059 = vmatprep.subr.mxu0 0.0
    %7060 = vmatpush1.msra.mxu0 0.0
    %7061 = vmatprep.subr.mxu0 0.0
    %7062 = vmatpush1.msra.mxu0 0.0
    %7063 = vmatprep.subr.mxu0 0.0
    %7064 = vmatpush1.msra.mxu0 0.0
    %7065 = vmatprep.subr.mxu0 0.0
    %7066 = vmatpush1.msra.mxu0 0.0
    %7067 = vmatprep.subr.mxu0 0.0
    %7068 = vmatpush1.msra.mxu0 %v1163
    %7069 = vmatprep.subr.mxu0 0.0
    %7070 = vmatpush1.msra.mxu0 %v1162
    %7071 = vmatprep.subr.mxu0 0.0
    %7072 = vmatpush1.msra.mxu0 %v1161
    %7073 = vmatprep.subr.mxu0 0.0
    %7074 = vmatpush1.msra.mxu0 %v1160
    %7075 = vmatprep.subr.mxu0 0.0
    %7076 = vmatpush2.msra.mxu0 0.0
    %7077 = vmatprep.subr.mxu0 0.0
    %7078 = vmatpush2.msra.mxu0 0.0
    %7079 = vmatprep.subr.mxu0 0.0
    %7080 = vmatpush2.msra.mxu0 0.0
    %7081 = vmatprep.subr.mxu0 0.0
    %7082 = vmatpush2.msra.mxu0 0.0
    %7083 = vmatprep.subr.mxu0 0.0
    %7084 = vmatpush2.msra.mxu0 0.0
    %7085 = vmatprep.subr.mxu0 0.0
    %7086 = vmatpush2.msra.mxu0 0.0
    %7087 = vmatprep.subr.mxu0 0.0
    %7088 = vmatpush2.msra.mxu0 0.0
    %7089 = vmatprep.subr.mxu0 0.0
    %7090 = vmatpush2.msra.mxu0 0.0
    %7091 = vmatprep.subr.mxu0 0.0
    %7092 = vmatpush2.msra.mxu0 0.0
    %7093 = vmatprep.subr.mxu0 0.0
    %7094 = vmatpush2.msra.mxu0 0.0
    %7095 = vmatprep.subr.mxu0 0.0
    %7096 = vmatpush2.msra.mxu0 0.0
    %7097 = vmatprep.subr.mxu0 0.0
    %7098 = vmatpush2.msra.mxu0 0.0
    %7099 = vmatprep.subr.mxu0 0.0
    %7100 = vmatpush2.msra.mxu0 0.0
    %7101 = vmatprep.subr.mxu0 0.0
    %7102 = vmatpush2.msra.mxu0 0.0
    %7103 = vmatprep.subr.mxu0 0.0
    %7104 = vmatpush2.msra.mxu0 0.0
    %7105 = vmatprep.subr.mxu0 0.0
    %7106 = vmatpush2.msra.mxu0 0.0
    %7107 = vmatprep.mubr.f32.mxu0 0.0
    %7108 = vmatmul.mubr.f32.gmra.mxu0 %v4262
    %v7109 = vpop.f32.mrf.mxu0
    %v7110 = vadd.f32 0.0, %v7109
    %v7111 = vpop.f32.mrf.mxu0
    %7112 = vdwg.mxu0
    %v7113 = vadd.f32 %v1192, %v7110
    %v7114 = vrot.slane %v3290, 1
    %v7115 = vsel %vm1293, %v7114, 0
    %7117 = vmatprep.subr.mxu0 0.0
    %7118 = vmatpush1.msra.mxu0 0.0
    %7119 = vmatprep.subr.mxu0 0.0
    %7120 = vmatpush1.msra.mxu0 0.0
    %7121 = vmatprep.subr.mxu0 0.0
    %7122 = vmatpush1.msra.mxu0 0.0
    %7123 = vmatprep.subr.mxu0 0.0
    %7124 = vmatpush1.msra.mxu0 0.0
    %7125 = vmatprep.subr.mxu0 0.0
    %7126 = vmatpush1.msra.mxu0 0.0
    %7127 = vmatprep.subr.mxu0 0.0
    %7128 = vmatpush1.msra.mxu0 0.0
    %7129 = vmatprep.subr.mxu0 0.0
    %7130 = vmatpush1.msra.mxu0 0.0
    %7131 = vmatprep.subr.mxu0 0.0
    %7132 = vmatpush1.msra.mxu0 0.0
    %7133 = vmatprep.subr.mxu0 0.0
    %7134 = vmatpush1.msra.mxu0 0.0
    %7135 = vmatprep.subr.mxu0 0.0
    %7136 = vmatpush1.msra.mxu0 0.0
    %7137 = vmatprep.subr.mxu0 0.0
    %7138 = vmatpush1.msra.mxu0 0.0
    %7139 = vmatprep.subr.mxu0 0.0
    %7140 = vmatpush1.msra.mxu0 0.0
    %7141 = vmatprep.subr.mxu0 0.0
    %7142 = vmatpush1.msra.mxu0 %v1167
    %7143 = vmatprep.subr.mxu0 0.0
    %7144 = vmatpush1.msra.mxu0 %v1166
    %7145 = vmatprep.subr.mxu0 0.0
    %7146 = vmatpush1.msra.mxu0 %v1165
    %7147 = vmatprep.subr.mxu0 0.0
    %7148 = vmatpush1.msra.mxu0 %v1164
    %7149 = vmatprep.subr.mxu0 0.0
    %7150 = vmatpush2.msra.mxu0 0.0
    %7151 = vmatprep.subr.mxu0 0.0
    %7152 = vmatpush2.msra.mxu0 0.0
    %7153 = vmatprep.subr.mxu0 0.0
    %7154 = vmatpush2.msra.mxu0 0.0
    %7155 = vmatprep.subr.mxu0 0.0
    %7156 = vmatpush2.msra.mxu0 0.0
    %7157 = vmatprep.subr.mxu0 0.0
    %7158 = vmatpush2.msra.mxu0 0.0
    %7159 = vmatprep.subr.mxu0 0.0
    %7160 = vmatpush2.msra.mxu0 0.0
    %7161 = vmatprep.subr.mxu0 0.0
    %7162 = vmatpush2.msra.mxu0 0.0
    %7163 = vmatprep.subr.mxu0 0.0
    %7164 = vmatpush2.msra.mxu0 0.0
    %7165 = vmatprep.subr.mxu0 0.0
    %7166 = vmatpush2.msra.mxu0 0.0
    %7167 = vmatprep.subr.mxu0 0.0
    %7168 = vmatpush2.msra.mxu0 0.0
    %7169 = vmatprep.subr.mxu0 0.0
    %7170 = vmatpush2.msra.mxu0 0.0
    %7171 = vmatprep.subr.mxu0 0.0
    %7172 = vmatpush2.msra.mxu0 0.0
    %7173 = vmatprep.subr.mxu0 0.0
    %7174 = vmatpush2.msra.mxu0 0.0
    %7175 = vmatprep.subr.mxu0 0.0
    %7176 = vmatpush2.msra.mxu0 0.0
    %7177 = vmatprep.subr.mxu0 0.0
    %7178 = vmatpush2.msra.mxu0 0.0
    %7179 = vmatprep.subr.mxu0 0.0
    %7180 = vmatpush2.msra.mxu0 0.0
    %7181 = vmatprep.mubr.f32.mxu0 0.0
    %7182 = vmatmul.mubr.f32.gmra.mxu0 %v7115
    %v7183 = vpop.f32.mrf.mxu0
    %v7184 = vadd.f32 0.0, %v7183
    %v7185 = vpop.f32.mrf.mxu0
    %7186 = vdwg.mxu0
    %v7187 = vadd.f32 %v7113, %v7184
    %v7188 = vrot.slane %v3290, 2
    %v7189 = vsel %vm1293, %v7188, 0
    %7191 = vmatprep.subr.mxu0 0.0
    %7192 = vmatpush1.msra.mxu0 0.0
    %7193 = vmatprep.subr.mxu0 0.0
    %7194 = vmatpush1.msra.mxu0 0.0
    %7195 = vmatprep.subr.mxu0 0.0
    %7196 = vmatpush1.msra.mxu0 0.0
    %7197 = vmatprep.subr.mxu0 0.0
    %7198 = vmatpush1.msra.mxu0 0.0
    %7199 = vmatprep.subr.mxu0 0.0
    %7200 = vmatpush1.msra.mxu0 0.0
    %7201 = vmatprep.subr.mxu0 0.0
    %7202 = vmatpush1.msra.mxu0 0.0
    %7203 = vmatprep.subr.mxu0 0.0
    %7204 = vmatpush1.msra.mxu0 0.0
    %7205 = vmatprep.subr.mxu0 0.0
    %7206 = vmatpush1.msra.mxu0 0.0
    %7207 = vmatprep.subr.mxu0 0.0
    %7208 = vmatpush1.msra.mxu0 0.0
    %7209 = vmatprep.subr.mxu0 0.0
    %7210 = vmatpush1.msra.mxu0 0.0
    %7211 = vmatprep.subr.mxu0 0.0
    %7212 = vmatpush1.msra.mxu0 0.0
    %7213 = vmatprep.subr.mxu0 0.0
    %7214 = vmatpush1.msra.mxu0 0.0
    %7215 = vmatprep.subr.mxu0 0.0
    %7216 = vmatpush1.msra.mxu0 %v1171
    %7217 = vmatprep.subr.mxu0 0.0
    %7218 = vmatpush1.msra.mxu0 %v1170
    %7219 = vmatprep.subr.mxu0 0.0
    %7220 = vmatpush1.msra.mxu0 %v1169
    %7221 = vmatprep.subr.mxu0 0.0
    %7222 = vmatpush1.msra.mxu0 %v1168
    %7223 = vmatprep.subr.mxu0 0.0
    %7224 = vmatpush2.msra.mxu0 0.0
    %7225 = vmatprep.subr.mxu0 0.0
    %7226 = vmatpush2.msra.mxu0 0.0
    %7227 = vmatprep.subr.mxu0 0.0
    %7228 = vmatpush2.msra.mxu0 0.0
    %7229 = vmatprep.subr.mxu0 0.0
    %7230 = vmatpush2.msra.mxu0 0.0
    %7231 = vmatprep.subr.mxu0 0.0
    %7232 = vmatpush2.msra.mxu0 0.0
    %7233 = vmatprep.subr.mxu0 0.0
    %7234 = vmatpush2.msra.mxu0 0.0
    %7235 = vmatprep.subr.mxu0 0.0
    %7236 = vmatpush2.msra.mxu0 0.0
    %7237 = vmatprep.subr.mxu0 0.0
    %7238 = vmatpush2.msra.mxu0 0.0
    %7239 = vmatprep.subr.mxu0 0.0
    %7240 = vmatpush2.msra.mxu0 0.0
    %7241 = vmatprep.subr.mxu0 0.0
    %7242 = vmatpush2.msra.mxu0 0.0
    %7243 = vmatprep.subr.mxu0 0.0
    %7244 = vmatpush2.msra.mxu0 0.0
    %7245 = vmatprep.subr.mxu0 0.0
    %7246 = vmatpush2.msra.mxu0 0.0
    %7247 = vmatprep.subr.mxu0 0.0
    %7248 = vmatpush2.msra.mxu0 0.0
    %7249 = vmatprep.subr.mxu0 0.0
    %7250 = vmatpush2.msra.mxu0 0.0
    %7251 = vmatprep.subr.mxu0 0.0
    %7252 = vmatpush2.msra.mxu0 0.0
    %7253 = vmatprep.subr.mxu0 0.0
    %7254 = vmatpush2.msra.mxu0 0.0
    %7255 = vmatprep.mubr.f32.mxu0 0.0
    %7256 = vmatmul.mubr.f32.gmra.mxu0 %v7189
    %v7257 = vpop.f32.mrf.mxu0
    %v7258 = vadd.f32 0.0, %v7257
    %v7259 = vpop.f32.mrf.mxu0
    %7260 = vdwg.mxu0
    %v7261 = vadd.f32 %v7187, %v7258
    %v7262 = vrot.slane %v3290, 3
    %v7263 = vsel %vm1293, %v7262, 0
    %7265 = vmatprep.subr.mxu0 0.0
    %7266 = vmatpush1.msra.mxu0 0.0
    %7267 = vmatprep.subr.mxu0 0.0
    %7268 = vmatpush1.msra.mxu0 0.0
    %7269 = vmatprep.subr.mxu0 0.0
    %7270 = vmatpush1.msra.mxu0 0.0
    %7271 = vmatprep.subr.mxu0 0.0
    %7272 = vmatpush1.msra.mxu0 0.0
    %7273 = vmatprep.subr.mxu0 0.0
    %7274 = vmatpush1.msra.mxu0 0.0
    %7275 = vmatprep.subr.mxu0 0.0
    %7276 = vmatpush1.msra.mxu0 0.0
    %7277 = vmatprep.subr.mxu0 0.0
    %7278 = vmatpush1.msra.mxu0 0.0
    %7279 = vmatprep.subr.mxu0 0.0
    %7280 = vmatpush1.msra.mxu0 0.0
    %7281 = vmatprep.subr.mxu0 0.0
    %7282 = vmatpush1.msra.mxu0 0.0
    %7283 = vmatprep.subr.mxu0 0.0
    %7284 = vmatpush1.msra.mxu0 0.0
    %7285 = vmatprep.subr.mxu0 0.0
    %7286 = vmatpush1.msra.mxu0 0.0
    %7287 = vmatprep.subr.mxu0 0.0
    %7288 = vmatpush1.msra.mxu0 0.0
    %7289 = vmatprep.subr.mxu0 0.0
    %7290 = vmatpush1.msra.mxu0 %v1175
    %7291 = vmatprep.subr.mxu0 0.0
    %7292 = vmatpush1.msra.mxu0 %v1174
    %7293 = vmatprep.subr.mxu0 0.0
    %7294 = vmatpush1.msra.mxu0 %v1173
    %7295 = vmatprep.subr.mxu0 0.0
    %7296 = vmatpush1.msra.mxu0 %v1172
    %7297 = vmatprep.subr.mxu0 0.0
    %7298 = vmatpush2.msra.mxu0 0.0
    %7299 = vmatprep.subr.mxu0 0.0
    %7300 = vmatpush2.msra.mxu0 0.0
    %7301 = vmatprep.subr.mxu0 0.0
    %7302 = vmatpush2.msra.mxu0 0.0
    %7303 = vmatprep.subr.mxu0 0.0
    %7304 = vmatpush2.msra.mxu0 0.0
    %7305 = vmatprep.subr.mxu0 0.0
    %7306 = vmatpush2.msra.mxu0 0.0
    %7307 = vmatprep.subr.mxu0 0.0
    %7308 = vmatpush2.msra.mxu0 0.0
    %7309 = vmatprep.subr.mxu0 0.0
    %7310 = vmatpush2.msra.mxu0 0.0
    %7311 = vmatprep.subr.mxu0 0.0
    %7312 = vmatpush2.msra.mxu0 0.0
    %7313 = vmatprep.subr.mxu0 0.0
    %7314 = vmatpush2.msra.mxu0 0.0
    %7315 = vmatprep.subr.mxu0 0.0
    %7316 = vmatpush2.msra.mxu0 0.0
    %7317 = vmatprep.subr.mxu0 0.0
    %7318 = vmatpush2.msra.mxu0 0.0
    %7319 = vmatprep.subr.mxu0 0.0
    %7320 = vmatpush2.msra.mxu0 0.0
    %7321 = vmatprep.subr.mxu0 0.0
    %7322 = vmatpush2.msra.mxu0 0.0
    %7323 = vmatprep.subr.mxu0 0.0
    %7324 = vmatpush2.msra.mxu0 0.0
    %7325 = vmatprep.subr.mxu0 0.0
    %7326 = vmatpush2.msra.mxu0 0.0
    %7327 = vmatprep.subr.mxu0 0.0
    %7328 = vmatpush2.msra.mxu0 0.0
    %7329 = vmatprep.mubr.f32.mxu0 0.0
    %7330 = vmatmul.mubr.f32.gmra.mxu0 %v7263
    %v7331 = vpop.f32.mrf.mxu0
    %v7332 = vadd.f32 0.0, %v7331
    %v7333 = vpop.f32.mrf.mxu0
    %7334 = vdwg.mxu0
    %v7335 = vadd.f32 %v7261, %v7332
    %v7336 = vrot.slane %v3290, 4
    %v7337 = vsel %vm1293, %v7336, 0
    %7339 = vmatprep.subr.mxu0 0.0
    %7340 = vmatpush1.msra.mxu0 0.0
    %7341 = vmatprep.subr.mxu0 0.0
    %7342 = vmatpush1.msra.mxu0 0.0
    %7343 = vmatprep.subr.mxu0 0.0
    %7344 = vmatpush1.msra.mxu0 0.0
    %7345 = vmatprep.subr.mxu0 0.0
    %7346 = vmatpush1.msra.mxu0 0.0
    %7347 = vmatprep.subr.mxu0 0.0
    %7348 = vmatpush1.msra.mxu0 0.0
    %7349 = vmatprep.subr.mxu0 0.0
    %7350 = vmatpush1.msra.mxu0 0.0
    %7351 = vmatprep.subr.mxu0 0.0
    %7352 = vmatpush1.msra.mxu0 0.0
    %7353 = vmatprep.subr.mxu0 0.0
    %7354 = vmatpush1.msra.mxu0 0.0
    %7355 = vmatprep.subr.mxu0 0.0
    %7356 = vmatpush1.msra.mxu0 0.0
    %7357 = vmatprep.subr.mxu0 0.0
    %7358 = vmatpush1.msra.mxu0 0.0
    %7359 = vmatprep.subr.mxu0 0.0
    %7360 = vmatpush1.msra.mxu0 0.0
    %7361 = vmatprep.subr.mxu0 0.0
    %7362 = vmatpush1.msra.mxu0 0.0
    %7363 = vmatprep.subr.mxu0 0.0
    %7364 = vmatpush1.msra.mxu0 %v1179
    %7365 = vmatprep.subr.mxu0 0.0
    %7366 = vmatpush1.msra.mxu0 %v1178
    %7367 = vmatprep.subr.mxu0 0.0
    %7368 = vmatpush1.msra.mxu0 %v1177
    %7369 = vmatprep.subr.mxu0 0.0
    %7370 = vmatpush1.msra.mxu0 %v1176
    %7371 = vmatprep.subr.mxu0 0.0
    %7372 = vmatpush2.msra.mxu0 0.0
    %7373 = vmatprep.subr.mxu0 0.0
    %7374 = vmatpush2.msra.mxu0 0.0
    %7375 = vmatprep.subr.mxu0 0.0
    %7376 = vmatpush2.msra.mxu0 0.0
    %7377 = vmatprep.subr.mxu0 0.0
    %7378 = vmatpush2.msra.mxu0 0.0
    %7379 = vmatprep.subr.mxu0 0.0
    %7380 = vmatpush2.msra.mxu0 0.0
    %7381 = vmatprep.subr.mxu0 0.0
    %7382 = vmatpush2.msra.mxu0 0.0
    %7383 = vmatprep.subr.mxu0 0.0
    %7384 = vmatpush2.msra.mxu0 0.0
    %7385 = vmatprep.subr.mxu0 0.0
    %7386 = vmatpush2.msra.mxu0 0.0
    %7387 = vmatprep.subr.mxu0 0.0
    %7388 = vmatpush2.msra.mxu0 0.0
    %7389 = vmatprep.subr.mxu0 0.0
    %7390 = vmatpush2.msra.mxu0 0.0
    %7391 = vmatprep.subr.mxu0 0.0
    %7392 = vmatpush2.msra.mxu0 0.0
    %7393 = vmatprep.subr.mxu0 0.0
    %7394 = vmatpush2.msra.mxu0 0.0
    %7395 = vmatprep.subr.mxu0 0.0
    %7396 = vmatpush2.msra.mxu0 0.0
    %7397 = vmatprep.subr.mxu0 0.0
    %7398 = vmatpush2.msra.mxu0 0.0
    %7399 = vmatprep.subr.mxu0 0.0
    %7400 = vmatpush2.msra.mxu0 0.0
    %7401 = vmatprep.subr.mxu0 0.0
    %7402 = vmatpush2.msra.mxu0 0.0
    %7403 = vmatprep.mubr.f32.mxu0 0.0
    %7404 = vmatmul.mubr.f32.gmra.mxu0 %v7337
    %v7405 = vpop.f32.mrf.mxu0
    %v7406 = vadd.f32 0.0, %v7405
    %v7407 = vpop.f32.mrf.mxu0
    %7408 = vdwg.mxu0
    %v7409 = vadd.f32 %v7335, %v7406
    %v7410 = vrot.slane %v3290, 5
    %v7411 = vsel %vm1293, %v7410, 0
    %7413 = vmatprep.subr.mxu0 0.0
    %7414 = vmatpush1.msra.mxu0 0.0
    %7415 = vmatprep.subr.mxu0 0.0
    %7416 = vmatpush1.msra.mxu0 0.0
    %7417 = vmatprep.subr.mxu0 0.0
    %7418 = vmatpush1.msra.mxu0 0.0
    %7419 = vmatprep.subr.mxu0 0.0
    %7420 = vmatpush1.msra.mxu0 0.0
    %7421 = vmatprep.subr.mxu0 0.0
    %7422 = vmatpush1.msra.mxu0 0.0
    %7423 = vmatprep.subr.mxu0 0.0
    %7424 = vmatpush1.msra.mxu0 0.0
    %7425 = vmatprep.subr.mxu0 0.0
    %7426 = vmatpush1.msra.mxu0 0.0
    %7427 = vmatprep.subr.mxu0 0.0
    %7428 = vmatpush1.msra.mxu0 0.0
    %7429 = vmatprep.subr.mxu0 0.0
    %7430 = vmatpush1.msra.mxu0 0.0
    %7431 = vmatprep.subr.mxu0 0.0
    %7432 = vmatpush1.msra.mxu0 0.0
    %7433 = vmatprep.subr.mxu0 0.0
    %7434 = vmatpush1.msra.mxu0 0.0
    %7435 = vmatprep.subr.mxu0 0.0
    %7436 = vmatpush1.msra.mxu0 0.0
    %7437 = vmatprep.subr.mxu0 0.0
    %7438 = vmatpush1.msra.mxu0 %v1183
    %7439 = vmatprep.subr.mxu0 0.0
    %7440 = vmatpush1.msra.mxu0 %v1182
    %7441 = vmatprep.subr.mxu0 0.0
    %7442 = vmatpush1.msra.mxu0 %v1181
    %7443 = vmatprep.subr.mxu0 0.0
    %7444 = vmatpush1.msra.mxu0 %v1180
    %7445 = vmatprep.subr.mxu0 0.0
    %7446 = vmatpush2.msra.mxu0 0.0
    %7447 = vmatprep.subr.mxu0 0.0
    %7448 = vmatpush2.msra.mxu0 0.0
    %7449 = vmatprep.subr.mxu0 0.0
    %7450 = vmatpush2.msra.mxu0 0.0
    %7451 = vmatprep.subr.mxu0 0.0
    %7452 = vmatpush2.msra.mxu0 0.0
    %7453 = vmatprep.subr.mxu0 0.0
    %7454 = vmatpush2.msra.mxu0 0.0
    %7455 = vmatprep.subr.mxu0 0.0
    %7456 = vmatpush2.msra.mxu0 0.0
    %7457 = vmatprep.subr.mxu0 0.0
    %7458 = vmatpush2.msra.mxu0 0.0
    %7459 = vmatprep.subr.mxu0 0.0
    %7460 = vmatpush2.msra.mxu0 0.0
    %7461 = vmatprep.subr.mxu0 0.0
    %7462 = vmatpush2.msra.mxu0 0.0
    %7463 = vmatprep.subr.mxu0 0.0
    %7464 = vmatpush2.msra.mxu0 0.0
    %7465 = vmatprep.subr.mxu0 0.0
    %7466 = vmatpush2.msra.mxu0 0.0
    %7467 = vmatprep.subr.mxu0 0.0
    %7468 = vmatpush2.msra.mxu0 0.0
    %7469 = vmatprep.subr.mxu0 0.0
    %7470 = vmatpush2.msra.mxu0 0.0
    %7471 = vmatprep.subr.mxu0 0.0
    %7472 = vmatpush2.msra.mxu0 0.0
    %7473 = vmatprep.subr.mxu0 0.0
    %7474 = vmatpush2.msra.mxu0 0.0
    %7475 = vmatprep.subr.mxu0 0.0
    %7476 = vmatpush2.msra.mxu0 0.0
    %7477 = vmatprep.mubr.f32.mxu0 0.0
    %7478 = vmatmul.mubr.f32.gmra.mxu0 %v7411
    %v7479 = vpop.f32.mrf.mxu0
    %v7480 = vadd.f32 0.0, %v7479
    %v7481 = vpop.f32.mrf.mxu0
    %7482 = vdwg.mxu0
    %v7483 = vadd.f32 %v7409, %v7480
    %v7484 = vrot.slane %v3290, 6
    %v7485 = vsel %vm1293, %v7484, 0
    %7487 = vmatprep.subr.mxu0 0.0
    %7488 = vmatpush1.msra.mxu0 0.0
    %7489 = vmatprep.subr.mxu0 0.0
    %7490 = vmatpush1.msra.mxu0 0.0
    %7491 = vmatprep.subr.mxu0 0.0
    %7492 = vmatpush1.msra.mxu0 0.0
    %7493 = vmatprep.subr.mxu0 0.0
    %7494 = vmatpush1.msra.mxu0 0.0
    %7495 = vmatprep.subr.mxu0 0.0
    %7496 = vmatpush1.msra.mxu0 0.0
    %7497 = vmatprep.subr.mxu0 0.0
    %7498 = vmatpush1.msra.mxu0 0.0
    %7499 = vmatprep.subr.mxu0 0.0
    %7500 = vmatpush1.msra.mxu0 0.0
    %7501 = vmatprep.subr.mxu0 0.0
    %7502 = vmatpush1.msra.mxu0 0.0
    %7503 = vmatprep.subr.mxu0 0.0
    %7504 = vmatpush1.msra.mxu0 0.0
    %7505 = vmatprep.subr.mxu0 0.0
    %7506 = vmatpush1.msra.mxu0 0.0
    %7507 = vmatprep.subr.mxu0 0.0
    %7508 = vmatpush1.msra.mxu0 0.0
    %7509 = vmatprep.subr.mxu0 0.0
    %7510 = vmatpush1.msra.mxu0 0.0
    %7511 = vmatprep.subr.mxu0 0.0
    %7512 = vmatpush1.msra.mxu0 %v1187
    %7513 = vmatprep.subr.mxu0 0.0
    %7514 = vmatpush1.msra.mxu0 %v1186
    %7515 = vmatprep.subr.mxu0 0.0
    %7516 = vmatpush1.msra.mxu0 %v1185
    %7517 = vmatprep.subr.mxu0 0.0
    %7518 = vmatpush1.msra.mxu0 %v1184
    %7519 = vmatprep.subr.mxu0 0.0
    %7520 = vmatpush2.msra.mxu0 0.0
    %7521 = vmatprep.subr.mxu0 0.0
    %7522 = vmatpush2.msra.mxu0 0.0
    %7523 = vmatprep.subr.mxu0 0.0
    %7524 = vmatpush2.msra.mxu0 0.0
    %7525 = vmatprep.subr.mxu0 0.0
    %7526 = vmatpush2.msra.mxu0 0.0
    %7527 = vmatprep.subr.mxu0 0.0
    %7528 = vmatpush2.msra.mxu0 0.0
    %7529 = vmatprep.subr.mxu0 0.0
    %7530 = vmatpush2.msra.mxu0 0.0
    %7531 = vmatprep.subr.mxu0 0.0
    %7532 = vmatpush2.msra.mxu0 0.0
    %7533 = vmatprep.subr.mxu0 0.0
    %7534 = vmatpush2.msra.mxu0 0.0
    %7535 = vmatprep.subr.mxu0 0.0
    %7536 = vmatpush2.msra.mxu0 0.0
    %7537 = vmatprep.subr.mxu0 0.0
    %7538 = vmatpush2.msra.mxu0 0.0
    %7539 = vmatprep.subr.mxu0 0.0
    %7540 = vmatpush2.msra.mxu0 0.0
    %7541 = vmatprep.subr.mxu0 0.0
    %7542 = vmatpush2.msra.mxu0 0.0
    %7543 = vmatprep.subr.mxu0 0.0
    %7544 = vmatpush2.msra.mxu0 0.0
    %7545 = vmatprep.subr.mxu0 0.0
    %7546 = vmatpush2.msra.mxu0 0.0
    %7547 = vmatprep.subr.mxu0 0.0
    %7548 = vmatpush2.msra.mxu0 0.0
    %7549 = vmatprep.subr.mxu0 0.0
    %7550 = vmatpush2.msra.mxu0 0.0
    %7551 = vmatprep.mubr.f32.mxu0 0.0
    %7552 = vmatmul.mubr.f32.gmra.mxu0 %v7485
    %v7553 = vpop.f32.mrf.mxu0
    %v7554 = vadd.f32 0.0, %v7553
    %v7555 = vpop.f32.mrf.mxu0
    %7556 = vdwg.mxu0
    %v7557 = vadd.f32 %v7483, %v7554
    %v7558 = vrot.slane %v3290, 7
    %v7559 = vsel %vm1293, %v7558, 0
    %7561 = vmatprep.subr.mxu0 0.0
    %7562 = vmatpush1.msra.mxu0 0.0
    %7563 = vmatprep.subr.mxu0 0.0
    %7564 = vmatpush1.msra.mxu0 0.0
    %7565 = vmatprep.subr.mxu0 0.0
    %7566 = vmatpush1.msra.mxu0 0.0
    %7567 = vmatprep.subr.mxu0 0.0
    %7568 = vmatpush1.msra.mxu0 0.0
    %7569 = vmatprep.subr.mxu0 0.0
    %7570 = vmatpush1.msra.mxu0 0.0
    %7571 = vmatprep.subr.mxu0 0.0
    %7572 = vmatpush1.msra.mxu0 0.0
    %7573 = vmatprep.subr.mxu0 0.0
    %7574 = vmatpush1.msra.mxu0 0.0
    %7575 = vmatprep.subr.mxu0 0.0
    %7576 = vmatpush1.msra.mxu0 0.0
    %7577 = vmatprep.subr.mxu0 0.0
    %7578 = vmatpush1.msra.mxu0 0.0
    %7579 = vmatprep.subr.mxu0 0.0
    %7580 = vmatpush1.msra.mxu0 0.0
    %7581 = vmatprep.subr.mxu0 0.0
    %7582 = vmatpush1.msra.mxu0 0.0
    %7583 = vmatprep.subr.mxu0 0.0
    %7584 = vmatpush1.msra.mxu0 0.0
    %7585 = vmatprep.subr.mxu0 0.0
    %7586 = vmatpush1.msra.mxu0 %v1191
    %7587 = vmatprep.subr.mxu0 0.0
    %7588 = vmatpush1.msra.mxu0 %v1190
    %7589 = vmatprep.subr.mxu0 0.0
    %7590 = vmatpush1.msra.mxu0 %v1189
    %7591 = vmatprep.subr.mxu0 0.0
    %7592 = vmatpush1.msra.mxu0 %v1188
    %7593 = vmatprep.subr.mxu0 0.0
    %7594 = vmatpush2.msra.mxu0 0.0
    %7595 = vmatprep.subr.mxu0 0.0
    %7596 = vmatpush2.msra.mxu0 0.0
    %7597 = vmatprep.subr.mxu0 0.0
    %7598 = vmatpush2.msra.mxu0 0.0
    %7599 = vmatprep.subr.mxu0 0.0
    %7600 = vmatpush2.msra.mxu0 0.0
    %7601 = vmatprep.subr.mxu0 0.0
    %7602 = vmatpush2.msra.mxu0 0.0
    %7603 = vmatprep.subr.mxu0 0.0
    %7604 = vmatpush2.msra.mxu0 0.0
    %7605 = vmatprep.subr.mxu0 0.0
    %7606 = vmatpush2.msra.mxu0 0.0
    %7607 = vmatprep.subr.mxu0 0.0
    %7608 = vmatpush2.msra.mxu0 0.0
    %7609 = vmatprep.subr.mxu0 0.0
    %7610 = vmatpush2.msra.mxu0 0.0
    %7611 = vmatprep.subr.mxu0 0.0
    %7612 = vmatpush2.msra.mxu0 0.0
    %7613 = vmatprep.subr.mxu0 0.0
    %7614 = vmatpush2.msra.mxu0 0.0
    %7615 = vmatprep.subr.mxu0 0.0
    %7616 = vmatpush2.msra.mxu0 0.0
    %7617 = vmatprep.subr.mxu0 0.0
    %7618 = vmatpush2.msra.mxu0 0.0
    %7619 = vmatprep.subr.mxu0 0.0
    %7620 = vmatpush2.msra.mxu0 0.0
    %7621 = vmatprep.subr.mxu0 0.0
    %7622 = vmatpush2.msra.mxu0 0.0
    %7623 = vmatprep.subr.mxu0 0.0
    %7624 = vmatpush2.msra.mxu0 0.0
    %7625 = vmatprep.mubr.f32.mxu0 0.0
    %7626 = vmatmul.mubr.f32.gmra.mxu0 %v7559
    %v7627 = vpop.f32.mrf.mxu0
    %v7628 = vadd.f32 0.0, %v7627
    %v7629 = vpop.f32.mrf.mxu0
    %7630 = vdwg.mxu0
    %v7631 = vadd.f32 %v7557, %v7628
    %7632 = vst [vmem:[#allocation83] sm:$0x1] %v7631
    %7633 = vmatprep.subr.mxu0 0.0
    %7634 = vmatpush1.msra.mxu0 0.0
    %7635 = vmatprep.subr.mxu0 0.0
    %7636 = vmatpush1.msra.mxu0 0.0
    %7637 = vmatprep.subr.mxu0 0.0
    %7638 = vmatpush1.msra.mxu0 0.0
    %7639 = vmatprep.subr.mxu0 0.0
    %7640 = vmatpush1.msra.mxu0 0.0
    %7641 = vmatprep.subr.mxu0 0.0
    %7642 = vmatpush1.msra.mxu0 0.0
    %7643 = vmatprep.subr.mxu0 0.0
    %7644 = vmatpush1.msra.mxu0 0.0
    %7645 = vmatprep.subr.mxu0 0.0
    %7646 = vmatpush1.msra.mxu0 0.0
    %7647 = vmatprep.subr.mxu0 0.0
    %7648 = vmatpush1.msra.mxu0 0.0
    %7649 = vmatprep.subr.mxu0 0.0
    %7650 = vmatpush1.msra.mxu0 0.0
    %7651 = vmatprep.subr.mxu0 0.0
    %7652 = vmatpush1.msra.mxu0 0.0
    %7653 = vmatprep.subr.mxu0 0.0
    %7654 = vmatpush1.msra.mxu0 0.0
    %7655 = vmatprep.subr.mxu0 0.0
    %7656 = vmatpush1.msra.mxu0 0.0
    %7657 = vmatprep.subr.mxu0 0.0
    %7658 = vmatpush1.msra.mxu0 %v1163
    %7659 = vmatprep.subr.mxu0 0.0
    %7660 = vmatpush1.msra.mxu0 %v1162
    %7661 = vmatprep.subr.mxu0 0.0
    %7662 = vmatpush1.msra.mxu0 %v1161
    %7663 = vmatprep.subr.mxu0 0.0
    %7664 = vmatpush1.msra.mxu0 %v1160
    %7665 = vmatprep.subr.mxu0 0.0
    %7666 = vmatpush2.msra.mxu0 0.0
    %7667 = vmatprep.subr.mxu0 0.0
    %7668 = vmatpush2.msra.mxu0 0.0
    %7669 = vmatprep.subr.mxu0 0.0
    %7670 = vmatpush2.msra.mxu0 0.0
    %7671 = vmatprep.subr.mxu0 0.0
    %7672 = vmatpush2.msra.mxu0 0.0
    %7673 = vmatprep.subr.mxu0 0.0
    %7674 = vmatpush2.msra.mxu0 0.0
    %7675 = vmatprep.subr.mxu0 0.0
    %7676 = vmatpush2.msra.mxu0 0.0
    %7677 = vmatprep.subr.mxu0 0.0
    %7678 = vmatpush2.msra.mxu0 0.0
    %7679 = vmatprep.subr.mxu0 0.0
    %7680 = vmatpush2.msra.mxu0 0.0
    %7681 = vmatprep.subr.mxu0 0.0
    %7682 = vmatpush2.msra.mxu0 0.0
    %7683 = vmatprep.subr.mxu0 0.0
    %7684 = vmatpush2.msra.mxu0 0.0
    %7685 = vmatprep.subr.mxu0 0.0
    %7686 = vmatpush2.msra.mxu0 0.0
    %7687 = vmatprep.subr.mxu0 0.0
    %7688 = vmatpush2.msra.mxu0 0.0
    %7689 = vmatprep.subr.mxu0 0.0
    %7690 = vmatpush2.msra.mxu0 0.0
    %7691 = vmatprep.subr.mxu0 0.0
    %7692 = vmatpush2.msra.mxu0 0.0
    %7693 = vmatprep.subr.mxu0 0.0
    %7694 = vmatpush2.msra.mxu0 0.0
    %7695 = vmatprep.subr.mxu0 0.0
    %7696 = vmatpush2.msra.mxu0 0.0
    %7697 = vmatprep.mubr.f32.mxu0 0.0
    %7698 = vmatmul.mubr.f32.gmra.mxu0 %v4265
    %v7699 = vpop.f32.mrf.mxu0
    %v7700 = vadd.f32 0.0, %v7699
    %v7701 = vpop.f32.mrf.mxu0
    %7702 = vdwg.mxu0
    %v7703 = vadd.f32 %v1192, %v7700
    %v7704 = vrot.slane %v3291, 1
    %v7705 = vsel %vm1293, %v7704, 0
    %7707 = vmatprep.subr.mxu0 0.0
    %7708 = vmatpush1.msra.mxu0 0.0
    %7709 = vmatprep.subr.mxu0 0.0
    %7710 = vmatpush1.msra.mxu0 0.0
    %7711 = vmatprep.subr.mxu0 0.0
    %7712 = vmatpush1.msra.mxu0 0.0
    %7713 = vmatprep.subr.mxu0 0.0
    %7714 = vmatpush1.msra.mxu0 0.0
    %7715 = vmatprep.subr.mxu0 0.0
    %7716 = vmatpush1.msra.mxu0 0.0
    %7717 = vmatprep.subr.mxu0 0.0
    %7718 = vmatpush1.msra.mxu0 0.0
    %7719 = vmatprep.subr.mxu0 0.0
    %7720 = vmatpush1.msra.mxu0 0.0
    %7721 = vmatprep.subr.mxu0 0.0
    %7722 = vmatpush1.msra.mxu0 0.0
    %7723 = vmatprep.subr.mxu0 0.0
    %7724 = vmatpush1.msra.mxu0 0.0
    %7725 = vmatprep.subr.mxu0 0.0
    %7726 = vmatpush1.msra.mxu0 0.0
    %7727 = vmatprep.subr.mxu0 0.0
    %7728 = vmatpush1.msra.mxu0 0.0
    %7729 = vmatprep.subr.mxu0 0.0
    %7730 = vmatpush1.msra.mxu0 0.0
    %7731 = vmatprep.subr.mxu0 0.0
    %7732 = vmatpush1.msra.mxu0 %v1167
    %7733 = vmatprep.subr.mxu0 0.0
    %7734 = vmatpush1.msra.mxu0 %v1166
    %7735 = vmatprep.subr.mxu0 0.0
    %7736 = vmatpush1.msra.mxu0 %v1165
    %7737 = vmatprep.subr.mxu0 0.0
    %7738 = vmatpush1.msra.mxu0 %v1164
    %7739 = vmatprep.subr.mxu0 0.0
    %7740 = vmatpush2.msra.mxu0 0.0
    %7741 = vmatprep.subr.mxu0 0.0
    %7742 = vmatpush2.msra.mxu0 0.0
    %7743 = vmatprep.subr.mxu0 0.0
    %7744 = vmatpush2.msra.mxu0 0.0
    %7745 = vmatprep.subr.mxu0 0.0
    %7746 = vmatpush2.msra.mxu0 0.0
    %7747 = vmatprep.subr.mxu0 0.0
    %7748 = vmatpush2.msra.mxu0 0.0
    %7749 = vmatprep.subr.mxu0 0.0
    %7750 = vmatpush2.msra.mxu0 0.0
    %7751 = vmatprep.subr.mxu0 0.0
    %7752 = vmatpush2.msra.mxu0 0.0
    %7753 = vmatprep.subr.mxu0 0.0
    %7754 = vmatpush2.msra.mxu0 0.0
    %7755 = vmatprep.subr.mxu0 0.0
    %7756 = vmatpush2.msra.mxu0 0.0
    %7757 = vmatprep.subr.mxu0 0.0
    %7758 = vmatpush2.msra.mxu0 0.0
    %7759 = vmatprep.subr.mxu0 0.0
    %7760 = vmatpush2.msra.mxu0 0.0
    %7761 = vmatprep.subr.mxu0 0.0
    %7762 = vmatpush2.msra.mxu0 0.0
    %7763 = vmatprep.subr.mxu0 0.0
    %7764 = vmatpush2.msra.mxu0 0.0
    %7765 = vmatprep.subr.mxu0 0.0
    %7766 = vmatpush2.msra.mxu0 0.0
    %7767 = vmatprep.subr.mxu0 0.0
    %7768 = vmatpush2.msra.mxu0 0.0
    %7769 = vmatprep.subr.mxu0 0.0
    %7770 = vmatpush2.msra.mxu0 0.0
    %7771 = vmatprep.mubr.f32.mxu0 0.0
    %7772 = vmatmul.mubr.f32.gmra.mxu0 %v7705
    %v7773 = vpop.f32.mrf.mxu0
    %v7774 = vadd.f32 0.0, %v7773
    %v7775 = vpop.f32.mrf.mxu0
    %7776 = vdwg.mxu0
    %v7777 = vadd.f32 %v7703, %v7774
    %v7778 = vrot.slane %v3291, 2
    %v7779 = vsel %vm1293, %v7778, 0
    %7781 = vmatprep.subr.mxu0 0.0
    %7782 = vmatpush1.msra.mxu0 0.0
    %7783 = vmatprep.subr.mxu0 0.0
    %7784 = vmatpush1.msra.mxu0 0.0
    %7785 = vmatprep.subr.mxu0 0.0
    %7786 = vmatpush1.msra.mxu0 0.0
    %7787 = vmatprep.subr.mxu0 0.0
    %7788 = vmatpush1.msra.mxu0 0.0
    %7789 = vmatprep.subr.mxu0 0.0
    %7790 = vmatpush1.msra.mxu0 0.0
    %7791 = vmatprep.subr.mxu0 0.0
    %7792 = vmatpush1.msra.mxu0 0.0
    %7793 = vmatprep.subr.mxu0 0.0
    %7794 = vmatpush1.msra.mxu0 0.0
    %7795 = vmatprep.subr.mxu0 0.0
    %7796 = vmatpush1.msra.mxu0 0.0
    %7797 = vmatprep.subr.mxu0 0.0
    %7798 = vmatpush1.msra.mxu0 0.0
    %7799 = vmatprep.subr.mxu0 0.0
    %7800 = vmatpush1.msra.mxu0 0.0
    %7801 = vmatprep.subr.mxu0 0.0
    %7802 = vmatpush1.msra.mxu0 0.0
    %7803 = vmatprep.subr.mxu0 0.0
    %7804 = vmatpush1.msra.mxu0 0.0
    %7805 = vmatprep.subr.mxu0 0.0
    %7806 = vmatpush1.msra.mxu0 %v1171
    %7807 = vmatprep.subr.mxu0 0.0
    %7808 = vmatpush1.msra.mxu0 %v1170
    %7809 = vmatprep.subr.mxu0 0.0
    %7810 = vmatpush1.msra.mxu0 %v1169
    %7811 = vmatprep.subr.mxu0 0.0
    %7812 = vmatpush1.msra.mxu0 %v1168
    %7813 = vmatprep.subr.mxu0 0.0
    %7814 = vmatpush2.msra.mxu0 0.0
    %7815 = vmatprep.subr.mxu0 0.0
    %7816 = vmatpush2.msra.mxu0 0.0
    %7817 = vmatprep.subr.mxu0 0.0
    %7818 = vmatpush2.msra.mxu0 0.0
    %7819 = vmatprep.subr.mxu0 0.0
    %7820 = vmatpush2.msra.mxu0 0.0
    %7821 = vmatprep.subr.mxu0 0.0
    %7822 = vmatpush2.msra.mxu0 0.0
    %7823 = vmatprep.subr.mxu0 0.0
    %7824 = vmatpush2.msra.mxu0 0.0
    %7825 = vmatprep.subr.mxu0 0.0
    %7826 = vmatpush2.msra.mxu0 0.0
    %7827 = vmatprep.subr.mxu0 0.0
    %7828 = vmatpush2.msra.mxu0 0.0
    %7829 = vmatprep.subr.mxu0 0.0
    %7830 = vmatpush2.msra.mxu0 0.0
    %7831 = vmatprep.subr.mxu0 0.0
    %7832 = vmatpush2.msra.mxu0 0.0
    %7833 = vmatprep.subr.mxu0 0.0
    %7834 = vmatpush2.msra.mxu0 0.0
    %7835 = vmatprep.subr.mxu0 0.0
    %7836 = vmatpush2.msra.mxu0 0.0
    %7837 = vmatprep.subr.mxu0 0.0
    %7838 = vmatpush2.msra.mxu0 0.0
    %7839 = vmatprep.subr.mxu0 0.0
    %7840 = vmatpush2.msra.mxu0 0.0
    %7841 = vmatprep.subr.mxu0 0.0
    %7842 = vmatpush2.msra.mxu0 0.0
    %7843 = vmatprep.subr.mxu0 0.0
    %7844 = vmatpush2.msra.mxu0 0.0
    %7845 = vmatprep.mubr.f32.mxu0 0.0
    %7846 = vmatmul.mubr.f32.gmra.mxu0 %v7779
    %v7847 = vpop.f32.mrf.mxu0
    %v7848 = vadd.f32 0.0, %v7847
    %v7849 = vpop.f32.mrf.mxu0
    %7850 = vdwg.mxu0
    %v7851 = vadd.f32 %v7777, %v7848
    %v7852 = vrot.slane %v3291, 3
    %v7853 = vsel %vm1293, %v7852, 0
    %7855 = vmatprep.subr.mxu0 0.0
    %7856 = vmatpush1.msra.mxu0 0.0
    %7857 = vmatprep.subr.mxu0 0.0
    %7858 = vmatpush1.msra.mxu0 0.0
    %7859 = vmatprep.subr.mxu0 0.0
    %7860 = vmatpush1.msra.mxu0 0.0
    %7861 = vmatprep.subr.mxu0 0.0
    %7862 = vmatpush1.msra.mxu0 0.0
    %7863 = vmatprep.subr.mxu0 0.0
    %7864 = vmatpush1.msra.mxu0 0.0
    %7865 = vmatprep.subr.mxu0 0.0
    %7866 = vmatpush1.msra.mxu0 0.0
    %7867 = vmatprep.subr.mxu0 0.0
    %7868 = vmatpush1.msra.mxu0 0.0
    %7869 = vmatprep.subr.mxu0 0.0
    %7870 = vmatpush1.msra.mxu0 0.0
    %7871 = vmatprep.subr.mxu0 0.0
    %7872 = vmatpush1.msra.mxu0 0.0
    %7873 = vmatprep.subr.mxu0 0.0
    %7874 = vmatpush1.msra.mxu0 0.0
    %7875 = vmatprep.subr.mxu0 0.0
    %7876 = vmatpush1.msra.mxu0 0.0
    %7877 = vmatprep.subr.mxu0 0.0
    %7878 = vmatpush1.msra.mxu0 0.0
    %7879 = vmatprep.subr.mxu0 0.0
    %7880 = vmatpush1.msra.mxu0 %v1175
    %7881 = vmatprep.subr.mxu0 0.0
    %7882 = vmatpush1.msra.mxu0 %v1174
    %7883 = vmatprep.subr.mxu0 0.0
    %7884 = vmatpush1.msra.mxu0 %v1173
    %7885 = vmatprep.subr.mxu0 0.0
    %7886 = vmatpush1.msra.mxu0 %v1172
    %7887 = vmatprep.subr.mxu0 0.0
    %7888 = vmatpush2.msra.mxu0 0.0
    %7889 = vmatprep.subr.mxu0 0.0
    %7890 = vmatpush2.msra.mxu0 0.0
    %7891 = vmatprep.subr.mxu0 0.0
    %7892 = vmatpush2.msra.mxu0 0.0
    %7893 = vmatprep.subr.mxu0 0.0
    %7894 = vmatpush2.msra.mxu0 0.0
    %7895 = vmatprep.subr.mxu0 0.0
    %7896 = vmatpush2.msra.mxu0 0.0
    %7897 = vmatprep.subr.mxu0 0.0
    %7898 = vmatpush2.msra.mxu0 0.0
    %7899 = vmatprep.subr.mxu0 0.0
    %7900 = vmatpush2.msra.mxu0 0.0
    %7901 = vmatprep.subr.mxu0 0.0
    %7902 = vmatpush2.msra.mxu0 0.0
    %7903 = vmatprep.subr.mxu0 0.0
    %7904 = vmatpush2.msra.mxu0 0.0
    %7905 = vmatprep.subr.mxu0 0.0
    %7906 = vmatpush2.msra.mxu0 0.0
    %7907 = vmatprep.subr.mxu0 0.0
    %7908 = vmatpush2.msra.mxu0 0.0
    %7909 = vmatprep.subr.mxu0 0.0
    %7910 = vmatpush2.msra.mxu0 0.0
    %7911 = vmatprep.subr.mxu0 0.0
    %7912 = vmatpush2.msra.mxu0 0.0
    %7913 = vmatprep.subr.mxu0 0.0
    %7914 = vmatpush2.msra.mxu0 0.0
    %7915 = vmatprep.subr.mxu0 0.0
    %7916 = vmatpush2.msra.mxu0 0.0
    %7917 = vmatprep.subr.mxu0 0.0
    %7918 = vmatpush2.msra.mxu0 0.0
    %7919 = vmatprep.mubr.f32.mxu0 0.0
    %7920 = vmatmul.mubr.f32.gmra.mxu0 %v7853
    %v7921 = vpop.f32.mrf.mxu0
    %v7922 = vadd.f32 0.0, %v7921
    %v7923 = vpop.f32.mrf.mxu0
    %7924 = vdwg.mxu0
    %v7925 = vadd.f32 %v7851, %v7922
    %v7926 = vrot.slane %v3291, 4
    %v7927 = vsel %vm1293, %v7926, 0
    %7929 = vmatprep.subr.mxu0 0.0
    %7930 = vmatpush1.msra.mxu0 0.0
    %7931 = vmatprep.subr.mxu0 0.0
    %7932 = vmatpush1.msra.mxu0 0.0
    %7933 = vmatprep.subr.mxu0 0.0
    %7934 = vmatpush1.msra.mxu0 0.0
    %7935 = vmatprep.subr.mxu0 0.0
    %7936 = vmatpush1.msra.mxu0 0.0
    %7937 = vmatprep.subr.mxu0 0.0
    %7938 = vmatpush1.msra.mxu0 0.0
    %7939 = vmatprep.subr.mxu0 0.0
    %7940 = vmatpush1.msra.mxu0 0.0
    %7941 = vmatprep.subr.mxu0 0.0
    %7942 = vmatpush1.msra.mxu0 0.0
    %7943 = vmatprep.subr.mxu0 0.0
    %7944 = vmatpush1.msra.mxu0 0.0
    %7945 = vmatprep.subr.mxu0 0.0
    %7946 = vmatpush1.msra.mxu0 0.0
    %7947 = vmatprep.subr.mxu0 0.0
    %7948 = vmatpush1.msra.mxu0 0.0
    %7949 = vmatprep.subr.mxu0 0.0
    %7950 = vmatpush1.msra.mxu0 0.0
    %7951 = vmatprep.subr.mxu0 0.0
    %7952 = vmatpush1.msra.mxu0 0.0
    %7953 = vmatprep.subr.mxu0 0.0
    %7954 = vmatpush1.msra.mxu0 %v1179
    %7955 = vmatprep.subr.mxu0 0.0
    %7956 = vmatpush1.msra.mxu0 %v1178
    %7957 = vmatprep.subr.mxu0 0.0
    %7958 = vmatpush1.msra.mxu0 %v1177
    %7959 = vmatprep.subr.mxu0 0.0
    %7960 = vmatpush1.msra.mxu0 %v1176
    %7961 = vmatprep.subr.mxu0 0.0
    %7962 = vmatpush2.msra.mxu0 0.0
    %7963 = vmatprep.subr.mxu0 0.0
    %7964 = vmatpush2.msra.mxu0 0.0
    %7965 = vmatprep.subr.mxu0 0.0
    %7966 = vmatpush2.msra.mxu0 0.0
    %7967 = vmatprep.subr.mxu0 0.0
    %7968 = vmatpush2.msra.mxu0 0.0
    %7969 = vmatprep.subr.mxu0 0.0
    %7970 = vmatpush2.msra.mxu0 0.0
    %7971 = vmatprep.subr.mxu0 0.0
    %7972 = vmatpush2.msra.mxu0 0.0
    %7973 = vmatprep.subr.mxu0 0.0
    %7974 = vmatpush2.msra.mxu0 0.0
    %7975 = vmatprep.subr.mxu0 0.0
    %7976 = vmatpush2.msra.mxu0 0.0
    %7977 = vmatprep.subr.mxu0 0.0
    %7978 = vmatpush2.msra.mxu0 0.0
    %7979 = vmatprep.subr.mxu0 0.0
    %7980 = vmatpush2.msra.mxu0 0.0
    %7981 = vmatprep.subr.mxu0 0.0
    %7982 = vmatpush2.msra.mxu0 0.0
    %7983 = vmatprep.subr.mxu0 0.0
    %7984 = vmatpush2.msra.mxu0 0.0
    %7985 = vmatprep.subr.mxu0 0.0
    %7986 = vmatpush2.msra.mxu0 0.0
    %7987 = vmatprep.subr.mxu0 0.0
    %7988 = vmatpush2.msra.mxu0 0.0
    %7989 = vmatprep.subr.mxu0 0.0
    %7990 = vmatpush2.msra.mxu0 0.0
    %7991 = vmatprep.subr.mxu0 0.0
    %7992 = vmatpush2.msra.mxu0 0.0
    %7993 = vmatprep.mubr.f32.mxu0 0.0
    %7994 = vmatmul.mubr.f32.gmra.mxu0 %v7927
    %v7995 = vpop.f32.mrf.mxu0
    %v7996 = vadd.f32 0.0, %v7995
    %v7997 = vpop.f32.mrf.mxu0
    %7998 = vdwg.mxu0
    %v7999 = vadd.f32 %v7925, %v7996
    %v8000 = vrot.slane %v3291, 5
    %v8001 = vsel %vm1293, %v8000, 0
    %8003 = vmatprep.subr.mxu0 0.0
    %8004 = vmatpush1.msra.mxu0 0.0
    %8005 = vmatprep.subr.mxu0 0.0
    %8006 = vmatpush1.msra.mxu0 0.0
    %8007 = vmatprep.subr.mxu0 0.0
    %8008 = vmatpush1.msra.mxu0 0.0
    %8009 = vmatprep.subr.mxu0 0.0
    %8010 = vmatpush1.msra.mxu0 0.0
    %8011 = vmatprep.subr.mxu0 0.0
    %8012 = vmatpush1.msra.mxu0 0.0
    %8013 = vmatprep.subr.mxu0 0.0
    %8014 = vmatpush1.msra.mxu0 0.0
    %8015 = vmatprep.subr.mxu0 0.0
    %8016 = vmatpush1.msra.mxu0 0.0
    %8017 = vmatprep.subr.mxu0 0.0
    %8018 = vmatpush1.msra.mxu0 0.0
    %8019 = vmatprep.subr.mxu0 0.0
    %8020 = vmatpush1.msra.mxu0 0.0
    %8021 = vmatprep.subr.mxu0 0.0
    %8022 = vmatpush1.msra.mxu0 0.0
    %8023 = vmatprep.subr.mxu0 0.0
    %8024 = vmatpush1.msra.mxu0 0.0
    %8025 = vmatprep.subr.mxu0 0.0
    %8026 = vmatpush1.msra.mxu0 0.0
    %8027 = vmatprep.subr.mxu0 0.0
    %8028 = vmatpush1.msra.mxu0 %v1183
    %8029 = vmatprep.subr.mxu0 0.0
    %8030 = vmatpush1.msra.mxu0 %v1182
    %8031 = vmatprep.subr.mxu0 0.0
    %8032 = vmatpush1.msra.mxu0 %v1181
    %8033 = vmatprep.subr.mxu0 0.0
    %8034 = vmatpush1.msra.mxu0 %v1180
    %8035 = vmatprep.subr.mxu0 0.0
    %8036 = vmatpush2.msra.mxu0 0.0
    %8037 = vmatprep.subr.mxu0 0.0
    %8038 = vmatpush2.msra.mxu0 0.0
    %8039 = vmatprep.subr.mxu0 0.0
    %8040 = vmatpush2.msra.mxu0 0.0
    %8041 = vmatprep.subr.mxu0 0.0
    %8042 = vmatpush2.msra.mxu0 0.0
    %8043 = vmatprep.subr.mxu0 0.0
    %8044 = vmatpush2.msra.mxu0 0.0
    %8045 = vmatprep.subr.mxu0 0.0
    %8046 = vmatpush2.msra.mxu0 0.0
    %8047 = vmatprep.subr.mxu0 0.0
    %8048 = vmatpush2.msra.mxu0 0.0
    %8049 = vmatprep.subr.mxu0 0.0
    %8050 = vmatpush2.msra.mxu0 0.0
    %8051 = vmatprep.subr.mxu0 0.0
    %8052 = vmatpush2.msra.mxu0 0.0
    %8053 = vmatprep.subr.mxu0 0.0
    %8054 = vmatpush2.msra.mxu0 0.0
    %8055 = vmatprep.subr.mxu0 0.0
    %8056 = vmatpush2.msra.mxu0 0.0
    %8057 = vmatprep.subr.mxu0 0.0
    %8058 = vmatpush2.msra.mxu0 0.0
    %8059 = vmatprep.subr.mxu0 0.0
    %8060 = vmatpush2.msra.mxu0 0.0
    %8061 = vmatprep.subr.mxu0 0.0
    %8062 = vmatpush2.msra.mxu0 0.0
    %8063 = vmatprep.subr.mxu0 0.0
    %8064 = vmatpush2.msra.mxu0 0.0
    %8065 = vmatprep.subr.mxu0 0.0
    %8066 = vmatpush2.msra.mxu0 0.0
    %8067 = vmatprep.mubr.f32.mxu0 0.0
    %8068 = vmatmul.mubr.f32.gmra.mxu0 %v8001
    %v8069 = vpop.f32.mrf.mxu0
    %v8070 = vadd.f32 0.0, %v8069
    %v8071 = vpop.f32.mrf.mxu0
    %8072 = vdwg.mxu0
    %v8073 = vadd.f32 %v7999, %v8070
    %v8074 = vrot.slane %v3291, 6
    %v8075 = vsel %vm1293, %v8074, 0
    %8077 = vmatprep.subr.mxu0 0.0
    %8078 = vmatpush1.msra.mxu0 0.0
    %8079 = vmatprep.subr.mxu0 0.0
    %8080 = vmatpush1.msra.mxu0 0.0
    %8081 = vmatprep.subr.mxu0 0.0
    %8082 = vmatpush1.msra.mxu0 0.0
    %8083 = vmatprep.subr.mxu0 0.0
    %8084 = vmatpush1.msra.mxu0 0.0
    %8085 = vmatprep.subr.mxu0 0.0
    %8086 = vmatpush1.msra.mxu0 0.0
    %8087 = vmatprep.subr.mxu0 0.0
    %8088 = vmatpush1.msra.mxu0 0.0
    %8089 = vmatprep.subr.mxu0 0.0
    %8090 = vmatpush1.msra.mxu0 0.0
    %8091 = vmatprep.subr.mxu0 0.0
    %8092 = vmatpush1.msra.mxu0 0.0
    %8093 = vmatprep.subr.mxu0 0.0
    %8094 = vmatpush1.msra.mxu0 0.0
    %8095 = vmatprep.subr.mxu0 0.0
    %8096 = vmatpush1.msra.mxu0 0.0
    %8097 = vmatprep.subr.mxu0 0.0
    %8098 = vmatpush1.msra.mxu0 0.0
    %8099 = vmatprep.subr.mxu0 0.0
    %8100 = vmatpush1.msra.mxu0 0.0
    %8101 = vmatprep.subr.mxu0 0.0
    %8102 = vmatpush1.msra.mxu0 %v1187
    %8103 = vmatprep.subr.mxu0 0.0
    %8104 = vmatpush1.msra.mxu0 %v1186
    %8105 = vmatprep.subr.mxu0 0.0
    %8106 = vmatpush1.msra.mxu0 %v1185
    %8107 = vmatprep.subr.mxu0 0.0
    %8108 = vmatpush1.msra.mxu0 %v1184
    %8109 = vmatprep.subr.mxu0 0.0
    %8110 = vmatpush2.msra.mxu0 0.0
    %8111 = vmatprep.subr.mxu0 0.0
    %8112 = vmatpush2.msra.mxu0 0.0
    %8113 = vmatprep.subr.mxu0 0.0
    %8114 = vmatpush2.msra.mxu0 0.0
    %8115 = vmatprep.subr.mxu0 0.0
    %8116 = vmatpush2.msra.mxu0 0.0
    %8117 = vmatprep.subr.mxu0 0.0
    %8118 = vmatpush2.msra.mxu0 0.0
    %8119 = vmatprep.subr.mxu0 0.0
    %8120 = vmatpush2.msra.mxu0 0.0
    %8121 = vmatprep.subr.mxu0 0.0
    %8122 = vmatpush2.msra.mxu0 0.0
    %8123 = vmatprep.subr.mxu0 0.0
    %8124 = vmatpush2.msra.mxu0 0.0
    %8125 = vmatprep.subr.mxu0 0.0
    %8126 = vmatpush2.msra.mxu0 0.0
    %8127 = vmatprep.subr.mxu0 0.0
    %8128 = vmatpush2.msra.mxu0 0.0
    %8129 = vmatprep.subr.mxu0 0.0
    %8130 = vmatpush2.msra.mxu0 0.0
    %8131 = vmatprep.subr.mxu0 0.0
    %8132 = vmatpush2.msra.mxu0 0.0
    %8133 = vmatprep.subr.mxu0 0.0
    %8134 = vmatpush2.msra.mxu0 0.0
    %8135 = vmatprep.subr.mxu0 0.0
    %8136 = vmatpush2.msra.mxu0 0.0
    %8137 = vmatprep.subr.mxu0 0.0
    %8138 = vmatpush2.msra.mxu0 0.0
    %8139 = vmatprep.subr.mxu0 0.0
    %8140 = vmatpush2.msra.mxu0 0.0
    %8141 = vmatprep.mubr.f32.mxu0 0.0
    %8142 = vmatmul.mubr.f32.gmra.mxu0 %v8075
    %v8143 = vpop.f32.mrf.mxu0
    %v8144 = vadd.f32 0.0, %v8143
    %v8145 = vpop.f32.mrf.mxu0
    %8146 = vdwg.mxu0
    %v8147 = vadd.f32 %v8073, %v8144
    %v8148 = vrot.slane %v3291, 7
    %v8149 = vsel %vm1293, %v8148, 0
    %8151 = vmatprep.subr.mxu0 0.0
    %8152 = vmatpush1.msra.mxu0 0.0
    %8153 = vmatprep.subr.mxu0 0.0
    %8154 = vmatpush1.msra.mxu0 0.0
    %8155 = vmatprep.subr.mxu0 0.0
    %8156 = vmatpush1.msra.mxu0 0.0
    %8157 = vmatprep.subr.mxu0 0.0
    %8158 = vmatpush1.msra.mxu0 0.0
    %8159 = vmatprep.subr.mxu0 0.0
    %8160 = vmatpush1.msra.mxu0 0.0
    %8161 = vmatprep.subr.mxu0 0.0
    %8162 = vmatpush1.msra.mxu0 0.0
    %8163 = vmatprep.subr.mxu0 0.0
    %8164 = vmatpush1.msra.mxu0 0.0
    %8165 = vmatprep.subr.mxu0 0.0
    %8166 = vmatpush1.msra.mxu0 0.0
    %8167 = vmatprep.subr.mxu0 0.0
    %8168 = vmatpush1.msra.mxu0 0.0
    %8169 = vmatprep.subr.mxu0 0.0
    %8170 = vmatpush1.msra.mxu0 0.0
    %8171 = vmatprep.subr.mxu0 0.0
    %8172 = vmatpush1.msra.mxu0 0.0
    %8173 = vmatprep.subr.mxu0 0.0
    %8174 = vmatpush1.msra.mxu0 0.0
    %8175 = vmatprep.subr.mxu0 0.0
    %8176 = vmatpush1.msra.mxu0 %v1191
    %8177 = vmatprep.subr.mxu0 0.0
    %8178 = vmatpush1.msra.mxu0 %v1190
    %8179 = vmatprep.subr.mxu0 0.0
    %8180 = vmatpush1.msra.mxu0 %v1189
    %8181 = vmatprep.subr.mxu0 0.0
    %8182 = vmatpush1.msra.mxu0 %v1188
    %8183 = vmatprep.subr.mxu0 0.0
    %8184 = vmatpush2.msra.mxu0 0.0
    %8185 = vmatprep.subr.mxu0 0.0
    %8186 = vmatpush2.msra.mxu0 0.0
    %8187 = vmatprep.subr.mxu0 0.0
    %8188 = vmatpush2.msra.mxu0 0.0
    %8189 = vmatprep.subr.mxu0 0.0
    %8190 = vmatpush2.msra.mxu0 0.0
    %8191 = vmatprep.subr.mxu0 0.0
    %8192 = vmatpush2.msra.mxu0 0.0
    %8193 = vmatprep.subr.mxu0 0.0
    %8194 = vmatpush2.msra.mxu0 0.0
    %8195 = vmatprep.subr.mxu0 0.0
    %8196 = vmatpush2.msra.mxu0 0.0
    %8197 = vmatprep.subr.mxu0 0.0
    %8198 = vmatpush2.msra.mxu0 0.0
    %8199 = vmatprep.subr.mxu0 0.0
    %8200 = vmatpush2.msra.mxu0 0.0
    %8201 = vmatprep.subr.mxu0 0.0
    %8202 = vmatpush2.msra.mxu0 0.0
    %8203 = vmatprep.subr.mxu0 0.0
    %8204 = vmatpush2.msra.mxu0 0.0
    %8205 = vmatprep.subr.mxu0 0.0
    %8206 = vmatpush2.msra.mxu0 0.0
    %8207 = vmatprep.subr.mxu0 0.0
    %8208 = vmatpush2.msra.mxu0 0.0
    %8209 = vmatprep.subr.mxu0 0.0
    %8210 = vmatpush2.msra.mxu0 0.0
    %8211 = vmatprep.subr.mxu0 0.0
    %8212 = vmatpush2.msra.mxu0 0.0
    %8213 = vmatprep.subr.mxu0 0.0
    %8214 = vmatpush2.msra.mxu0 0.0
    %8215 = vmatprep.mubr.f32.mxu0 0.0
    %8216 = vmatmul.mubr.f32.gmra.mxu0 %v8149
    %v8217 = vpop.f32.mrf.mxu0
    %v8218 = vadd.f32 0.0, %v8217
    %v8219 = vpop.f32.mrf.mxu0
    %8220 = vdwg.mxu0
    %v8221 = vadd.f32 %v8147, %v8218
    %8222 = vst [vmem:[#allocation83 + $0x1] sm:$0x1] %v8221
    // Predicated region
    $region562: #{_lambda_.1} parent=1 // pred_check
      _
    $region563: #{_lambda_.1} parent=1 // pred_check_branch
      %8224 = sbr.rel (0) target = $region565
    $region564: #{_lambda_.1} parent=1 // pred_region
      _
    $region565: #{_lambda_.1} parent=1 // pred_fallthru
      _
    // Predicated region
    $region566: #{_lambda_.1} parent=1 // pred_check
      _
    $region567: #{_lambda_.1} parent=1 // pred_check_branch
      %8226 = sbr.rel (0) target = $region569
    $region568: #{_lambda_.1} parent=1 // pred_region
      %s8228 = ssub.s32 32, 32
      %8229 = vsyncadd [#allocation4], %s8228
      %s8231 = sshll.u32 [#allocation83], 4
      %s8232 = int_to_ptr.vmem [resolvable:$true] %s8231
      %8234 = dma.vmem_to_hbm [thread:$0]  %s8232, 32, %s177, [#allocation4]
    $region569: #{_lambda_.1} parent=1 // pred_fallthru
      _
    // Predicated region
    $region570: #{_lambda_.1} parent=1 // pred_check
      _
    $region571: #{_lambda_.1} parent=1 // pred_check_branch
      %8236 = sbr.rel (0) target = $region573
    $region572: #{_lambda_.1} parent=1 // pred_region
      %s8238 = ssub.s32 256, 256
      %8239 = vsyncadd [#allocation85], %s8238
      %s8240 = sshll.u32 [#allocation84], 4
      %s8241 = int_to_ptr.vmem [resolvable:$true] %s8240
      %8246 = dma.vmem_to_hbm [thread:$0]  %s8241, 256, %s179, [#allocation85], 128, 128, 8
    $region573: #{_lambda_.1} parent=1 // pred_fallthru
      _
    // Predicated region
    $region574: #{_lambda_.1} parent=1 // pred_check
      _
    $region575: #{_lambda_.1} parent=1 // pred_check_branch
      %8248 = sbr.rel (0) target = $region577
    $region576: #{_lambda_.1} parent=1 // pred_region
      _
    $region577: #{_lambda_.1} parent=1 // pred_fallthru
      _
    // Predicated region
    $region578: #{_lambda_.1} parent=1 // pred_check
      _
    $region579: #{_lambda_.1} parent=1 // pred_check_branch
      %8250 = sbr.rel (0) target = $region581
    $region580: #{_lambda_.1} parent=1 // pred_region
      %8251 = dma.done [#allocation4], 32
    $region581: #{_lambda_.1} parent=1 // pred_fallthru
      _
    // Predicated region
    $region582: #{_lambda_.1} parent=1 // pred_check
      _
    $region583: #{_lambda_.1} parent=1 // pred_check_branch
      %8253 = sbr.rel (0) target = $region585
    $region584: #{_lambda_.1} parent=1 // pred_region
      %8254 = dma.done [#allocation85], 256
    $region585: #{_lambda_.1} parent=1 // pred_fallthru
      _
    %8255 = vsyncpa [#allocation3], 1
    %8256 = vsyncpa [#allocation6], 1
    %8257 = vsyncpa [#allocation9], 1
    %8258 = vsyncpa [#allocation12], 1
    %8259 = vsyncpa [#allocation15], 1
    %8260 = vsyncpa [#allocation18], 1
    %8261 = vsyncpa [#allocation21], 1
    %8262 = vsyncpa [#allocation24], 1
    %8263 = vsyncpa [#allocation27], 1
    %8264 = vsyncpa [#allocation30], 1
    %8265 = vsyncpa [#allocation33], 1
    %8266 = vsyncpa [#allocation36], 1
    %8267 = vsyncpa [#allocation39], 1
    %8268 = vsyncpa [#allocation42], 1
    %8269 = vsyncpa [#allocation45], 1
    %8270 = vsyncpa [#allocation48], 1
    %8271 = vsyncpa [#allocation51], 1
    %8272 = vsyncpa [#allocation54], 1
    %8273 = vsyncpa [#allocation57], 1
    %8274 = vsyncpa [#allocation60], 1
    %8275 = vsyncpa [#allocation63], 1
    %8276 = vsyncpa [#allocation66], 1
    %8277 = vsyncpa [#allocation69], 1
    %8278 = vsyncpa [#allocation72], 1
    %8279 = vsyncpa [#allocation75], 1
    %8280 = vsyncpa [#allocation78], 1
    %8281 = vsyncpa [#allocation81], 1
    %8282 = vsyncpa [#allocation4], 1
    %8283 = vsyncpa [#allocation85], 1

</llo_original>
